<compile_context>
chip_gen: v7x
topology: tpu7x:2x2x1
jax: 0.10.0
libtpu: 0.0.40
codegen_flags: <defaults>
</compile_context>

<pallas_src>
import jax
import jax.numpy as jnp
from jax.experimental import pallas as pl
from jax.experimental.pallas import tpu as pltpu


# ---------------------------------------------------------------------------
# Kernel: one (batch, row-tile) of the output per grid step.
# ---------------------------------------------------------------------------
def _sac_kernel(p7_ref, f_ref, watt_ref, batt_ref, w1_ref, b1_ref,
                w2_ref, b2_ref, out_ref, mid_buf):
    TH, W, C = out_ref.shape
    HA = TH + 2                      # attention / mid rows incl. 1-row halo
    t = pl.program_id(1)

    # Pre-im2col'd 7x7 xyz patches for the HA rows of this tile (lane-dense).
    p7 = p7_ref[...].reshape(HA * W, 49 * 3)                        # bf16

    # Attention (per 3x3 tap) + sigmoid + gating + 1x1 conv, fused as 9
    # accumulated matmuls; no (HA*W, 9C) tensor is ever materialized.
    acc1 = jnp.zeros((HA * W, C), jnp.float32) + b1_ref[...]
    for k in range(9):
        ki, kj = divmod(k, 3)
        logits = jnp.dot(p7, watt_ref[k],
                         preferred_element_type=jnp.float32) + batt_ref[k]
        att_k = pl.reciprocal(1.0 + jnp.exp(-logits), approx=True)  # sigmoid
        f_k = f_ref[ki:ki + HA, kj:kj + W, :].reshape(HA * W, C)    # f32
        g_k = (att_k * f_k).astype(jnp.bfloat16)
        acc1 = acc1 + jnp.dot(g_k, w1_ref[k],
                              preferred_element_type=jnp.float32)
    mid = jnp.maximum(acc1, 0.0).astype(jnp.bfloat16).reshape(HA, W, C)

    # Column-padded mid (one wide interior store + two 1-col zero stores).
    mid_buf[:, 1:W + 1, :] = mid
    zcol = jnp.zeros((HA, 1, C), dtype=mid_buf.dtype)
    mid_buf[:, 0:1, :] = zcol
    mid_buf[:, W + 1:W + 2, :] = zcol

    # 3x3-conv zero padding of the post-ReLU mid at the image top / bottom
    # (matches the reference, which pads mid with zeros, not conv-of-padding).
    @pl.when(t == 0)
    def _():
        mid_buf[0:1, :, :] = jnp.zeros((1, W + 2, C), dtype=mid_buf.dtype)

    @pl.when(t == pl.num_programs(1) - 1)
    def _():
        mid_buf[HA - 1:HA, :, :] = jnp.zeros((1, W + 2, C),
                                             dtype=mid_buf.dtype)

    # 3x3 conv (C -> C) as 9 accumulated matmuls over shifted reads of mid_buf.
    acc2 = jnp.zeros((TH * W, C), jnp.float32) + b2_ref[...]
    for k in range(9):
        ki, kj = divmod(k, 3)
        m_k = mid_buf[ki:ki + TH, kj:kj + W, :].reshape(TH * W, C)
        acc2 = acc2 + jnp.dot(m_k, w2_ref[k],
                              preferred_element_type=jnp.float32)
    y = jnp.maximum(acc2, 0.0).reshape(TH, W, C)

    # Residual add on the exact f32 feature (interior of the haloed window).
    out_ref[...] = (y + f_ref[2:2 + TH, 1:1 + W, :]).astype(out_ref.dtype)


# ---------------------------------------------------------------------------
# VMEM accounting / tiling heuristics (generation aware)
# ---------------------------------------------------------------------------
def _round_up(x, m):
    return (x + m - 1) // m * m


def _vmem_bytes_estimate(TH, W, C):
    """Padded VMEM footprint: pipeline buffers, scratch AND live temporaries."""
    HA = TH + 2
    cL = _round_up(C, 128)

    def tiled(shape, itemsize, sublane):
        lead = 1
        for d in shape[:-2]:
            lead *= d
        return (lead * _round_up(shape[-2], sublane)
                * _round_up(shape[-1], 128) * itemsize)

    total = 0
    # double-buffered auto-pipelined blocks
    total += 2 * tiled((HA, W, 49 * 3), 2, 16)        # 7x7 im2col window (bf16)
    total += 2 * tiled((TH + 4, W + 2, C), 4, 8)      # f32 feature window
    total += 2 * tiled((TH, W, C), 4, 8)              # f32 output block
    # persistent scratch
    total += tiled((HA, W + 2, C), 2, 16)             # column-padded mid (bf16)
    # live compiler temporaries (reshaped patches, per-tap logits/att/gate,
    # the two f32 accumulators and the mid value)
    total += tiled((HA * W, 49 * 3), 2, 16)
    total += 8 * _round_up(HA * W, 8) * cL * 4
    total += _round_up(TH * W, 8) * cL * 4
    # weights (double-buffered, small)
    total += 2 * (9 * tiled((49 * 3, C), 2, 16) + 2 * 9 * tiled((C, C), 2, 16)
                  + 3 * tiled((8, C), 4, 8))
    return total


def _pick_tile_h(H, W, C, budget_bytes):
    best = 1
    for th in range(1, H + 1):
        if H % th == 0 and _vmem_bytes_estimate(th, W, C) <= budget_bytes:
            best = th
    return best


# ---------------------------------------------------------------------------
# Wrapper
# ---------------------------------------------------------------------------
def sac_block_pallas_nhwc(new_xyz_nhwc, feat_nhwc, kernel_params, tile_h=None):
    """SACBlock forward on NHWC inputs; returns the fused NHWC feature map."""
    N, H, W, C = feat_nhwc.shape
    watt, batt, w1, b1, w2, b2 = kernel_params

    try:
        vmem_cap = int(pltpu.get_tpu_info().vmem_capacity_bytes)
    except Exception:
        vmem_cap = 64 << 20                           # conservative default

    TH = (_pick_tile_h(H, W, C, budget_bytes=vmem_cap // 3)
          if tile_h is None else tile_h)
    assert H % TH == 0, "tile_h must divide H"
    nT = H // TH
    HA = TH + 2

    # --- lane-dense 7x7 im2col of new_xyz, built once by XLA (bf16) ---------
    xp = jnp.pad(new_xyz_nhwc,
                 ((0, 0), (3, 3), (3, 3), (0, 0))).astype(jnp.bfloat16)
    p7 = jnp.concatenate([xp[:, di:di + H, dj:dj + W, :]
                          for di in range(7) for dj in range(7)], axis=-1)
    p7 = jnp.pad(p7, ((0, 0), (1, 1), (0, 0), (0, 0)))       # 1-row halo pad
    # non-overlapping pre-haloed windows -> plain auto-pipelined BlockSpecs
    p7_w = jnp.stack([p7[:, t * TH:t * TH + HA] for t in range(nT)], axis=1)

    # --- single f32 haloed feature window: feeds unfold AND residual --------
    fp = jnp.pad(feat_nhwc, ((0, 0), (2, 2), (1, 1), (0, 0)))
    f_w = jnp.stack([fp[:, t * TH:t * TH + TH + 4] for t in range(nT)], axis=1)

    est = _vmem_bytes_estimate(TH, W, C)
    vmem_limit = int(min(max(2 * est, 32 << 20), int(0.75 * vmem_cap)))

    flops = 2 * N * nT * (HA * W * 147 * 9 * C        # 7x7 attention conv
                          + HA * W * 9 * C * C        # gated 1x1 conv
                          + TH * W * 9 * C * C)       # 3x3 conv
    transcendentals = N * nT * HA * W * 9 * C
    bytes_accessed = (p7_w.size * 2 + f_w.size * 4 + N * H * W * C * 4
                      + (watt.size + w1.size + w2.size) * 2
                      + (batt.size + b1.size + b2.size) * 4)

    grid_spec = pltpu.PrefetchScalarGridSpec(
        num_scalar_prefetch=0,
        grid=(N, nT),
        in_specs=[
            pl.BlockSpec((None, None, HA, W, 49 * 3),
                         lambda n, t: (n, t, 0, 0, 0)),           # 7x7 patches
            pl.BlockSpec((None, None, TH + 4, W + 2, C),
                         lambda n, t: (n, t, 0, 0, 0)),           # f32 feature
            pl.BlockSpec((9, 49 * 3, C), lambda n, t: (0, 0, 0)),  # watt (per tap)
            pl.BlockSpec((9, 1, C), lambda n, t: (0, 0, 0)),       # batt
            pl.BlockSpec((9, C, C), lambda n, t: (0, 0, 0)),       # w1 (per tap)
            pl.BlockSpec((1, C), lambda n, t: (0, 0)),             # b1
            pl.BlockSpec((9, C, C), lambda n, t: (0, 0, 0)),       # w2 (per tap)
            pl.BlockSpec((1, C), lambda n, t: (0, 0)),             # b2
        ],
        out_specs=pl.BlockSpec((None, TH, W, C), lambda n, t: (n, t, 0, 0)),
        scratch_shapes=[
            pltpu.VMEM((HA, W + 2, C), jnp.bfloat16),   # column-padded mid
        ],
    )
    return pl.pallas_call(
        _sac_kernel,
        out_shape=jax.ShapeDtypeStruct((N, H, W, C), feat_nhwc.dtype),
        grid_spec=grid_spec,
        compiler_params=pltpu.CompilerParams(
            dimension_semantics=("parallel", "parallel"),
            vmem_limit_bytes=vmem_limit),
        cost_estimate=pl.CostEstimate(flops=int(flops),
                                      transcendentals=int(transcendentals),
                                      bytes_accessed=int(bytes_accessed)),
    )(p7_w, f_w, watt, batt, w1, b1, w2, b2)


def sac_block_forward(xyz, new_xyz, feature, kernel_params, tile_h=None):
    """NCHW (PyTorch-convention) wrapper. At model scale, call the NHWC entry
    point directly so the layout change happens once at the model boundary."""
    new_xyz_nhwc = jnp.transpose(new_xyz, (0, 2, 3, 1))
    feat_nhwc = jnp.transpose(feature, (0, 2, 3, 1))
    fuse_nhwc = sac_block_pallas_nhwc(new_xyz_nhwc, feat_nhwc, kernel_params,
                                      tile_h=tile_h)
    fuse = jnp.transpose(fuse_nhwc, (0, 3, 1, 2))
    return xyz, new_xyz, fuse


# ---------------------------------------------------------------------------
# Parameter setup (deterministic) + BatchNorm folding + kernel-layout weights
# ---------------------------------------------------------------------------
def make_params(key, inplanes):
    C = inplanes
    C9 = 9 * C
    eps = 1e-5
    ks = jax.random.split(key, 18)

    def conv_init(kw, kb, out_c, in_c, kh, kwid):
        bound = 1.0 / jnp.sqrt(in_c * kh * kwid)
        w = jax.random.uniform(kw, (out_c, in_c, kh, kwid), jnp.float32,
                               -bound, bound)
        b = jax.random.uniform(kb, (out_c,), jnp.float32, -bound, bound)
        return w, b

    def bn_init(kg, kb, km, kv, c):
        gamma = 1.0 + 0.1 * jax.random.normal(kg, (c,), jnp.float32)
        beta = 0.1 * jax.random.normal(kb, (c,), jnp.float32)
        rmean = 0.1 * jax.random.normal(km, (c,), jnp.float32)
        rvar = jnp.abs(1.0 + 0.1 * jax.random.normal(kv, (c,), jnp.float32))
        return gamma, beta, rmean, rvar

    def fold(w, b, bn):
        gamma, beta, rmean, rvar = bn
        s = gamma / jnp.sqrt(rvar + eps)
        return w * s[:, None, None, None], (b - rmean) * s + beta

    # attention_x: Conv2d(3, 9C, 7, pad=3) + BN(9C)
    w_att, b_att = conv_init(ks[0], ks[1], C9, 3, 7, 7)
    w_att, b_att = fold(w_att, b_att, bn_init(ks[2], ks[3], ks[4], ks[5], C9))
    # position_mlp_2[0]: Conv2d(9C, C, 1) + BN(C)
    w1, b1 = conv_init(ks[6], ks[7], C, C9, 1, 1)
    w1, b1 = fold(w1, b1, bn_init(ks[8], ks[9], ks[10], ks[11], C))
    # position_mlp_2[3]: Conv2d(C, C, 3, pad=1) + BN(C)
    w2, b2 = conv_init(ks[12], ks[13], C, C, 3, 3)
    w2, b2 = fold(w2, b2, bn_init(ks[14], ks[15], ks[16], ks[17], C))

    pt_params = dict(w_att=w_att, b_att=b_att, w1=w1, b1=b1, w2=w2, b2=b2)

    # --- convert to per-tap kernel layouts ----------------------------------
    # PyTorch unfold orders the 9C axis as d = c*9 + k (k = ki*3 + kj); the
    # kernel is decomposed per tap k, with a (*, C) slab for each tap.
    # watt_k[k, (di*7+dj)*3 + cin, c] = w_att[c*9+k, cin, di, dj]
    tmp = jnp.transpose(w_att, (2, 3, 1, 0)).reshape(49 * 3, C9)
    watt_k = jnp.transpose(tmp.reshape(49 * 3, C, 9), (2, 0, 1))
    watt_k = watt_k.astype(jnp.bfloat16)                       # (9, 147, C)
    batt_k = jnp.transpose(b_att.reshape(C, 9), (1, 0)).reshape(9, 1, C)
    # w1_k[k, cin, cout] = w1[cout, cin*9 + k]
    w1_k = jnp.transpose(w1[:, :, 0, 0].reshape(C, C, 9), (2, 1, 0))
    w1_k = w1_k.astype(jnp.bfloat16)                           # (9, C, C)
    b1_k = b1.reshape(1, C)
    # w2_k[k = ki*3+kj, cin, cout] = w2[cout, cin, ki, kj]
    w2_k = jnp.transpose(w2, (2, 3, 1, 0)).reshape(9, C, C)
    w2_k = w2_k.astype(jnp.bfloat16)                           # (9, C, C)
    b2_k = b2.reshape(1, C)

    kernel_params = (watt_k, batt_k, w1_k, b1_k, w2_k, b2_k)
    return pt_params, kernel_params


# ---------------------------------------------------------------------------
# Pure-JAX reference (NCHW, mirrors the PyTorch forward with folded BN, f32)
# ---------------------------------------------------------------------------
def reference_forward(new_xyz, feature, p):
    N, C, H, W = feature.shape
    dn = ('NCHW', 'OIHW', 'NCHW')
    att = jax.lax.conv_general_dilated(new_xyz, p['w_att'], (1, 1),
                                       [(3, 3), (3, 3)], dimension_numbers=dn)
    att = jax.nn.sigmoid(att + p['b_att'][None, :, None, None])

    fpad = jnp.pad(feature, ((0, 0), (0, 0), (1, 1), (1, 1)))
    patches = []
    for c in range(C):
        for ki in range(3):
            for kj in range(3):
                patches.append(fpad[:, c, ki:ki + H, kj:kj + W])
    unf = jnp.stack(patches, axis=1)            # (N, 9C, H, W), d = c*9 + k

    x = unf * att
    x = jax.lax.conv_general_dilated(x, p['w1'], (1, 1), [(0, 0), (0, 0)],
                                     dimension_numbers=dn)
    x = jnp.maximum(x + p['b1'][None, :, None, None], 0.0)
    x = jax.lax.conv_general_dilated(x, p['w2'], (1, 1), [(1, 1), (1, 1)],
                                     dimension_numbers=dn)
    x = jnp.maximum(x + p['b2'][None, :, None, None], 0.0)
    return x + feature


if __name__ == "__main__":
    N, C, H, W = 2, 4, 16, 16          # inplanes = 4
    key = jax.random.PRNGKey(0)
    kx, knx, kf, kp = jax.random.split(key, 4)

    xyz = jax.random.normal(kx, (N, 3, H, W), jnp.float32)
    new_xyz = jax.random.normal(knx, (N, 3, H, W), jnp.float32)
    feature = jax.random.normal(kf, (N, C, H, W), jnp.float32)

    pt_params, kernel_params = make_params(kp, C)

    # tile_h=8 -> two row tiles per image, exercising the halo/boundary path.
    xyz_o, new_xyz_o, fuse = sac_block_forward(xyz, new_xyz, feature,
                                               kernel_params, tile_h=8)
    fuse = jax.block_until_ready(fuse)

    ref = reference_forward(new_xyz, feature, pt_params)
    max_err = float(jnp.max(jnp.abs(fuse - ref)))
    # bf16 matmul operands with f32 accumulation -> loosened tolerance.
    assert max_err < 5e-2, f"mismatch vs reference: {max_err}"
    print("KERNEL_OK")
</pallas_src>

<mosaic_0001>
module attributes {stable_mosaic.version = 11 : i64} {
  func.func @_sac_kernel(%arg0: i32, %arg1: i32, %arg2: memref<1x1x10x16x147xbf16, #tpu.memory_space<vmem>>, %arg3: memref<1x1x12x18x4xf32, #tpu.memory_space<vmem>>, %arg4: memref<9x147x4xbf16, #tpu.memory_space<vmem>>, %arg5: memref<9x1x4xf32, #tpu.memory_space<vmem>>, %arg6: memref<9x4x4xbf16, #tpu.memory_space<vmem>>, %arg7: memref<1x4xf32, #tpu.memory_space<vmem>>, %arg8: memref<9x4x4xbf16, #tpu.memory_space<vmem>>, %arg9: memref<1x4xf32, #tpu.memory_space<vmem>>, %arg10: memref<1x8x16x4xf32, #tpu.memory_space<vmem>>, %arg11: memref<10x18x4xbf16, #tpu.memory_space<vmem>>) attributes {dimension_semantics = [#tpu.dimension_semantics<parallel>, #tpu.dimension_semantics<parallel>], iteration_bounds = array<i64: 2, 2>, scalar_prefetch = 0 : i64, scratch_operands = 1 : i64, tpu.core_type = #tpu.core_type<tc>, window_params = [{transform_indices = @transform_0, window_bounds = array<i64: 1, 1, 10, 16, 147>}, {transform_indices = @transform_1, window_bounds = array<i64: 1, 1, 12, 18, 4>}, {pipeline_mode = #tpu.pipeline_mode<synchronous>, transform_indices = @transform_2, window_bounds = array<i64: 9, 147, 4>}, {pipeline_mode = #tpu.pipeline_mode<synchronous>, transform_indices = @transform_3, window_bounds = array<i64: 9, 1, 4>}, {pipeline_mode = #tpu.pipeline_mode<synchronous>, transform_indices = @transform_4, window_bounds = array<i64: 9, 4, 4>}, {pipeline_mode = #tpu.pipeline_mode<synchronous>, transform_indices = @transform_5, window_bounds = array<i64: 1, 4>}, {pipeline_mode = #tpu.pipeline_mode<synchronous>, transform_indices = @transform_6, window_bounds = array<i64: 9, 4, 4>}, {pipeline_mode = #tpu.pipeline_mode<synchronous>, transform_indices = @transform_7, window_bounds = array<i64: 1, 4>}, {transform_indices = @transform_8, window_bounds = array<i64: 1, 8, 16, 4>}]} {
    %c0 = arith.constant 0 : index
    %c0_0 = arith.constant 0 : index
    %c0_1 = arith.constant 0 : index
    %c0_2 = arith.constant 0 : index
    %c0_3 = arith.constant 0 : index
    %0 = vector.load %arg2[%c0, %c0_0, %c0_1, %c0_2, %c0_3] : memref<1x1x10x16x147xbf16, #tpu.memory_space<vmem>>, vector<1x1x10x16x147xbf16>
    %1 = vector.shape_cast %0 : vector<1x1x10x16x147xbf16> to vector<10x16x147xbf16>
    %2 = vector.shape_cast %1 : vector<10x16x147xbf16> to vector<160x147xbf16>
    %cst = arith.constant 0.000000e+00 : f32
    %3 = vector.broadcast %cst : f32 to vector<160x4xf32>
    %c0_4 = arith.constant 0 : index
    %c0_5 = arith.constant 0 : index
    %4 = vector.load %arg7[%c0_4, %c0_5] : memref<1x4xf32, #tpu.memory_space<vmem>>, vector<1x4xf32>
    %5 = vector.broadcast %4 : vector<1x4xf32> to vector<160x4xf32>
    %6 = arith.addf %3, %5 : vector<160x4xf32>
    %c0_6 = arith.constant 0 : index
    %c0_7 = arith.constant 0 : index
    %c0_8 = arith.constant 0 : index
    %7 = vector.load %arg4[%c0_6, %c0_7, %c0_8] : memref<9x147x4xbf16, #tpu.memory_space<vmem>>, vector<1x147x4xbf16>
    %8 = vector.shape_cast %7 : vector<1x147x4xbf16> to vector<147x4xbf16>
    %cst_9 = arith.constant dense<0.000000e+00> : vector<160x4xf32>
    %9 = tpu.matmul %2, %8, %cst_9 {dimension_numbers = #tpu.dot_dimension_numbers<[1], [0], [0], [1], [0, 0, 1, 1], [], []>} : vector<160x147xbf16>, vector<147x4xbf16>, vector<160x4xf32> -> vector<160x4xf32>
    %c0_10 = arith.constant 0 : index
    %c0_11 = arith.constant 0 : index
    %c0_12 = arith.constant 0 : index
    %10 = vector.load %arg5[%c0_10, %c0_11, %c0_12] : memref<9x1x4xf32, #tpu.memory_space<vmem>>, vector<1x1x4xf32>
    %11 = vector.shape_cast %10 : vector<1x1x4xf32> to vector<1x4xf32>
    %12 = vector.broadcast %11 : vector<1x4xf32> to vector<160x4xf32>
    %13 = arith.addf %9, %12 : vector<160x4xf32>
    %cst_13 = arith.constant 0.000000e+00 : f32
    %14 = vector.broadcast %cst_13 : f32 to vector<160x4xf32>
    %15 = arith.subf %14, %13 : vector<160x4xf32>
    %16 = math.exp %15 : vector<160x4xf32>
    %cst_14 = arith.constant 1.000000e+00 : f32
    %17 = vector.broadcast %cst_14 : f32 to vector<160x4xf32>
    %18 = arith.addf %17, %16 : vector<160x4xf32>
    %19 = tpu.reciprocal %18 {approx = true} : vector<160x4xf32> -> vector<160x4xf32>
    %c0_15 = arith.constant 0 : index
    %c0_16 = arith.constant 0 : index
    %c0_17 = arith.constant 0 : index
    %c0_18 = arith.constant 0 : index
    %c0_19 = arith.constant 0 : index
    %20 = vector.load %arg3[%c0_15, %c0_16, %c0_17, %c0_18, %c0_19] : memref<1x1x12x18x4xf32, #tpu.memory_space<vmem>>, vector<1x1x10x16x4xf32>
    %21 = vector.shape_cast %20 : vector<1x1x10x16x4xf32> to vector<10x16x4xf32>
    %22 = vector.shape_cast %21 : vector<10x16x4xf32> to vector<160x4xf32>
    %23 = arith.mulf %19, %22 : vector<160x4xf32>
    %24 = arith.truncf %23 : vector<160x4xf32> to vector<160x4xbf16>
    %c0_20 = arith.constant 0 : index
    %c0_21 = arith.constant 0 : index
    %c0_22 = arith.constant 0 : index
    %25 = vector.load %arg6[%c0_20, %c0_21, %c0_22] : memref<9x4x4xbf16, #tpu.memory_space<vmem>>, vector<1x4x4xbf16>
    %26 = vector.shape_cast %25 : vector<1x4x4xbf16> to vector<4x4xbf16>
    %cst_23 = arith.constant dense<0.000000e+00> : vector<160x4xf32>
    %27 = tpu.matmul %24, %26, %cst_23 {dimension_numbers = #tpu.dot_dimension_numbers<[1], [0], [0], [1], [0, 0, 1, 1], [], []>} : vector<160x4xbf16>, vector<4x4xbf16>, vector<160x4xf32> -> vector<160x4xf32>
    %28 = arith.addf %6, %27 : vector<160x4xf32>
    %c1 = arith.constant 1 : index
    %c0_24 = arith.constant 0 : index
    %c0_25 = arith.constant 0 : index
    %29 = vector.load %arg4[%c1, %c0_24, %c0_25] : memref<9x147x4xbf16, #tpu.memory_space<vmem>>, vector<1x147x4xbf16>
    %30 = vector.shape_cast %29 : vector<1x147x4xbf16> to vector<147x4xbf16>
    %cst_26 = arith.constant dense<0.000000e+00> : vector<160x4xf32>
    %31 = tpu.matmul %2, %30, %cst_26 {dimension_numbers = #tpu.dot_dimension_numbers<[1], [0], [0], [1], [0, 0, 1, 1], [], []>} : vector<160x147xbf16>, vector<147x4xbf16>, vector<160x4xf32> -> vector<160x4xf32>
    %c1_27 = arith.constant 1 : index
    %c0_28 = arith.constant 0 : index
    %c0_29 = arith.constant 0 : index
    %32 = vector.load %arg5[%c1_27, %c0_28, %c0_29] : memref<9x1x4xf32, #tpu.memory_space<vmem>>, vector<1x1x4xf32>
    %33 = vector.shape_cast %32 : vector<1x1x4xf32> to vector<1x4xf32>
    %34 = vector.broadcast %33 : vector<1x4xf32> to vector<160x4xf32>
    %35 = arith.addf %31, %34 : vector<160x4xf32>
    %cst_30 = arith.constant 0.000000e+00 : f32
    %36 = vector.broadcast %cst_30 : f32 to vector<160x4xf32>
    %37 = arith.subf %36, %35 : vector<160x4xf32>
    %38 = math.exp %37 : vector<160x4xf32>
    %cst_31 = arith.constant 1.000000e+00 : f32
    %39 = vector.broadcast %cst_31 : f32 to vector<160x4xf32>
    %40 = arith.addf %39, %38 : vector<160x4xf32>
    %41 = tpu.reciprocal %40 {approx = true} : vector<160x4xf32> -> vector<160x4xf32>
    %c0_32 = arith.constant 0 : index
    %c0_33 = arith.constant 0 : index
    %c0_34 = arith.constant 0 : index
    %c1_35 = arith.constant 1 : index
    %c0_36 = arith.constant 0 : index
    %42 = vector.load %arg3[%c0_32, %c0_33, %c0_34, %c1_35, %c0_36] : memref<1x1x12x18x4xf32, #tpu.memory_space<vmem>>, vector<1x1x10x16x4xf32>
    %43 = vector.shape_cast %42 : vector<1x1x10x16x4xf32> to vector<10x16x4xf32>
    %44 = vector.shape_cast %43 : vector<10x16x4xf32> to vector<160x4xf32>
    %45 = arith.mulf %41, %44 : vector<160x4xf32>
    %46 = arith.truncf %45 : vector<160x4xf32> to vector<160x4xbf16>
    %c1_37 = arith.constant 1 : index
    %c0_38 = arith.constant 0 : index
    %c0_39 = arith.constant 0 : index
    %47 = vector.load %arg6[%c1_37, %c0_38, %c0_39] : memref<9x4x4xbf16, #tpu.memory_space<vmem>>, vector<1x4x4xbf16>
    %48 = vector.shape_cast %47 : vector<1x4x4xbf16> to vector<4x4xbf16>
    %cst_40 = arith.constant dense<0.000000e+00> : vector<160x4xf32>
    %49 = tpu.matmul %46, %48, %cst_40 {dimension_numbers = #tpu.dot_dimension_numbers<[1], [0], [0], [1], [0, 0, 1, 1], [], []>} : vector<160x4xbf16>, vector<4x4xbf16>, vector<160x4xf32> -> vector<160x4xf32>
    %50 = arith.addf %28, %49 : vector<160x4xf32>
    %c2 = arith.constant 2 : index
    %c0_41 = arith.constant 0 : index
    %c0_42 = arith.constant 0 : index
    %51 = vector.load %arg4[%c2, %c0_41, %c0_42] : memref<9x147x4xbf16, #tpu.memory_space<vmem>>, vector<1x147x4xbf16>
    %52 = vector.shape_cast %51 : vector<1x147x4xbf16> to vector<147x4xbf16>
    %cst_43 = arith.constant dense<0.000000e+00> : vector<160x4xf32>
    %53 = tpu.matmul %2, %52, %cst_43 {dimension_numbers = #tpu.dot_dimension_numbers<[1], [0], [0], [1], [0, 0, 1, 1], [], []>} : vector<160x147xbf16>, vector<147x4xbf16>, vector<160x4xf32> -> vector<160x4xf32>
    %c2_44 = arith.constant 2 : index
    %c0_45 = arith.constant 0 : index
    %c0_46 = arith.constant 0 : index
    %54 = vector.load %arg5[%c2_44, %c0_45, %c0_46] : memref<9x1x4xf32, #tpu.memory_space<vmem>>, vector<1x1x4xf32>
    %55 = vector.shape_cast %54 : vector<1x1x4xf32> to vector<1x4xf32>
    %56 = vector.broadcast %55 : vector<1x4xf32> to vector<160x4xf32>
    %57 = arith.addf %53, %56 : vector<160x4xf32>
    %cst_47 = arith.constant 0.000000e+00 : f32
    %58 = vector.broadcast %cst_47 : f32 to vector<160x4xf32>
    %59 = arith.subf %58, %57 : vector<160x4xf32>
    %60 = math.exp %59 : vector<160x4xf32>
    %cst_48 = arith.constant 1.000000e+00 : f32
    %61 = vector.broadcast %cst_48 : f32 to vector<160x4xf32>
    %62 = arith.addf %61, %60 : vector<160x4xf32>
    %63 = tpu.reciprocal %62 {approx = true} : vector<160x4xf32> -> vector<160x4xf32>
    %c0_49 = arith.constant 0 : index
    %c0_50 = arith.constant 0 : index
    %c0_51 = arith.constant 0 : index
    %c2_52 = arith.constant 2 : index
    %c0_53 = arith.constant 0 : index
    %64 = vector.load %arg3[%c0_49, %c0_50, %c0_51, %c2_52, %c0_53] : memref<1x1x12x18x4xf32, #tpu.memory_space<vmem>>, vector<1x1x10x16x4xf32>
    %65 = vector.shape_cast %64 : vector<1x1x10x16x4xf32> to vector<10x16x4xf32>
    %66 = vector.shape_cast %65 : vector<10x16x4xf32> to vector<160x4xf32>
    %67 = arith.mulf %63, %66 : vector<160x4xf32>
    %68 = arith.truncf %67 : vector<160x4xf32> to vector<160x4xbf16>
    %c2_54 = arith.constant 2 : index
    %c0_55 = arith.constant 0 : index
    %c0_56 = arith.constant 0 : index
    %69 = vector.load %arg6[%c2_54, %c0_55, %c0_56] : memref<9x4x4xbf16, #tpu.memory_space<vmem>>, vector<1x4x4xbf16>
    %70 = vector.shape_cast %69 : vector<1x4x4xbf16> to vector<4x4xbf16>
    %cst_57 = arith.constant dense<0.000000e+00> : vector<160x4xf32>
    %71 = tpu.matmul %68, %70, %cst_57 {dimension_numbers = #tpu.dot_dimension_numbers<[1], [0], [0], [1], [0, 0, 1, 1], [], []>} : vector<160x4xbf16>, vector<4x4xbf16>, vector<160x4xf32> -> vector<160x4xf32>
    %72 = arith.addf %50, %71 : vector<160x4xf32>
    %c3 = arith.constant 3 : index
    %c0_58 = arith.constant 0 : index
    %c0_59 = arith.constant 0 : index
    %73 = vector.load %arg4[%c3, %c0_58, %c0_59] : memref<9x147x4xbf16, #tpu.memory_space<vmem>>, vector<1x147x4xbf16>
    %74 = vector.shape_cast %73 : vector<1x147x4xbf16> to vector<147x4xbf16>
    %cst_60 = arith.constant dense<0.000000e+00> : vector<160x4xf32>
    %75 = tpu.matmul %2, %74, %cst_60 {dimension_numbers = #tpu.dot_dimension_numbers<[1], [0], [0], [1], [0, 0, 1, 1], [], []>} : vector<160x147xbf16>, vector<147x4xbf16>, vector<160x4xf32> -> vector<160x4xf32>
    %c3_61 = arith.constant 3 : index
    %c0_62 = arith.constant 0 : index
    %c0_63 = arith.constant 0 : index
    %76 = vector.load %arg5[%c3_61, %c0_62, %c0_63] : memref<9x1x4xf32, #tpu.memory_space<vmem>>, vector<1x1x4xf32>
    %77 = vector.shape_cast %76 : vector<1x1x4xf32> to vector<1x4xf32>
    %78 = vector.broadcast %77 : vector<1x4xf32> to vector<160x4xf32>
    %79 = arith.addf %75, %78 : vector<160x4xf32>
    %cst_64 = arith.constant 0.000000e+00 : f32
    %80 = vector.broadcast %cst_64 : f32 to vector<160x4xf32>
    %81 = arith.subf %80, %79 : vector<160x4xf32>
    %82 = math.exp %81 : vector<160x4xf32>
    %cst_65 = arith.constant 1.000000e+00 : f32
    %83 = vector.broadcast %cst_65 : f32 to vector<160x4xf32>
    %84 = arith.addf %83, %82 : vector<160x4xf32>
    %85 = tpu.reciprocal %84 {approx = true} : vector<160x4xf32> -> vector<160x4xf32>
    %c0_66 = arith.constant 0 : index
    %c0_67 = arith.constant 0 : index
    %c1_68 = arith.constant 1 : index
    %c0_69 = arith.constant 0 : index
    %c0_70 = arith.constant 0 : index
    %86 = vector.load %arg3[%c0_66, %c0_67, %c1_68, %c0_69, %c0_70] : memref<1x1x12x18x4xf32, #tpu.memory_space<vmem>>, vector<1x1x10x16x4xf32>
    %87 = vector.shape_cast %86 : vector<1x1x10x16x4xf32> to vector<10x16x4xf32>
    %88 = vector.shape_cast %87 : vector<10x16x4xf32> to vector<160x4xf32>
    %89 = arith.mulf %85, %88 : vector<160x4xf32>
    %90 = arith.truncf %89 : vector<160x4xf32> to vector<160x4xbf16>
    %c3_71 = arith.constant 3 : index
    %c0_72 = arith.constant 0 : index
    %c0_73 = arith.constant 0 : index
    %91 = vector.load %arg6[%c3_71, %c0_72, %c0_73] : memref<9x4x4xbf16, #tpu.memory_space<vmem>>, vector<1x4x4xbf16>
    %92 = vector.shape_cast %91 : vector<1x4x4xbf16> to vector<4x4xbf16>
    %cst_74 = arith.constant dense<0.000000e+00> : vector<160x4xf32>
    %93 = tpu.matmul %90, %92, %cst_74 {dimension_numbers = #tpu.dot_dimension_numbers<[1], [0], [0], [1], [0, 0, 1, 1], [], []>} : vector<160x4xbf16>, vector<4x4xbf16>, vector<160x4xf32> -> vector<160x4xf32>
    %94 = arith.addf %72, %93 : vector<160x4xf32>
    %c4 = arith.constant 4 : index
    %c0_75 = arith.constant 0 : index
    %c0_76 = arith.constant 0 : index
    %95 = vector.load %arg4[%c4, %c0_75, %c0_76] : memref<9x147x4xbf16, #tpu.memory_space<vmem>>, vector<1x147x4xbf16>
    %96 = vector.shape_cast %95 : vector<1x147x4xbf16> to vector<147x4xbf16>
    %cst_77 = arith.constant dense<0.000000e+00> : vector<160x4xf32>
    %97 = tpu.matmul %2, %96, %cst_77 {dimension_numbers = #tpu.dot_dimension_numbers<[1], [0], [0], [1], [0, 0, 1, 1], [], []>} : vector<160x147xbf16>, vector<147x4xbf16>, vector<160x4xf32> -> vector<160x4xf32>
    %c4_78 = arith.constant 4 : index
    %c0_79 = arith.constant 0 : index
    %c0_80 = arith.constant 0 : index
    %98 = vector.load %arg5[%c4_78, %c0_79, %c0_80] : memref<9x1x4xf32, #tpu.memory_space<vmem>>, vector<1x1x4xf32>
    %99 = vector.shape_cast %98 : vector<1x1x4xf32> to vector<1x4xf32>
    %100 = vector.broadcast %99 : vector<1x4xf32> to vector<160x4xf32>
    %101 = arith.addf %97, %100 : vector<160x4xf32>
    %cst_81 = arith.constant 0.000000e+00 : f32
    %102 = vector.broadcast %cst_81 : f32 to vector<160x4xf32>
    %103 = arith.subf %102, %101 : vector<160x4xf32>
    %104 = math.exp %103 : vector<160x4xf32>
    %cst_82 = arith.constant 1.000000e+00 : f32
    %105 = vector.broadcast %cst_82 : f32 to vector<160x4xf32>
    %106 = arith.addf %105, %104 : vector<160x4xf32>
    %107 = tpu.reciprocal %106 {approx = true} : vector<160x4xf32> -> vector<160x4xf32>
    %c0_83 = arith.constant 0 : index
    %c0_84 = arith.constant 0 : index
    %c1_85 = arith.constant 1 : index
    %c1_86 = arith.constant 1 : index
    %c0_87 = arith.constant 0 : index
    %108 = vector.load %arg3[%c0_83, %c0_84, %c1_85, %c1_86, %c0_87] : memref<1x1x12x18x4xf32, #tpu.memory_space<vmem>>, vector<1x1x10x16x4xf32>
    %109 = vector.shape_cast %108 : vector<1x1x10x16x4xf32> to vector<10x16x4xf32>
    %110 = vector.shape_cast %109 : vector<10x16x4xf32> to vector<160x4xf32>
    %111 = arith.mulf %107, %110 : vector<160x4xf32>
    %112 = arith.truncf %111 : vector<160x4xf32> to vector<160x4xbf16>
    %c4_88 = arith.constant 4 : index
    %c0_89 = arith.constant 0 : index
    %c0_90 = arith.constant 0 : index
    %113 = vector.load %arg6[%c4_88, %c0_89, %c0_90] : memref<9x4x4xbf16, #tpu.memory_space<vmem>>, vector<1x4x4xbf16>
    %114 = vector.shape_cast %113 : vector<1x4x4xbf16> to vector<4x4xbf16>
    %cst_91 = arith.constant dense<0.000000e+00> : vector<160x4xf32>
    %115 = tpu.matmul %112, %114, %cst_91 {dimension_numbers = #tpu.dot_dimension_numbers<[1], [0], [0], [1], [0, 0, 1, 1], [], []>} : vector<160x4xbf16>, vector<4x4xbf16>, vector<160x4xf32> -> vector<160x4xf32>
    %116 = arith.addf %94, %115 : vector<160x4xf32>
    %c5 = arith.constant 5 : index
    %c0_92 = arith.constant 0 : index
    %c0_93 = arith.constant 0 : index
    %117 = vector.load %arg4[%c5, %c0_92, %c0_93] : memref<9x147x4xbf16, #tpu.memory_space<vmem>>, vector<1x147x4xbf16>
    %118 = vector.shape_cast %117 : vector<1x147x4xbf16> to vector<147x4xbf16>
    %cst_94 = arith.constant dense<0.000000e+00> : vector<160x4xf32>
    %119 = tpu.matmul %2, %118, %cst_94 {dimension_numbers = #tpu.dot_dimension_numbers<[1], [0], [0], [1], [0, 0, 1, 1], [], []>} : vector<160x147xbf16>, vector<147x4xbf16>, vector<160x4xf32> -> vector<160x4xf32>
    %c5_95 = arith.constant 5 : index
    %c0_96 = arith.constant 0 : index
    %c0_97 = arith.constant 0 : index
    %120 = vector.load %arg5[%c5_95, %c0_96, %c0_97] : memref<9x1x4xf32, #tpu.memory_space<vmem>>, vector<1x1x4xf32>
    %121 = vector.shape_cast %120 : vector<1x1x4xf32> to vector<1x4xf32>
    %122 = vector.broadcast %121 : vector<1x4xf32> to vector<160x4xf32>
    %123 = arith.addf %119, %122 : vector<160x4xf32>
    %cst_98 = arith.constant 0.000000e+00 : f32
    %124 = vector.broadcast %cst_98 : f32 to vector<160x4xf32>
    %125 = arith.subf %124, %123 : vector<160x4xf32>
    %126 = math.exp %125 : vector<160x4xf32>
    %cst_99 = arith.constant 1.000000e+00 : f32
    %127 = vector.broadcast %cst_99 : f32 to vector<160x4xf32>
    %128 = arith.addf %127, %126 : vector<160x4xf32>
    %129 = tpu.reciprocal %128 {approx = true} : vector<160x4xf32> -> vector<160x4xf32>
    %c0_100 = arith.constant 0 : index
    %c0_101 = arith.constant 0 : index
    %c1_102 = arith.constant 1 : index
    %c2_103 = arith.constant 2 : index
    %c0_104 = arith.constant 0 : index
    %130 = vector.load %arg3[%c0_100, %c0_101, %c1_102, %c2_103, %c0_104] : memref<1x1x12x18x4xf32, #tpu.memory_space<vmem>>, vector<1x1x10x16x4xf32>
    %131 = vector.shape_cast %130 : vector<1x1x10x16x4xf32> to vector<10x16x4xf32>
    %132 = vector.shape_cast %131 : vector<10x16x4xf32> to vector<160x4xf32>
    %133 = arith.mulf %129, %132 : vector<160x4xf32>
    %134 = arith.truncf %133 : vector<160x4xf32> to vector<160x4xbf16>
    %c5_105 = arith.constant 5 : index
    %c0_106 = arith.constant 0 : index
    %c0_107 = arith.constant 0 : index
    %135 = vector.load %arg6[%c5_105, %c0_106, %c0_107] : memref<9x4x4xbf16, #tpu.memory_space<vmem>>, vector<1x4x4xbf16>
    %136 = vector.shape_cast %135 : vector<1x4x4xbf16> to vector<4x4xbf16>
    %cst_108 = arith.constant dense<0.000000e+00> : vector<160x4xf32>
    %137 = tpu.matmul %134, %136, %cst_108 {dimension_numbers = #tpu.dot_dimension_numbers<[1], [0], [0], [1], [0, 0, 1, 1], [], []>} : vector<160x4xbf16>, vector<4x4xbf16>, vector<160x4xf32> -> vector<160x4xf32>
    %138 = arith.addf %116, %137 : vector<160x4xf32>
    %c6 = arith.constant 6 : index
    %c0_109 = arith.constant 0 : index
    %c0_110 = arith.constant 0 : index
    %139 = vector.load %arg4[%c6, %c0_109, %c0_110] : memref<9x147x4xbf16, #tpu.memory_space<vmem>>, vector<1x147x4xbf16>
    %140 = vector.shape_cast %139 : vector<1x147x4xbf16> to vector<147x4xbf16>
    %cst_111 = arith.constant dense<0.000000e+00> : vector<160x4xf32>
    %141 = tpu.matmul %2, %140, %cst_111 {dimension_numbers = #tpu.dot_dimension_numbers<[1], [0], [0], [1], [0, 0, 1, 1], [], []>} : vector<160x147xbf16>, vector<147x4xbf16>, vector<160x4xf32> -> vector<160x4xf32>
    %c6_112 = arith.constant 6 : index
    %c0_113 = arith.constant 0 : index
    %c0_114 = arith.constant 0 : index
    %142 = vector.load %arg5[%c6_112, %c0_113, %c0_114] : memref<9x1x4xf32, #tpu.memory_space<vmem>>, vector<1x1x4xf32>
    %143 = vector.shape_cast %142 : vector<1x1x4xf32> to vector<1x4xf32>
    %144 = vector.broadcast %143 : vector<1x4xf32> to vector<160x4xf32>
    %145 = arith.addf %141, %144 : vector<160x4xf32>
    %cst_115 = arith.constant 0.000000e+00 : f32
    %146 = vector.broadcast %cst_115 : f32 to vector<160x4xf32>
    %147 = arith.subf %146, %145 : vector<160x4xf32>
    %148 = math.exp %147 : vector<160x4xf32>
    %cst_116 = arith.constant 1.000000e+00 : f32
    %149 = vector.broadcast %cst_116 : f32 to vector<160x4xf32>
    %150 = arith.addf %149, %148 : vector<160x4xf32>
    %151 = tpu.reciprocal %150 {approx = true} : vector<160x4xf32> -> vector<160x4xf32>
    %c0_117 = arith.constant 0 : index
    %c0_118 = arith.constant 0 : index
    %c2_119 = arith.constant 2 : index
    %c0_120 = arith.constant 0 : index
    %c0_121 = arith.constant 0 : index
    %152 = vector.load %arg3[%c0_117, %c0_118, %c2_119, %c0_120, %c0_121] : memref<1x1x12x18x4xf32, #tpu.memory_space<vmem>>, vector<1x1x10x16x4xf32>
    %153 = vector.shape_cast %152 : vector<1x1x10x16x4xf32> to vector<10x16x4xf32>
    %154 = vector.shape_cast %153 : vector<10x16x4xf32> to vector<160x4xf32>
    %155 = arith.mulf %151, %154 : vector<160x4xf32>
    %156 = arith.truncf %155 : vector<160x4xf32> to vector<160x4xbf16>
    %c6_122 = arith.constant 6 : index
    %c0_123 = arith.constant 0 : index
    %c0_124 = arith.constant 0 : index
    %157 = vector.load %arg6[%c6_122, %c0_123, %c0_124] : memref<9x4x4xbf16, #tpu.memory_space<vmem>>, vector<1x4x4xbf16>
    %158 = vector.shape_cast %157 : vector<1x4x4xbf16> to vector<4x4xbf16>
    %cst_125 = arith.constant dense<0.000000e+00> : vector<160x4xf32>
    %159 = tpu.matmul %156, %158, %cst_125 {dimension_numbers = #tpu.dot_dimension_numbers<[1], [0], [0], [1], [0, 0, 1, 1], [], []>} : vector<160x4xbf16>, vector<4x4xbf16>, vector<160x4xf32> -> vector<160x4xf32>
    %160 = arith.addf %138, %159 : vector<160x4xf32>
    %c7 = arith.constant 7 : index
    %c0_126 = arith.constant 0 : index
    %c0_127 = arith.constant 0 : index
    %161 = vector.load %arg4[%c7, %c0_126, %c0_127] : memref<9x147x4xbf16, #tpu.memory_space<vmem>>, vector<1x147x4xbf16>
    %162 = vector.shape_cast %161 : vector<1x147x4xbf16> to vector<147x4xbf16>
    %cst_128 = arith.constant dense<0.000000e+00> : vector<160x4xf32>
    %163 = tpu.matmul %2, %162, %cst_128 {dimension_numbers = #tpu.dot_dimension_numbers<[1], [0], [0], [1], [0, 0, 1, 1], [], []>} : vector<160x147xbf16>, vector<147x4xbf16>, vector<160x4xf32> -> vector<160x4xf32>
    %c7_129 = arith.constant 7 : index
    %c0_130 = arith.constant 0 : index
    %c0_131 = arith.constant 0 : index
    %164 = vector.load %arg5[%c7_129, %c0_130, %c0_131] : memref<9x1x4xf32, #tpu.memory_space<vmem>>, vector<1x1x4xf32>
    %165 = vector.shape_cast %164 : vector<1x1x4xf32> to vector<1x4xf32>
    %166 = vector.broadcast %165 : vector<1x4xf32> to vector<160x4xf32>
    %167 = arith.addf %163, %166 : vector<160x4xf32>
    %cst_132 = arith.constant 0.000000e+00 : f32
    %168 = vector.broadcast %cst_132 : f32 to vector<160x4xf32>
    %169 = arith.subf %168, %167 : vector<160x4xf32>
    %170 = math.exp %169 : vector<160x4xf32>
    %cst_133 = arith.constant 1.000000e+00 : f32
    %171 = vector.broadcast %cst_133 : f32 to vector<160x4xf32>
    %172 = arith.addf %171, %170 : vector<160x4xf32>
    %173 = tpu.reciprocal %172 {approx = true} : vector<160x4xf32> -> vector<160x4xf32>
    %c0_134 = arith.constant 0 : index
    %c0_135 = arith.constant 0 : index
    %c2_136 = arith.constant 2 : index
    %c1_137 = arith.constant 1 : index
    %c0_138 = arith.constant 0 : index
    %174 = vector.load %arg3[%c0_134, %c0_135, %c2_136, %c1_137, %c0_138] : memref<1x1x12x18x4xf32, #tpu.memory_space<vmem>>, vector<1x1x10x16x4xf32>
    %175 = vector.shape_cast %174 : vector<1x1x10x16x4xf32> to vector<10x16x4xf32>
    %176 = vector.shape_cast %175 : vector<10x16x4xf32> to vector<160x4xf32>
    %177 = arith.mulf %173, %176 : vector<160x4xf32>
    %178 = arith.truncf %177 : vector<160x4xf32> to vector<160x4xbf16>
    %c7_139 = arith.constant 7 : index
    %c0_140 = arith.constant 0 : index
    %c0_141 = arith.constant 0 : index
    %179 = vector.load %arg6[%c7_139, %c0_140, %c0_141] : memref<9x4x4xbf16, #tpu.memory_space<vmem>>, vector<1x4x4xbf16>
    %180 = vector.shape_cast %179 : vector<1x4x4xbf16> to vector<4x4xbf16>
    %cst_142 = arith.constant dense<0.000000e+00> : vector<160x4xf32>
    %181 = tpu.matmul %178, %180, %cst_142 {dimension_numbers = #tpu.dot_dimension_numbers<[1], [0], [0], [1], [0, 0, 1, 1], [], []>} : vector<160x4xbf16>, vector<4x4xbf16>, vector<160x4xf32> -> vector<160x4xf32>
    %182 = arith.addf %160, %181 : vector<160x4xf32>
    %c8 = arith.constant 8 : index
    %c0_143 = arith.constant 0 : index
    %c0_144 = arith.constant 0 : index
    %183 = vector.load %arg4[%c8, %c0_143, %c0_144] : memref<9x147x4xbf16, #tpu.memory_space<vmem>>, vector<1x147x4xbf16>
    %184 = vector.shape_cast %183 : vector<1x147x4xbf16> to vector<147x4xbf16>
    %cst_145 = arith.constant dense<0.000000e+00> : vector<160x4xf32>
    %185 = tpu.matmul %2, %184, %cst_145 {dimension_numbers = #tpu.dot_dimension_numbers<[1], [0], [0], [1], [0, 0, 1, 1], [], []>} : vector<160x147xbf16>, vector<147x4xbf16>, vector<160x4xf32> -> vector<160x4xf32>
    %c8_146 = arith.constant 8 : index
    %c0_147 = arith.constant 0 : index
    %c0_148 = arith.constant 0 : index
    %186 = vector.load %arg5[%c8_146, %c0_147, %c0_148] : memref<9x1x4xf32, #tpu.memory_space<vmem>>, vector<1x1x4xf32>
    %187 = vector.shape_cast %186 : vector<1x1x4xf32> to vector<1x4xf32>
    %188 = vector.broadcast %187 : vector<1x4xf32> to vector<160x4xf32>
    %189 = arith.addf %185, %188 : vector<160x4xf32>
    %cst_149 = arith.constant 0.000000e+00 : f32
    %190 = vector.broadcast %cst_149 : f32 to vector<160x4xf32>
    %191 = arith.subf %190, %189 : vector<160x4xf32>
    %192 = math.exp %191 : vector<160x4xf32>
    %cst_150 = arith.constant 1.000000e+00 : f32
    %193 = vector.broadcast %cst_150 : f32 to vector<160x4xf32>
    %194 = arith.addf %193, %192 : vector<160x4xf32>
    %195 = tpu.reciprocal %194 {approx = true} : vector<160x4xf32> -> vector<160x4xf32>
    %c0_151 = arith.constant 0 : index
    %c0_152 = arith.constant 0 : index
    %c2_153 = arith.constant 2 : index
    %c2_154 = arith.constant 2 : index
    %c0_155 = arith.constant 0 : index
    %196 = vector.load %arg3[%c0_151, %c0_152, %c2_153, %c2_154, %c0_155] : memref<1x1x12x18x4xf32, #tpu.memory_space<vmem>>, vector<1x1x10x16x4xf32>
    %197 = vector.shape_cast %196 : vector<1x1x10x16x4xf32> to vector<10x16x4xf32>
    %198 = vector.shape_cast %197 : vector<10x16x4xf32> to vector<160x4xf32>
    %199 = arith.mulf %195, %198 : vector<160x4xf32>
    %200 = arith.truncf %199 : vector<160x4xf32> to vector<160x4xbf16>
    %c8_156 = arith.constant 8 : index
    %c0_157 = arith.constant 0 : index
    %c0_158 = arith.constant 0 : index
    %201 = vector.load %arg6[%c8_156, %c0_157, %c0_158] : memref<9x4x4xbf16, #tpu.memory_space<vmem>>, vector<1x4x4xbf16>
    %202 = vector.shape_cast %201 : vector<1x4x4xbf16> to vector<4x4xbf16>
    %cst_159 = arith.constant dense<0.000000e+00> : vector<160x4xf32>
    %203 = tpu.matmul %200, %202, %cst_159 {dimension_numbers = #tpu.dot_dimension_numbers<[1], [0], [0], [1], [0, 0, 1, 1], [], []>} : vector<160x4xbf16>, vector<4x4xbf16>, vector<160x4xf32> -> vector<160x4xf32>
    %204 = arith.addf %182, %203 : vector<160x4xf32>
    %cst_160 = arith.constant 0.000000e+00 : f32
    %205 = vector.broadcast %cst_160 : f32 to vector<160x4xf32>
    %206 = arith.maximumf %204, %205 : vector<160x4xf32>
    %207 = arith.truncf %206 : vector<160x4xf32> to vector<160x4xbf16>
    %208 = vector.shape_cast %207 : vector<160x4xbf16> to vector<10x16x4xbf16>
    %c0_161 = arith.constant 0 : index
    %c1_162 = arith.constant 1 : index
    %c0_163 = arith.constant 0 : index
    %209 = vector.load %arg11[%c0_161, %c1_162, %c0_163] : memref<10x18x4xbf16, #tpu.memory_space<vmem>>, vector<10x16x4xbf16>
    tpu.vector_store %arg11[%c0_161, %c1_162, %c0_163], %208 {strides = array<i32>} : memref<10x18x4xbf16, #tpu.memory_space<vmem>>, vector<10x16x4xbf16>,
    %cst_164 = arith.constant 0.000000e+00 : bf16
    %210 = vector.broadcast %cst_164 : bf16 to vector<10x1x4xbf16>
    %c0_165 = arith.constant 0 : index
    %c0_166 = arith.constant 0 : index
    %c0_167 = arith.constant 0 : index
    %211 = vector.load %arg11[%c0_165, %c0_166, %c0_167] : memref<10x18x4xbf16, #tpu.memory_space<vmem>>, vector<10x1x4xbf16>
    tpu.vector_store %arg11[%c0_165, %c0_166, %c0_167], %210 {strides = array<i32>} : memref<10x18x4xbf16, #tpu.memory_space<vmem>>, vector<10x1x4xbf16>,
    %c0_168 = arith.constant 0 : index
    %c17 = arith.constant 17 : index
    %c0_169 = arith.constant 0 : index
    %212 = vector.load %arg11[%c0_168, %c17, %c0_169] : memref<10x18x4xbf16, #tpu.memory_space<vmem>>, vector<10x1x4xbf16>
    tpu.vector_store %arg11[%c0_168, %c17, %c0_169], %210 {strides = array<i32>} : memref<10x18x4xbf16, #tpu.memory_space<vmem>>, vector<10x1x4xbf16>,
    %c0_i32 = arith.constant 0 : i32
    %213 = arith.cmpi eq, %arg1, %c0_i32 : i32
    %214 = arith.extui %213 : i1 to i32
    %c0_i32_170 = arith.constant 0 : i32
    %215 = arith.cmpi ne, %214, %c0_i32_170 : i32
    scf.if %215 {
      %cst_248 = arith.constant 0.000000e+00 : bf16
      %286 = vector.broadcast %cst_248 : bf16 to vector<1x18x4xbf16>
      %c0_249 = arith.constant 0 : index
      %c0_250 = arith.constant 0 : index
      %c0_251 = arith.constant 0 : index
      %287 = vector.load %arg11[%c0_249, %c0_250, %c0_251] : memref<10x18x4xbf16, #tpu.memory_space<vmem>>, vector<1x18x4xbf16>
      tpu.vector_store %arg11[%c0_249, %c0_250, %c0_251], %286 {strides = array<i32>} : memref<10x18x4xbf16, #tpu.memory_space<vmem>>, vector<1x18x4xbf16>,
    } else {
    }
    %c1_i32 = arith.constant 1 : i32
    %216 = arith.cmpi eq, %arg1, %c1_i32 : i32
    %217 = arith.extui %216 : i1 to i32
    %c0_i32_171 = arith.constant 0 : i32
    %218 = arith.cmpi ne, %217, %c0_i32_171 : i32
    scf.if %218 {
      %cst_248 = arith.constant 0.000000e+00 : bf16
      %286 = vector.broadcast %cst_248 : bf16 to vector<1x18x4xbf16>
      %c9 = arith.constant 9 : index
      %c0_249 = arith.constant 0 : index
      %c0_250 = arith.constant 0 : index
      %287 = vector.load %arg11[%c9, %c0_249, %c0_250] : memref<10x18x4xbf16, #tpu.memory_space<vmem>>, vector<1x18x4xbf16>
      tpu.vector_store %arg11[%c9, %c0_249, %c0_250], %286 {strides = array<i32>} : memref<10x18x4xbf16, #tpu.memory_space<vmem>>, vector<1x18x4xbf16>,
    } else {
    }
    %cst_172 = arith.constant 0.000000e+00 : f32
    %219 = vector.broadcast %cst_172 : f32 to vector<128x4xf32>
    %c0_173 = arith.constant 0 : index
    %c0_174 = arith.constant 0 : index
    %220 = vector.load %arg9[%c0_173, %c0_174] : memref<1x4xf32, #tpu.memory_space<vmem>>, vector<1x4xf32>
    %221 = vector.broadcast %220 : vector<1x4xf32> to vector<128x4xf32>
    %222 = arith.addf %219, %221 : vector<128x4xf32>
    %c0_175 = arith.constant 0 : index
    %c0_176 = arith.constant 0 : index
    %c0_177 = arith.constant 0 : index
    %223 = vector.load %arg11[%c0_175, %c0_176, %c0_177] : memref<10x18x4xbf16, #tpu.memory_space<vmem>>, vector<8x16x4xbf16>
    %224 = vector.shape_cast %223 : vector<8x16x4xbf16> to vector<128x4xbf16>
    %c0_178 = arith.constant 0 : index
    %c0_179 = arith.constant 0 : index
    %c0_180 = arith.constant 0 : index
    %225 = vector.load %arg8[%c0_178, %c0_179, %c0_180] : memref<9x4x4xbf16, #tpu.memory_space<vmem>>, vector<1x4x4xbf16>
    %226 = vector.shape_cast %225 : vector<1x4x4xbf16> to vector<4x4xbf16>
    %cst_181 = arith.constant dense<0.000000e+00> : vector<128x4xf32>
    %227 = tpu.matmul %224, %226, %cst_181 {dimension_numbers = #tpu.dot_dimension_numbers<[1], [0], [0], [1], [0, 0, 1, 1], [], []>} : vector<128x4xbf16>, vector<4x4xbf16>, vector<128x4xf32> -> vector<128x4xf32>
    %228 = arith.addf %222, %227 : vector<128x4xf32>
    %c0_182 = arith.constant 0 : index
    %c1_183 = arith.constant 1 : index
    %c0_184 = arith.constant 0 : index
    %229 = vector.load %arg11[%c0_182, %c1_183, %c0_184] : memref<10x18x4xbf16, #tpu.memory_space<vmem>>, vector<8x16x4xbf16>
    %230 = vector.shape_cast %229 : vector<8x16x4xbf16> to vector<128x4xbf16>
    %c1_185 = arith.constant 1 : index
    %c0_186 = arith.constant 0 : index
    %c0_187 = arith.constant 0 : index
    %231 = vector.load %arg8[%c1_185, %c0_186, %c0_187] : memref<9x4x4xbf16, #tpu.memory_space<vmem>>, vector<1x4x4xbf16>
    %232 = vector.shape_cast %231 : vector<1x4x4xbf16> to vector<4x4xbf16>
    %cst_188 = arith.constant dense<0.000000e+00> : vector<128x4xf32>
    %233 = tpu.matmul %230, %232, %cst_188 {dimension_numbers = #tpu.dot_dimension_numbers<[1], [0], [0], [1], [0, 0, 1, 1], [], []>} : vector<128x4xbf16>, vector<4x4xbf16>, vector<128x4xf32> -> vector<128x4xf32>
    %234 = arith.addf %228, %233 : vector<128x4xf32>
    %c0_189 = arith.constant 0 : index
    %c2_190 = arith.constant 2 : index
    %c0_191 = arith.constant 0 : index
    %235 = vector.load %arg11[%c0_189, %c2_190, %c0_191] : memref<10x18x4xbf16, #tpu.memory_space<vmem>>, vector<8x16x4xbf16>
    %236 = vector.shape_cast %235 : vector<8x16x4xbf16> to vector<128x4xbf16>
    %c2_192 = arith.constant 2 : index
    %c0_193 = arith.constant 0 : index
    %c0_194 = arith.constant 0 : index
    %237 = vector.load %arg8[%c2_192, %c0_193, %c0_194] : memref<9x4x4xbf16, #tpu.memory_space<vmem>>, vector<1x4x4xbf16>
    %238 = vector.shape_cast %237 : vector<1x4x4xbf16> to vector<4x4xbf16>
    %cst_195 = arith.constant dense<0.000000e+00> : vector<128x4xf32>
    %239 = tpu.matmul %236, %238, %cst_195 {dimension_numbers = #tpu.dot_dimension_numbers<[1], [0], [0], [1], [0, 0, 1, 1], [], []>} : vector<128x4xbf16>, vector<4x4xbf16>, vector<128x4xf32> -> vector<128x4xf32>
    %240 = arith.addf %234, %239 : vector<128x4xf32>
    %c1_196 = arith.constant 1 : index
    %c0_197 = arith.constant 0 : index
    %c0_198 = arith.constant 0 : index
    %241 = vector.load %arg11[%c1_196, %c0_197, %c0_198] : memref<10x18x4xbf16, #tpu.memory_space<vmem>>, vector<8x16x4xbf16>
    %242 = vector.shape_cast %241 : vector<8x16x4xbf16> to vector<128x4xbf16>
    %c3_199 = arith.constant 3 : index
    %c0_200 = arith.constant 0 : index
    %c0_201 = arith.constant 0 : index
    %243 = vector.load %arg8[%c3_199, %c0_200, %c0_201] : memref<9x4x4xbf16, #tpu.memory_space<vmem>>, vector<1x4x4xbf16>
    %244 = vector.shape_cast %243 : vector<1x4x4xbf16> to vector<4x4xbf16>
    %cst_202 = arith.constant dense<0.000000e+00> : vector<128x4xf32>
    %245 = tpu.matmul %242, %244, %cst_202 {dimension_numbers = #tpu.dot_dimension_numbers<[1], [0], [0], [1], [0, 0, 1, 1], [], []>} : vector<128x4xbf16>, vector<4x4xbf16>, vector<128x4xf32> -> vector<128x4xf32>
    %246 = arith.addf %240, %245 : vector<128x4xf32>
    %c1_203 = arith.constant 1 : index
    %c1_204 = arith.constant 1 : index
    %c0_205 = arith.constant 0 : index
    %247 = vector.load %arg11[%c1_203, %c1_204, %c0_205] : memref<10x18x4xbf16, #tpu.memory_space<vmem>>, vector<8x16x4xbf16>
    %248 = vector.shape_cast %247 : vector<8x16x4xbf16> to vector<128x4xbf16>
    %c4_206 = arith.constant 4 : index
    %c0_207 = arith.constant 0 : index
    %c0_208 = arith.constant 0 : index
    %249 = vector.load %arg8[%c4_206, %c0_207, %c0_208] : memref<9x4x4xbf16, #tpu.memory_space<vmem>>, vector<1x4x4xbf16>
    %250 = vector.shape_cast %249 : vector<1x4x4xbf16> to vector<4x4xbf16>
    %cst_209 = arith.constant dense<0.000000e+00> : vector<128x4xf32>
    %251 = tpu.matmul %248, %250, %cst_209 {dimension_numbers = #tpu.dot_dimension_numbers<[1], [0], [0], [1], [0, 0, 1, 1], [], []>} : vector<128x4xbf16>, vector<4x4xbf16>, vector<128x4xf32> -> vector<128x4xf32>
    %252 = arith.addf %246, %251 : vector<128x4xf32>
    %c1_210 = arith.constant 1 : index
    %c2_211 = arith.constant 2 : index
    %c0_212 = arith.constant 0 : index
    %253 = vector.load %arg11[%c1_210, %c2_211, %c0_212] : memref<10x18x4xbf16, #tpu.memory_space<vmem>>, vector<8x16x4xbf16>
    %254 = vector.shape_cast %253 : vector<8x16x4xbf16> to vector<128x4xbf16>
    %c5_213 = arith.constant 5 : index
    %c0_214 = arith.constant 0 : index
    %c0_215 = arith.constant 0 : index
    %255 = vector.load %arg8[%c5_213, %c0_214, %c0_215] : memref<9x4x4xbf16, #tpu.memory_space<vmem>>, vector<1x4x4xbf16>
    %256 = vector.shape_cast %255 : vector<1x4x4xbf16> to vector<4x4xbf16>
    %cst_216 = arith.constant dense<0.000000e+00> : vector<128x4xf32>
    %257 = tpu.matmul %254, %256, %cst_216 {dimension_numbers = #tpu.dot_dimension_numbers<[1], [0], [0], [1], [0, 0, 1, 1], [], []>} : vector<128x4xbf16>, vector<4x4xbf16>, vector<128x4xf32> -> vector<128x4xf32>
    %258 = arith.addf %252, %257 : vector<128x4xf32>
    %c2_217 = arith.constant 2 : index
    %c0_218 = arith.constant 0 : index
    %c0_219 = arith.constant 0 : index
    %259 = vector.load %arg11[%c2_217, %c0_218, %c0_219] : memref<10x18x4xbf16, #tpu.memory_space<vmem>>, vector<8x16x4xbf16>
    %260 = vector.shape_cast %259 : vector<8x16x4xbf16> to vector<128x4xbf16>
    %c6_220 = arith.constant 6 : index
    %c0_221 = arith.constant 0 : index
    %c0_222 = arith.constant 0 : index
    %261 = vector.load %arg8[%c6_220, %c0_221, %c0_222] : memref<9x4x4xbf16, #tpu.memory_space<vmem>>, vector<1x4x4xbf16>
    %262 = vector.shape_cast %261 : vector<1x4x4xbf16> to vector<4x4xbf16>
    %cst_223 = arith.constant dense<0.000000e+00> : vector<128x4xf32>
    %263 = tpu.matmul %260, %262, %cst_223 {dimension_numbers = #tpu.dot_dimension_numbers<[1], [0], [0], [1], [0, 0, 1, 1], [], []>} : vector<128x4xbf16>, vector<4x4xbf16>, vector<128x4xf32> -> vector<128x4xf32>
    %264 = arith.addf %258, %263 : vector<128x4xf32>
    %c2_224 = arith.constant 2 : index
    %c1_225 = arith.constant 1 : index
    %c0_226 = arith.constant 0 : index
    %265 = vector.load %arg11[%c2_224, %c1_225, %c0_226] : memref<10x18x4xbf16, #tpu.memory_space<vmem>>, vector<8x16x4xbf16>
    %266 = vector.shape_cast %265 : vector<8x16x4xbf16> to vector<128x4xbf16>
    %c7_227 = arith.constant 7 : index
    %c0_228 = arith.constant 0 : index
    %c0_229 = arith.constant 0 : index
    %267 = vector.load %arg8[%c7_227, %c0_228, %c0_229] : memref<9x4x4xbf16, #tpu.memory_space<vmem>>, vector<1x4x4xbf16>
    %268 = vector.shape_cast %267 : vector<1x4x4xbf16> to vector<4x4xbf16>
    %cst_230 = arith.constant dense<0.000000e+00> : vector<128x4xf32>
    %269 = tpu.matmul %266, %268, %cst_230 {dimension_numbers = #tpu.dot_dimension_numbers<[1], [0], [0], [1], [0, 0, 1, 1], [], []>} : vector<128x4xbf16>, vector<4x4xbf16>, vector<128x4xf32> -> vector<128x4xf32>
    %270 = arith.addf %264, %269 : vector<128x4xf32>
    %c2_231 = arith.constant 2 : index
    %c2_232 = arith.constant 2 : index
    %c0_233 = arith.constant 0 : index
    %271 = vector.load %arg11[%c2_231, %c2_232, %c0_233] : memref<10x18x4xbf16, #tpu.memory_space<vmem>>, vector<8x16x4xbf16>
    %272 = vector.shape_cast %271 : vector<8x16x4xbf16> to vector<128x4xbf16>
    %c8_234 = arith.constant 8 : index
    %c0_235 = arith.constant 0 : index
    %c0_236 = arith.constant 0 : index
    %273 = vector.load %arg8[%c8_234, %c0_235, %c0_236] : memref<9x4x4xbf16, #tpu.memory_space<vmem>>, vector<1x4x4xbf16>
    %274 = vector.shape_cast %273 : vector<1x4x4xbf16> to vector<4x4xbf16>
    %cst_237 = arith.constant dense<0.000000e+00> : vector<128x4xf32>
    %275 = tpu.matmul %272, %274, %cst_237 {dimension_numbers = #tpu.dot_dimension_numbers<[1], [0], [0], [1], [0, 0, 1, 1], [], []>} : vector<128x4xbf16>, vector<4x4xbf16>, vector<128x4xf32> -> vector<128x4xf32>
    %276 = arith.addf %270, %275 : vector<128x4xf32>
    %cst_238 = arith.constant 0.000000e+00 : f32
    %277 = vector.broadcast %cst_238 : f32 to vector<128x4xf32>
    %278 = arith.maximumf %276, %277 : vector<128x4xf32>
    %279 = vector.shape_cast %278 : vector<128x4xf32> to vector<8x16x4xf32>
    %c0_239 = arith.constant 0 : index
    %c0_240 = arith.constant 0 : index
    %c2_241 = arith.constant 2 : index
    %c1_242 = arith.constant 1 : index
    %c0_243 = arith.constant 0 : index
    %280 = vector.load %arg3[%c0_239, %c0_240, %c2_241, %c1_242, %c0_243] : memref<1x1x12x18x4xf32, #tpu.memory_space<vmem>>, vector<1x1x8x16x4xf32>
    %281 = vector.shape_cast %280 : vector<1x1x8x16x4xf32> to vector<8x16x4xf32>
    %282 = arith.addf %279, %281 : vector<8x16x4xf32>
    %c0_244 = arith.constant 0 : index
    %c0_245 = arith.constant 0 : index
    %c0_246 = arith.constant 0 : index
    %c0_247 = arith.constant 0 : index
    %283 = vector.load %arg10[%c0_244, %c0_245, %c0_246, %c0_247] : memref<1x8x16x4xf32, #tpu.memory_space<vmem>>, vector<1x8x16x4xf32>
    %284 = vector.shape_cast %283 : vector<1x8x16x4xf32> to vector<8x16x4xf32>
    %285 = vector.shape_cast %282 : vector<8x16x4xf32> to vector<1x8x16x4xf32>
    tpu.vector_store %arg10[%c0_244, %c0_245, %c0_246, %c0_247], %285 {strides = array<i32>} : memref<1x8x16x4xf32, #tpu.memory_space<vmem>>, vector<1x8x16x4xf32>,
    return
  }
  func.func @transform_0(%arg0: i32, %arg1: i32) -> (i32, i32, i32, i32, i32) {
    %c0_i32 = arith.constant 0 : i32
    %c0_i32_0 = arith.constant 0 : i32
    %c0_i32_1 = arith.constant 0 : i32
    %c0_i32_2 = arith.constant 0 : i32
    return %arg0, %arg1, %c0_i32, %c0_i32_0, %c0_i32_1 : i32, i32, i32, i32, i32
  }
  func.func @transform_1(%arg0: i32, %arg1: i32) -> (i32, i32, i32, i32, i32) {
    %c0_i32 = arith.constant 0 : i32
    %c0_i32_0 = arith.constant 0 : i32
    %c0_i32_1 = arith.constant 0 : i32
    %c0_i32_2 = arith.constant 0 : i32
    return %arg0, %arg1, %c0_i32, %c0_i32_0, %c0_i32_1 : i32, i32, i32, i32, i32
  }
  func.func @transform_2(%arg0: i32, %arg1: i32) -> (i32, i32, i32) {
    %c0_i32 = arith.constant 0 : i32
    %c0_i32_0 = arith.constant 0 : i32
    %c0_i32_1 = arith.constant 0 : i32
    %c0_i32_2 = arith.constant 0 : i32
    return %c0_i32, %c0_i32_0, %c0_i32_1 : i32, i32, i32
  }
  func.func @transform_3(%arg0: i32, %arg1: i32) -> (i32, i32, i32) {
    %c0_i32 = arith.constant 0 : i32
    %c0_i32_0 = arith.constant 0 : i32
    %c0_i32_1 = arith.constant 0 : i32
    %c0_i32_2 = arith.constant 0 : i32
    return %c0_i32, %c0_i32_0, %c0_i32_1 : i32, i32, i32
  }
  func.func @transform_4(%arg0: i32, %arg1: i32) -> (i32, i32, i32) {
    %c0_i32 = arith.constant 0 : i32
    %c0_i32_0 = arith.constant 0 : i32
    %c0_i32_1 = arith.constant 0 : i32
    %c0_i32_2 = arith.constant 0 : i32
    return %c0_i32, %c0_i32_0, %c0_i32_1 : i32, i32, i32
  }
  func.func @transform_5(%arg0: i32, %arg1: i32) -> (i32, i32) {
    %c0_i32 = arith.constant 0 : i32
    %c0_i32_0 = arith.constant 0 : i32
    %c0_i32_1 = arith.constant 0 : i32
    return %c0_i32, %c0_i32_0 : i32, i32
  }
  func.func @transform_6(%arg0: i32, %arg1: i32) -> (i32, i32, i32) {
    %c0_i32 = arith.constant 0 : i32
    %c0_i32_0 = arith.constant 0 : i32
    %c0_i32_1 = arith.constant 0 : i32
    %c0_i32_2 = arith.constant 0 : i32
    return %c0_i32, %c0_i32_0, %c0_i32_1 : i32, i32, i32
  }
  func.func @transform_7(%arg0: i32, %arg1: i32) -> (i32, i32) {
    %c0_i32 = arith.constant 0 : i32
    %c0_i32_0 = arith.constant 0 : i32
    %c0_i32_1 = arith.constant 0 : i32
    return %c0_i32, %c0_i32_0 : i32, i32
  }
  func.func @transform_8(%arg0: i32, %arg1: i32) -> (i32, i32, i32, i32) {
    %c0_i32 = arith.constant 0 : i32
    %c0_i32_0 = arith.constant 0 : i32
    %c0_i32_1 = arith.constant 0 : i32
    return %arg0, %arg1, %c0_i32, %c0_i32_0 : i32, i32, i32, i32
  }
}

</mosaic_0001>

<llo_original>
// kernel: tpu_custom_call.1
$region0: #{tpu_custom_call.1}
  #allocation0 [shape = 'u32[]', space=smem, size = 0x4, offset = 0x4, fixed_abs, tag = 'smem constant byte address 0x4 - core index']
  #allocation1 [shape = 'u32[144,128]{1,0:T(1,128)}', space=vmem, size = 0x12000, scoped, tag = 'internal scratch']
  #allocation2 [shape = 'bf16[10,18,4]{2,1,0:T(8,128)(2,1)}', space=vmem, size = 0xf000, scoped, tag = 'scratch operand']
  %s0 = inlined_call_operand.vmem [shape: bf16[2,2,10,16,147], index: 0, kind: input, shape index: {}]
  %s1 = inlined_call_operand.vmem [shape: f32[2,2,12,18,4], index: 1, kind: input, shape index: {}]
  %s2 = inlined_call_operand.vmem [shape: bf16[9,147,4], index: 2, kind: input, shape index: {}]
  %s3 = inlined_call_operand.vmem [shape: f32[9,1,4], index: 3, kind: input, shape index: {}]
  %s4 = inlined_call_operand.vmem [shape: bf16[9,4,4], index: 4, kind: input, shape index: {}]
  %s5 = inlined_call_operand.vmem [shape: f32[1,4], index: 5, kind: input, shape index: {}]
  %s6 = inlined_call_operand.vmem [shape: bf16[9,4,4], index: 6, kind: input, shape index: {}]
  %s7 = inlined_call_operand.vmem [shape: f32[1,4], index: 7, kind: input, shape index: {}]
  %s8 = inlined_call_operand.vmem [shape: f32[2,16,16,4], index: 8, kind: output, shape index: {}]
  %s9 = sld [smem:[#allocation0]]
  $region73: #{tpu_custom_call.1} parent=0
    _
  %s11 = ssub.s32 1, %s9
  %s12 = scalar_select 0, %s11, %s9
  loop: start=0, step=1, limit=6
  $region2: #{tpu_custom_call.1} parent=0 // loop_pre_header
    _
  $region3: #{tpu_custom_call.1} parent=0 // loop_header
    %s14 = sphi 0, %s18
    %p15 = scmp.ge.s32.totalorder %s14, 6
    %s21 = sphi 0, %s33
    %s22 = sphi 0, %s29
    %s23 = sphi 0, %s21
    %s24 = sphi 0, %s22
    %s25 = sphi 0, %s23
    %s26 = sphi 0, %s24
    %s38 = sphi 0, %s40
    %s41 = sphi 0, %s38
    %s42 = sphi 0, %s41
    %s58 = sphi 0, %s42
    %s66 = sphi 0, %s68
    %s69 = sphi 0, %s66
    %s70 = sphi 0, %s69
    %s86 = sphi 0, %s70
    %s90 = sphi 0, %s90
    %s92 = sphi 0, %s90
    %s93 = sphi 0, %s92
    %s107 = sphi 0, %s93
    %s111 = sphi 0, %s111
    %s113 = sphi 0, %s111
    %s114 = sphi 0, %s113
    %s128 = sphi 0, %s114
    %s132 = sphi 0, %s132
    %s134 = sphi 0, %s132
    %s135 = sphi 0, %s134
    %s149 = sphi 0, %s135
    %s153 = sphi 0, %s153
    %s155 = sphi 0, %s153
    %s156 = sphi 0, %s155
    %s170 = sphi 0, %s156
    %s174 = sphi 0, %s174
    %s176 = sphi 0, %s174
    %s177 = sphi 0, %s176
    %s191 = sphi 0, %s177
    %s195 = sphi 0, %s195
    %s197 = sphi 0, %s195
    %s198 = sphi 0, %s197
    %s212 = sphi 0, %s198
    %s220 = sphi 0, %s222
    %s223 = sphi 0, %s220
    %s224 = sphi 0, %s223
    %s240 = sphi 0, %s224
  $region4: #{tpu_custom_call.1} parent=0 // loop_header_branch
    %17 = sbr.rel (%p15) target = $region8
  $region5: #{tpu_custom_call.1} parent=0 // loop_body
    %s19 = ssub.s32 %s14, 1
    %s20 = ssub.s32 %s14, 2
    %s27 = sadd.s32 1, %s22
    %p28 = scmp.ge.s32.totalorder %s27, 2
    %s29 = scalar_select %p28, 0, %s27
    %s30 = sadd.s32 1, %s21
    %s31 = scalar_select %p28, %s30, %s21
    %p32 = scmp.ge.s32.totalorder %s31, 2
    %s33 = scalar_select %p32, 0, %s31
    %s34 = ssub.s32 %s21, %s33
    %s35 = ssub.s32 %s22, %s29
    %s36 = sor.u32 %s34, %s35
    %p37 = scmp.eq.s32.totalorder %s36, 0
    %s39 = sadd.s32 %s38, 1
    %s40 = scalar_select %p37, %s38, %s39
    %p43 = pneg %p37
    %p44 = scmp.eq.s32.totalorder %s14, 3
    %p45 = por %p43, %p44
    %p46 = scmp.ne.s32.totalorder %s38, %s41
    %p47 = scmp.eq.s32.totalorder %s14, 0
    %p48 = por %p46, %p47
    %p49 = scmp.ne.s32.totalorder %s38, %s41
    %p50 = scmp.eq.s32.totalorder %s19, 3
    %p51 = por %p49, %p50
    %p52 = scmp.ne.s32.totalorder %s41, %s42
    %p53 = scmp.eq.s32.totalorder %s19, 0
    %p54 = por %p52, %p53
    %p55 = scmp.ne.s32.totalorder %s41, %s42
    %p56 = scmp.eq.s32.totalorder %s20, 3
    %p57 = por %p55, %p56
    %p59 = scmp.ne.s32.totalorder %s42, %s58
    %p60 = scmp.eq.s32.totalorder %s20, 0
    %p61 = por %p59, %p60
    %s62 = ssub.s32 %s21, %s33
    %s63 = ssub.s32 %s22, %s29
    %s64 = sor.u32 %s62, %s63
    %p65 = scmp.eq.s32.totalorder %s64, 0
    %s67 = sadd.s32 %s66, 1
    %s68 = scalar_select %p65, %s66, %s67
    %p71 = pneg %p65
    %p72 = scmp.eq.s32.totalorder %s14, 3
    %p73 = por %p71, %p72
    %p74 = scmp.ne.s32.totalorder %s66, %s69
    %p75 = scmp.eq.s32.totalorder %s14, 0
    %p76 = por %p74, %p75
    %p77 = scmp.ne.s32.totalorder %s66, %s69
    %p78 = scmp.eq.s32.totalorder %s19, 3
    %p79 = por %p77, %p78
    %p80 = scmp.ne.s32.totalorder %s69, %s70
    %p81 = scmp.eq.s32.totalorder %s19, 0
    %p82 = por %p80, %p81
    %p83 = scmp.ne.s32.totalorder %s69, %s70
    %p84 = scmp.eq.s32.totalorder %s20, 3
    %p85 = por %p83, %p84
    %p87 = scmp.ne.s32.totalorder %s70, %s86
    %p88 = scmp.eq.s32.totalorder %s20, 0
    %p89 = por %p87, %p88
    %s91 = sadd.s32 %s90, 1
    %p94 = scmp.eq.s32.totalorder %s14, 3
    %p95 = scmp.ne.s32.totalorder %s90, %s92
    %p96 = scmp.eq.s32.totalorder %s14, 0
    %p97 = por %p95, %p96
    %p98 = scmp.ne.s32.totalorder %s90, %s92
    %p99 = scmp.eq.s32.totalorder %s19, 3
    %p100 = por %p98, %p99
    %p101 = scmp.ne.s32.totalorder %s92, %s93
    %p102 = scmp.eq.s32.totalorder %s19, 0
    %p103 = por %p101, %p102
    %p104 = scmp.ne.s32.totalorder %s92, %s93
    %p105 = scmp.eq.s32.totalorder %s20, 3
    %p106 = por %p104, %p105
    %p108 = scmp.ne.s32.totalorder %s93, %s107
    %p109 = scmp.eq.s32.totalorder %s20, 0
    %p110 = por %p108, %p109
    %s112 = sadd.s32 %s111, 1
    %p115 = scmp.eq.s32.totalorder %s14, 3
    %p116 = scmp.ne.s32.totalorder %s111, %s113
    %p117 = scmp.eq.s32.totalorder %s14, 0
    %p118 = por %p116, %p117
    %p119 = scmp.ne.s32.totalorder %s111, %s113
    %p120 = scmp.eq.s32.totalorder %s19, 3
    %p121 = por %p119, %p120
    %p122 = scmp.ne.s32.totalorder %s113, %s114
    %p123 = scmp.eq.s32.totalorder %s19, 0
    %p124 = por %p122, %p123
    %p125 = scmp.ne.s32.totalorder %s113, %s114
    %p126 = scmp.eq.s32.totalorder %s20, 3
    %p127 = por %p125, %p126
    %p129 = scmp.ne.s32.totalorder %s114, %s128
    %p130 = scmp.eq.s32.totalorder %s20, 0
    %p131 = por %p129, %p130
    %s133 = sadd.s32 %s132, 1
    %p136 = scmp.eq.s32.totalorder %s14, 3
    %p137 = scmp.ne.s32.totalorder %s132, %s134
    %p138 = scmp.eq.s32.totalorder %s14, 0
    %p139 = por %p137, %p138
    %p140 = scmp.ne.s32.totalorder %s132, %s134
    %p141 = scmp.eq.s32.totalorder %s19, 3
    %p142 = por %p140, %p141
    %p143 = scmp.ne.s32.totalorder %s134, %s135
    %p144 = scmp.eq.s32.totalorder %s19, 0
    %p145 = por %p143, %p144
    %p146 = scmp.ne.s32.totalorder %s134, %s135
    %p147 = scmp.eq.s32.totalorder %s20, 3
    %p148 = por %p146, %p147
    %p150 = scmp.ne.s32.totalorder %s135, %s149
    %p151 = scmp.eq.s32.totalorder %s20, 0
    %p152 = por %p150, %p151
    %s154 = sadd.s32 %s153, 1
    %p157 = scmp.eq.s32.totalorder %s14, 3
    %p158 = scmp.ne.s32.totalorder %s153, %s155
    %p159 = scmp.eq.s32.totalorder %s14, 0
    %p160 = por %p158, %p159
    %p161 = scmp.ne.s32.totalorder %s153, %s155
    %p162 = scmp.eq.s32.totalorder %s19, 3
    %p163 = por %p161, %p162
    %p164 = scmp.ne.s32.totalorder %s155, %s156
    %p165 = scmp.eq.s32.totalorder %s19, 0
    %p166 = por %p164, %p165
    %p167 = scmp.ne.s32.totalorder %s155, %s156
    %p168 = scmp.eq.s32.totalorder %s20, 3
    %p169 = por %p167, %p168
    %p171 = scmp.ne.s32.totalorder %s156, %s170
    %p172 = scmp.eq.s32.totalorder %s20, 0
    %p173 = por %p171, %p172
    %s175 = sadd.s32 %s174, 1
    %p178 = scmp.eq.s32.totalorder %s14, 3
    %p179 = scmp.ne.s32.totalorder %s174, %s176
    %p180 = scmp.eq.s32.totalorder %s14, 0
    %p181 = por %p179, %p180
    %p182 = scmp.ne.s32.totalorder %s174, %s176
    %p183 = scmp.eq.s32.totalorder %s19, 3
    %p184 = por %p182, %p183
    %p185 = scmp.ne.s32.totalorder %s176, %s177
    %p186 = scmp.eq.s32.totalorder %s19, 0
    %p187 = por %p185, %p186
    %p188 = scmp.ne.s32.totalorder %s176, %s177
    %p189 = scmp.eq.s32.totalorder %s20, 3
    %p190 = por %p188, %p189
    %p192 = scmp.ne.s32.totalorder %s177, %s191
    %p193 = scmp.eq.s32.totalorder %s20, 0
    %p194 = por %p192, %p193
    %s196 = sadd.s32 %s195, 1
    %p199 = scmp.eq.s32.totalorder %s14, 3
    %p200 = scmp.ne.s32.totalorder %s195, %s197
    %p201 = scmp.eq.s32.totalorder %s14, 0
    %p202 = por %p200, %p201
    %p203 = scmp.ne.s32.totalorder %s195, %s197
    %p204 = scmp.eq.s32.totalorder %s19, 3
    %p205 = por %p203, %p204
    %p206 = scmp.ne.s32.totalorder %s197, %s198
    %p207 = scmp.eq.s32.totalorder %s19, 0
    %p208 = por %p206, %p207
    %p209 = scmp.ne.s32.totalorder %s197, %s198
    %p210 = scmp.eq.s32.totalorder %s20, 3
    %p211 = por %p209, %p210
    %p213 = scmp.ne.s32.totalorder %s198, %s212
    %p214 = scmp.eq.s32.totalorder %s20, 0
    %p215 = por %p213, %p214
    %s216 = ssub.s32 %s21, %s33
    %s217 = ssub.s32 %s22, %s29
    %s218 = sor.u32 %s216, %s217
    %p219 = scmp.eq.s32.totalorder %s218, 0
    %s221 = sadd.s32 %s220, 1
    %s222 = scalar_select %p219, %s220, %s221
    %p225 = pneg %p219
    %p226 = scmp.eq.s32.totalorder %s14, 3
    %p227 = por %p225, %p226
    %p228 = scmp.ne.s32.totalorder %s220, %s223
    %p229 = scmp.eq.s32.totalorder %s14, 0
    %p230 = por %p228, %p229
    %p231 = scmp.ne.s32.totalorder %s220, %s223
    %p232 = scmp.eq.s32.totalorder %s19, 3
    %p233 = por %p231, %p232
    %p234 = scmp.ne.s32.totalorder %s223, %s224
    %p235 = scmp.eq.s32.totalorder %s19, 0
    %p236 = por %p234, %p235
    %p237 = scmp.ne.s32.totalorder %s223, %s224
    %p238 = scmp.eq.s32.totalorder %s20, 3
    %p239 = por %p237, %p238
    %p241 = scmp.ne.s32.totalorder %s224, %s240
    %p242 = scmp.eq.s32.totalorder %s20, 0
    %p243 = por %p241, %p242
    %p244 = scmp.le.s32.totalorder 1, %s14
    %p245 = scmp.lt.s32.totalorder %s14, 5
    %p246 = pnand %p244, %p245
    %p247 = pneg %p246
    // Predicated region
    $region9: #{tpu_custom_call.1} parent=5 // pred_check
      _
    $region10: #{tpu_custom_call.1} parent=5 // pred_check_branch
      %249 = sbr.rel (%p246) target = $region12
    $region11: #{tpu_custom_call.1} parent=5 // pred_region
      %s250 = ssub.s32 %s14, 1
      // Predicated region
      $region13: #{tpu_custom_call.1} parent=11 // pred_check
        %p251 = pneg %p103
      $region14: #{tpu_custom_call.1} parent=11 // pred_check_branch
        %253 = sbr.rel (%p251) target = $region16
      $region15: #{tpu_custom_call.1} parent=11 // pred_region
        _
      $region16: #{tpu_custom_call.1} parent=11 // pred_fallthru
        _
      // Predicated region
      $region17: #{tpu_custom_call.1} parent=11 // pred_check
        %p254 = pneg %p124
      $region18: #{tpu_custom_call.1} parent=11 // pred_check_branch
        %256 = sbr.rel (%p254) target = $region20
      $region19: #{tpu_custom_call.1} parent=11 // pred_region
        _
      $region20: #{tpu_custom_call.1} parent=11 // pred_fallthru
        _
      // Predicated region
      $region21: #{tpu_custom_call.1} parent=11 // pred_check
        %p257 = pneg %p145
      $region22: #{tpu_custom_call.1} parent=11 // pred_check_branch
        %259 = sbr.rel (%p257) target = $region24
      $region23: #{tpu_custom_call.1} parent=11 // pred_region
        _
      $region24: #{tpu_custom_call.1} parent=11 // pred_fallthru
        _
      // Predicated region
      $region25: #{tpu_custom_call.1} parent=11 // pred_check
        %p260 = pneg %p166
      $region26: #{tpu_custom_call.1} parent=11 // pred_check_branch
        %262 = sbr.rel (%p260) target = $region28
      $region27: #{tpu_custom_call.1} parent=11 // pred_region
        _
      $region28: #{tpu_custom_call.1} parent=11 // pred_fallthru
        _
      // Predicated region
      $region29: #{tpu_custom_call.1} parent=11 // pred_check
        %p263 = pneg %p187
      $region30: #{tpu_custom_call.1} parent=11 // pred_check_branch
        %265 = sbr.rel (%p263) target = $region32
      $region31: #{tpu_custom_call.1} parent=11 // pred_region
        _
      $region32: #{tpu_custom_call.1} parent=11 // pred_fallthru
        _
      // Predicated region
      $region33: #{tpu_custom_call.1} parent=11 // pred_check
        %p266 = pneg %p208
      $region34: #{tpu_custom_call.1} parent=11 // pred_check_branch
        %268 = sbr.rel (%p266) target = $region36
      $region35: #{tpu_custom_call.1} parent=11 // pred_region
        _
      $region36: #{tpu_custom_call.1} parent=11 // pred_fallthru
        _
    $region12: #{tpu_custom_call.1} parent=5 // pred_fallthru
      _
    %p269 = scmp.lt.s32.totalorder %s14, 4
    // Predicated region
    $region37: #{tpu_custom_call.1} parent=5 // pred_check
      %p270 = pneg %p269
    $region38: #{tpu_custom_call.1} parent=5 // pred_check_branch
      %272 = sbr.rel (%p270) target = $region40
    $region39: #{tpu_custom_call.1} parent=5 // pred_region
      // Predicated region
      $region41: #{tpu_custom_call.1} parent=39 // pred_check
        %p273 = pneg %p48
      $region42: #{tpu_custom_call.1} parent=39 // pred_check_branch
        %275 = sbr.rel (%p273) target = $region44
      $region43: #{tpu_custom_call.1} parent=39 // pred_region
        %p276 = scmp.lt.s32.totalorder %s21, 1
        %s277 = scalar_select %p276, %s21, 1
        %p278 = scmp.lt.s32.totalorder %s22, 1
        %s279 = scalar_select %p278, %s22, 1
        %s280 = smul.addr %s279, 40
        %s281 = smul.addr %s277, 80
        %s282 = sadd.s32 %s280, %s281
        %s283 = smul.addr %s282, 4
        %s284 = scalar_lea.vmem %s0, %s283
      $region44: #{tpu_custom_call.1} parent=39 // pred_fallthru
        _
      // Predicated region
      $region45: #{tpu_custom_call.1} parent=39 // pred_check
        %p285 = pneg %p76
      $region46: #{tpu_custom_call.1} parent=39 // pred_check_branch
        %287 = sbr.rel (%p285) target = $region48
      $region47: #{tpu_custom_call.1} parent=39 // pred_region
        %p288 = scmp.lt.s32.totalorder %s21, 1
        %s289 = scalar_select %p288, %s21, 1
        %p290 = scmp.lt.s32.totalorder %s22, 1
        %s291 = scalar_select %p290, %s22, 1
        %s292 = smul.addr %s291, 36
        %s293 = smul.addr %s289, 72
        %s294 = sadd.s32 %s292, %s293
        %s295 = smul.addr %s294, 8
        %s296 = scalar_lea.vmem %s1, %s295
      $region48: #{tpu_custom_call.1} parent=39 // pred_fallthru
        _
    $region40: #{tpu_custom_call.1} parent=5 // pred_fallthru
      _
    %p297 = scmp.le.s32.totalorder 1, %s14
    %p298 = scmp.lt.s32.totalorder %s14, 5
    %p299 = pnand %p297, %p298
    %p300 = pneg %p299
    // Predicated region
    $region49: #{tpu_custom_call.1} parent=5 // pred_check
      _
    $region50: #{tpu_custom_call.1} parent=5 // pred_check_branch
      %302 = sbr.rel (%p299) target = $region52
    $region51: #{tpu_custom_call.1} parent=5 // pred_region
      %s303 = ssub.s32 %s14, 1
      %p304 = scmp.lt.s32.totalorder %s23, 1
      %s305 = scalar_select %p304, %s23, 1
      %p306 = scmp.lt.s32.totalorder %s24, 1
      %s307 = scalar_select %p306, %s24, 1
      %s308 = smul.addr %s307, 40
      %s309 = smul.addr %s305, 80
      %s310 = sadd.s32 %s308, %s309
      %s311 = smul.addr %s310, 4
      %s312 = scalar_lea.vmem %s0, %s311
      %p313 = pneg %p54
      %p314 = pneg %p51
      %p315 = scmp.lt.s32.totalorder %s23, 1
      %s316 = scalar_select %p315, %s23, 1
      %p317 = scmp.lt.s32.totalorder %s24, 1
      %s318 = scalar_select %p317, %s24, 1
      %s319 = smul.addr %s318, 36
      %s320 = smul.addr %s316, 72
      %s321 = sadd.s32 %s319, %s320
      %s322 = smul.addr %s321, 8
      %s323 = scalar_lea.vmem %s1, %s322
      %p324 = pneg %p82
      %p325 = pneg %p79
      %p326 = pneg %p103
      %p327 = pneg %p100
      %p328 = pneg %p124
      %p329 = pneg %p121
      %p330 = pneg %p145
      %p331 = pneg %p142
      %p332 = pneg %p166
      %p333 = pneg %p163
      %p334 = pneg %p187
      %p335 = pneg %p184
      %p336 = pneg %p208
      %p337 = pneg %p205
      %p338 = pneg %p236
      %p339 = pneg %p233
      %s340 = smul.u32 8, %s24
      %p341 = scmp.lt.s32.totalorder %s23, 1
      %s342 = scalar_select %p341, %s23, 1
      %p343 = scmp.lt.s32.totalorder %s340, 15
      %s344 = scalar_select %p343, %s340, 15
      %s345 = smul.addr %s344, 2
      %s346 = smul.addr %s342, 32
      %s347 = sadd.s32 %s345, %s346
      %s348 = smul.addr %s347, 8
      %s349 = scalar_lea.vmem %s8, %s348
      %p350 = scmp.lt.s32.totalorder %s23, 1
      %s351 = scalar_select %p350, %s23, 1
      %p352 = scmp.lt.s32.totalorder %s24, 1
      %s353 = scalar_select %p352, %s24, 1
      %s354 = smul.addr %s353, 40
      %s355 = smul.addr %s351, 80
      %s356 = sadd.s32 %s354, %s355
      %s357 = smul.addr %s356, 4
      %s358 = scalar_lea.vmem %s0, %s357
      %p359 = scmp.lt.s32.totalorder %s23, 1
      %s360 = scalar_select %p359, %s23, 1
      %p361 = scmp.lt.s32.totalorder %s24, 1
      %s362 = scalar_select %p361, %s24, 1
      %s363 = smul.addr %s362, 36
      %s364 = smul.addr %s360, 72
      %s365 = sadd.s32 %s363, %s364
      %s366 = smul.addr %s365, 8
      %s367 = scalar_lea.vmem %s1, %s366
      %s368 = smul.u32 8, %s24
      %p369 = scmp.lt.s32.totalorder %s23, 1
      %s370 = scalar_select %p369, %s23, 1
      %p371 = scmp.lt.s32.totalorder %s368, 15
      %s372 = scalar_select %p371, %s368, 15
      %s373 = smul.addr %s372, 2
      %s374 = smul.addr %s370, 32
      %s375 = sadd.s32 %s373, %s374
      %s376 = smul.addr %s375, 8
      %s377 = scalar_lea.vmem %s8, %s376
      %s378 = smul.u32 8, %s24
      %v380 = vld [vmem:[%s358] sm:$0xff]
      %v381 = vld [vmem:[%s358 + $0x8] sm:$0xff]
      %v382 = vld [vmem:[%s358 + $0x10] sm:$0xff]
      %v383 = vld [vmem:[%s358 + $0x18] sm:$0xff]
      %v384 = vld [vmem:[%s358 + $0x20] sm:$0xff]
      %v385 = vld [vmem:[%s358 + $0x28] sm:$0xff]
      %v386 = vld [vmem:[%s358 + $0x30] sm:$0xff]
      %v387 = vld [vmem:[%s358 + $0x38] sm:$0xff]
      %v388 = vld [vmem:[%s358 + $0x40] sm:$0xff]
      %v389 = vld [vmem:[%s358 + $0x48] sm:$0xff]
      %v390 = vld [vmem:[%s358 + $0x50] sm:$0xff]
      %v391 = vld [vmem:[%s358 + $0x58] sm:$0xff]
      %v392 = vld [vmem:[%s358 + $0x60] sm:$0xff]
      %v393 = vld [vmem:[%s358 + $0x68] sm:$0xff]
      %v394 = vld [vmem:[%s358 + $0x70] sm:$0xff]
      %v395 = vld [vmem:[%s358 + $0x78] sm:$0xff]
      %v396 = vld [vmem:[%s358 + $0x80] sm:$0xff]
      %v397 = vld [vmem:[%s358 + $0x88] sm:$0xff]
      %v398 = vld [vmem:[%s358 + $0x90] sm:$0xff]
      %v399 = vld [vmem:[%s358 + $0x98] sm:$0xff]
      %v400 = vld [vmem:[%s5] sm:$0x1]
      %v402 = vlaneseq
      %v403 = vshrl.u32 %v402, 7
      %v404 = vsub.s32 0, %v403
      %v405 = vrot.slane %v400, %v404
      %v407 = vadd.f32 %v405, 0.0
      %v408 = vld [vmem:[%s2] sm:$0xf]
      %v409 = vld [vmem:[%s2 + $0x4] sm:$0xf]
      %v410 = vld [vmem:[%s2 + $0x8] sm:$0xf]
      %v411 = vld [vmem:[%s2 + $0xc] sm:$0xf]
      %v412 = vld [vmem:[%s2 + $0x10] sm:$0xf]
      %v413 = vld [vmem:[%s2 + $0x14] sm:$0xf]
      %v414 = vld [vmem:[%s2 + $0x18] sm:$0xf]
      %v415 = vld [vmem:[%s2 + $0x1c] sm:$0xf]
      %v416 = vld [vmem:[%s2 + $0x20] sm:$0xf]
      %v417 = vld [vmem:[%s2 + $0x24] sm:$0xf]
      %v418 = vld [vmem:[%s2 + $0x28] sm:$0xf]
      %v419 = vld [vmem:[%s2 + $0x2c] sm:$0xf]
      %v420 = vld [vmem:[%s2 + $0x30] sm:$0xf]
      %v421 = vld [vmem:[%s2 + $0x34] sm:$0xf]
      %v422 = vld [vmem:[%s2 + $0x38] sm:$0xf]
      %v423 = vld [vmem:[%s2 + $0x3c] sm:$0xf]
      %v424 = vld [vmem:[%s2 + $0x40] sm:$0xf]
      %v425 = vld [vmem:[%s2 + $0x44] sm:$0xf]
      %v426 = vld [vmem:[%s2 + $0x48] sm:$0x3]
      %v427 = vld [vmem:[%s3] sm:$0x1]
      %v429 = vlaneseq
      %v430 = vshrl.u32 %v429, 7
      %v431 = vsub.s32 0, %v430
      %v432 = vrot.slane %v427, %v431
      %v454 = vunpack.c.l.b16 %v380
      %v455 = vunpack.c.h.b16 %v380
      %v456 = vunpack.c.l.b16 %v381
      %v457 = vunpack.c.h.b16 %v381
      %v458 = vunpack.c.l.b16 %v382
      %v459 = vunpack.c.h.b16 %v382
      %v460 = vunpack.c.l.b16 %v383
      %v461 = vunpack.c.h.b16 %v383
      %v462 = vunpack.c.l.b16 %v384
      %v463 = vunpack.c.h.b16 %v384
      %v464 = vunpack.c.l.b16 %v385
      %v465 = vunpack.c.h.b16 %v385
      %v466 = vunpack.c.l.b16 %v386
      %v467 = vunpack.c.h.b16 %v386
      %v468 = vunpack.c.l.b16 %v387
      %v469 = vunpack.c.h.b16 %v387
      %v470 = vunpack.c.l.b16 %v388
      %v471 = vunpack.c.h.b16 %v388
      %v472 = vunpack.c.l.b16 %v389
      %v473 = vunpack.c.h.b16 %v389
      %v474 = vunpack.c.l.b16 %v390
      %v475 = vunpack.c.h.b16 %v390
      %v476 = vunpack.c.l.b16 %v391
      %v477 = vunpack.c.h.b16 %v391
      %v478 = vunpack.c.l.b16 %v392
      %v479 = vunpack.c.h.b16 %v392
      %v480 = vunpack.c.l.b16 %v393
      %v481 = vunpack.c.h.b16 %v393
      %v482 = vunpack.c.l.b16 %v394
      %v483 = vunpack.c.h.b16 %v394
      %v484 = vunpack.c.l.b16 %v395
      %v485 = vunpack.c.h.b16 %v395
      %v486 = vunpack.c.l.b16 %v396
      %v487 = vunpack.c.h.b16 %v396
      %v488 = vunpack.c.l.b16 %v397
      %v489 = vunpack.c.h.b16 %v397
      %v490 = vunpack.c.l.b16 %v398
      %v491 = vunpack.c.h.b16 %v398
      %v492 = vunpack.c.l.b16 %v399
      %v493 = vunpack.c.h.b16 %v399
      %v494 = vpack.c.b16 %v456, %v454
      %v495 = vpack.c.b16 %v457, %v455
      %v496 = vpack.c.b16 %v460, %v458
      %v497 = vpack.c.b16 %v461, %v459
      %v498 = vpack.c.b16 %v464, %v462
      %v499 = vpack.c.b16 %v465, %v463
      %v500 = vpack.c.b16 %v468, %v466
      %v501 = vpack.c.b16 %v469, %v467
      %v502 = vpack.c.b16 %v472, %v470
      %v503 = vpack.c.b16 %v473, %v471
      %v504 = vpack.c.b16 %v476, %v474
      %v505 = vpack.c.b16 %v477, %v475
      %v506 = vpack.c.b16 %v480, %v478
      %v507 = vpack.c.b16 %v481, %v479
      %v508 = vpack.c.b16 %v484, %v482
      %v509 = vpack.c.b16 %v485, %v483
      %v510 = vpack.c.b16 %v488, %v486
      %v511 = vpack.c.b16 %v489, %v487
      %v512 = vpack.c.b16 %v492, %v490
      %v513 = vpack.c.b16 %v493, %v491
      %v543 = vunpack.c.l.b16 %v408
      %v544 = vunpack.c.l.b16 %v409
      %v545 = vunpack.c.l.b16 %v410
      %v546 = vunpack.c.l.b16 %v411
      %v547 = vunpack.c.l.b16 %v412
      %v548 = vunpack.c.l.b16 %v413
      %v549 = vunpack.c.l.b16 %v414
      %v550 = vunpack.c.l.b16 %v415
      %v551 = vunpack.c.l.b16 %v416
      %v552 = vunpack.c.l.b16 %v417
      %v553 = vunpack.c.l.b16 %v418
      %v554 = vunpack.c.l.b16 %v419
      %v555 = vunpack.c.l.b16 %v420
      %v556 = vunpack.c.l.b16 %v421
      %v557 = vunpack.c.l.b16 %v422
      %v558 = vunpack.c.l.b16 %v423
      %v559 = vunpack.c.l.b16 %v424
      %v560 = vunpack.c.l.b16 %v425
      %v561 = vunpack.c.l.b16 %v426
      %v562 = vpack.c.b16 %v544, %v543
      %v563 = vpack.c.b16 %v546, %v545
      %v564 = vpack.c.b16 %v548, %v547
      %v565 = vpack.c.b16 %v550, %v549
      %v566 = vpack.c.b16 %v552, %v551
      %v567 = vpack.c.b16 %v554, %v553
      %v568 = vpack.c.b16 %v556, %v555
      %v569 = vpack.c.b16 %v558, %v557
      %v570 = vpack.c.b16 %v560, %v559
      %v571 = vpack.c.b16 %v561, %v561
      %vm581 = vcmask 154624
      %v583 = vsel %vm581, %v495, 0
      %v586 = vsel %vm581, %v497, 0
      %v589 = vsel %vm581, %v499, 0
      %v592 = vsel %vm581, %v501, 0
      %v595 = vsel %vm581, %v503, 0
      %v598 = vsel %vm581, %v505, 0
      %v601 = vsel %vm581, %v507, 0
      %v604 = vsel %vm581, %v509, 0
      %v607 = vsel %vm581, %v511, 0
      %v610 = vsel %vm581, %v513, 0
      %vm612 = vcmask 1040384
      %vm613 = vcmask 1041408
      %v614 = vsel %vm612, 4294967295, 65535
      %v615 = vsel %vm613, %v614, 0
      %v617 = vand.u32 %v571, %v615
      %619 = vmatprep.subr.bf16.mxu0 0
      %620 = vmatpush1.bf16.msra.mxu0 %v562
      %621 = vmatprep.subr.bf16.mxu0 0
      %622 = vmatpush1.bf16.msra.mxu0 %v563
      %623 = vmatprep.subr.bf16.mxu0 0
      %624 = vmatpush1.bf16.msra.mxu0 %v564
      %625 = vmatprep.subr.bf16.mxu0 0
      %626 = vmatpush1.bf16.msra.mxu0 %v565
      %627 = vmatprep.subr.bf16.mxu0 0
      %628 = vmatpush1.bf16.msra.mxu0 %v566
      %629 = vmatprep.subr.bf16.mxu0 0
      %630 = vmatpush1.bf16.msra.mxu0 %v567
      %631 = vmatprep.subr.bf16.mxu0 0
      %632 = vmatpush1.bf16.msra.mxu0 %v568
      %633 = vmatprep.subr.bf16.mxu0 0
      %634 = vmatpush1.bf16.msra.mxu0 %v569
      %635 = vmatprep.subr.bf16.mxu0 0
      %636 = vmatpush1.bf16.msra.mxu0 %v570
      %637 = vmatprep.subr.bf16.mxu0 0
      %638 = vmatpush1.bf16.msra.mxu0 %v617
      %639 = vmatprep.subr.bf16.mxu0 0
      %640 = vmatpush1.bf16.msra.mxu0 0
      %641 = vmatprep.subr.bf16.mxu0 0
      %642 = vmatpush1.bf16.msra.mxu0 0
      %643 = vmatprep.subr.bf16.mxu0 0
      %644 = vmatpush1.bf16.msra.mxu0 0
      %645 = vmatprep.subr.bf16.mxu0 0
      %646 = vmatpush1.bf16.msra.mxu0 0
      %647 = vmatprep.subr.bf16.mxu0 0
      %648 = vmatpush1.bf16.msra.mxu0 0
      %649 = vmatprep.subr.bf16.mxu0 0
      %650 = vmatpush1.bf16.msra.mxu0 0
      %651 = vmatprep.mubr.bf16.mxu0 %v583
      %652 = vmatmul.mubr.bf16.gmra.mrb[0].mxu0 %v494
      %v653 = vpop.f32.mrb[0].mxu0
      %v654 = vadd.f32 %v432, %v653
      %v655 = vpop.f32.mrb[0].mxu0
      %v656 = vpop.f32.mrb[0].mxu0
      %v657 = vadd.f32 %v432, %v656
      %v658 = vpop.f32.mrb[0].mxu0
      %659 = vmatprep.mubr.bf16.mxu0 %v586
      %660 = vmatmul.mubr.bf16.gmra.mrb[0].mxu0 %v496
      %v661 = vpop.f32.mrb[0].mxu0
      %v662 = vadd.f32 %v432, %v661
      %v663 = vpop.f32.mrb[0].mxu0
      %v664 = vpop.f32.mrb[0].mxu0
      %v665 = vadd.f32 %v432, %v664
      %v666 = vpop.f32.mrb[0].mxu0
      %667 = vmatprep.mubr.bf16.mxu0 %v589
      %668 = vmatmul.mubr.bf16.gmra.mrb[0].mxu0 %v498
      %v669 = vpop.f32.mrb[0].mxu0
      %v670 = vadd.f32 %v432, %v669
      %v671 = vpop.f32.mrb[0].mxu0
      %v672 = vpop.f32.mrb[0].mxu0
      %v673 = vadd.f32 %v432, %v672
      %v674 = vpop.f32.mrb[0].mxu0
      %675 = vmatprep.mubr.bf16.mxu0 %v592
      %676 = vmatmul.mubr.bf16.gmra.mrb[0].mxu0 %v500
      %v677 = vpop.f32.mrb[0].mxu0
      %v678 = vadd.f32 %v432, %v677
      %v679 = vpop.f32.mrb[0].mxu0
      %v680 = vpop.f32.mrb[0].mxu0
      %v681 = vadd.f32 %v432, %v680
      %v682 = vpop.f32.mrb[0].mxu0
      %683 = vmatprep.mubr.bf16.mxu0 %v595
      %684 = vmatmul.mubr.bf16.gmra.mrb[0].mxu0 %v502
      %v685 = vpop.f32.mrb[0].mxu0
      %v686 = vadd.f32 %v432, %v685
      %v687 = vpop.f32.mrb[0].mxu0
      %v688 = vpop.f32.mrb[0].mxu0
      %v689 = vadd.f32 %v432, %v688
      %v690 = vpop.f32.mrb[0].mxu0
      %691 = vmatprep.mubr.bf16.mxu0 %v598
      %692 = vmatmul.mubr.bf16.gmra.mrb[0].mxu0 %v504
      %v693 = vpop.f32.mrb[0].mxu0
      %v694 = vadd.f32 %v432, %v693
      %v695 = vpop.f32.mrb[0].mxu0
      %v696 = vpop.f32.mrb[0].mxu0
      %v697 = vadd.f32 %v432, %v696
      %v698 = vpop.f32.mrb[0].mxu0
      %699 = vmatprep.mubr.bf16.mxu0 %v601
      %700 = vmatmul.mubr.bf16.gmra.mrb[0].mxu0 %v506
      %v701 = vpop.f32.mrb[0].mxu0
      %v702 = vadd.f32 %v432, %v701
      %v703 = vpop.f32.mrb[0].mxu0
      %v704 = vpop.f32.mrb[0].mxu0
      %v705 = vadd.f32 %v432, %v704
      %v706 = vpop.f32.mrb[0].mxu0
      %707 = vmatprep.mubr.bf16.mxu0 %v604
      %708 = vmatmul.mubr.bf16.gmra.mrb[0].mxu0 %v508
      %v709 = vpop.f32.mrb[0].mxu0
      %v710 = vadd.f32 %v432, %v709
      %v711 = vpop.f32.mrb[0].mxu0
      %v712 = vpop.f32.mrb[0].mxu0
      %v713 = vadd.f32 %v432, %v712
      %v714 = vpop.f32.mrb[0].mxu0
      %715 = vmatprep.mubr.bf16.mxu0 %v607
      %716 = vmatmul.mubr.bf16.gmra.mrb[0].mxu0 %v510
      %v717 = vpop.f32.mrb[0].mxu0
      %v718 = vadd.f32 %v432, %v717
      %v719 = vpop.f32.mrb[0].mxu0
      %v720 = vpop.f32.mrb[0].mxu0
      %v721 = vadd.f32 %v432, %v720
      %v722 = vpop.f32.mrb[0].mxu0
      %723 = vmatprep.mubr.bf16.mxu0 %v610
      %724 = vmatmul.mubr.bf16.gmra.mrb[0].mxu0 %v512
      %v725 = vpop.f32.mrb[0].mxu0
      %v726 = vadd.f32 %v432, %v725
      %v727 = vpop.f32.mrb[0].mxu0
      %v728 = vpop.f32.mrb[0].mxu0
      %v729 = vadd.f32 %v432, %v728
      %v730 = vpop.f32.mrb[0].mxu0
      %731 = vdwg.mxu0
      %v732 = vsub.f32 0.0, %v654
      %v733 = vsub.f32 0.0, %v657
      %v734 = vsub.f32 0.0, %v662
      %v735 = vsub.f32 0.0, %v665
      %v736 = vsub.f32 0.0, %v670
      %v737 = vsub.f32 0.0, %v673
      %v738 = vsub.f32 0.0, %v678
      %v739 = vsub.f32 0.0, %v681
      %v740 = vsub.f32 0.0, %v686
      %v741 = vsub.f32 0.0, %v689
      %v742 = vsub.f32 0.0, %v694
      %v743 = vsub.f32 0.0, %v697
      %v744 = vsub.f32 0.0, %v702
      %v745 = vsub.f32 0.0, %v705
      %v746 = vsub.f32 0.0, %v710
      %v747 = vsub.f32 0.0, %v713
      %v748 = vsub.f32 0.0, %v718
      %v749 = vsub.f32 0.0, %v721
      %v750 = vsub.f32 0.0, %v726
      %v751 = vsub.f32 0.0, %v729
      %v752 = vmul.f32 %v732, 1.442695
      %v753 = vpow.pop %v752
      %v754 = vmul.f32 %v733, 1.442695
      %v755 = vpow.pop %v754
      %v756 = vmul.f32 %v734, 1.442695
      %v757 = vpow.pop %v756
      %v758 = vmul.f32 %v735, 1.442695
      %v759 = vpow.pop %v758
      %v760 = vmul.f32 %v736, 1.442695
      %v761 = vpow.pop %v760
      %v762 = vmul.f32 %v737, 1.442695
      %v763 = vpow.pop %v762
      %v764 = vmul.f32 %v738, 1.442695
      %v765 = vpow.pop %v764
      %v766 = vmul.f32 %v739, 1.442695
      %v767 = vpow.pop %v766
      %v768 = vmul.f32 %v740, 1.442695
      %v769 = vpow.pop %v768
      %v770 = vmul.f32 %v741, 1.442695
      %v771 = vpow.pop %v770
      %v772 = vmul.f32 %v742, 1.442695
      %v773 = vpow.pop %v772
      %v774 = vmul.f32 %v743, 1.442695
      %v775 = vpow.pop %v774
      %v776 = vmul.f32 %v744, 1.442695
      %v777 = vpow.pop %v776
      %v778 = vmul.f32 %v745, 1.442695
      %v779 = vpow.pop %v778
      %v780 = vmul.f32 %v746, 1.442695
      %v781 = vpow.pop %v780
      %v782 = vmul.f32 %v747, 1.442695
      %v783 = vpow.pop %v782
      %v784 = vmul.f32 %v748, 1.442695
      %v785 = vpow.pop %v784
      %v786 = vmul.f32 %v749, 1.442695
      %v787 = vpow.pop %v786
      %v788 = vmul.f32 %v750, 1.442695
      %v789 = vpow.pop %v788
      %v790 = vmul.f32 %v751, 1.442695
      %v791 = vpow.pop %v790
      %v792 = vadd.f32 %v753, 1.0
      %v793 = vadd.f32 %v755, 1.0
      %v794 = vadd.f32 %v757, 1.0
      %v795 = vadd.f32 %v759, 1.0
      %v796 = vadd.f32 %v761, 1.0
      %v797 = vadd.f32 %v763, 1.0
      %v798 = vadd.f32 %v765, 1.0
      %v799 = vadd.f32 %v767, 1.0
      %v800 = vadd.f32 %v769, 1.0
      %v801 = vadd.f32 %v771, 1.0
      %v802 = vadd.f32 %v773, 1.0
      %v803 = vadd.f32 %v775, 1.0
      %v804 = vadd.f32 %v777, 1.0
      %v805 = vadd.f32 %v779, 1.0
      %v806 = vadd.f32 %v781, 1.0
      %v807 = vadd.f32 %v783, 1.0
      %v808 = vadd.f32 %v785, 1.0
      %v809 = vadd.f32 %v787, 1.0
      %v810 = vadd.f32 %v789, 1.0
      %v811 = vadd.f32 %v791, 1.0
      %v812 = vrcp.pop %v792
      %v813 = vrcp.pop %v793
      %v814 = vrcp.pop %v794
      %v815 = vrcp.pop %v795
      %v816 = vrcp.pop %v796
      %v817 = vrcp.pop %v797
      %v818 = vrcp.pop %v798
      %v819 = vrcp.pop %v799
      %v820 = vrcp.pop %v800
      %v821 = vrcp.pop %v801
      %v822 = vrcp.pop %v802
      %v823 = vrcp.pop %v803
      %v824 = vrcp.pop %v804
      %v825 = vrcp.pop %v805
      %v826 = vrcp.pop %v806
      %v827 = vrcp.pop %v807
      %v828 = vrcp.pop %v808
      %v829 = vrcp.pop %v809
      %v830 = vrcp.pop %v810
      %v831 = vrcp.pop %v811
      %v832 = vld [vmem:[%s367] sm:$0xff]
      %v833 = vld [vmem:[%s367 + $0x8] sm:$0xff]
      %v834 = vld [vmem:[%s367 + $0x18] sm:$0xff]
      %v835 = vld [vmem:[%s367 + $0x20] sm:$0xff]
      %v836 = vld [vmem:[%s367 + $0x30] sm:$0xff]
      %v837 = vld [vmem:[%s367 + $0x38] sm:$0xff]
      %v838 = vld [vmem:[%s367 + $0x48] sm:$0xff]
      %v839 = vld [vmem:[%s367 + $0x50] sm:$0xff]
      %v840 = vld [vmem:[%s367 + $0x60] sm:$0xff]
      %v841 = vld [vmem:[%s367 + $0x68] sm:$0xff]
      %v842 = vld [vmem:[%s367 + $0x78] sm:$0xff]
      %v843 = vld [vmem:[%s367 + $0x80] sm:$0xff]
      %v844 = vld [vmem:[%s367 + $0x90] sm:$0xff]
      %v845 = vld [vmem:[%s367 + $0x98] sm:$0xff]
      %v846 = vld [vmem:[%s367 + $0xa8] sm:$0xff]
      %v847 = vld [vmem:[%s367 + $0xb0] sm:$0xff]
      %v848 = vld [vmem:[%s367 + $0xc0] sm:$0xff]
      %v849 = vld [vmem:[%s367 + $0xc8] sm:$0xff]
      %v850 = vld [vmem:[%s367 + $0xd8] sm:$0xff]
      %v851 = vld [vmem:[%s367 + $0xe0] sm:$0xff]
      %v852 = vmul.f32 %v812, %v832
      %v853 = vmul.f32 %v813, %v833
      %v854 = vmul.f32 %v814, %v834
      %v855 = vmul.f32 %v815, %v835
      %v856 = vmul.f32 %v816, %v836
      %v857 = vmul.f32 %v817, %v837
      %v858 = vmul.f32 %v818, %v838
      %v859 = vmul.f32 %v819, %v839
      %v860 = vmul.f32 %v820, %v840
      %v861 = vmul.f32 %v821, %v841
      %v862 = vmul.f32 %v822, %v842
      %v863 = vmul.f32 %v823, %v843
      %v864 = vmul.f32 %v824, %v844
      %v865 = vmul.f32 %v825, %v845
      %v866 = vmul.f32 %v826, %v846
      %v867 = vmul.f32 %v827, %v847
      %v868 = vmul.f32 %v828, %v848
      %v869 = vmul.f32 %v829, %v849
      %v870 = vmul.f32 %v830, %v850
      %v871 = vmul.f32 %v831, %v851
      %v872 = vpack.c.bf16 %v853, %v852
      %v873 = vpack.c.bf16 %v855, %v854
      %v874 = vpack.c.bf16 %v857, %v856
      %v875 = vpack.c.bf16 %v859, %v858
      %v876 = vpack.c.bf16 %v861, %v860
      %v877 = vpack.c.bf16 %v863, %v862
      %v878 = vpack.c.bf16 %v865, %v864
      %v879 = vpack.c.bf16 %v867, %v866
      %v880 = vpack.c.bf16 %v869, %v868
      %v881 = vpack.c.bf16 %v871, %v870
      %v882 = vld [vmem:[%s4] sm:$0x3]
      %vm883 = vcmask 31744
      %v885 = vsel %vm883, %v872, 0
      %v888 = vsel %vm883, %v873, 0
      %v891 = vsel %vm883, %v874, 0
      %v894 = vsel %vm883, %v875, 0
      %v897 = vsel %vm883, %v876, 0
      %v900 = vsel %vm883, %v877, 0
      %v903 = vsel %vm883, %v878, 0
      %v906 = vsel %vm883, %v879, 0
      %v909 = vsel %vm883, %v880, 0
      %v912 = vsel %vm883, %v881, 0
      %v915 = vsel %vm613, %v882, 0
      %917 = vmatprep.subr.bf16.mxu0 0
      %918 = vmatpush1.bf16.msra.mxu0 %v915
      %919 = vmatprep.subr.bf16.mxu0 0
      %920 = vmatpush1.bf16.msra.mxu0 0
      %921 = vmatprep.subr.bf16.mxu0 0
      %922 = vmatpush1.bf16.msra.mxu0 0
      %923 = vmatprep.subr.bf16.mxu0 0
      %924 = vmatpush1.bf16.msra.mxu0 0
      %925 = vmatprep.subr.bf16.mxu0 0
      %926 = vmatpush1.bf16.msra.mxu0 0
      %927 = vmatprep.subr.bf16.mxu0 0
      %928 = vmatpush1.bf16.msra.mxu0 0
      %929 = vmatprep.subr.bf16.mxu0 0
      %930 = vmatpush1.bf16.msra.mxu0 0
      %931 = vmatprep.subr.bf16.mxu0 0
      %932 = vmatpush1.bf16.msra.mxu0 0
      %933 = vmatprep.subr.bf16.mxu0 0
      %934 = vmatpush1.bf16.msra.mxu0 0
      %935 = vmatprep.subr.bf16.mxu0 0
      %936 = vmatpush1.bf16.msra.mxu0 0
      %937 = vmatprep.subr.bf16.mxu0 0
      %938 = vmatpush1.bf16.msra.mxu0 0
      %939 = vmatprep.subr.bf16.mxu0 0
      %940 = vmatpush1.bf16.msra.mxu0 0
      %941 = vmatprep.subr.bf16.mxu0 0
      %942 = vmatpush1.bf16.msra.mxu0 0
      %943 = vmatprep.subr.bf16.mxu0 0
      %944 = vmatpush1.bf16.msra.mxu0 0
      %945 = vmatprep.subr.bf16.mxu0 0
      %946 = vmatpush1.bf16.msra.mxu0 0
      %947 = vmatprep.subr.bf16.mxu0 0
      %948 = vmatpush1.bf16.msra.mxu0 0
      %949 = vmatprep.mubr.bf16.mxu0 0
      %950 = vmatmul.mubr.bf16.gmra.mrb[0].mxu0 %v885
      %v951 = vpop.f32.mrb[0].mxu0
      %v952 = vadd.f32 0.0, %v951
      %v953 = vpop.f32.mrb[0].mxu0
      %v954 = vpop.f32.mrb[0].mxu0
      %v955 = vadd.f32 0.0, %v954
      %v956 = vpop.f32.mrb[0].mxu0
      %957 = vmatprep.mubr.bf16.mxu0 0
      %958 = vmatmul.mubr.bf16.gmra.mrb[0].mxu0 %v888
      %v959 = vpop.f32.mrb[0].mxu0
      %v960 = vadd.f32 0.0, %v959
      %v961 = vpop.f32.mrb[0].mxu0
      %v962 = vpop.f32.mrb[0].mxu0
      %v963 = vadd.f32 0.0, %v962
      %v964 = vpop.f32.mrb[0].mxu0
      %965 = vmatprep.mubr.bf16.mxu0 0
      %966 = vmatmul.mubr.bf16.gmra.mrb[0].mxu0 %v891
      %v967 = vpop.f32.mrb[0].mxu0
      %v968 = vadd.f32 0.0, %v967
      %v969 = vpop.f32.mrb[0].mxu0
      %v970 = vpop.f32.mrb[0].mxu0
      %v971 = vadd.f32 0.0, %v970
      %v972 = vpop.f32.mrb[0].mxu0
      %973 = vmatprep.mubr.bf16.mxu0 0
      %974 = vmatmul.mubr.bf16.gmra.mrb[0].mxu0 %v894
      %v975 = vpop.f32.mrb[0].mxu0
      %v976 = vadd.f32 0.0, %v975
      %v977 = vpop.f32.mrb[0].mxu0
      %v978 = vpop.f32.mrb[0].mxu0
      %v979 = vadd.f32 0.0, %v978
      %v980 = vpop.f32.mrb[0].mxu0
      %981 = vmatprep.mubr.bf16.mxu0 0
      %982 = vmatmul.mubr.bf16.gmra.mrb[0].mxu0 %v897
      %v983 = vpop.f32.mrb[0].mxu0
      %v984 = vadd.f32 0.0, %v983
      %v985 = vpop.f32.mrb[0].mxu0
      %v986 = vpop.f32.mrb[0].mxu0
      %v987 = vadd.f32 0.0, %v986
      %v988 = vpop.f32.mrb[0].mxu0
      %989 = vmatprep.mubr.bf16.mxu0 0
      %990 = vmatmul.mubr.bf16.gmra.mrb[0].mxu0 %v900
      %v991 = vpop.f32.mrb[0].mxu0
      %v992 = vadd.f32 0.0, %v991
      %v993 = vpop.f32.mrb[0].mxu0
      %v994 = vpop.f32.mrb[0].mxu0
      %v995 = vadd.f32 0.0, %v994
      %v996 = vpop.f32.mrb[0].mxu0
      %997 = vmatprep.mubr.bf16.mxu0 0
      %998 = vmatmul.mubr.bf16.gmra.mrb[0].mxu0 %v903
      %v999 = vpop.f32.mrb[0].mxu0
      %v1000 = vadd.f32 0.0, %v999
      %v1001 = vpop.f32.mrb[0].mxu0
      %v1002 = vpop.f32.mrb[0].mxu0
      %v1003 = vadd.f32 0.0, %v1002
      %v1004 = vpop.f32.mrb[0].mxu0
      %1005 = vmatprep.mubr.bf16.mxu0 0
      %1006 = vmatmul.mubr.bf16.gmra.mrb[0].mxu0 %v906
      %v1007 = vpop.f32.mrb[0].mxu0
      %v1008 = vadd.f32 0.0, %v1007
      %v1009 = vpop.f32.mrb[0].mxu0
      %v1010 = vpop.f32.mrb[0].mxu0
      %v1011 = vadd.f32 0.0, %v1010
      %v1012 = vpop.f32.mrb[0].mxu0
      %1013 = vmatprep.mubr.bf16.mxu0 0
      %1014 = vmatmul.mubr.bf16.gmra.mrb[0].mxu0 %v909
      %v1015 = vpop.f32.mrb[0].mxu0
      %v1016 = vadd.f32 0.0, %v1015
      %v1017 = vpop.f32.mrb[0].mxu0
      %v1018 = vpop.f32.mrb[0].mxu0
      %v1019 = vadd.f32 0.0, %v1018
      %v1020 = vpop.f32.mrb[0].mxu0
      %1021 = vmatprep.mubr.bf16.mxu0 0
      %1022 = vmatmul.mubr.bf16.gmra.mrb[0].mxu0 %v912
      %v1023 = vpop.f32.mrb[0].mxu0
      %v1024 = vadd.f32 0.0, %v1023
      %v1025 = vpop.f32.mrb[0].mxu0
      %v1026 = vpop.f32.mrb[0].mxu0
      %v1027 = vadd.f32 0.0, %v1026
      %v1028 = vpop.f32.mrb[0].mxu0
      %1029 = vdwg.mxu0
      %v1030 = vadd.f32 %v407, %v952
      %v1031 = vadd.f32 %v407, %v955
      %v1032 = vadd.f32 %v407, %v960
      %v1033 = vadd.f32 %v407, %v963
      %v1034 = vadd.f32 %v407, %v968
      %v1035 = vadd.f32 %v407, %v971
      %v1036 = vadd.f32 %v407, %v976
      %v1037 = vadd.f32 %v407, %v979
      %v1038 = vadd.f32 %v407, %v984
      %v1039 = vadd.f32 %v407, %v987
      %v1040 = vadd.f32 %v407, %v992
      %v1041 = vadd.f32 %v407, %v995
      %v1042 = vadd.f32 %v407, %v1000
      %v1043 = vadd.f32 %v407, %v1003
      %v1044 = vadd.f32 %v407, %v1008
      %v1045 = vadd.f32 %v407, %v1011
      %v1046 = vadd.f32 %v407, %v1016
      %v1047 = vadd.f32 %v407, %v1019
      %v1048 = vadd.f32 %v407, %v1024
      %v1049 = vadd.f32 %v407, %v1027
      %s1050 = scalar_lea.vmem %s2, 76
      %v1051 = vld [vmem:[%s1050] sm:$0xf]
      %v1052 = vld [vmem:[%s1050 + $0x4] sm:$0xf]
      %v1053 = vld [vmem:[%s1050 + $0x8] sm:$0xf]
      %v1054 = vld [vmem:[%s1050 + $0xc] sm:$0xf]
      %v1055 = vld [vmem:[%s1050 + $0x10] sm:$0xf]
      %v1056 = vld [vmem:[%s1050 + $0x14] sm:$0xf]
      %v1057 = vld [vmem:[%s1050 + $0x18] sm:$0xf]
      %v1058 = vld [vmem:[%s1050 + $0x1c] sm:$0xf]
      %v1059 = vld [vmem:[%s1050 + $0x20] sm:$0xf]
      %v1060 = vld [vmem:[%s1050 + $0x24] sm:$0xf]
      %v1061 = vld [vmem:[%s1050 + $0x28] sm:$0xf]
      %v1062 = vld [vmem:[%s1050 + $0x2c] sm:$0xf]
      %v1063 = vld [vmem:[%s1050 + $0x30] sm:$0xf]
      %v1064 = vld [vmem:[%s1050 + $0x34] sm:$0xf]
      %v1065 = vld [vmem:[%s1050 + $0x38] sm:$0xf]
      %v1066 = vld [vmem:[%s1050 + $0x3c] sm:$0xf]
      %v1067 = vld [vmem:[%s1050 + $0x40] sm:$0xf]
      %v1068 = vld [vmem:[%s1050 + $0x44] sm:$0xf]
      %v1069 = vld [vmem:[%s1050 + $0x48] sm:$0x3]
      %s1070 = scalar_lea.vmem %s3, 1
      %v1071 = vld [vmem:[%s1070] sm:$0x1]
      %v1073 = vlaneseq
      %v1074 = vshrl.u32 %v1073, 7
      %v1075 = vsub.s32 0, %v1074
      %v1076 = vrot.slane %v1071, %v1075
      %v1097 = vunpack.c.l.b16 %v1051
      %v1098 = vunpack.c.l.b16 %v1052
      %v1099 = vunpack.c.l.b16 %v1053
      %v1100 = vunpack.c.l.b16 %v1054
      %v1101 = vunpack.c.l.b16 %v1055
      %v1102 = vunpack.c.l.b16 %v1056
      %v1103 = vunpack.c.l.b16 %v1057
      %v1104 = vunpack.c.l.b16 %v1058
      %v1105 = vunpack.c.l.b16 %v1059
      %v1106 = vunpack.c.l.b16 %v1060
      %v1107 = vunpack.c.l.b16 %v1061
      %v1108 = vunpack.c.l.b16 %v1062
      %v1109 = vunpack.c.l.b16 %v1063
      %v1110 = vunpack.c.l.b16 %v1064
      %v1111 = vunpack.c.l.b16 %v1065
      %v1112 = vunpack.c.l.b16 %v1066
      %v1113 = vunpack.c.l.b16 %v1067
      %v1114 = vunpack.c.l.b16 %v1068
      %v1115 = vunpack.c.l.b16 %v1069
      %v1116 = vpack.c.b16 %v1098, %v1097
      %v1117 = vpack.c.b16 %v1100, %v1099
      %v1118 = vpack.c.b16 %v1102, %v1101
      %v1119 = vpack.c.b16 %v1104, %v1103
      %v1120 = vpack.c.b16 %v1106, %v1105
      %v1121 = vpack.c.b16 %v1108, %v1107
      %v1122 = vpack.c.b16 %v1110, %v1109
      %v1123 = vpack.c.b16 %v1112, %v1111
      %v1124 = vpack.c.b16 %v1114, %v1113
      %v1125 = vpack.c.b16 %v1115, %v1115
      %v1136 = vand.u32 %v1125, %v615
      %1138 = vmatprep.subr.bf16.mxu0 0
      %1139 = vmatpush1.bf16.msra.mxu0 %v1116
      %1140 = vmatprep.subr.bf16.mxu0 0
      %1141 = vmatpush1.bf16.msra.mxu0 %v1117
      %1142 = vmatprep.subr.bf16.mxu0 0
      %1143 = vmatpush1.bf16.msra.mxu0 %v1118
      %1144 = vmatprep.subr.bf16.mxu0 0
      %1145 = vmatpush1.bf16.msra.mxu0 %v1119
      %1146 = vmatprep.subr.bf16.mxu0 0
      %1147 = vmatpush1.bf16.msra.mxu0 %v1120
      %1148 = vmatprep.subr.bf16.mxu0 0
      %1149 = vmatpush1.bf16.msra.mxu0 %v1121
      %1150 = vmatprep.subr.bf16.mxu0 0
      %1151 = vmatpush1.bf16.msra.mxu0 %v1122
      %1152 = vmatprep.subr.bf16.mxu0 0
      %1153 = vmatpush1.bf16.msra.mxu0 %v1123
      %1154 = vmatprep.subr.bf16.mxu0 0
      %1155 = vmatpush1.bf16.msra.mxu0 %v1124
      %1156 = vmatprep.subr.bf16.mxu0 0
      %1157 = vmatpush1.bf16.msra.mxu0 %v1136
      %1158 = vmatprep.subr.bf16.mxu0 0
      %1159 = vmatpush1.bf16.msra.mxu0 0
      %1160 = vmatprep.subr.bf16.mxu0 0
      %1161 = vmatpush1.bf16.msra.mxu0 0
      %1162 = vmatprep.subr.bf16.mxu0 0
      %1163 = vmatpush1.bf16.msra.mxu0 0
      %1164 = vmatprep.subr.bf16.mxu0 0
      %1165 = vmatpush1.bf16.msra.mxu0 0
      %1166 = vmatprep.subr.bf16.mxu0 0
      %1167 = vmatpush1.bf16.msra.mxu0 0
      %1168 = vmatprep.subr.bf16.mxu0 0
      %1169 = vmatpush1.bf16.msra.mxu0 0
      %1170 = vmatprep.mubr.bf16.mxu0 %v583
      %1171 = vmatmul.mubr.bf16.gmra.mrb[0].mxu0 %v494
      %v1172 = vpop.f32.mrb[0].mxu0
      %v1173 = vadd.f32 %v1076, %v1172
      %v1174 = vpop.f32.mrb[0].mxu0
      %v1175 = vpop.f32.mrb[0].mxu0
      %v1176 = vadd.f32 %v1076, %v1175
      %v1177 = vpop.f32.mrb[0].mxu0
      %1178 = vmatprep.mubr.bf16.mxu0 %v586
      %1179 = vmatmul.mubr.bf16.gmra.mrb[0].mxu0 %v496
      %v1180 = vpop.f32.mrb[0].mxu0
      %v1181 = vadd.f32 %v1076, %v1180
      %v1182 = vpop.f32.mrb[0].mxu0
      %v1183 = vpop.f32.mrb[0].mxu0
      %v1184 = vadd.f32 %v1076, %v1183
      %v1185 = vpop.f32.mrb[0].mxu0
      %1186 = vmatprep.mubr.bf16.mxu0 %v589
      %1187 = vmatmul.mubr.bf16.gmra.mrb[0].mxu0 %v498
      %v1188 = vpop.f32.mrb[0].mxu0
      %v1189 = vadd.f32 %v1076, %v1188
      %v1190 = vpop.f32.mrb[0].mxu0
      %v1191 = vpop.f32.mrb[0].mxu0
      %v1192 = vadd.f32 %v1076, %v1191
      %v1193 = vpop.f32.mrb[0].mxu0
      %1194 = vmatprep.mubr.bf16.mxu0 %v592
      %1195 = vmatmul.mubr.bf16.gmra.mrb[0].mxu0 %v500
      %v1196 = vpop.f32.mrb[0].mxu0
      %v1197 = vadd.f32 %v1076, %v1196
      %v1198 = vpop.f32.mrb[0].mxu0
      %v1199 = vpop.f32.mrb[0].mxu0
      %v1200 = vadd.f32 %v1076, %v1199
      %v1201 = vpop.f32.mrb[0].mxu0
      %1202 = vmatprep.mubr.bf16.mxu0 %v595
      %1203 = vmatmul.mubr.bf16.gmra.mrb[0].mxu0 %v502
      %v1204 = vpop.f32.mrb[0].mxu0
      %v1205 = vadd.f32 %v1076, %v1204
      %v1206 = vpop.f32.mrb[0].mxu0
      %v1207 = vpop.f32.mrb[0].mxu0
      %v1208 = vadd.f32 %v1076, %v1207
      %v1209 = vpop.f32.mrb[0].mxu0
      %1210 = vmatprep.mubr.bf16.mxu0 %v598
      %1211 = vmatmul.mubr.bf16.gmra.mrb[0].mxu0 %v504
      %v1212 = vpop.f32.mrb[0].mxu0
      %v1213 = vadd.f32 %v1076, %v1212
      %v1214 = vpop.f32.mrb[0].mxu0
      %v1215 = vpop.f32.mrb[0].mxu0
      %v1216 = vadd.f32 %v1076, %v1215
      %v1217 = vpop.f32.mrb[0].mxu0
      %1218 = vmatprep.mubr.bf16.mxu0 %v601
      %1219 = vmatmul.mubr.bf16.gmra.mrb[0].mxu0 %v506
      %v1220 = vpop.f32.mrb[0].mxu0
      %v1221 = vadd.f32 %v1076, %v1220
      %v1222 = vpop.f32.mrb[0].mxu0
      %v1223 = vpop.f32.mrb[0].mxu0
      %v1224 = vadd.f32 %v1076, %v1223
      %v1225 = vpop.f32.mrb[0].mxu0
      %1226 = vmatprep.mubr.bf16.mxu0 %v604
      %1227 = vmatmul.mubr.bf16.gmra.mrb[0].mxu0 %v508
      %v1228 = vpop.f32.mrb[0].mxu0
      %v1229 = vadd.f32 %v1076, %v1228
      %v1230 = vpop.f32.mrb[0].mxu0
      %v1231 = vpop.f32.mrb[0].mxu0
      %v1232 = vadd.f32 %v1076, %v1231
      %v1233 = vpop.f32.mrb[0].mxu0
      %1234 = vmatprep.mubr.bf16.mxu0 %v607
      %1235 = vmatmul.mubr.bf16.gmra.mrb[0].mxu0 %v510
      %v1236 = vpop.f32.mrb[0].mxu0
      %v1237 = vadd.f32 %v1076, %v1236
      %v1238 = vpop.f32.mrb[0].mxu0
      %v1239 = vpop.f32.mrb[0].mxu0
      %v1240 = vadd.f32 %v1076, %v1239
      %v1241 = vpop.f32.mrb[0].mxu0
      %1242 = vmatprep.mubr.bf16.mxu0 %v610
      %1243 = vmatmul.mubr.bf16.gmra.mrb[0].mxu0 %v512
      %v1244 = vpop.f32.mrb[0].mxu0
      %v1245 = vadd.f32 %v1076, %v1244
      %v1246 = vpop.f32.mrb[0].mxu0
      %v1247 = vpop.f32.mrb[0].mxu0
      %v1248 = vadd.f32 %v1076, %v1247
      %v1249 = vpop.f32.mrb[0].mxu0
      %1250 = vdwg.mxu0
      %v1251 = vsub.f32 0.0, %v1173
      %v1252 = vsub.f32 0.0, %v1176
      %v1253 = vsub.f32 0.0, %v1181
      %v1254 = vsub.f32 0.0, %v1184
      %v1255 = vsub.f32 0.0, %v1189
      %v1256 = vsub.f32 0.0, %v1192
      %v1257 = vsub.f32 0.0, %v1197
      %v1258 = vsub.f32 0.0, %v1200
      %v1259 = vsub.f32 0.0, %v1205
      %v1260 = vsub.f32 0.0, %v1208
      %v1261 = vsub.f32 0.0, %v1213
      %v1262 = vsub.f32 0.0, %v1216
      %v1263 = vsub.f32 0.0, %v1221
      %v1264 = vsub.f32 0.0, %v1224
      %v1265 = vsub.f32 0.0, %v1229
      %v1266 = vsub.f32 0.0, %v1232
      %v1267 = vsub.f32 0.0, %v1237
      %v1268 = vsub.f32 0.0, %v1240
      %v1269 = vsub.f32 0.0, %v1245
      %v1270 = vsub.f32 0.0, %v1248
      %v1271 = vmul.f32 %v1251, 1.442695
      %v1272 = vpow.pop %v1271
      %v1273 = vmul.f32 %v1252, 1.442695
      %v1274 = vpow.pop %v1273
      %v1275 = vmul.f32 %v1253, 1.442695
      %v1276 = vpow.pop %v1275
      %v1277 = vmul.f32 %v1254, 1.442695
      %v1278 = vpow.pop %v1277
      %v1279 = vmul.f32 %v1255, 1.442695
      %v1280 = vpow.pop %v1279
      %v1281 = vmul.f32 %v1256, 1.442695
      %v1282 = vpow.pop %v1281
      %v1283 = vmul.f32 %v1257, 1.442695
      %v1284 = vpow.pop %v1283
      %v1285 = vmul.f32 %v1258, 1.442695
      %v1286 = vpow.pop %v1285
      %v1287 = vmul.f32 %v1259, 1.442695
      %v1288 = vpow.pop %v1287
      %v1289 = vmul.f32 %v1260, 1.442695
      %v1290 = vpow.pop %v1289
      %v1291 = vmul.f32 %v1261, 1.442695
      %v1292 = vpow.pop %v1291
      %v1293 = vmul.f32 %v1262, 1.442695
      %v1294 = vpow.pop %v1293
      %v1295 = vmul.f32 %v1263, 1.442695
      %v1296 = vpow.pop %v1295
      %v1297 = vmul.f32 %v1264, 1.442695
      %v1298 = vpow.pop %v1297
      %v1299 = vmul.f32 %v1265, 1.442695
      %v1300 = vpow.pop %v1299
      %v1301 = vmul.f32 %v1266, 1.442695
      %v1302 = vpow.pop %v1301
      %v1303 = vmul.f32 %v1267, 1.442695
      %v1304 = vpow.pop %v1303
      %v1305 = vmul.f32 %v1268, 1.442695
      %v1306 = vpow.pop %v1305
      %v1307 = vmul.f32 %v1269, 1.442695
      %v1308 = vpow.pop %v1307
      %v1309 = vmul.f32 %v1270, 1.442695
      %v1310 = vpow.pop %v1309
      %v1311 = vadd.f32 %v1272, 1.0
      %v1312 = vadd.f32 %v1274, 1.0
      %v1313 = vadd.f32 %v1276, 1.0
      %v1314 = vadd.f32 %v1278, 1.0
      %v1315 = vadd.f32 %v1280, 1.0
      %v1316 = vadd.f32 %v1282, 1.0
      %v1317 = vadd.f32 %v1284, 1.0
      %v1318 = vadd.f32 %v1286, 1.0
      %v1319 = vadd.f32 %v1288, 1.0
      %v1320 = vadd.f32 %v1290, 1.0
      %v1321 = vadd.f32 %v1292, 1.0
      %v1322 = vadd.f32 %v1294, 1.0
      %v1323 = vadd.f32 %v1296, 1.0
      %v1324 = vadd.f32 %v1298, 1.0
      %v1325 = vadd.f32 %v1300, 1.0
      %v1326 = vadd.f32 %v1302, 1.0
      %v1327 = vadd.f32 %v1304, 1.0
      %v1328 = vadd.f32 %v1306, 1.0
      %v1329 = vadd.f32 %v1308, 1.0
      %v1330 = vadd.f32 %v1310, 1.0
      %v1331 = vrcp.pop %v1311
      %v1332 = vrcp.pop %v1312
      %v1333 = vrcp.pop %v1313
      %v1334 = vrcp.pop %v1314
      %v1335 = vrcp.pop %v1315
      %v1336 = vrcp.pop %v1316
      %v1337 = vrcp.pop %v1317
      %v1338 = vrcp.pop %v1318
      %v1339 = vrcp.pop %v1319
      %v1340 = vrcp.pop %v1320
      %v1341 = vrcp.pop %v1321
      %v1342 = vrcp.pop %v1322
      %v1343 = vrcp.pop %v1323
      %v1344 = vrcp.pop %v1324
      %v1345 = vrcp.pop %v1325
      %v1346 = vrcp.pop %v1326
      %v1347 = vrcp.pop %v1327
      %v1348 = vrcp.pop %v1328
      %v1349 = vrcp.pop %v1329
      %v1350 = vrcp.pop %v1330
      %v1351 = vld [vmem:[%s367 + $0x1] sm:$0xff]
      %v1352 = vld [vmem:[%s367 + $0x9] sm:$0xff]
      %v1353 = vld [vmem:[%s367 + $0x19] sm:$0xff]
      %v1354 = vld [vmem:[%s367 + $0x21] sm:$0xff]
      %v1355 = vld [vmem:[%s367 + $0x31] sm:$0xff]
      %v1356 = vld [vmem:[%s367 + $0x39] sm:$0xff]
      %v1357 = vld [vmem:[%s367 + $0x49] sm:$0xff]
      %v1358 = vld [vmem:[%s367 + $0x51] sm:$0xff]
      %v1359 = vld [vmem:[%s367 + $0x61] sm:$0xff]
      %v1360 = vld [vmem:[%s367 + $0x69] sm:$0xff]
      %v1361 = vld [vmem:[%s367 + $0x79] sm:$0xff]
      %v1362 = vld [vmem:[%s367 + $0x81] sm:$0xff]
      %v1363 = vld [vmem:[%s367 + $0x91] sm:$0xff]
      %v1364 = vld [vmem:[%s367 + $0x99] sm:$0xff]
      %v1365 = vld [vmem:[%s367 + $0xa9] sm:$0xff]
      %v1366 = vld [vmem:[%s367 + $0xb1] sm:$0xff]
      %v1367 = vld [vmem:[%s367 + $0xc1] sm:$0xff]
      %v1368 = vld [vmem:[%s367 + $0xc9] sm:$0xff]
      %v1369 = vld [vmem:[%s367 + $0xd9] sm:$0xff]
      %v1370 = vld [vmem:[%s367 + $0xe1] sm:$0xff]
      %v1371 = vmul.f32 %v1331, %v1351
      %v1372 = vmul.f32 %v1332, %v1352
      %v1373 = vmul.f32 %v1333, %v1353
      %v1374 = vmul.f32 %v1334, %v1354
      %v1375 = vmul.f32 %v1335, %v1355
      %v1376 = vmul.f32 %v1336, %v1356
      %v1377 = vmul.f32 %v1337, %v1357
      %v1378 = vmul.f32 %v1338, %v1358
      %v1379 = vmul.f32 %v1339, %v1359
      %v1380 = vmul.f32 %v1340, %v1360
      %v1381 = vmul.f32 %v1341, %v1361
      %v1382 = vmul.f32 %v1342, %v1362
      %v1383 = vmul.f32 %v1343, %v1363
      %v1384 = vmul.f32 %v1344, %v1364
      %v1385 = vmul.f32 %v1345, %v1365
      %v1386 = vmul.f32 %v1346, %v1366
      %v1387 = vmul.f32 %v1347, %v1367
      %v1388 = vmul.f32 %v1348, %v1368
      %v1389 = vmul.f32 %v1349, %v1369
      %v1390 = vmul.f32 %v1350, %v1370
      %v1391 = vpack.c.bf16 %v1372, %v1371
      %v1392 = vpack.c.bf16 %v1374, %v1373
      %v1393 = vpack.c.bf16 %v1376, %v1375
      %v1394 = vpack.c.bf16 %v1378, %v1377
      %v1395 = vpack.c.bf16 %v1380, %v1379
      %v1396 = vpack.c.bf16 %v1382, %v1381
      %v1397 = vpack.c.bf16 %v1384, %v1383
      %v1398 = vpack.c.bf16 %v1386, %v1385
      %v1399 = vpack.c.bf16 %v1388, %v1387
      %v1400 = vpack.c.bf16 %v1390, %v1389
      %s1401 = scalar_lea.vmem %s4, 2
      %v1402 = vld [vmem:[%s1401] sm:$0x3]
      %v1404 = vsel %vm883, %v1391, 0
      %v1407 = vsel %vm883, %v1392, 0
      %v1410 = vsel %vm883, %v1393, 0
      %v1413 = vsel %vm883, %v1394, 0
      %v1416 = vsel %vm883, %v1395, 0
      %v1419 = vsel %vm883, %v1396, 0
      %v1422 = vsel %vm883, %v1397, 0
      %v1425 = vsel %vm883, %v1398, 0
      %v1428 = vsel %vm883, %v1399, 0
      %v1431 = vsel %vm883, %v1400, 0
      %v1434 = vsel %vm613, %v1402, 0
      %1436 = vmatprep.subr.bf16.mxu0 0
      %1437 = vmatpush1.bf16.msra.mxu0 %v1434
      %1438 = vmatprep.subr.bf16.mxu0 0
      %1439 = vmatpush1.bf16.msra.mxu0 0
      %1440 = vmatprep.subr.bf16.mxu0 0
      %1441 = vmatpush1.bf16.msra.mxu0 0
      %1442 = vmatprep.subr.bf16.mxu0 0
      %1443 = vmatpush1.bf16.msra.mxu0 0
      %1444 = vmatprep.subr.bf16.mxu0 0
      %1445 = vmatpush1.bf16.msra.mxu0 0
      %1446 = vmatprep.subr.bf16.mxu0 0
      %1447 = vmatpush1.bf16.msra.mxu0 0
      %1448 = vmatprep.subr.bf16.mxu0 0
      %1449 = vmatpush1.bf16.msra.mxu0 0
      %1450 = vmatprep.subr.bf16.mxu0 0
      %1451 = vmatpush1.bf16.msra.mxu0 0
      %1452 = vmatprep.subr.bf16.mxu0 0
      %1453 = vmatpush1.bf16.msra.mxu0 0
      %1454 = vmatprep.subr.bf16.mxu0 0
      %1455 = vmatpush1.bf16.msra.mxu0 0
      %1456 = vmatprep.subr.bf16.mxu0 0
      %1457 = vmatpush1.bf16.msra.mxu0 0
      %1458 = vmatprep.subr.bf16.mxu0 0
      %1459 = vmatpush1.bf16.msra.mxu0 0
      %1460 = vmatprep.subr.bf16.mxu0 0
      %1461 = vmatpush1.bf16.msra.mxu0 0
      %1462 = vmatprep.subr.bf16.mxu0 0
      %1463 = vmatpush1.bf16.msra.mxu0 0
      %1464 = vmatprep.subr.bf16.mxu0 0
      %1465 = vmatpush1.bf16.msra.mxu0 0
      %1466 = vmatprep.subr.bf16.mxu0 0
      %1467 = vmatpush1.bf16.msra.mxu0 0
      %1468 = vmatprep.mubr.bf16.mxu0 0
      %1469 = vmatmul.mubr.bf16.gmra.mrb[0].mxu0 %v1404
      %v1470 = vpop.f32.mrb[0].mxu0
      %v1471 = vadd.f32 0.0, %v1470
      %v1472 = vpop.f32.mrb[0].mxu0
      %v1473 = vpop.f32.mrb[0].mxu0
      %v1474 = vadd.f32 0.0, %v1473
      %v1475 = vpop.f32.mrb[0].mxu0
      %1476 = vmatprep.mubr.bf16.mxu0 0
      %1477 = vmatmul.mubr.bf16.gmra.mrb[0].mxu0 %v1407
      %v1478 = vpop.f32.mrb[0].mxu0
      %v1479 = vadd.f32 0.0, %v1478
      %v1480 = vpop.f32.mrb[0].mxu0
      %v1481 = vpop.f32.mrb[0].mxu0
      %v1482 = vadd.f32 0.0, %v1481
      %v1483 = vpop.f32.mrb[0].mxu0
      %1484 = vmatprep.mubr.bf16.mxu0 0
      %1485 = vmatmul.mubr.bf16.gmra.mrb[0].mxu0 %v1410
      %v1486 = vpop.f32.mrb[0].mxu0
      %v1487 = vadd.f32 0.0, %v1486
      %v1488 = vpop.f32.mrb[0].mxu0
      %v1489 = vpop.f32.mrb[0].mxu0
      %v1490 = vadd.f32 0.0, %v1489
      %v1491 = vpop.f32.mrb[0].mxu0
      %1492 = vmatprep.mubr.bf16.mxu0 0
      %1493 = vmatmul.mubr.bf16.gmra.mrb[0].mxu0 %v1413
      %v1494 = vpop.f32.mrb[0].mxu0
      %v1495 = vadd.f32 0.0, %v1494
      %v1496 = vpop.f32.mrb[0].mxu0
      %v1497 = vpop.f32.mrb[0].mxu0
      %v1498 = vadd.f32 0.0, %v1497
      %v1499 = vpop.f32.mrb[0].mxu0
      %1500 = vmatprep.mubr.bf16.mxu0 0
      %1501 = vmatmul.mubr.bf16.gmra.mrb[0].mxu0 %v1416
      %v1502 = vpop.f32.mrb[0].mxu0
      %v1503 = vadd.f32 0.0, %v1502
      %v1504 = vpop.f32.mrb[0].mxu0
      %v1505 = vpop.f32.mrb[0].mxu0
      %v1506 = vadd.f32 0.0, %v1505
      %v1507 = vpop.f32.mrb[0].mxu0
      %1508 = vmatprep.mubr.bf16.mxu0 0
      %1509 = vmatmul.mubr.bf16.gmra.mrb[0].mxu0 %v1419
      %v1510 = vpop.f32.mrb[0].mxu0
      %v1511 = vadd.f32 0.0, %v1510
      %v1512 = vpop.f32.mrb[0].mxu0
      %v1513 = vpop.f32.mrb[0].mxu0
      %v1514 = vadd.f32 0.0, %v1513
      %v1515 = vpop.f32.mrb[0].mxu0
      %1516 = vmatprep.mubr.bf16.mxu0 0
      %1517 = vmatmul.mubr.bf16.gmra.mrb[0].mxu0 %v1422
      %v1518 = vpop.f32.mrb[0].mxu0
      %v1519 = vadd.f32 0.0, %v1518
      %v1520 = vpop.f32.mrb[0].mxu0
      %v1521 = vpop.f32.mrb[0].mxu0
      %v1522 = vadd.f32 0.0, %v1521
      %v1523 = vpop.f32.mrb[0].mxu0
      %1524 = vmatprep.mubr.bf16.mxu0 0
      %1525 = vmatmul.mubr.bf16.gmra.mrb[0].mxu0 %v1425
      %v1526 = vpop.f32.mrb[0].mxu0
      %v1527 = vadd.f32 0.0, %v1526
      %v1528 = vpop.f32.mrb[0].mxu0
      %v1529 = vpop.f32.mrb[0].mxu0
      %v1530 = vadd.f32 0.0, %v1529
      %v1531 = vpop.f32.mrb[0].mxu0
      %1532 = vmatprep.mubr.bf16.mxu0 0
      %1533 = vmatmul.mubr.bf16.gmra.mrb[0].mxu0 %v1428
      %v1534 = vpop.f32.mrb[0].mxu0
      %v1535 = vadd.f32 0.0, %v1534
      %v1536 = vpop.f32.mrb[0].mxu0
      %v1537 = vpop.f32.mrb[0].mxu0
      %v1538 = vadd.f32 0.0, %v1537
      %v1539 = vpop.f32.mrb[0].mxu0
      %1540 = vmatprep.mubr.bf16.mxu0 0
      %1541 = vmatmul.mubr.bf16.gmra.mrb[0].mxu0 %v1431
      %v1542 = vpop.f32.mrb[0].mxu0
      %v1543 = vadd.f32 0.0, %v1542
      %v1544 = vpop.f32.mrb[0].mxu0
      %v1545 = vpop.f32.mrb[0].mxu0
      %v1546 = vadd.f32 0.0, %v1545
      %v1547 = vpop.f32.mrb[0].mxu0
      %1548 = vdwg.mxu0
      %v1549 = vadd.f32 %v1030, %v1471
      %v1550 = vadd.f32 %v1031, %v1474
      %v1551 = vadd.f32 %v1032, %v1479
      %v1552 = vadd.f32 %v1033, %v1482
      %v1553 = vadd.f32 %v1034, %v1487
      %v1554 = vadd.f32 %v1035, %v1490
      %v1555 = vadd.f32 %v1036, %v1495
      %v1556 = vadd.f32 %v1037, %v1498
      %v1557 = vadd.f32 %v1038, %v1503
      %v1558 = vadd.f32 %v1039, %v1506
      %v1559 = vadd.f32 %v1040, %v1511
      %v1560 = vadd.f32 %v1041, %v1514
      %v1561 = vadd.f32 %v1042, %v1519
      %v1562 = vadd.f32 %v1043, %v1522
      %v1563 = vadd.f32 %v1044, %v1527
      %v1564 = vadd.f32 %v1045, %v1530
      %v1565 = vadd.f32 %v1046, %v1535
      %v1566 = vadd.f32 %v1047, %v1538
      %v1567 = vadd.f32 %v1048, %v1543
      %v1568 = vadd.f32 %v1049, %v1546
      %s1569 = scalar_lea.vmem %s2, 152
      %v1570 = vld [vmem:[%s1569] sm:$0xf]
      %v1571 = vld [vmem:[%s1569 + $0x4] sm:$0xf]
      %v1572 = vld [vmem:[%s1569 + $0x8] sm:$0xf]
      %v1573 = vld [vmem:[%s1569 + $0xc] sm:$0xf]
      %v1574 = vld [vmem:[%s1569 + $0x10] sm:$0xf]
      %v1575 = vld [vmem:[%s1569 + $0x14] sm:$0xf]
      %v1576 = vld [vmem:[%s1569 + $0x18] sm:$0xf]
      %v1577 = vld [vmem:[%s1569 + $0x1c] sm:$0xf]
      %v1578 = vld [vmem:[%s1569 + $0x20] sm:$0xf]
      %v1579 = vld [vmem:[%s1569 + $0x24] sm:$0xf]
      %v1580 = vld [vmem:[%s1569 + $0x28] sm:$0xf]
      %v1581 = vld [vmem:[%s1569 + $0x2c] sm:$0xf]
      %v1582 = vld [vmem:[%s1569 + $0x30] sm:$0xf]
      %v1583 = vld [vmem:[%s1569 + $0x34] sm:$0xf]
      %v1584 = vld [vmem:[%s1569 + $0x38] sm:$0xf]
      %v1585 = vld [vmem:[%s1569 + $0x3c] sm:$0xf]
      %v1586 = vld [vmem:[%s1569 + $0x40] sm:$0xf]
      %v1587 = vld [vmem:[%s1569 + $0x44] sm:$0xf]
      %v1588 = vld [vmem:[%s1569 + $0x48] sm:$0x3]
      %s1589 = scalar_lea.vmem %s3, 2
      %v1590 = vld [vmem:[%s1589] sm:$0x1]
      %v1592 = vlaneseq
      %v1593 = vshrl.u32 %v1592, 7
      %v1594 = vsub.s32 0, %v1593
      %v1595 = vrot.slane %v1590, %v1594
      %v1616 = vunpack.c.l.b16 %v1570
      %v1617 = vunpack.c.l.b16 %v1571
      %v1618 = vunpack.c.l.b16 %v1572
      %v1619 = vunpack.c.l.b16 %v1573
      %v1620 = vunpack.c.l.b16 %v1574
      %v1621 = vunpack.c.l.b16 %v1575
      %v1622 = vunpack.c.l.b16 %v1576
      %v1623 = vunpack.c.l.b16 %v1577
      %v1624 = vunpack.c.l.b16 %v1578
      %v1625 = vunpack.c.l.b16 %v1579
      %v1626 = vunpack.c.l.b16 %v1580
      %v1627 = vunpack.c.l.b16 %v1581
      %v1628 = vunpack.c.l.b16 %v1582
      %v1629 = vunpack.c.l.b16 %v1583
      %v1630 = vunpack.c.l.b16 %v1584
      %v1631 = vunpack.c.l.b16 %v1585
      %v1632 = vunpack.c.l.b16 %v1586
      %v1633 = vunpack.c.l.b16 %v1587
      %v1634 = vunpack.c.l.b16 %v1588
      %v1635 = vpack.c.b16 %v1617, %v1616
      %v1636 = vpack.c.b16 %v1619, %v1618
      %v1637 = vpack.c.b16 %v1621, %v1620
      %v1638 = vpack.c.b16 %v1623, %v1622
      %v1639 = vpack.c.b16 %v1625, %v1624
      %v1640 = vpack.c.b16 %v1627, %v1626
      %v1641 = vpack.c.b16 %v1629, %v1628
      %v1642 = vpack.c.b16 %v1631, %v1630
      %v1643 = vpack.c.b16 %v1633, %v1632
      %v1644 = vpack.c.b16 %v1634, %v1634
      %v1655 = vand.u32 %v1644, %v615
      %1657 = vmatprep.subr.bf16.mxu0 0
      %1658 = vmatpush1.bf16.msra.mxu0 %v1635
      %1659 = vmatprep.subr.bf16.mxu0 0
      %1660 = vmatpush1.bf16.msra.mxu0 %v1636
      %1661 = vmatprep.subr.bf16.mxu0 0
      %1662 = vmatpush1.bf16.msra.mxu0 %v1637
      %1663 = vmatprep.subr.bf16.mxu0 0
      %1664 = vmatpush1.bf16.msra.mxu0 %v1638
      %1665 = vmatprep.subr.bf16.mxu0 0
      %1666 = vmatpush1.bf16.msra.mxu0 %v1639
      %1667 = vmatprep.subr.bf16.mxu0 0
      %1668 = vmatpush1.bf16.msra.mxu0 %v1640
      %1669 = vmatprep.subr.bf16.mxu0 0
      %1670 = vmatpush1.bf16.msra.mxu0 %v1641
      %1671 = vmatprep.subr.bf16.mxu0 0
      %1672 = vmatpush1.bf16.msra.mxu0 %v1642
      %1673 = vmatprep.subr.bf16.mxu0 0
      %1674 = vmatpush1.bf16.msra.mxu0 %v1643
      %1675 = vmatprep.subr.bf16.mxu0 0
      %1676 = vmatpush1.bf16.msra.mxu0 %v1655
      %1677 = vmatprep.subr.bf16.mxu0 0
      %1678 = vmatpush1.bf16.msra.mxu0 0
      %1679 = vmatprep.subr.bf16.mxu0 0
      %1680 = vmatpush1.bf16.msra.mxu0 0
      %1681 = vmatprep.subr.bf16.mxu0 0
      %1682 = vmatpush1.bf16.msra.mxu0 0
      %1683 = vmatprep.subr.bf16.mxu0 0
      %1684 = vmatpush1.bf16.msra.mxu0 0
      %1685 = vmatprep.subr.bf16.mxu0 0
      %1686 = vmatpush1.bf16.msra.mxu0 0
      %1687 = vmatprep.subr.bf16.mxu0 0
      %1688 = vmatpush1.bf16.msra.mxu0 0
      %1689 = vmatprep.mubr.bf16.mxu0 %v583
      %1690 = vmatmul.mubr.bf16.gmra.mrb[0].mxu0 %v494
      %v1691 = vpop.f32.mrb[0].mxu0
      %v1692 = vadd.f32 %v1595, %v1691
      %v1693 = vpop.f32.mrb[0].mxu0
      %v1694 = vpop.f32.mrb[0].mxu0
      %v1695 = vadd.f32 %v1595, %v1694
      %v1696 = vpop.f32.mrb[0].mxu0
      %1697 = vmatprep.mubr.bf16.mxu0 %v586
      %1698 = vmatmul.mubr.bf16.gmra.mrb[0].mxu0 %v496
      %v1699 = vpop.f32.mrb[0].mxu0
      %v1700 = vadd.f32 %v1595, %v1699
      %v1701 = vpop.f32.mrb[0].mxu0
      %v1702 = vpop.f32.mrb[0].mxu0
      %v1703 = vadd.f32 %v1595, %v1702
      %v1704 = vpop.f32.mrb[0].mxu0
      %1705 = vmatprep.mubr.bf16.mxu0 %v589
      %1706 = vmatmul.mubr.bf16.gmra.mrb[0].mxu0 %v498
      %v1707 = vpop.f32.mrb[0].mxu0
      %v1708 = vadd.f32 %v1595, %v1707
      %v1709 = vpop.f32.mrb[0].mxu0
      %v1710 = vpop.f32.mrb[0].mxu0
      %v1711 = vadd.f32 %v1595, %v1710
      %v1712 = vpop.f32.mrb[0].mxu0
      %1713 = vmatprep.mubr.bf16.mxu0 %v592
      %1714 = vmatmul.mubr.bf16.gmra.mrb[0].mxu0 %v500
      %v1715 = vpop.f32.mrb[0].mxu0
      %v1716 = vadd.f32 %v1595, %v1715
      %v1717 = vpop.f32.mrb[0].mxu0
      %v1718 = vpop.f32.mrb[0].mxu0
      %v1719 = vadd.f32 %v1595, %v1718
      %v1720 = vpop.f32.mrb[0].mxu0
      %1721 = vmatprep.mubr.bf16.mxu0 %v595
      %1722 = vmatmul.mubr.bf16.gmra.mrb[0].mxu0 %v502
      %v1723 = vpop.f32.mrb[0].mxu0
      %v1724 = vadd.f32 %v1595, %v1723
      %v1725 = vpop.f32.mrb[0].mxu0
      %v1726 = vpop.f32.mrb[0].mxu0
      %v1727 = vadd.f32 %v1595, %v1726
      %v1728 = vpop.f32.mrb[0].mxu0
      %1729 = vmatprep.mubr.bf16.mxu0 %v598
      %1730 = vmatmul.mubr.bf16.gmra.mrb[0].mxu0 %v504
      %v1731 = vpop.f32.mrb[0].mxu0
      %v1732 = vadd.f32 %v1595, %v1731
      %v1733 = vpop.f32.mrb[0].mxu0
      %v1734 = vpop.f32.mrb[0].mxu0
      %v1735 = vadd.f32 %v1595, %v1734
      %v1736 = vpop.f32.mrb[0].mxu0
      %1737 = vmatprep.mubr.bf16.mxu0 %v601
      %1738 = vmatmul.mubr.bf16.gmra.mrb[0].mxu0 %v506
      %v1739 = vpop.f32.mrb[0].mxu0
      %v1740 = vadd.f32 %v1595, %v1739
      %v1741 = vpop.f32.mrb[0].mxu0
      %v1742 = vpop.f32.mrb[0].mxu0
      %v1743 = vadd.f32 %v1595, %v1742
      %v1744 = vpop.f32.mrb[0].mxu0
      %1745 = vmatprep.mubr.bf16.mxu0 %v604
      %1746 = vmatmul.mubr.bf16.gmra.mrb[0].mxu0 %v508
      %v1747 = vpop.f32.mrb[0].mxu0
      %v1748 = vadd.f32 %v1595, %v1747
      %v1749 = vpop.f32.mrb[0].mxu0
      %v1750 = vpop.f32.mrb[0].mxu0
      %v1751 = vadd.f32 %v1595, %v1750
      %v1752 = vpop.f32.mrb[0].mxu0
      %1753 = vmatprep.mubr.bf16.mxu0 %v607
      %1754 = vmatmul.mubr.bf16.gmra.mrb[0].mxu0 %v510
      %v1755 = vpop.f32.mrb[0].mxu0
      %v1756 = vadd.f32 %v1595, %v1755
      %v1757 = vpop.f32.mrb[0].mxu0
      %v1758 = vpop.f32.mrb[0].mxu0
      %v1759 = vadd.f32 %v1595, %v1758
      %v1760 = vpop.f32.mrb[0].mxu0
      %1761 = vmatprep.mubr.bf16.mxu0 %v610
      %1762 = vmatmul.mubr.bf16.gmra.mrb[0].mxu0 %v512
      %v1763 = vpop.f32.mrb[0].mxu0
      %v1764 = vadd.f32 %v1595, %v1763
      %v1765 = vpop.f32.mrb[0].mxu0
      %v1766 = vpop.f32.mrb[0].mxu0
      %v1767 = vadd.f32 %v1595, %v1766
      %v1768 = vpop.f32.mrb[0].mxu0
      %1769 = vdwg.mxu0
      %v1770 = vsub.f32 0.0, %v1692
      %v1771 = vsub.f32 0.0, %v1695
      %v1772 = vsub.f32 0.0, %v1700
      %v1773 = vsub.f32 0.0, %v1703
      %v1774 = vsub.f32 0.0, %v1708
      %v1775 = vsub.f32 0.0, %v1711
      %v1776 = vsub.f32 0.0, %v1716
      %v1777 = vsub.f32 0.0, %v1719
      %v1778 = vsub.f32 0.0, %v1724
      %v1779 = vsub.f32 0.0, %v1727
      %v1780 = vsub.f32 0.0, %v1732
      %v1781 = vsub.f32 0.0, %v1735
      %v1782 = vsub.f32 0.0, %v1740
      %v1783 = vsub.f32 0.0, %v1743
      %v1784 = vsub.f32 0.0, %v1748
      %v1785 = vsub.f32 0.0, %v1751
      %v1786 = vsub.f32 0.0, %v1756
      %v1787 = vsub.f32 0.0, %v1759
      %v1788 = vsub.f32 0.0, %v1764
      %v1789 = vsub.f32 0.0, %v1767
      %v1790 = vmul.f32 %v1770, 1.442695
      %v1791 = vpow.pop %v1790
      %v1792 = vmul.f32 %v1771, 1.442695
      %v1793 = vpow.pop %v1792
      %v1794 = vmul.f32 %v1772, 1.442695
      %v1795 = vpow.pop %v1794
      %v1796 = vmul.f32 %v1773, 1.442695
      %v1797 = vpow.pop %v1796
      %v1798 = vmul.f32 %v1774, 1.442695
      %v1799 = vpow.pop %v1798
      %v1800 = vmul.f32 %v1775, 1.442695
      %v1801 = vpow.pop %v1800
      %v1802 = vmul.f32 %v1776, 1.442695
      %v1803 = vpow.pop %v1802
      %v1804 = vmul.f32 %v1777, 1.442695
      %v1805 = vpow.pop %v1804
      %v1806 = vmul.f32 %v1778, 1.442695
      %v1807 = vpow.pop %v1806
      %v1808 = vmul.f32 %v1779, 1.442695
      %v1809 = vpow.pop %v1808
      %v1810 = vmul.f32 %v1780, 1.442695
      %v1811 = vpow.pop %v1810
      %v1812 = vmul.f32 %v1781, 1.442695
      %v1813 = vpow.pop %v1812
      %v1814 = vmul.f32 %v1782, 1.442695
      %v1815 = vpow.pop %v1814
      %v1816 = vmul.f32 %v1783, 1.442695
      %v1817 = vpow.pop %v1816
      %v1818 = vmul.f32 %v1784, 1.442695
      %v1819 = vpow.pop %v1818
      %v1820 = vmul.f32 %v1785, 1.442695
      %v1821 = vpow.pop %v1820
      %v1822 = vmul.f32 %v1786, 1.442695
      %v1823 = vpow.pop %v1822
      %v1824 = vmul.f32 %v1787, 1.442695
      %v1825 = vpow.pop %v1824
      %v1826 = vmul.f32 %v1788, 1.442695
      %v1827 = vpow.pop %v1826
      %v1828 = vmul.f32 %v1789, 1.442695
      %v1829 = vpow.pop %v1828
      %v1830 = vadd.f32 %v1791, 1.0
      %v1831 = vadd.f32 %v1793, 1.0
      %v1832 = vadd.f32 %v1795, 1.0
      %v1833 = vadd.f32 %v1797, 1.0
      %v1834 = vadd.f32 %v1799, 1.0
      %v1835 = vadd.f32 %v1801, 1.0
      %v1836 = vadd.f32 %v1803, 1.0
      %v1837 = vadd.f32 %v1805, 1.0
      %v1838 = vadd.f32 %v1807, 1.0
      %v1839 = vadd.f32 %v1809, 1.0
      %v1840 = vadd.f32 %v1811, 1.0
      %v1841 = vadd.f32 %v1813, 1.0
      %v1842 = vadd.f32 %v1815, 1.0
      %v1843 = vadd.f32 %v1817, 1.0
      %v1844 = vadd.f32 %v1819, 1.0
      %v1845 = vadd.f32 %v1821, 1.0
      %v1846 = vadd.f32 %v1823, 1.0
      %v1847 = vadd.f32 %v1825, 1.0
      %v1848 = vadd.f32 %v1827, 1.0
      %v1849 = vadd.f32 %v1829, 1.0
      %v1850 = vrcp.pop %v1830
      %v1851 = vrcp.pop %v1831
      %v1852 = vrcp.pop %v1832
      %v1853 = vrcp.pop %v1833
      %v1854 = vrcp.pop %v1834
      %v1855 = vrcp.pop %v1835
      %v1856 = vrcp.pop %v1836
      %v1857 = vrcp.pop %v1837
      %v1858 = vrcp.pop %v1838
      %v1859 = vrcp.pop %v1839
      %v1860 = vrcp.pop %v1840
      %v1861 = vrcp.pop %v1841
      %v1862 = vrcp.pop %v1842
      %v1863 = vrcp.pop %v1843
      %v1864 = vrcp.pop %v1844
      %v1865 = vrcp.pop %v1845
      %v1866 = vrcp.pop %v1846
      %v1867 = vrcp.pop %v1847
      %v1868 = vrcp.pop %v1848
      %v1869 = vrcp.pop %v1849
      %v1870 = vld [vmem:[%s367 + $0x2] sm:$0xff]
      %v1871 = vld [vmem:[%s367 + $0xa] sm:$0xff]
      %v1872 = vld [vmem:[%s367 + $0x1a] sm:$0xff]
      %v1873 = vld [vmem:[%s367 + $0x22] sm:$0xff]
      %v1874 = vld [vmem:[%s367 + $0x32] sm:$0xff]
      %v1875 = vld [vmem:[%s367 + $0x3a] sm:$0xff]
      %v1876 = vld [vmem:[%s367 + $0x4a] sm:$0xff]
      %v1877 = vld [vmem:[%s367 + $0x52] sm:$0xff]
      %v1878 = vld [vmem:[%s367 + $0x62] sm:$0xff]
      %v1879 = vld [vmem:[%s367 + $0x6a] sm:$0xff]
      %v1880 = vld [vmem:[%s367 + $0x7a] sm:$0xff]
      %v1881 = vld [vmem:[%s367 + $0x82] sm:$0xff]
      %v1882 = vld [vmem:[%s367 + $0x92] sm:$0xff]
      %v1883 = vld [vmem:[%s367 + $0x9a] sm:$0xff]
      %v1884 = vld [vmem:[%s367 + $0xaa] sm:$0xff]
      %v1885 = vld [vmem:[%s367 + $0xb2] sm:$0xff]
      %v1886 = vld [vmem:[%s367 + $0xc2] sm:$0xff]
      %v1887 = vld [vmem:[%s367 + $0xca] sm:$0xff]
      %v1888 = vld [vmem:[%s367 + $0xda] sm:$0xff]
      %v1889 = vld [vmem:[%s367 + $0xe2] sm:$0xff]
      %v1890 = vmul.f32 %v1850, %v1870
      %v1891 = vmul.f32 %v1851, %v1871
      %v1892 = vmul.f32 %v1852, %v1872
      %v1893 = vmul.f32 %v1853, %v1873
      %v1894 = vmul.f32 %v1854, %v1874
      %v1895 = vmul.f32 %v1855, %v1875
      %v1896 = vmul.f32 %v1856, %v1876
      %v1897 = vmul.f32 %v1857, %v1877
      %v1898 = vmul.f32 %v1858, %v1878
      %v1899 = vmul.f32 %v1859, %v1879
      %v1900 = vmul.f32 %v1860, %v1880
      %v1901 = vmul.f32 %v1861, %v1881
      %v1902 = vmul.f32 %v1862, %v1882
      %v1903 = vmul.f32 %v1863, %v1883
      %v1904 = vmul.f32 %v1864, %v1884
      %v1905 = vmul.f32 %v1865, %v1885
      %v1906 = vmul.f32 %v1866, %v1886
      %v1907 = vmul.f32 %v1867, %v1887
      %v1908 = vmul.f32 %v1868, %v1888
      %v1909 = vmul.f32 %v1869, %v1889
      %v1910 = vpack.c.bf16 %v1891, %v1890
      %v1911 = vpack.c.bf16 %v1893, %v1892
      %v1912 = vpack.c.bf16 %v1895, %v1894
      %v1913 = vpack.c.bf16 %v1897, %v1896
      %v1914 = vpack.c.bf16 %v1899, %v1898
      %v1915 = vpack.c.bf16 %v1901, %v1900
      %v1916 = vpack.c.bf16 %v1903, %v1902
      %v1917 = vpack.c.bf16 %v1905, %v1904
      %v1918 = vpack.c.bf16 %v1907, %v1906
      %v1919 = vpack.c.bf16 %v1909, %v1908
      %s1920 = scalar_lea.vmem %s4, 4
      %v1921 = vld [vmem:[%s1920] sm:$0x3]
      %v1923 = vsel %vm883, %v1910, 0
      %v1926 = vsel %vm883, %v1911, 0
      %v1929 = vsel %vm883, %v1912, 0
      %v1932 = vsel %vm883, %v1913, 0
      %v1935 = vsel %vm883, %v1914, 0
      %v1938 = vsel %vm883, %v1915, 0
      %v1941 = vsel %vm883, %v1916, 0
      %v1944 = vsel %vm883, %v1917, 0
      %v1947 = vsel %vm883, %v1918, 0
      %v1950 = vsel %vm883, %v1919, 0
      %v1953 = vsel %vm613, %v1921, 0
      %1955 = vmatprep.subr.bf16.mxu0 0
      %1956 = vmatpush1.bf16.msra.mxu0 %v1953
      %1957 = vmatprep.subr.bf16.mxu0 0
      %1958 = vmatpush1.bf16.msra.mxu0 0
      %1959 = vmatprep.subr.bf16.mxu0 0
      %1960 = vmatpush1.bf16.msra.mxu0 0
      %1961 = vmatprep.subr.bf16.mxu0 0
      %1962 = vmatpush1.bf16.msra.mxu0 0
      %1963 = vmatprep.subr.bf16.mxu0 0
      %1964 = vmatpush1.bf16.msra.mxu0 0
      %1965 = vmatprep.subr.bf16.mxu0 0
      %1966 = vmatpush1.bf16.msra.mxu0 0
      %1967 = vmatprep.subr.bf16.mxu0 0
      %1968 = vmatpush1.bf16.msra.mxu0 0
      %1969 = vmatprep.subr.bf16.mxu0 0
      %1970 = vmatpush1.bf16.msra.mxu0 0
      %1971 = vmatprep.subr.bf16.mxu0 0
      %1972 = vmatpush1.bf16.msra.mxu0 0
      %1973 = vmatprep.subr.bf16.mxu0 0
      %1974 = vmatpush1.bf16.msra.mxu0 0
      %1975 = vmatprep.subr.bf16.mxu0 0
      %1976 = vmatpush1.bf16.msra.mxu0 0
      %1977 = vmatprep.subr.bf16.mxu0 0
      %1978 = vmatpush1.bf16.msra.mxu0 0
      %1979 = vmatprep.subr.bf16.mxu0 0
      %1980 = vmatpush1.bf16.msra.mxu0 0
      %1981 = vmatprep.subr.bf16.mxu0 0
      %1982 = vmatpush1.bf16.msra.mxu0 0
      %1983 = vmatprep.subr.bf16.mxu0 0
      %1984 = vmatpush1.bf16.msra.mxu0 0
      %1985 = vmatprep.subr.bf16.mxu0 0
      %1986 = vmatpush1.bf16.msra.mxu0 0
      %1987 = vmatprep.mubr.bf16.mxu0 0
      %1988 = vmatmul.mubr.bf16.gmra.mrb[0].mxu0 %v1923
      %v1989 = vpop.f32.mrb[0].mxu0
      %v1990 = vadd.f32 0.0, %v1989
      %v1991 = vpop.f32.mrb[0].mxu0
      %v1992 = vpop.f32.mrb[0].mxu0
      %v1993 = vadd.f32 0.0, %v1992
      %v1994 = vpop.f32.mrb[0].mxu0
      %1995 = vmatprep.mubr.bf16.mxu0 0
      %1996 = vmatmul.mubr.bf16.gmra.mrb[0].mxu0 %v1926
      %v1997 = vpop.f32.mrb[0].mxu0
      %v1998 = vadd.f32 0.0, %v1997
      %v1999 = vpop.f32.mrb[0].mxu0
      %v2000 = vpop.f32.mrb[0].mxu0
      %v2001 = vadd.f32 0.0, %v2000
      %v2002 = vpop.f32.mrb[0].mxu0
      %2003 = vmatprep.mubr.bf16.mxu0 0
      %2004 = vmatmul.mubr.bf16.gmra.mrb[0].mxu0 %v1929
      %v2005 = vpop.f32.mrb[0].mxu0
      %v2006 = vadd.f32 0.0, %v2005
      %v2007 = vpop.f32.mrb[0].mxu0
      %v2008 = vpop.f32.mrb[0].mxu0
      %v2009 = vadd.f32 0.0, %v2008
      %v2010 = vpop.f32.mrb[0].mxu0
      %2011 = vmatprep.mubr.bf16.mxu0 0
      %2012 = vmatmul.mubr.bf16.gmra.mrb[0].mxu0 %v1932
      %v2013 = vpop.f32.mrb[0].mxu0
      %v2014 = vadd.f32 0.0, %v2013
      %v2015 = vpop.f32.mrb[0].mxu0
      %v2016 = vpop.f32.mrb[0].mxu0
      %v2017 = vadd.f32 0.0, %v2016
      %v2018 = vpop.f32.mrb[0].mxu0
      %2019 = vmatprep.mubr.bf16.mxu0 0
      %2020 = vmatmul.mubr.bf16.gmra.mrb[0].mxu0 %v1935
      %v2021 = vpop.f32.mrb[0].mxu0
      %v2022 = vadd.f32 0.0, %v2021
      %v2023 = vpop.f32.mrb[0].mxu0
      %v2024 = vpop.f32.mrb[0].mxu0
      %v2025 = vadd.f32 0.0, %v2024
      %v2026 = vpop.f32.mrb[0].mxu0
      %2027 = vmatprep.mubr.bf16.mxu0 0
      %2028 = vmatmul.mubr.bf16.gmra.mrb[0].mxu0 %v1938
      %v2029 = vpop.f32.mrb[0].mxu0
      %v2030 = vadd.f32 0.0, %v2029
      %v2031 = vpop.f32.mrb[0].mxu0
      %v2032 = vpop.f32.mrb[0].mxu0
      %v2033 = vadd.f32 0.0, %v2032
      %v2034 = vpop.f32.mrb[0].mxu0
      %2035 = vmatprep.mubr.bf16.mxu0 0
      %2036 = vmatmul.mubr.bf16.gmra.mrb[0].mxu0 %v1941
      %v2037 = vpop.f32.mrb[0].mxu0
      %v2038 = vadd.f32 0.0, %v2037
      %v2039 = vpop.f32.mrb[0].mxu0
      %v2040 = vpop.f32.mrb[0].mxu0
      %v2041 = vadd.f32 0.0, %v2040
      %v2042 = vpop.f32.mrb[0].mxu0
      %2043 = vmatprep.mubr.bf16.mxu0 0
      %2044 = vmatmul.mubr.bf16.gmra.mrb[0].mxu0 %v1944
      %v2045 = vpop.f32.mrb[0].mxu0
      %v2046 = vadd.f32 0.0, %v2045
      %v2047 = vpop.f32.mrb[0].mxu0
      %v2048 = vpop.f32.mrb[0].mxu0
      %v2049 = vadd.f32 0.0, %v2048
      %v2050 = vpop.f32.mrb[0].mxu0
      %2051 = vmatprep.mubr.bf16.mxu0 0
      %2052 = vmatmul.mubr.bf16.gmra.mrb[0].mxu0 %v1947
      %v2053 = vpop.f32.mrb[0].mxu0
      %v2054 = vadd.f32 0.0, %v2053
      %v2055 = vpop.f32.mrb[0].mxu0
      %v2056 = vpop.f32.mrb[0].mxu0
      %v2057 = vadd.f32 0.0, %v2056
      %v2058 = vpop.f32.mrb[0].mxu0
      %2059 = vmatprep.mubr.bf16.mxu0 0
      %2060 = vmatmul.mubr.bf16.gmra.mrb[0].mxu0 %v1950
      %v2061 = vpop.f32.mrb[0].mxu0
      %v2062 = vadd.f32 0.0, %v2061
      %v2063 = vpop.f32.mrb[0].mxu0
      %v2064 = vpop.f32.mrb[0].mxu0
      %v2065 = vadd.f32 0.0, %v2064
      %v2066 = vpop.f32.mrb[0].mxu0
      %2067 = vdwg.mxu0
      %v2068 = vadd.f32 %v1549, %v1990
      %v2069 = vadd.f32 %v1550, %v1993
      %v2070 = vadd.f32 %v1551, %v1998
      %v2071 = vadd.f32 %v1552, %v2001
      %v2072 = vadd.f32 %v1553, %v2006
      %v2073 = vadd.f32 %v1554, %v2009
      %v2074 = vadd.f32 %v1555, %v2014
      %v2075 = vadd.f32 %v1556, %v2017
      %v2076 = vadd.f32 %v1557, %v2022
      %v2077 = vadd.f32 %v1558, %v2025
      %v2078 = vadd.f32 %v1559, %v2030
      %v2079 = vadd.f32 %v1560, %v2033
      %v2080 = vadd.f32 %v1561, %v2038
      %v2081 = vadd.f32 %v1562, %v2041
      %v2082 = vadd.f32 %v1563, %v2046
      %v2083 = vadd.f32 %v1564, %v2049
      %v2084 = vadd.f32 %v1565, %v2054
      %v2085 = vadd.f32 %v1566, %v2057
      %v2086 = vadd.f32 %v1567, %v2062
      %v2087 = vadd.f32 %v1568, %v2065
      %s2088 = scalar_lea.vmem %s2, 228
      %v2089 = vld [vmem:[%s2088] sm:$0xf]
      %v2090 = vld [vmem:[%s2088 + $0x4] sm:$0xf]
      %v2091 = vld [vmem:[%s2088 + $0x8] sm:$0xf]
      %v2092 = vld [vmem:[%s2088 + $0xc] sm:$0xf]
      %v2093 = vld [vmem:[%s2088 + $0x10] sm:$0xf]
      %v2094 = vld [vmem:[%s2088 + $0x14] sm:$0xf]
      %v2095 = vld [vmem:[%s2088 + $0x18] sm:$0xf]
      %v2096 = vld [vmem:[%s2088 + $0x1c] sm:$0xf]
      %v2097 = vld [vmem:[%s2088 + $0x20] sm:$0xf]
      %v2098 = vld [vmem:[%s2088 + $0x24] sm:$0xf]
      %v2099 = vld [vmem:[%s2088 + $0x28] sm:$0xf]
      %v2100 = vld [vmem:[%s2088 + $0x2c] sm:$0xf]
      %v2101 = vld [vmem:[%s2088 + $0x30] sm:$0xf]
      %v2102 = vld [vmem:[%s2088 + $0x34] sm:$0xf]
      %v2103 = vld [vmem:[%s2088 + $0x38] sm:$0xf]
      %v2104 = vld [vmem:[%s2088 + $0x3c] sm:$0xf]
      %v2105 = vld [vmem:[%s2088 + $0x40] sm:$0xf]
      %v2106 = vld [vmem:[%s2088 + $0x44] sm:$0xf]
      %v2107 = vld [vmem:[%s2088 + $0x48] sm:$0x3]
      %s2108 = scalar_lea.vmem %s3, 3
      %v2109 = vld [vmem:[%s2108] sm:$0x1]
      %v2111 = vlaneseq
      %v2112 = vshrl.u32 %v2111, 7
      %v2113 = vsub.s32 0, %v2112
      %v2114 = vrot.slane %v2109, %v2113
      %v2135 = vunpack.c.l.b16 %v2089
      %v2136 = vunpack.c.l.b16 %v2090
      %v2137 = vunpack.c.l.b16 %v2091
      %v2138 = vunpack.c.l.b16 %v2092
      %v2139 = vunpack.c.l.b16 %v2093
      %v2140 = vunpack.c.l.b16 %v2094
      %v2141 = vunpack.c.l.b16 %v2095
      %v2142 = vunpack.c.l.b16 %v2096
      %v2143 = vunpack.c.l.b16 %v2097
      %v2144 = vunpack.c.l.b16 %v2098
      %v2145 = vunpack.c.l.b16 %v2099
      %v2146 = vunpack.c.l.b16 %v2100
      %v2147 = vunpack.c.l.b16 %v2101
      %v2148 = vunpack.c.l.b16 %v2102
      %v2149 = vunpack.c.l.b16 %v2103
      %v2150 = vunpack.c.l.b16 %v2104
      %v2151 = vunpack.c.l.b16 %v2105
      %v2152 = vunpack.c.l.b16 %v2106
      %v2153 = vunpack.c.l.b16 %v2107
      %v2154 = vpack.c.b16 %v2136, %v2135
      %v2155 = vpack.c.b16 %v2138, %v2137
      %v2156 = vpack.c.b16 %v2140, %v2139
      %v2157 = vpack.c.b16 %v2142, %v2141
      %v2158 = vpack.c.b16 %v2144, %v2143
      %v2159 = vpack.c.b16 %v2146, %v2145
      %v2160 = vpack.c.b16 %v2148, %v2147
      %v2161 = vpack.c.b16 %v2150, %v2149
      %v2162 = vpack.c.b16 %v2152, %v2151
      %v2163 = vpack.c.b16 %v2153, %v2153
      %v2174 = vand.u32 %v2163, %v615
      %2176 = vmatprep.subr.bf16.mxu0 0
      %2177 = vmatpush1.bf16.msra.mxu0 %v2154
      %2178 = vmatprep.subr.bf16.mxu0 0
      %2179 = vmatpush1.bf16.msra.mxu0 %v2155
      %2180 = vmatprep.subr.bf16.mxu0 0
      %2181 = vmatpush1.bf16.msra.mxu0 %v2156
      %2182 = vmatprep.subr.bf16.mxu0 0
      %2183 = vmatpush1.bf16.msra.mxu0 %v2157
      %2184 = vmatprep.subr.bf16.mxu0 0
      %2185 = vmatpush1.bf16.msra.mxu0 %v2158
      %2186 = vmatprep.subr.bf16.mxu0 0
      %2187 = vmatpush1.bf16.msra.mxu0 %v2159
      %2188 = vmatprep.subr.bf16.mxu0 0
      %2189 = vmatpush1.bf16.msra.mxu0 %v2160
      %2190 = vmatprep.subr.bf16.mxu0 0
      %2191 = vmatpush1.bf16.msra.mxu0 %v2161
      %2192 = vmatprep.subr.bf16.mxu0 0
      %2193 = vmatpush1.bf16.msra.mxu0 %v2162
      %2194 = vmatprep.subr.bf16.mxu0 0
      %2195 = vmatpush1.bf16.msra.mxu0 %v2174
      %2196 = vmatprep.subr.bf16.mxu0 0
      %2197 = vmatpush1.bf16.msra.mxu0 0
      %2198 = vmatprep.subr.bf16.mxu0 0
      %2199 = vmatpush1.bf16.msra.mxu0 0
      %2200 = vmatprep.subr.bf16.mxu0 0
      %2201 = vmatpush1.bf16.msra.mxu0 0
      %2202 = vmatprep.subr.bf16.mxu0 0
      %2203 = vmatpush1.bf16.msra.mxu0 0
      %2204 = vmatprep.subr.bf16.mxu0 0
      %2205 = vmatpush1.bf16.msra.mxu0 0
      %2206 = vmatprep.subr.bf16.mxu0 0
      %2207 = vmatpush1.bf16.msra.mxu0 0
      %2208 = vmatprep.mubr.bf16.mxu0 %v583
      %2209 = vmatmul.mubr.bf16.gmra.mrb[0].mxu0 %v494
      %v2210 = vpop.f32.mrb[0].mxu0
      %v2211 = vadd.f32 %v2114, %v2210
      %v2212 = vpop.f32.mrb[0].mxu0
      %v2213 = vpop.f32.mrb[0].mxu0
      %v2214 = vadd.f32 %v2114, %v2213
      %v2215 = vpop.f32.mrb[0].mxu0
      %2216 = vmatprep.mubr.bf16.mxu0 %v586
      %2217 = vmatmul.mubr.bf16.gmra.mrb[0].mxu0 %v496
      %v2218 = vpop.f32.mrb[0].mxu0
      %v2219 = vadd.f32 %v2114, %v2218
      %v2220 = vpop.f32.mrb[0].mxu0
      %v2221 = vpop.f32.mrb[0].mxu0
      %v2222 = vadd.f32 %v2114, %v2221
      %v2223 = vpop.f32.mrb[0].mxu0
      %2224 = vmatprep.mubr.bf16.mxu0 %v589
      %2225 = vmatmul.mubr.bf16.gmra.mrb[0].mxu0 %v498
      %v2226 = vpop.f32.mrb[0].mxu0
      %v2227 = vadd.f32 %v2114, %v2226
      %v2228 = vpop.f32.mrb[0].mxu0
      %v2229 = vpop.f32.mrb[0].mxu0
      %v2230 = vadd.f32 %v2114, %v2229
      %v2231 = vpop.f32.mrb[0].mxu0
      %2232 = vmatprep.mubr.bf16.mxu0 %v592
      %2233 = vmatmul.mubr.bf16.gmra.mrb[0].mxu0 %v500
      %v2234 = vpop.f32.mrb[0].mxu0
      %v2235 = vadd.f32 %v2114, %v2234
      %v2236 = vpop.f32.mrb[0].mxu0
      %v2237 = vpop.f32.mrb[0].mxu0
      %v2238 = vadd.f32 %v2114, %v2237
      %v2239 = vpop.f32.mrb[0].mxu0
      %2240 = vmatprep.mubr.bf16.mxu0 %v595
      %2241 = vmatmul.mubr.bf16.gmra.mrb[0].mxu0 %v502
      %v2242 = vpop.f32.mrb[0].mxu0
      %v2243 = vadd.f32 %v2114, %v2242
      %v2244 = vpop.f32.mrb[0].mxu0
      %v2245 = vpop.f32.mrb[0].mxu0
      %v2246 = vadd.f32 %v2114, %v2245
      %v2247 = vpop.f32.mrb[0].mxu0
      %2248 = vmatprep.mubr.bf16.mxu0 %v598
      %2249 = vmatmul.mubr.bf16.gmra.mrb[0].mxu0 %v504
      %v2250 = vpop.f32.mrb[0].mxu0
      %v2251 = vadd.f32 %v2114, %v2250
      %v2252 = vpop.f32.mrb[0].mxu0
      %v2253 = vpop.f32.mrb[0].mxu0
      %v2254 = vadd.f32 %v2114, %v2253
      %v2255 = vpop.f32.mrb[0].mxu0
      %2256 = vmatprep.mubr.bf16.mxu0 %v601
      %2257 = vmatmul.mubr.bf16.gmra.mrb[0].mxu0 %v506
      %v2258 = vpop.f32.mrb[0].mxu0
      %v2259 = vadd.f32 %v2114, %v2258
      %v2260 = vpop.f32.mrb[0].mxu0
      %v2261 = vpop.f32.mrb[0].mxu0
      %v2262 = vadd.f32 %v2114, %v2261
      %v2263 = vpop.f32.mrb[0].mxu0
      %2264 = vmatprep.mubr.bf16.mxu0 %v604
      %2265 = vmatmul.mubr.bf16.gmra.mrb[0].mxu0 %v508
      %v2266 = vpop.f32.mrb[0].mxu0
      %v2267 = vadd.f32 %v2114, %v2266
      %v2268 = vpop.f32.mrb[0].mxu0
      %v2269 = vpop.f32.mrb[0].mxu0
      %v2270 = vadd.f32 %v2114, %v2269
      %v2271 = vpop.f32.mrb[0].mxu0
      %2272 = vmatprep.mubr.bf16.mxu0 %v607
      %2273 = vmatmul.mubr.bf16.gmra.mrb[0].mxu0 %v510
      %v2274 = vpop.f32.mrb[0].mxu0
      %v2275 = vadd.f32 %v2114, %v2274
      %v2276 = vpop.f32.mrb[0].mxu0
      %v2277 = vpop.f32.mrb[0].mxu0
      %v2278 = vadd.f32 %v2114, %v2277
      %v2279 = vpop.f32.mrb[0].mxu0
      %2280 = vmatprep.mubr.bf16.mxu0 %v610
      %2281 = vmatmul.mubr.bf16.gmra.mrb[0].mxu0 %v512
      %v2282 = vpop.f32.mrb[0].mxu0
      %v2283 = vadd.f32 %v2114, %v2282
      %v2284 = vpop.f32.mrb[0].mxu0
      %v2285 = vpop.f32.mrb[0].mxu0
      %v2286 = vadd.f32 %v2114, %v2285
      %v2287 = vpop.f32.mrb[0].mxu0
      %2288 = vdwg.mxu0
      %v2289 = vsub.f32 0.0, %v2211
      %v2290 = vsub.f32 0.0, %v2214
      %v2291 = vsub.f32 0.0, %v2219
      %v2292 = vsub.f32 0.0, %v2222
      %v2293 = vsub.f32 0.0, %v2227
      %v2294 = vsub.f32 0.0, %v2230
      %v2295 = vsub.f32 0.0, %v2235
      %v2296 = vsub.f32 0.0, %v2238
      %v2297 = vsub.f32 0.0, %v2243
      %v2298 = vsub.f32 0.0, %v2246
      %v2299 = vsub.f32 0.0, %v2251
      %v2300 = vsub.f32 0.0, %v2254
      %v2301 = vsub.f32 0.0, %v2259
      %v2302 = vsub.f32 0.0, %v2262
      %v2303 = vsub.f32 0.0, %v2267
      %v2304 = vsub.f32 0.0, %v2270
      %v2305 = vsub.f32 0.0, %v2275
      %v2306 = vsub.f32 0.0, %v2278
      %v2307 = vsub.f32 0.0, %v2283
      %v2308 = vsub.f32 0.0, %v2286
      %v2309 = vmul.f32 %v2289, 1.442695
      %v2310 = vpow.pop %v2309
      %v2311 = vmul.f32 %v2290, 1.442695
      %v2312 = vpow.pop %v2311
      %v2313 = vmul.f32 %v2291, 1.442695
      %v2314 = vpow.pop %v2313
      %v2315 = vmul.f32 %v2292, 1.442695
      %v2316 = vpow.pop %v2315
      %v2317 = vmul.f32 %v2293, 1.442695
      %v2318 = vpow.pop %v2317
      %v2319 = vmul.f32 %v2294, 1.442695
      %v2320 = vpow.pop %v2319
      %v2321 = vmul.f32 %v2295, 1.442695
      %v2322 = vpow.pop %v2321
      %v2323 = vmul.f32 %v2296, 1.442695
      %v2324 = vpow.pop %v2323
      %v2325 = vmul.f32 %v2297, 1.442695
      %v2326 = vpow.pop %v2325
      %v2327 = vmul.f32 %v2298, 1.442695
      %v2328 = vpow.pop %v2327
      %v2329 = vmul.f32 %v2299, 1.442695
      %v2330 = vpow.pop %v2329
      %v2331 = vmul.f32 %v2300, 1.442695
      %v2332 = vpow.pop %v2331
      %v2333 = vmul.f32 %v2301, 1.442695
      %v2334 = vpow.pop %v2333
      %v2335 = vmul.f32 %v2302, 1.442695
      %v2336 = vpow.pop %v2335
      %v2337 = vmul.f32 %v2303, 1.442695
      %v2338 = vpow.pop %v2337
      %v2339 = vmul.f32 %v2304, 1.442695
      %v2340 = vpow.pop %v2339
      %v2341 = vmul.f32 %v2305, 1.442695
      %v2342 = vpow.pop %v2341
      %v2343 = vmul.f32 %v2306, 1.442695
      %v2344 = vpow.pop %v2343
      %v2345 = vmul.f32 %v2307, 1.442695
      %v2346 = vpow.pop %v2345
      %v2347 = vmul.f32 %v2308, 1.442695
      %v2348 = vpow.pop %v2347
      %v2349 = vadd.f32 %v2310, 1.0
      %v2350 = vadd.f32 %v2312, 1.0
      %v2351 = vadd.f32 %v2314, 1.0
      %v2352 = vadd.f32 %v2316, 1.0
      %v2353 = vadd.f32 %v2318, 1.0
      %v2354 = vadd.f32 %v2320, 1.0
      %v2355 = vadd.f32 %v2322, 1.0
      %v2356 = vadd.f32 %v2324, 1.0
      %v2357 = vadd.f32 %v2326, 1.0
      %v2358 = vadd.f32 %v2328, 1.0
      %v2359 = vadd.f32 %v2330, 1.0
      %v2360 = vadd.f32 %v2332, 1.0
      %v2361 = vadd.f32 %v2334, 1.0
      %v2362 = vadd.f32 %v2336, 1.0
      %v2363 = vadd.f32 %v2338, 1.0
      %v2364 = vadd.f32 %v2340, 1.0
      %v2365 = vadd.f32 %v2342, 1.0
      %v2366 = vadd.f32 %v2344, 1.0
      %v2367 = vadd.f32 %v2346, 1.0
      %v2368 = vadd.f32 %v2348, 1.0
      %v2369 = vrcp.pop %v2349
      %v2370 = vrcp.pop %v2350
      %v2371 = vrcp.pop %v2351
      %v2372 = vrcp.pop %v2352
      %v2373 = vrcp.pop %v2353
      %v2374 = vrcp.pop %v2354
      %v2375 = vrcp.pop %v2355
      %v2376 = vrcp.pop %v2356
      %v2377 = vrcp.pop %v2357
      %v2378 = vrcp.pop %v2358
      %v2379 = vrcp.pop %v2359
      %v2380 = vrcp.pop %v2360
      %v2381 = vrcp.pop %v2361
      %v2382 = vrcp.pop %v2362
      %v2383 = vrcp.pop %v2363
      %v2384 = vrcp.pop %v2364
      %v2385 = vrcp.pop %v2365
      %v2386 = vrcp.pop %v2366
      %v2387 = vrcp.pop %v2367
      %v2388 = vrcp.pop %v2368
      %s2389 = scalar_lea.vmem %s367, 24
      %v2390 = vld [vmem:[%s2389] sm:$0xff]
      %v2391 = vld [vmem:[%s2389 + $0x8] sm:$0xff]
      %v2392 = vld [vmem:[%s2389 + $0x18] sm:$0xff]
      %v2393 = vld [vmem:[%s2389 + $0x20] sm:$0xff]
      %v2394 = vld [vmem:[%s2389 + $0x30] sm:$0xff]
      %v2395 = vld [vmem:[%s2389 + $0x38] sm:$0xff]
      %v2396 = vld [vmem:[%s2389 + $0x48] sm:$0xff]
      %v2397 = vld [vmem:[%s2389 + $0x50] sm:$0xff]
      %v2398 = vld [vmem:[%s2389 + $0x60] sm:$0xff]
      %v2399 = vld [vmem:[%s2389 + $0x68] sm:$0xff]
      %v2400 = vld [vmem:[%s2389 + $0x78] sm:$0xff]
      %v2401 = vld [vmem:[%s2389 + $0x80] sm:$0xff]
      %v2402 = vld [vmem:[%s2389 + $0x90] sm:$0xff]
      %v2403 = vld [vmem:[%s2389 + $0x98] sm:$0xff]
      %v2404 = vld [vmem:[%s2389 + $0xa8] sm:$0xff]
      %v2405 = vld [vmem:[%s2389 + $0xb0] sm:$0xff]
      %v2406 = vld [vmem:[%s2389 + $0xc0] sm:$0xff]
      %v2407 = vld [vmem:[%s2389 + $0xc8] sm:$0xff]
      %v2408 = vld [vmem:[%s2389 + $0xd8] sm:$0xff]
      %v2409 = vld [vmem:[%s2389 + $0xe0] sm:$0xff]
      %v2410 = vmul.f32 %v2369, %v2390
      %v2411 = vmul.f32 %v2370, %v2391
      %v2412 = vmul.f32 %v2371, %v2392
      %v2413 = vmul.f32 %v2372, %v2393
      %v2414 = vmul.f32 %v2373, %v2394
      %v2415 = vmul.f32 %v2374, %v2395
      %v2416 = vmul.f32 %v2375, %v2396
      %v2417 = vmul.f32 %v2376, %v2397
      %v2418 = vmul.f32 %v2377, %v2398
      %v2419 = vmul.f32 %v2378, %v2399
      %v2420 = vmul.f32 %v2379, %v2400
      %v2421 = vmul.f32 %v2380, %v2401
      %v2422 = vmul.f32 %v2381, %v2402
      %v2423 = vmul.f32 %v2382, %v2403
      %v2424 = vmul.f32 %v2383, %v2404
      %v2425 = vmul.f32 %v2384, %v2405
      %v2426 = vmul.f32 %v2385, %v2406
      %v2427 = vmul.f32 %v2386, %v2407
      %v2428 = vmul.f32 %v2387, %v2408
      %v2429 = vmul.f32 %v2388, %v2409
      %v2430 = vpack.c.bf16 %v2411, %v2410
      %v2431 = vpack.c.bf16 %v2413, %v2412
      %v2432 = vpack.c.bf16 %v2415, %v2414
      %v2433 = vpack.c.bf16 %v2417, %v2416
      %v2434 = vpack.c.bf16 %v2419, %v2418
      %v2435 = vpack.c.bf16 %v2421, %v2420
      %v2436 = vpack.c.bf16 %v2423, %v2422
      %v2437 = vpack.c.bf16 %v2425, %v2424
      %v2438 = vpack.c.bf16 %v2427, %v2426
      %v2439 = vpack.c.bf16 %v2429, %v2428
      %s2440 = scalar_lea.vmem %s4, 6
      %v2441 = vld [vmem:[%s2440] sm:$0x3]
      %v2443 = vsel %vm883, %v2430, 0
      %v2446 = vsel %vm883, %v2431, 0
      %v2449 = vsel %vm883, %v2432, 0
      %v2452 = vsel %vm883, %v2433, 0
      %v2455 = vsel %vm883, %v2434, 0
      %v2458 = vsel %vm883, %v2435, 0
      %v2461 = vsel %vm883, %v2436, 0
      %v2464 = vsel %vm883, %v2437, 0
      %v2467 = vsel %vm883, %v2438, 0
      %v2470 = vsel %vm883, %v2439, 0
      %v2473 = vsel %vm613, %v2441, 0
      %2475 = vmatprep.subr.bf16.mxu0 0
      %2476 = vmatpush1.bf16.msra.mxu0 %v2473
      %2477 = vmatprep.subr.bf16.mxu0 0
      %2478 = vmatpush1.bf16.msra.mxu0 0
      %2479 = vmatprep.subr.bf16.mxu0 0
      %2480 = vmatpush1.bf16.msra.mxu0 0
      %2481 = vmatprep.subr.bf16.mxu0 0
      %2482 = vmatpush1.bf16.msra.mxu0 0
      %2483 = vmatprep.subr.bf16.mxu0 0
      %2484 = vmatpush1.bf16.msra.mxu0 0
      %2485 = vmatprep.subr.bf16.mxu0 0
      %2486 = vmatpush1.bf16.msra.mxu0 0
      %2487 = vmatprep.subr.bf16.mxu0 0
      %2488 = vmatpush1.bf16.msra.mxu0 0
      %2489 = vmatprep.subr.bf16.mxu0 0
      %2490 = vmatpush1.bf16.msra.mxu0 0
      %2491 = vmatprep.subr.bf16.mxu0 0
      %2492 = vmatpush1.bf16.msra.mxu0 0
      %2493 = vmatprep.subr.bf16.mxu0 0
      %2494 = vmatpush1.bf16.msra.mxu0 0
      %2495 = vmatprep.subr.bf16.mxu0 0
      %2496 = vmatpush1.bf16.msra.mxu0 0
      %2497 = vmatprep.subr.bf16.mxu0 0
      %2498 = vmatpush1.bf16.msra.mxu0 0
      %2499 = vmatprep.subr.bf16.mxu0 0
      %2500 = vmatpush1.bf16.msra.mxu0 0
      %2501 = vmatprep.subr.bf16.mxu0 0
      %2502 = vmatpush1.bf16.msra.mxu0 0
      %2503 = vmatprep.subr.bf16.mxu0 0
      %2504 = vmatpush1.bf16.msra.mxu0 0
      %2505 = vmatprep.subr.bf16.mxu0 0
      %2506 = vmatpush1.bf16.msra.mxu0 0
      %2507 = vmatprep.mubr.bf16.mxu0 0
      %2508 = vmatmul.mubr.bf16.gmra.mrb[0].mxu0 %v2443
      %v2509 = vpop.f32.mrb[0].mxu0
      %v2510 = vadd.f32 0.0, %v2509
      %v2511 = vpop.f32.mrb[0].mxu0
      %v2512 = vpop.f32.mrb[0].mxu0
      %v2513 = vadd.f32 0.0, %v2512
      %v2514 = vpop.f32.mrb[0].mxu0
      %2515 = vmatprep.mubr.bf16.mxu0 0
      %2516 = vmatmul.mubr.bf16.gmra.mrb[0].mxu0 %v2446
      %v2517 = vpop.f32.mrb[0].mxu0
      %v2518 = vadd.f32 0.0, %v2517
      %v2519 = vpop.f32.mrb[0].mxu0
      %v2520 = vpop.f32.mrb[0].mxu0
      %v2521 = vadd.f32 0.0, %v2520
      %v2522 = vpop.f32.mrb[0].mxu0
      %2523 = vmatprep.mubr.bf16.mxu0 0
      %2524 = vmatmul.mubr.bf16.gmra.mrb[0].mxu0 %v2449
      %v2525 = vpop.f32.mrb[0].mxu0
      %v2526 = vadd.f32 0.0, %v2525
      %v2527 = vpop.f32.mrb[0].mxu0
      %v2528 = vpop.f32.mrb[0].mxu0
      %v2529 = vadd.f32 0.0, %v2528
      %v2530 = vpop.f32.mrb[0].mxu0
      %2531 = vmatprep.mubr.bf16.mxu0 0
      %2532 = vmatmul.mubr.bf16.gmra.mrb[0].mxu0 %v2452
      %v2533 = vpop.f32.mrb[0].mxu0
      %v2534 = vadd.f32 0.0, %v2533
      %v2535 = vpop.f32.mrb[0].mxu0
      %v2536 = vpop.f32.mrb[0].mxu0
      %v2537 = vadd.f32 0.0, %v2536
      %v2538 = vpop.f32.mrb[0].mxu0
      %2539 = vmatprep.mubr.bf16.mxu0 0
      %2540 = vmatmul.mubr.bf16.gmra.mrb[0].mxu0 %v2455
      %v2541 = vpop.f32.mrb[0].mxu0
      %v2542 = vadd.f32 0.0, %v2541
      %v2543 = vpop.f32.mrb[0].mxu0
      %v2544 = vpop.f32.mrb[0].mxu0
      %v2545 = vadd.f32 0.0, %v2544
      %v2546 = vpop.f32.mrb[0].mxu0
      %2547 = vmatprep.mubr.bf16.mxu0 0
      %2548 = vmatmul.mubr.bf16.gmra.mrb[0].mxu0 %v2458
      %v2549 = vpop.f32.mrb[0].mxu0
      %v2550 = vadd.f32 0.0, %v2549
      %v2551 = vpop.f32.mrb[0].mxu0
      %v2552 = vpop.f32.mrb[0].mxu0
      %v2553 = vadd.f32 0.0, %v2552
      %v2554 = vpop.f32.mrb[0].mxu0
      %2555 = vmatprep.mubr.bf16.mxu0 0
      %2556 = vmatmul.mubr.bf16.gmra.mrb[0].mxu0 %v2461
      %v2557 = vpop.f32.mrb[0].mxu0
      %v2558 = vadd.f32 0.0, %v2557
      %v2559 = vpop.f32.mrb[0].mxu0
      %v2560 = vpop.f32.mrb[0].mxu0
      %v2561 = vadd.f32 0.0, %v2560
      %v2562 = vpop.f32.mrb[0].mxu0
      %2563 = vmatprep.mubr.bf16.mxu0 0
      %2564 = vmatmul.mubr.bf16.gmra.mrb[0].mxu0 %v2464
      %v2565 = vpop.f32.mrb[0].mxu0
      %v2566 = vadd.f32 0.0, %v2565
      %v2567 = vpop.f32.mrb[0].mxu0
      %v2568 = vpop.f32.mrb[0].mxu0
      %v2569 = vadd.f32 0.0, %v2568
      %v2570 = vpop.f32.mrb[0].mxu0
      %2571 = vmatprep.mubr.bf16.mxu0 0
      %2572 = vmatmul.mubr.bf16.gmra.mrb[0].mxu0 %v2467
      %v2573 = vpop.f32.mrb[0].mxu0
      %v2574 = vadd.f32 0.0, %v2573
      %v2575 = vpop.f32.mrb[0].mxu0
      %v2576 = vpop.f32.mrb[0].mxu0
      %v2577 = vadd.f32 0.0, %v2576
      %v2578 = vpop.f32.mrb[0].mxu0
      %2579 = vmatprep.mubr.bf16.mxu0 0
      %2580 = vmatmul.mubr.bf16.gmra.mrb[0].mxu0 %v2470
      %v2581 = vpop.f32.mrb[0].mxu0
      %v2582 = vadd.f32 0.0, %v2581
      %v2583 = vpop.f32.mrb[0].mxu0
      %v2584 = vpop.f32.mrb[0].mxu0
      %v2585 = vadd.f32 0.0, %v2584
      %v2586 = vpop.f32.mrb[0].mxu0
      %2587 = vdwg.mxu0
      %v2588 = vadd.f32 %v2068, %v2510
      %v2589 = vadd.f32 %v2069, %v2513
      %v2590 = vadd.f32 %v2070, %v2518
      %v2591 = vadd.f32 %v2071, %v2521
      %v2592 = vadd.f32 %v2072, %v2526
      %v2593 = vadd.f32 %v2073, %v2529
      %v2594 = vadd.f32 %v2074, %v2534
      %v2595 = vadd.f32 %v2075, %v2537
      %v2596 = vadd.f32 %v2076, %v2542
      %v2597 = vadd.f32 %v2077, %v2545
      %v2598 = vadd.f32 %v2078, %v2550
      %v2599 = vadd.f32 %v2079, %v2553
      %v2600 = vadd.f32 %v2080, %v2558
      %v2601 = vadd.f32 %v2081, %v2561
      %v2602 = vadd.f32 %v2082, %v2566
      %v2603 = vadd.f32 %v2083, %v2569
      %v2604 = vadd.f32 %v2084, %v2574
      %v2605 = vadd.f32 %v2085, %v2577
      %v2606 = vadd.f32 %v2086, %v2582
      %v2607 = vadd.f32 %v2087, %v2585
      %s2608 = scalar_lea.vmem %s2, 304
      %v2609 = vld [vmem:[%s2608] sm:$0xf]
      %v2610 = vld [vmem:[%s2608 + $0x4] sm:$0xf]
      %v2611 = vld [vmem:[%s2608 + $0x8] sm:$0xf]
      %v2612 = vld [vmem:[%s2608 + $0xc] sm:$0xf]
      %v2613 = vld [vmem:[%s2608 + $0x10] sm:$0xf]
      %v2614 = vld [vmem:[%s2608 + $0x14] sm:$0xf]
      %v2615 = vld [vmem:[%s2608 + $0x18] sm:$0xf]
      %v2616 = vld [vmem:[%s2608 + $0x1c] sm:$0xf]
      %v2617 = vld [vmem:[%s2608 + $0x20] sm:$0xf]
      %v2618 = vld [vmem:[%s2608 + $0x24] sm:$0xf]
      %v2619 = vld [vmem:[%s2608 + $0x28] sm:$0xf]
      %v2620 = vld [vmem:[%s2608 + $0x2c] sm:$0xf]
      %v2621 = vld [vmem:[%s2608 + $0x30] sm:$0xf]
      %v2622 = vld [vmem:[%s2608 + $0x34] sm:$0xf]
      %v2623 = vld [vmem:[%s2608 + $0x38] sm:$0xf]
      %v2624 = vld [vmem:[%s2608 + $0x3c] sm:$0xf]
      %v2625 = vld [vmem:[%s2608 + $0x40] sm:$0xf]
      %v2626 = vld [vmem:[%s2608 + $0x44] sm:$0xf]
      %v2627 = vld [vmem:[%s2608 + $0x48] sm:$0x3]
      %s2628 = scalar_lea.vmem %s3, 4
      %v2629 = vld [vmem:[%s2628] sm:$0x1]
      %v2631 = vlaneseq
      %v2632 = vshrl.u32 %v2631, 7
      %v2633 = vsub.s32 0, %v2632
      %v2634 = vrot.slane %v2629, %v2633
      %v2655 = vunpack.c.l.b16 %v2609
      %v2656 = vunpack.c.l.b16 %v2610
      %v2657 = vunpack.c.l.b16 %v2611
      %v2658 = vunpack.c.l.b16 %v2612
      %v2659 = vunpack.c.l.b16 %v2613
      %v2660 = vunpack.c.l.b16 %v2614
      %v2661 = vunpack.c.l.b16 %v2615
      %v2662 = vunpack.c.l.b16 %v2616
      %v2663 = vunpack.c.l.b16 %v2617
      %v2664 = vunpack.c.l.b16 %v2618
      %v2665 = vunpack.c.l.b16 %v2619
      %v2666 = vunpack.c.l.b16 %v2620
      %v2667 = vunpack.c.l.b16 %v2621
      %v2668 = vunpack.c.l.b16 %v2622
      %v2669 = vunpack.c.l.b16 %v2623
      %v2670 = vunpack.c.l.b16 %v2624
      %v2671 = vunpack.c.l.b16 %v2625
      %v2672 = vunpack.c.l.b16 %v2626
      %v2673 = vunpack.c.l.b16 %v2627
      %v2674 = vpack.c.b16 %v2656, %v2655
      %v2675 = vpack.c.b16 %v2658, %v2657
      %v2676 = vpack.c.b16 %v2660, %v2659
      %v2677 = vpack.c.b16 %v2662, %v2661
      %v2678 = vpack.c.b16 %v2664, %v2663
      %v2679 = vpack.c.b16 %v2666, %v2665
      %v2680 = vpack.c.b16 %v2668, %v2667
      %v2681 = vpack.c.b16 %v2670, %v2669
      %v2682 = vpack.c.b16 %v2672, %v2671
      %v2683 = vpack.c.b16 %v2673, %v2673
      %v2694 = vand.u32 %v2683, %v615
      %2696 = vmatprep.subr.bf16.mxu0 0
      %2697 = vmatpush1.bf16.msra.mxu0 %v2674
      %2698 = vmatprep.subr.bf16.mxu0 0
      %2699 = vmatpush1.bf16.msra.mxu0 %v2675
      %2700 = vmatprep.subr.bf16.mxu0 0
      %2701 = vmatpush1.bf16.msra.mxu0 %v2676
      %2702 = vmatprep.subr.bf16.mxu0 0
      %2703 = vmatpush1.bf16.msra.mxu0 %v2677
      %2704 = vmatprep.subr.bf16.mxu0 0
      %2705 = vmatpush1.bf16.msra.mxu0 %v2678
      %2706 = vmatprep.subr.bf16.mxu0 0
      %2707 = vmatpush1.bf16.msra.mxu0 %v2679
      %2708 = vmatprep.subr.bf16.mxu0 0
      %2709 = vmatpush1.bf16.msra.mxu0 %v2680
      %2710 = vmatprep.subr.bf16.mxu0 0
      %2711 = vmatpush1.bf16.msra.mxu0 %v2681
      %2712 = vmatprep.subr.bf16.mxu0 0
      %2713 = vmatpush1.bf16.msra.mxu0 %v2682
      %2714 = vmatprep.subr.bf16.mxu0 0
      %2715 = vmatpush1.bf16.msra.mxu0 %v2694
      %2716 = vmatprep.subr.bf16.mxu0 0
      %2717 = vmatpush1.bf16.msra.mxu0 0
      %2718 = vmatprep.subr.bf16.mxu0 0
      %2719 = vmatpush1.bf16.msra.mxu0 0
      %2720 = vmatprep.subr.bf16.mxu0 0
      %2721 = vmatpush1.bf16.msra.mxu0 0
      %2722 = vmatprep.subr.bf16.mxu0 0
      %2723 = vmatpush1.bf16.msra.mxu0 0
      %2724 = vmatprep.subr.bf16.mxu0 0
      %2725 = vmatpush1.bf16.msra.mxu0 0
      %2726 = vmatprep.subr.bf16.mxu0 0
      %2727 = vmatpush1.bf16.msra.mxu0 0
      %2728 = vmatprep.mubr.bf16.mxu0 %v583
      %2729 = vmatmul.mubr.bf16.gmra.mrb[0].mxu0 %v494
      %v2730 = vpop.f32.mrb[0].mxu0
      %v2731 = vadd.f32 %v2634, %v2730
      %v2732 = vpop.f32.mrb[0].mxu0
      %v2733 = vpop.f32.mrb[0].mxu0
      %v2734 = vadd.f32 %v2634, %v2733
      %v2735 = vpop.f32.mrb[0].mxu0
      %2736 = vmatprep.mubr.bf16.mxu0 %v586
      %2737 = vmatmul.mubr.bf16.gmra.mrb[0].mxu0 %v496
      %v2738 = vpop.f32.mrb[0].mxu0
      %v2739 = vadd.f32 %v2634, %v2738
      %v2740 = vpop.f32.mrb[0].mxu0
      %v2741 = vpop.f32.mrb[0].mxu0
      %v2742 = vadd.f32 %v2634, %v2741
      %v2743 = vpop.f32.mrb[0].mxu0
      %2744 = vmatprep.mubr.bf16.mxu0 %v589
      %2745 = vmatmul.mubr.bf16.gmra.mrb[0].mxu0 %v498
      %v2746 = vpop.f32.mrb[0].mxu0
      %v2747 = vadd.f32 %v2634, %v2746
      %v2748 = vpop.f32.mrb[0].mxu0
      %v2749 = vpop.f32.mrb[0].mxu0
      %v2750 = vadd.f32 %v2634, %v2749
      %v2751 = vpop.f32.mrb[0].mxu0
      %2752 = vmatprep.mubr.bf16.mxu0 %v592
      %2753 = vmatmul.mubr.bf16.gmra.mrb[0].mxu0 %v500
      %v2754 = vpop.f32.mrb[0].mxu0
      %v2755 = vadd.f32 %v2634, %v2754
      %v2756 = vpop.f32.mrb[0].mxu0
      %v2757 = vpop.f32.mrb[0].mxu0
      %v2758 = vadd.f32 %v2634, %v2757
      %v2759 = vpop.f32.mrb[0].mxu0
      %2760 = vmatprep.mubr.bf16.mxu0 %v595
      %2761 = vmatmul.mubr.bf16.gmra.mrb[0].mxu0 %v502
      %v2762 = vpop.f32.mrb[0].mxu0
      %v2763 = vadd.f32 %v2634, %v2762
      %v2764 = vpop.f32.mrb[0].mxu0
      %v2765 = vpop.f32.mrb[0].mxu0
      %v2766 = vadd.f32 %v2634, %v2765
      %v2767 = vpop.f32.mrb[0].mxu0
      %2768 = vmatprep.mubr.bf16.mxu0 %v598
      %2769 = vmatmul.mubr.bf16.gmra.mrb[0].mxu0 %v504
      %v2770 = vpop.f32.mrb[0].mxu0
      %v2771 = vadd.f32 %v2634, %v2770
      %v2772 = vpop.f32.mrb[0].mxu0
      %v2773 = vpop.f32.mrb[0].mxu0
      %v2774 = vadd.f32 %v2634, %v2773
      %v2775 = vpop.f32.mrb[0].mxu0
      %2776 = vmatprep.mubr.bf16.mxu0 %v601
      %2777 = vmatmul.mubr.bf16.gmra.mrb[0].mxu0 %v506
      %v2778 = vpop.f32.mrb[0].mxu0
      %v2779 = vadd.f32 %v2634, %v2778
      %v2780 = vpop.f32.mrb[0].mxu0
      %v2781 = vpop.f32.mrb[0].mxu0
      %v2782 = vadd.f32 %v2634, %v2781
      %v2783 = vpop.f32.mrb[0].mxu0
      %2784 = vmatprep.mubr.bf16.mxu0 %v604
      %2785 = vmatmul.mubr.bf16.gmra.mrb[0].mxu0 %v508
      %v2786 = vpop.f32.mrb[0].mxu0
      %v2787 = vadd.f32 %v2634, %v2786
      %v2788 = vpop.f32.mrb[0].mxu0
      %v2789 = vpop.f32.mrb[0].mxu0
      %v2790 = vadd.f32 %v2634, %v2789
      %v2791 = vpop.f32.mrb[0].mxu0
      %2792 = vmatprep.mubr.bf16.mxu0 %v607
      %2793 = vmatmul.mubr.bf16.gmra.mrb[0].mxu0 %v510
      %v2794 = vpop.f32.mrb[0].mxu0
      %v2795 = vadd.f32 %v2634, %v2794
      %v2796 = vpop.f32.mrb[0].mxu0
      %v2797 = vpop.f32.mrb[0].mxu0
      %v2798 = vadd.f32 %v2634, %v2797
      %v2799 = vpop.f32.mrb[0].mxu0
      %2800 = vmatprep.mubr.bf16.mxu0 %v610
      %2801 = vmatmul.mubr.bf16.gmra.mrb[0].mxu0 %v512
      %v2802 = vpop.f32.mrb[0].mxu0
      %v2803 = vadd.f32 %v2634, %v2802
      %v2804 = vpop.f32.mrb[0].mxu0
      %v2805 = vpop.f32.mrb[0].mxu0
      %v2806 = vadd.f32 %v2634, %v2805
      %v2807 = vpop.f32.mrb[0].mxu0
      %2808 = vdwg.mxu0
      %v2809 = vsub.f32 0.0, %v2731
      %v2810 = vsub.f32 0.0, %v2734
      %v2811 = vsub.f32 0.0, %v2739
      %v2812 = vsub.f32 0.0, %v2742
      %v2813 = vsub.f32 0.0, %v2747
      %v2814 = vsub.f32 0.0, %v2750
      %v2815 = vsub.f32 0.0, %v2755
      %v2816 = vsub.f32 0.0, %v2758
      %v2817 = vsub.f32 0.0, %v2763
      %v2818 = vsub.f32 0.0, %v2766
      %v2819 = vsub.f32 0.0, %v2771
      %v2820 = vsub.f32 0.0, %v2774
      %v2821 = vsub.f32 0.0, %v2779
      %v2822 = vsub.f32 0.0, %v2782
      %v2823 = vsub.f32 0.0, %v2787
      %v2824 = vsub.f32 0.0, %v2790
      %v2825 = vsub.f32 0.0, %v2795
      %v2826 = vsub.f32 0.0, %v2798
      %v2827 = vsub.f32 0.0, %v2803
      %v2828 = vsub.f32 0.0, %v2806
      %v2829 = vmul.f32 %v2809, 1.442695
      %v2830 = vpow.pop %v2829
      %v2831 = vmul.f32 %v2810, 1.442695
      %v2832 = vpow.pop %v2831
      %v2833 = vmul.f32 %v2811, 1.442695
      %v2834 = vpow.pop %v2833
      %v2835 = vmul.f32 %v2812, 1.442695
      %v2836 = vpow.pop %v2835
      %v2837 = vmul.f32 %v2813, 1.442695
      %v2838 = vpow.pop %v2837
      %v2839 = vmul.f32 %v2814, 1.442695
      %v2840 = vpow.pop %v2839
      %v2841 = vmul.f32 %v2815, 1.442695
      %v2842 = vpow.pop %v2841
      %v2843 = vmul.f32 %v2816, 1.442695
      %v2844 = vpow.pop %v2843
      %v2845 = vmul.f32 %v2817, 1.442695
      %v2846 = vpow.pop %v2845
      %v2847 = vmul.f32 %v2818, 1.442695
      %v2848 = vpow.pop %v2847
      %v2849 = vmul.f32 %v2819, 1.442695
      %v2850 = vpow.pop %v2849
      %v2851 = vmul.f32 %v2820, 1.442695
      %v2852 = vpow.pop %v2851
      %v2853 = vmul.f32 %v2821, 1.442695
      %v2854 = vpow.pop %v2853
      %v2855 = vmul.f32 %v2822, 1.442695
      %v2856 = vpow.pop %v2855
      %v2857 = vmul.f32 %v2823, 1.442695
      %v2858 = vpow.pop %v2857
      %v2859 = vmul.f32 %v2824, 1.442695
      %v2860 = vpow.pop %v2859
      %v2861 = vmul.f32 %v2825, 1.442695
      %v2862 = vpow.pop %v2861
      %v2863 = vmul.f32 %v2826, 1.442695
      %v2864 = vpow.pop %v2863
      %v2865 = vmul.f32 %v2827, 1.442695
      %v2866 = vpow.pop %v2865
      %v2867 = vmul.f32 %v2828, 1.442695
      %v2868 = vpow.pop %v2867
      %v2869 = vadd.f32 %v2830, 1.0
      %v2870 = vadd.f32 %v2832, 1.0
      %v2871 = vadd.f32 %v2834, 1.0
      %v2872 = vadd.f32 %v2836, 1.0
      %v2873 = vadd.f32 %v2838, 1.0
      %v2874 = vadd.f32 %v2840, 1.0
      %v2875 = vadd.f32 %v2842, 1.0
      %v2876 = vadd.f32 %v2844, 1.0
      %v2877 = vadd.f32 %v2846, 1.0
      %v2878 = vadd.f32 %v2848, 1.0
      %v2879 = vadd.f32 %v2850, 1.0
      %v2880 = vadd.f32 %v2852, 1.0
      %v2881 = vadd.f32 %v2854, 1.0
      %v2882 = vadd.f32 %v2856, 1.0
      %v2883 = vadd.f32 %v2858, 1.0
      %v2884 = vadd.f32 %v2860, 1.0
      %v2885 = vadd.f32 %v2862, 1.0
      %v2886 = vadd.f32 %v2864, 1.0
      %v2887 = vadd.f32 %v2866, 1.0
      %v2888 = vadd.f32 %v2868, 1.0
      %v2889 = vrcp.pop %v2869
      %v2890 = vrcp.pop %v2870
      %v2891 = vrcp.pop %v2871
      %v2892 = vrcp.pop %v2872
      %v2893 = vrcp.pop %v2873
      %v2894 = vrcp.pop %v2874
      %v2895 = vrcp.pop %v2875
      %v2896 = vrcp.pop %v2876
      %v2897 = vrcp.pop %v2877
      %v2898 = vrcp.pop %v2878
      %v2899 = vrcp.pop %v2879
      %v2900 = vrcp.pop %v2880
      %v2901 = vrcp.pop %v2881
      %v2902 = vrcp.pop %v2882
      %v2903 = vrcp.pop %v2883
      %v2904 = vrcp.pop %v2884
      %v2905 = vrcp.pop %v2885
      %v2906 = vrcp.pop %v2886
      %v2907 = vrcp.pop %v2887
      %v2908 = vrcp.pop %v2888
      %v2909 = vld [vmem:[%s2389 + $0x1] sm:$0xff]
      %v2910 = vld [vmem:[%s2389 + $0x9] sm:$0xff]
      %v2911 = vld [vmem:[%s2389 + $0x19] sm:$0xff]
      %v2912 = vld [vmem:[%s2389 + $0x21] sm:$0xff]
      %v2913 = vld [vmem:[%s2389 + $0x31] sm:$0xff]
      %v2914 = vld [vmem:[%s2389 + $0x39] sm:$0xff]
      %v2915 = vld [vmem:[%s2389 + $0x49] sm:$0xff]
      %v2916 = vld [vmem:[%s2389 + $0x51] sm:$0xff]
      %v2917 = vld [vmem:[%s2389 + $0x61] sm:$0xff]
      %v2918 = vld [vmem:[%s2389 + $0x69] sm:$0xff]
      %v2919 = vld [vmem:[%s2389 + $0x79] sm:$0xff]
      %v2920 = vld [vmem:[%s2389 + $0x81] sm:$0xff]
      %v2921 = vld [vmem:[%s2389 + $0x91] sm:$0xff]
      %v2922 = vld [vmem:[%s2389 + $0x99] sm:$0xff]
      %v2923 = vld [vmem:[%s2389 + $0xa9] sm:$0xff]
      %v2924 = vld [vmem:[%s2389 + $0xb1] sm:$0xff]
      %v2925 = vld [vmem:[%s2389 + $0xc1] sm:$0xff]
      %v2926 = vld [vmem:[%s2389 + $0xc9] sm:$0xff]
      %v2927 = vld [vmem:[%s2389 + $0xd9] sm:$0xff]
      %v2928 = vld [vmem:[%s2389 + $0xe1] sm:$0xff]
      %v2929 = vmul.f32 %v2889, %v2909
      %v2930 = vmul.f32 %v2890, %v2910
      %v2931 = vmul.f32 %v2891, %v2911
      %v2932 = vmul.f32 %v2892, %v2912
      %v2933 = vmul.f32 %v2893, %v2913
      %v2934 = vmul.f32 %v2894, %v2914
      %v2935 = vmul.f32 %v2895, %v2915
      %v2936 = vmul.f32 %v2896, %v2916
      %v2937 = vmul.f32 %v2897, %v2917
      %v2938 = vmul.f32 %v2898, %v2918
      %v2939 = vmul.f32 %v2899, %v2919
      %v2940 = vmul.f32 %v2900, %v2920
      %v2941 = vmul.f32 %v2901, %v2921
      %v2942 = vmul.f32 %v2902, %v2922
      %v2943 = vmul.f32 %v2903, %v2923
      %v2944 = vmul.f32 %v2904, %v2924
      %v2945 = vmul.f32 %v2905, %v2925
      %v2946 = vmul.f32 %v2906, %v2926
      %v2947 = vmul.f32 %v2907, %v2927
      %v2948 = vmul.f32 %v2908, %v2928
      %v2949 = vpack.c.bf16 %v2930, %v2929
      %v2950 = vpack.c.bf16 %v2932, %v2931
      %v2951 = vpack.c.bf16 %v2934, %v2933
      %v2952 = vpack.c.bf16 %v2936, %v2935
      %v2953 = vpack.c.bf16 %v2938, %v2937
      %v2954 = vpack.c.bf16 %v2940, %v2939
      %v2955 = vpack.c.bf16 %v2942, %v2941
      %v2956 = vpack.c.bf16 %v2944, %v2943
      %v2957 = vpack.c.bf16 %v2946, %v2945
      %v2958 = vpack.c.bf16 %v2948, %v2947
      %s2959 = scalar_lea.vmem %s4, 8
      %v2960 = vld [vmem:[%s2959] sm:$0x3]
      %v2962 = vsel %vm883, %v2949, 0
      %v2965 = vsel %vm883, %v2950, 0
      %v2968 = vsel %vm883, %v2951, 0
      %v2971 = vsel %vm883, %v2952, 0
      %v2974 = vsel %vm883, %v2953, 0
      %v2977 = vsel %vm883, %v2954, 0
      %v2980 = vsel %vm883, %v2955, 0
      %v2983 = vsel %vm883, %v2956, 0
      %v2986 = vsel %vm883, %v2957, 0
      %v2989 = vsel %vm883, %v2958, 0
      %v2992 = vsel %vm613, %v2960, 0
      %2994 = vmatprep.subr.bf16.mxu0 0
      %2995 = vmatpush1.bf16.msra.mxu0 %v2992
      %2996 = vmatprep.subr.bf16.mxu0 0
      %2997 = vmatpush1.bf16.msra.mxu0 0
      %2998 = vmatprep.subr.bf16.mxu0 0
      %2999 = vmatpush1.bf16.msra.mxu0 0
      %3000 = vmatprep.subr.bf16.mxu0 0
      %3001 = vmatpush1.bf16.msra.mxu0 0
      %3002 = vmatprep.subr.bf16.mxu0 0
      %3003 = vmatpush1.bf16.msra.mxu0 0
      %3004 = vmatprep.subr.bf16.mxu0 0
      %3005 = vmatpush1.bf16.msra.mxu0 0
      %3006 = vmatprep.subr.bf16.mxu0 0
      %3007 = vmatpush1.bf16.msra.mxu0 0
      %3008 = vmatprep.subr.bf16.mxu0 0
      %3009 = vmatpush1.bf16.msra.mxu0 0
      %3010 = vmatprep.subr.bf16.mxu0 0
      %3011 = vmatpush1.bf16.msra.mxu0 0
      %3012 = vmatprep.subr.bf16.mxu0 0
      %3013 = vmatpush1.bf16.msra.mxu0 0
      %3014 = vmatprep.subr.bf16.mxu0 0
      %3015 = vmatpush1.bf16.msra.mxu0 0
      %3016 = vmatprep.subr.bf16.mxu0 0
      %3017 = vmatpush1.bf16.msra.mxu0 0
      %3018 = vmatprep.subr.bf16.mxu0 0
      %3019 = vmatpush1.bf16.msra.mxu0 0
      %3020 = vmatprep.subr.bf16.mxu0 0
      %3021 = vmatpush1.bf16.msra.mxu0 0
      %3022 = vmatprep.subr.bf16.mxu0 0
      %3023 = vmatpush1.bf16.msra.mxu0 0
      %3024 = vmatprep.subr.bf16.mxu0 0
      %3025 = vmatpush1.bf16.msra.mxu0 0
      %3026 = vmatprep.mubr.bf16.mxu0 0
      %3027 = vmatmul.mubr.bf16.gmra.mrb[0].mxu0 %v2962
      %v3028 = vpop.f32.mrb[0].mxu0
      %v3029 = vadd.f32 0.0, %v3028
      %v3030 = vpop.f32.mrb[0].mxu0
      %v3031 = vpop.f32.mrb[0].mxu0
      %v3032 = vadd.f32 0.0, %v3031
      %v3033 = vpop.f32.mrb[0].mxu0
      %3034 = vmatprep.mubr.bf16.mxu0 0
      %3035 = vmatmul.mubr.bf16.gmra.mrb[0].mxu0 %v2965
      %v3036 = vpop.f32.mrb[0].mxu0
      %v3037 = vadd.f32 0.0, %v3036
      %v3038 = vpop.f32.mrb[0].mxu0
      %v3039 = vpop.f32.mrb[0].mxu0
      %v3040 = vadd.f32 0.0, %v3039
      %v3041 = vpop.f32.mrb[0].mxu0
      %3042 = vmatprep.mubr.bf16.mxu0 0
      %3043 = vmatmul.mubr.bf16.gmra.mrb[0].mxu0 %v2968
      %v3044 = vpop.f32.mrb[0].mxu0
      %v3045 = vadd.f32 0.0, %v3044
      %v3046 = vpop.f32.mrb[0].mxu0
      %v3047 = vpop.f32.mrb[0].mxu0
      %v3048 = vadd.f32 0.0, %v3047
      %v3049 = vpop.f32.mrb[0].mxu0
      %3050 = vmatprep.mubr.bf16.mxu0 0
      %3051 = vmatmul.mubr.bf16.gmra.mrb[0].mxu0 %v2971
      %v3052 = vpop.f32.mrb[0].mxu0
      %v3053 = vadd.f32 0.0, %v3052
      %v3054 = vpop.f32.mrb[0].mxu0
      %v3055 = vpop.f32.mrb[0].mxu0
      %v3056 = vadd.f32 0.0, %v3055
      %v3057 = vpop.f32.mrb[0].mxu0
      %3058 = vmatprep.mubr.bf16.mxu0 0
      %3059 = vmatmul.mubr.bf16.gmra.mrb[0].mxu0 %v2974
      %v3060 = vpop.f32.mrb[0].mxu0
      %v3061 = vadd.f32 0.0, %v3060
      %v3062 = vpop.f32.mrb[0].mxu0
      %v3063 = vpop.f32.mrb[0].mxu0
      %v3064 = vadd.f32 0.0, %v3063
      %v3065 = vpop.f32.mrb[0].mxu0
      %3066 = vmatprep.mubr.bf16.mxu0 0
      %3067 = vmatmul.mubr.bf16.gmra.mrb[0].mxu0 %v2977
      %v3068 = vpop.f32.mrb[0].mxu0
      %v3069 = vadd.f32 0.0, %v3068
      %v3070 = vpop.f32.mrb[0].mxu0
      %v3071 = vpop.f32.mrb[0].mxu0
      %v3072 = vadd.f32 0.0, %v3071
      %v3073 = vpop.f32.mrb[0].mxu0
      %3074 = vmatprep.mubr.bf16.mxu0 0
      %3075 = vmatmul.mubr.bf16.gmra.mrb[0].mxu0 %v2980
      %v3076 = vpop.f32.mrb[0].mxu0
      %v3077 = vadd.f32 0.0, %v3076
      %v3078 = vpop.f32.mrb[0].mxu0
      %v3079 = vpop.f32.mrb[0].mxu0
      %v3080 = vadd.f32 0.0, %v3079
      %v3081 = vpop.f32.mrb[0].mxu0
      %3082 = vmatprep.mubr.bf16.mxu0 0
      %3083 = vmatmul.mubr.bf16.gmra.mrb[0].mxu0 %v2983
      %v3084 = vpop.f32.mrb[0].mxu0
      %v3085 = vadd.f32 0.0, %v3084
      %v3086 = vpop.f32.mrb[0].mxu0
      %v3087 = vpop.f32.mrb[0].mxu0
      %v3088 = vadd.f32 0.0, %v3087
      %v3089 = vpop.f32.mrb[0].mxu0
      %3090 = vmatprep.mubr.bf16.mxu0 0
      %3091 = vmatmul.mubr.bf16.gmra.mrb[0].mxu0 %v2986
      %v3092 = vpop.f32.mrb[0].mxu0
      %v3093 = vadd.f32 0.0, %v3092
      %v3094 = vpop.f32.mrb[0].mxu0
      %v3095 = vpop.f32.mrb[0].mxu0
      %v3096 = vadd.f32 0.0, %v3095
      %v3097 = vpop.f32.mrb[0].mxu0
      %3098 = vmatprep.mubr.bf16.mxu0 0
      %3099 = vmatmul.mubr.bf16.gmra.mrb[0].mxu0 %v2989
      %v3100 = vpop.f32.mrb[0].mxu0
      %v3101 = vadd.f32 0.0, %v3100
      %v3102 = vpop.f32.mrb[0].mxu0
      %v3103 = vpop.f32.mrb[0].mxu0
      %v3104 = vadd.f32 0.0, %v3103
      %v3105 = vpop.f32.mrb[0].mxu0
      %3106 = vdwg.mxu0
      %v3107 = vadd.f32 %v2588, %v3029
      %v3108 = vadd.f32 %v2589, %v3032
      %v3109 = vadd.f32 %v2590, %v3037
      %v3110 = vadd.f32 %v2591, %v3040
      %v3111 = vadd.f32 %v2592, %v3045
      %v3112 = vadd.f32 %v2593, %v3048
      %v3113 = vadd.f32 %v2594, %v3053
      %v3114 = vadd.f32 %v2595, %v3056
      %v3115 = vadd.f32 %v2596, %v3061
      %v3116 = vadd.f32 %v2597, %v3064
      %v3117 = vadd.f32 %v2598, %v3069
      %v3118 = vadd.f32 %v2599, %v3072
      %v3119 = vadd.f32 %v2600, %v3077
      %v3120 = vadd.f32 %v2601, %v3080
      %v3121 = vadd.f32 %v2602, %v3085
      %v3122 = vadd.f32 %v2603, %v3088
      %v3123 = vadd.f32 %v2604, %v3093
      %v3124 = vadd.f32 %v2605, %v3096
      %v3125 = vadd.f32 %v2606, %v3101
      %v3126 = vadd.f32 %v2607, %v3104
      %s3127 = scalar_lea.vmem %s2, 380
      %v3128 = vld [vmem:[%s3127] sm:$0xf]
      %v3129 = vld [vmem:[%s3127 + $0x4] sm:$0xf]
      %v3130 = vld [vmem:[%s3127 + $0x8] sm:$0xf]
      %v3131 = vld [vmem:[%s3127 + $0xc] sm:$0xf]
      %v3132 = vld [vmem:[%s3127 + $0x10] sm:$0xf]
      %v3133 = vld [vmem:[%s3127 + $0x14] sm:$0xf]
      %v3134 = vld [vmem:[%s3127 + $0x18] sm:$0xf]
      %v3135 = vld [vmem:[%s3127 + $0x1c] sm:$0xf]
      %v3136 = vld [vmem:[%s3127 + $0x20] sm:$0xf]
      %v3137 = vld [vmem:[%s3127 + $0x24] sm:$0xf]
      %v3138 = vld [vmem:[%s3127 + $0x28] sm:$0xf]
      %v3139 = vld [vmem:[%s3127 + $0x2c] sm:$0xf]
      %v3140 = vld [vmem:[%s3127 + $0x30] sm:$0xf]
      %v3141 = vld [vmem:[%s3127 + $0x34] sm:$0xf]
      %v3142 = vld [vmem:[%s3127 + $0x38] sm:$0xf]
      %v3143 = vld [vmem:[%s3127 + $0x3c] sm:$0xf]
      %v3144 = vld [vmem:[%s3127 + $0x40] sm:$0xf]
      %v3145 = vld [vmem:[%s3127 + $0x44] sm:$0xf]
      %v3146 = vld [vmem:[%s3127 + $0x48] sm:$0x3]
      %s3147 = scalar_lea.vmem %s3, 5
      %v3148 = vld [vmem:[%s3147] sm:$0x1]
      %v3150 = vlaneseq
      %v3151 = vshrl.u32 %v3150, 7
      %v3152 = vsub.s32 0, %v3151
      %v3153 = vrot.slane %v3148, %v3152
      %v3174 = vunpack.c.l.b16 %v3128
      %v3175 = vunpack.c.l.b16 %v3129
      %v3176 = vunpack.c.l.b16 %v3130
      %v3177 = vunpack.c.l.b16 %v3131
      %v3178 = vunpack.c.l.b16 %v3132
      %v3179 = vunpack.c.l.b16 %v3133
      %v3180 = vunpack.c.l.b16 %v3134
      %v3181 = vunpack.c.l.b16 %v3135
      %v3182 = vunpack.c.l.b16 %v3136
      %v3183 = vunpack.c.l.b16 %v3137
      %v3184 = vunpack.c.l.b16 %v3138
      %v3185 = vunpack.c.l.b16 %v3139
      %v3186 = vunpack.c.l.b16 %v3140
      %v3187 = vunpack.c.l.b16 %v3141
      %v3188 = vunpack.c.l.b16 %v3142
      %v3189 = vunpack.c.l.b16 %v3143
      %v3190 = vunpack.c.l.b16 %v3144
      %v3191 = vunpack.c.l.b16 %v3145
      %v3192 = vunpack.c.l.b16 %v3146
      %v3193 = vpack.c.b16 %v3175, %v3174
      %v3194 = vpack.c.b16 %v3177, %v3176
      %v3195 = vpack.c.b16 %v3179, %v3178
      %v3196 = vpack.c.b16 %v3181, %v3180
      %v3197 = vpack.c.b16 %v3183, %v3182
      %v3198 = vpack.c.b16 %v3185, %v3184
      %v3199 = vpack.c.b16 %v3187, %v3186
      %v3200 = vpack.c.b16 %v3189, %v3188
      %v3201 = vpack.c.b16 %v3191, %v3190
      %v3202 = vpack.c.b16 %v3192, %v3192
      %v3213 = vand.u32 %v3202, %v615
      %3215 = vmatprep.subr.bf16.mxu0 0
      %3216 = vmatpush1.bf16.msra.mxu0 %v3193
      %3217 = vmatprep.subr.bf16.mxu0 0
      %3218 = vmatpush1.bf16.msra.mxu0 %v3194
      %3219 = vmatprep.subr.bf16.mxu0 0
      %3220 = vmatpush1.bf16.msra.mxu0 %v3195
      %3221 = vmatprep.subr.bf16.mxu0 0
      %3222 = vmatpush1.bf16.msra.mxu0 %v3196
      %3223 = vmatprep.subr.bf16.mxu0 0
      %3224 = vmatpush1.bf16.msra.mxu0 %v3197
      %3225 = vmatprep.subr.bf16.mxu0 0
      %3226 = vmatpush1.bf16.msra.mxu0 %v3198
      %3227 = vmatprep.subr.bf16.mxu0 0
      %3228 = vmatpush1.bf16.msra.mxu0 %v3199
      %3229 = vmatprep.subr.bf16.mxu0 0
      %3230 = vmatpush1.bf16.msra.mxu0 %v3200
      %3231 = vmatprep.subr.bf16.mxu0 0
      %3232 = vmatpush1.bf16.msra.mxu0 %v3201
      %3233 = vmatprep.subr.bf16.mxu0 0
      %3234 = vmatpush1.bf16.msra.mxu0 %v3213
      %3235 = vmatprep.subr.bf16.mxu0 0
      %3236 = vmatpush1.bf16.msra.mxu0 0
      %3237 = vmatprep.subr.bf16.mxu0 0
      %3238 = vmatpush1.bf16.msra.mxu0 0
      %3239 = vmatprep.subr.bf16.mxu0 0
      %3240 = vmatpush1.bf16.msra.mxu0 0
      %3241 = vmatprep.subr.bf16.mxu0 0
      %3242 = vmatpush1.bf16.msra.mxu0 0
      %3243 = vmatprep.subr.bf16.mxu0 0
      %3244 = vmatpush1.bf16.msra.mxu0 0
      %3245 = vmatprep.subr.bf16.mxu0 0
      %3246 = vmatpush1.bf16.msra.mxu0 0
      %3247 = vmatprep.mubr.bf16.mxu0 %v583
      %3248 = vmatmul.mubr.bf16.gmra.mrb[0].mxu0 %v494
      %v3249 = vpop.f32.mrb[0].mxu0
      %v3250 = vadd.f32 %v3153, %v3249
      %v3251 = vpop.f32.mrb[0].mxu0
      %v3252 = vpop.f32.mrb[0].mxu0
      %v3253 = vadd.f32 %v3153, %v3252
      %v3254 = vpop.f32.mrb[0].mxu0
      %3255 = vmatprep.mubr.bf16.mxu0 %v586
      %3256 = vmatmul.mubr.bf16.gmra.mrb[0].mxu0 %v496
      %v3257 = vpop.f32.mrb[0].mxu0
      %v3258 = vadd.f32 %v3153, %v3257
      %v3259 = vpop.f32.mrb[0].mxu0
      %v3260 = vpop.f32.mrb[0].mxu0
      %v3261 = vadd.f32 %v3153, %v3260
      %v3262 = vpop.f32.mrb[0].mxu0
      %3263 = vmatprep.mubr.bf16.mxu0 %v589
      %3264 = vmatmul.mubr.bf16.gmra.mrb[0].mxu0 %v498
      %v3265 = vpop.f32.mrb[0].mxu0
      %v3266 = vadd.f32 %v3153, %v3265
      %v3267 = vpop.f32.mrb[0].mxu0
      %v3268 = vpop.f32.mrb[0].mxu0
      %v3269 = vadd.f32 %v3153, %v3268
      %v3270 = vpop.f32.mrb[0].mxu0
      %3271 = vmatprep.mubr.bf16.mxu0 %v592
      %3272 = vmatmul.mubr.bf16.gmra.mrb[0].mxu0 %v500
      %v3273 = vpop.f32.mrb[0].mxu0
      %v3274 = vadd.f32 %v3153, %v3273
      %v3275 = vpop.f32.mrb[0].mxu0
      %v3276 = vpop.f32.mrb[0].mxu0
      %v3277 = vadd.f32 %v3153, %v3276
      %v3278 = vpop.f32.mrb[0].mxu0
      %3279 = vmatprep.mubr.bf16.mxu0 %v595
      %3280 = vmatmul.mubr.bf16.gmra.mrb[0].mxu0 %v502
      %v3281 = vpop.f32.mrb[0].mxu0
      %v3282 = vadd.f32 %v3153, %v3281
      %v3283 = vpop.f32.mrb[0].mxu0
      %v3284 = vpop.f32.mrb[0].mxu0
      %v3285 = vadd.f32 %v3153, %v3284
      %v3286 = vpop.f32.mrb[0].mxu0
      %3287 = vmatprep.mubr.bf16.mxu0 %v598
      %3288 = vmatmul.mubr.bf16.gmra.mrb[0].mxu0 %v504
      %v3289 = vpop.f32.mrb[0].mxu0
      %v3290 = vadd.f32 %v3153, %v3289
      %v3291 = vpop.f32.mrb[0].mxu0
      %v3292 = vpop.f32.mrb[0].mxu0
      %v3293 = vadd.f32 %v3153, %v3292
      %v3294 = vpop.f32.mrb[0].mxu0
      %3295 = vmatprep.mubr.bf16.mxu0 %v601
      %3296 = vmatmul.mubr.bf16.gmra.mrb[0].mxu0 %v506
      %v3297 = vpop.f32.mrb[0].mxu0
      %v3298 = vadd.f32 %v3153, %v3297
      %v3299 = vpop.f32.mrb[0].mxu0
      %v3300 = vpop.f32.mrb[0].mxu0
      %v3301 = vadd.f32 %v3153, %v3300
      %v3302 = vpop.f32.mrb[0].mxu0
      %3303 = vmatprep.mubr.bf16.mxu0 %v604
      %3304 = vmatmul.mubr.bf16.gmra.mrb[0].mxu0 %v508
      %v3305 = vpop.f32.mrb[0].mxu0
      %v3306 = vadd.f32 %v3153, %v3305
      %v3307 = vpop.f32.mrb[0].mxu0
      %v3308 = vpop.f32.mrb[0].mxu0
      %v3309 = vadd.f32 %v3153, %v3308
      %v3310 = vpop.f32.mrb[0].mxu0
      %3311 = vmatprep.mubr.bf16.mxu0 %v607
      %3312 = vmatmul.mubr.bf16.gmra.mrb[0].mxu0 %v510
      %v3313 = vpop.f32.mrb[0].mxu0
      %v3314 = vadd.f32 %v3153, %v3313
      %v3315 = vpop.f32.mrb[0].mxu0
      %v3316 = vpop.f32.mrb[0].mxu0
      %v3317 = vadd.f32 %v3153, %v3316
      %v3318 = vpop.f32.mrb[0].mxu0
      %3319 = vmatprep.mubr.bf16.mxu0 %v610
      %3320 = vmatmul.mubr.bf16.gmra.mrb[0].mxu0 %v512
      %v3321 = vpop.f32.mrb[0].mxu0
      %v3322 = vadd.f32 %v3153, %v3321
      %v3323 = vpop.f32.mrb[0].mxu0
      %v3324 = vpop.f32.mrb[0].mxu0
      %v3325 = vadd.f32 %v3153, %v3324
      %v3326 = vpop.f32.mrb[0].mxu0
      %3327 = vdwg.mxu0
      %v3328 = vsub.f32 0.0, %v3250
      %v3329 = vsub.f32 0.0, %v3253
      %v3330 = vsub.f32 0.0, %v3258
      %v3331 = vsub.f32 0.0, %v3261
      %v3332 = vsub.f32 0.0, %v3266
      %v3333 = vsub.f32 0.0, %v3269
      %v3334 = vsub.f32 0.0, %v3274
      %v3335 = vsub.f32 0.0, %v3277
      %v3336 = vsub.f32 0.0, %v3282
      %v3337 = vsub.f32 0.0, %v3285
      %v3338 = vsub.f32 0.0, %v3290
      %v3339 = vsub.f32 0.0, %v3293
      %v3340 = vsub.f32 0.0, %v3298
      %v3341 = vsub.f32 0.0, %v3301
      %v3342 = vsub.f32 0.0, %v3306
      %v3343 = vsub.f32 0.0, %v3309
      %v3344 = vsub.f32 0.0, %v3314
      %v3345 = vsub.f32 0.0, %v3317
      %v3346 = vsub.f32 0.0, %v3322
      %v3347 = vsub.f32 0.0, %v3325
      %v3348 = vmul.f32 %v3328, 1.442695
      %v3349 = vpow.pop %v3348
      %v3350 = vmul.f32 %v3329, 1.442695
      %v3351 = vpow.pop %v3350
      %v3352 = vmul.f32 %v3330, 1.442695
      %v3353 = vpow.pop %v3352
      %v3354 = vmul.f32 %v3331, 1.442695
      %v3355 = vpow.pop %v3354
      %v3356 = vmul.f32 %v3332, 1.442695
      %v3357 = vpow.pop %v3356
      %v3358 = vmul.f32 %v3333, 1.442695
      %v3359 = vpow.pop %v3358
      %v3360 = vmul.f32 %v3334, 1.442695
      %v3361 = vpow.pop %v3360
      %v3362 = vmul.f32 %v3335, 1.442695
      %v3363 = vpow.pop %v3362
      %v3364 = vmul.f32 %v3336, 1.442695
      %v3365 = vpow.pop %v3364
      %v3366 = vmul.f32 %v3337, 1.442695
      %v3367 = vpow.pop %v3366
      %v3368 = vmul.f32 %v3338, 1.442695
      %v3369 = vpow.pop %v3368
      %v3370 = vmul.f32 %v3339, 1.442695
      %v3371 = vpow.pop %v3370
      %v3372 = vmul.f32 %v3340, 1.442695
      %v3373 = vpow.pop %v3372
      %v3374 = vmul.f32 %v3341, 1.442695
      %v3375 = vpow.pop %v3374
      %v3376 = vmul.f32 %v3342, 1.442695
      %v3377 = vpow.pop %v3376
      %v3378 = vmul.f32 %v3343, 1.442695
      %v3379 = vpow.pop %v3378
      %v3380 = vmul.f32 %v3344, 1.442695
      %v3381 = vpow.pop %v3380
      %v3382 = vmul.f32 %v3345, 1.442695
      %v3383 = vpow.pop %v3382
      %v3384 = vmul.f32 %v3346, 1.442695
      %v3385 = vpow.pop %v3384
      %v3386 = vmul.f32 %v3347, 1.442695
      %v3387 = vpow.pop %v3386
      %v3388 = vadd.f32 %v3349, 1.0
      %v3389 = vadd.f32 %v3351, 1.0
      %v3390 = vadd.f32 %v3353, 1.0
      %v3391 = vadd.f32 %v3355, 1.0
      %v3392 = vadd.f32 %v3357, 1.0
      %v3393 = vadd.f32 %v3359, 1.0
      %v3394 = vadd.f32 %v3361, 1.0
      %v3395 = vadd.f32 %v3363, 1.0
      %v3396 = vadd.f32 %v3365, 1.0
      %v3397 = vadd.f32 %v3367, 1.0
      %v3398 = vadd.f32 %v3369, 1.0
      %v3399 = vadd.f32 %v3371, 1.0
      %v3400 = vadd.f32 %v3373, 1.0
      %v3401 = vadd.f32 %v3375, 1.0
      %v3402 = vadd.f32 %v3377, 1.0
      %v3403 = vadd.f32 %v3379, 1.0
      %v3404 = vadd.f32 %v3381, 1.0
      %v3405 = vadd.f32 %v3383, 1.0
      %v3406 = vadd.f32 %v3385, 1.0
      %v3407 = vadd.f32 %v3387, 1.0
      %v3408 = vrcp.pop %v3388
      %v3409 = vrcp.pop %v3389
      %v3410 = vrcp.pop %v3390
      %v3411 = vrcp.pop %v3391
      %v3412 = vrcp.pop %v3392
      %v3413 = vrcp.pop %v3393
      %v3414 = vrcp.pop %v3394
      %v3415 = vrcp.pop %v3395
      %v3416 = vrcp.pop %v3396
      %v3417 = vrcp.pop %v3397
      %v3418 = vrcp.pop %v3398
      %v3419 = vrcp.pop %v3399
      %v3420 = vrcp.pop %v3400
      %v3421 = vrcp.pop %v3401
      %v3422 = vrcp.pop %v3402
      %v3423 = vrcp.pop %v3403
      %v3424 = vrcp.pop %v3404
      %v3425 = vrcp.pop %v3405
      %v3426 = vrcp.pop %v3406
      %v3427 = vrcp.pop %v3407
      %v3428 = vld [vmem:[%s2389 + $0x2] sm:$0xff]
      %v3429 = vld [vmem:[%s2389 + $0xa] sm:$0xff]
      %v3430 = vld [vmem:[%s2389 + $0x1a] sm:$0xff]
      %v3431 = vld [vmem:[%s2389 + $0x22] sm:$0xff]
      %v3432 = vld [vmem:[%s2389 + $0x32] sm:$0xff]
      %v3433 = vld [vmem:[%s2389 + $0x3a] sm:$0xff]
      %v3434 = vld [vmem:[%s2389 + $0x4a] sm:$0xff]
      %v3435 = vld [vmem:[%s2389 + $0x52] sm:$0xff]
      %v3436 = vld [vmem:[%s2389 + $0x62] sm:$0xff]
      %v3437 = vld [vmem:[%s2389 + $0x6a] sm:$0xff]
      %v3438 = vld [vmem:[%s2389 + $0x7a] sm:$0xff]
      %v3439 = vld [vmem:[%s2389 + $0x82] sm:$0xff]
      %v3440 = vld [vmem:[%s2389 + $0x92] sm:$0xff]
      %v3441 = vld [vmem:[%s2389 + $0x9a] sm:$0xff]
      %v3442 = vld [vmem:[%s2389 + $0xaa] sm:$0xff]
      %v3443 = vld [vmem:[%s2389 + $0xb2] sm:$0xff]
      %v3444 = vld [vmem:[%s2389 + $0xc2] sm:$0xff]
      %v3445 = vld [vmem:[%s2389 + $0xca] sm:$0xff]
      %v3446 = vld [vmem:[%s2389 + $0xda] sm:$0xff]
      %v3447 = vld [vmem:[%s2389 + $0xe2] sm:$0xff]
      %v3448 = vmul.f32 %v3408, %v3428
      %v3449 = vmul.f32 %v3409, %v3429
      %v3450 = vmul.f32 %v3410, %v3430
      %v3451 = vmul.f32 %v3411, %v3431
      %v3452 = vmul.f32 %v3412, %v3432
      %v3453 = vmul.f32 %v3413, %v3433
      %v3454 = vmul.f32 %v3414, %v3434
      %v3455 = vmul.f32 %v3415, %v3435
      %v3456 = vmul.f32 %v3416, %v3436
      %v3457 = vmul.f32 %v3417, %v3437
      %v3458 = vmul.f32 %v3418, %v3438
      %v3459 = vmul.f32 %v3419, %v3439
      %v3460 = vmul.f32 %v3420, %v3440
      %v3461 = vmul.f32 %v3421, %v3441
      %v3462 = vmul.f32 %v3422, %v3442
      %v3463 = vmul.f32 %v3423, %v3443
      %v3464 = vmul.f32 %v3424, %v3444
      %v3465 = vmul.f32 %v3425, %v3445
      %v3466 = vmul.f32 %v3426, %v3446
      %v3467 = vmul.f32 %v3427, %v3447
      %v3468 = vpack.c.bf16 %v3449, %v3448
      %v3469 = vpack.c.bf16 %v3451, %v3450
      %v3470 = vpack.c.bf16 %v3453, %v3452
      %v3471 = vpack.c.bf16 %v3455, %v3454
      %v3472 = vpack.c.bf16 %v3457, %v3456
      %v3473 = vpack.c.bf16 %v3459, %v3458
      %v3474 = vpack.c.bf16 %v3461, %v3460
      %v3475 = vpack.c.bf16 %v3463, %v3462
      %v3476 = vpack.c.bf16 %v3465, %v3464
      %v3477 = vpack.c.bf16 %v3467, %v3466
      %s3478 = scalar_lea.vmem %s4, 10
      %v3479 = vld [vmem:[%s3478] sm:$0x3]
      %v3481 = vsel %vm883, %v3468, 0
      %v3484 = vsel %vm883, %v3469, 0
      %v3487 = vsel %vm883, %v3470, 0
      %v3490 = vsel %vm883, %v3471, 0
      %v3493 = vsel %vm883, %v3472, 0
      %v3496 = vsel %vm883, %v3473, 0
      %v3499 = vsel %vm883, %v3474, 0
      %v3502 = vsel %vm883, %v3475, 0
      %v3505 = vsel %vm883, %v3476, 0
      %v3508 = vsel %vm883, %v3477, 0
      %v3511 = vsel %vm613, %v3479, 0
      %3513 = vmatprep.subr.bf16.mxu0 0
      %3514 = vmatpush1.bf16.msra.mxu0 %v3511
      %3515 = vmatprep.subr.bf16.mxu0 0
      %3516 = vmatpush1.bf16.msra.mxu0 0
      %3517 = vmatprep.subr.bf16.mxu0 0
      %3518 = vmatpush1.bf16.msra.mxu0 0
      %3519 = vmatprep.subr.bf16.mxu0 0
      %3520 = vmatpush1.bf16.msra.mxu0 0
      %3521 = vmatprep.subr.bf16.mxu0 0
      %3522 = vmatpush1.bf16.msra.mxu0 0
      %3523 = vmatprep.subr.bf16.mxu0 0
      %3524 = vmatpush1.bf16.msra.mxu0 0
      %3525 = vmatprep.subr.bf16.mxu0 0
      %3526 = vmatpush1.bf16.msra.mxu0 0
      %3527 = vmatprep.subr.bf16.mxu0 0
      %3528 = vmatpush1.bf16.msra.mxu0 0
      %3529 = vmatprep.subr.bf16.mxu0 0
      %3530 = vmatpush1.bf16.msra.mxu0 0
      %3531 = vmatprep.subr.bf16.mxu0 0
      %3532 = vmatpush1.bf16.msra.mxu0 0
      %3533 = vmatprep.subr.bf16.mxu0 0
      %3534 = vmatpush1.bf16.msra.mxu0 0
      %3535 = vmatprep.subr.bf16.mxu0 0
      %3536 = vmatpush1.bf16.msra.mxu0 0
      %3537 = vmatprep.subr.bf16.mxu0 0
      %3538 = vmatpush1.bf16.msra.mxu0 0
      %3539 = vmatprep.subr.bf16.mxu0 0
      %3540 = vmatpush1.bf16.msra.mxu0 0
      %3541 = vmatprep.subr.bf16.mxu0 0
      %3542 = vmatpush1.bf16.msra.mxu0 0
      %3543 = vmatprep.subr.bf16.mxu0 0
      %3544 = vmatpush1.bf16.msra.mxu0 0
      %3545 = vmatprep.mubr.bf16.mxu0 0
      %3546 = vmatmul.mubr.bf16.gmra.mrb[0].mxu0 %v3481
      %v3547 = vpop.f32.mrb[0].mxu0
      %v3548 = vadd.f32 0.0, %v3547
      %v3549 = vpop.f32.mrb[0].mxu0
      %v3550 = vpop.f32.mrb[0].mxu0
      %v3551 = vadd.f32 0.0, %v3550
      %v3552 = vpop.f32.mrb[0].mxu0
      %3553 = vmatprep.mubr.bf16.mxu0 0
      %3554 = vmatmul.mubr.bf16.gmra.mrb[0].mxu0 %v3484
      %v3555 = vpop.f32.mrb[0].mxu0
      %v3556 = vadd.f32 0.0, %v3555
      %v3557 = vpop.f32.mrb[0].mxu0
      %v3558 = vpop.f32.mrb[0].mxu0
      %v3559 = vadd.f32 0.0, %v3558
      %v3560 = vpop.f32.mrb[0].mxu0
      %3561 = vmatprep.mubr.bf16.mxu0 0
      %3562 = vmatmul.mubr.bf16.gmra.mrb[0].mxu0 %v3487
      %v3563 = vpop.f32.mrb[0].mxu0
      %v3564 = vadd.f32 0.0, %v3563
      %v3565 = vpop.f32.mrb[0].mxu0
      %v3566 = vpop.f32.mrb[0].mxu0
      %v3567 = vadd.f32 0.0, %v3566
      %v3568 = vpop.f32.mrb[0].mxu0
      %3569 = vmatprep.mubr.bf16.mxu0 0
      %3570 = vmatmul.mubr.bf16.gmra.mrb[0].mxu0 %v3490
      %v3571 = vpop.f32.mrb[0].mxu0
      %v3572 = vadd.f32 0.0, %v3571
      %v3573 = vpop.f32.mrb[0].mxu0
      %v3574 = vpop.f32.mrb[0].mxu0
      %v3575 = vadd.f32 0.0, %v3574
      %v3576 = vpop.f32.mrb[0].mxu0
      %3577 = vmatprep.mubr.bf16.mxu0 0
      %3578 = vmatmul.mubr.bf16.gmra.mrb[0].mxu0 %v3493
      %v3579 = vpop.f32.mrb[0].mxu0
      %v3580 = vadd.f32 0.0, %v3579
      %v3581 = vpop.f32.mrb[0].mxu0
      %v3582 = vpop.f32.mrb[0].mxu0
      %v3583 = vadd.f32 0.0, %v3582
      %v3584 = vpop.f32.mrb[0].mxu0
      %3585 = vmatprep.mubr.bf16.mxu0 0
      %3586 = vmatmul.mubr.bf16.gmra.mrb[0].mxu0 %v3496
      %v3587 = vpop.f32.mrb[0].mxu0
      %v3588 = vadd.f32 0.0, %v3587
      %v3589 = vpop.f32.mrb[0].mxu0
      %v3590 = vpop.f32.mrb[0].mxu0
      %v3591 = vadd.f32 0.0, %v3590
      %v3592 = vpop.f32.mrb[0].mxu0
      %3593 = vmatprep.mubr.bf16.mxu0 0
      %3594 = vmatmul.mubr.bf16.gmra.mrb[0].mxu0 %v3499
      %v3595 = vpop.f32.mrb[0].mxu0
      %v3596 = vadd.f32 0.0, %v3595
      %v3597 = vpop.f32.mrb[0].mxu0
      %v3598 = vpop.f32.mrb[0].mxu0
      %v3599 = vadd.f32 0.0, %v3598
      %v3600 = vpop.f32.mrb[0].mxu0
      %3601 = vmatprep.mubr.bf16.mxu0 0
      %3602 = vmatmul.mubr.bf16.gmra.mrb[0].mxu0 %v3502
      %v3603 = vpop.f32.mrb[0].mxu0
      %v3604 = vadd.f32 0.0, %v3603
      %v3605 = vpop.f32.mrb[0].mxu0
      %v3606 = vpop.f32.mrb[0].mxu0
      %v3607 = vadd.f32 0.0, %v3606
      %v3608 = vpop.f32.mrb[0].mxu0
      %3609 = vmatprep.mubr.bf16.mxu0 0
      %3610 = vmatmul.mubr.bf16.gmra.mrb[0].mxu0 %v3505
      %v3611 = vpop.f32.mrb[0].mxu0
      %v3612 = vadd.f32 0.0, %v3611
      %v3613 = vpop.f32.mrb[0].mxu0
      %v3614 = vpop.f32.mrb[0].mxu0
      %v3615 = vadd.f32 0.0, %v3614
      %v3616 = vpop.f32.mrb[0].mxu0
      %3617 = vmatprep.mubr.bf16.mxu0 0
      %3618 = vmatmul.mubr.bf16.gmra.mrb[0].mxu0 %v3508
      %v3619 = vpop.f32.mrb[0].mxu0
      %v3620 = vadd.f32 0.0, %v3619
      %v3621 = vpop.f32.mrb[0].mxu0
      %v3622 = vpop.f32.mrb[0].mxu0
      %v3623 = vadd.f32 0.0, %v3622
      %v3624 = vpop.f32.mrb[0].mxu0
      %3625 = vdwg.mxu0
      %v3626 = vadd.f32 %v3107, %v3548
      %v3627 = vadd.f32 %v3108, %v3551
      %v3628 = vadd.f32 %v3109, %v3556
      %v3629 = vadd.f32 %v3110, %v3559
      %v3630 = vadd.f32 %v3111, %v3564
      %v3631 = vadd.f32 %v3112, %v3567
      %v3632 = vadd.f32 %v3113, %v3572
      %v3633 = vadd.f32 %v3114, %v3575
      %v3634 = vadd.f32 %v3115, %v3580
      %v3635 = vadd.f32 %v3116, %v3583
      %v3636 = vadd.f32 %v3117, %v3588
      %v3637 = vadd.f32 %v3118, %v3591
      %v3638 = vadd.f32 %v3119, %v3596
      %v3639 = vadd.f32 %v3120, %v3599
      %v3640 = vadd.f32 %v3121, %v3604
      %v3641 = vadd.f32 %v3122, %v3607
      %v3642 = vadd.f32 %v3123, %v3612
      %v3643 = vadd.f32 %v3124, %v3615
      %v3644 = vadd.f32 %v3125, %v3620
      %v3645 = vadd.f32 %v3126, %v3623
      %s3646 = scalar_lea.vmem %s2, 456
      %v3647 = vld [vmem:[%s3646] sm:$0xf]
      %v3648 = vld [vmem:[%s3646 + $0x4] sm:$0xf]
      %v3649 = vld [vmem:[%s3646 + $0x8] sm:$0xf]
      %v3650 = vld [vmem:[%s3646 + $0xc] sm:$0xf]
      %v3651 = vld [vmem:[%s3646 + $0x10] sm:$0xf]
      %v3652 = vld [vmem:[%s3646 + $0x14] sm:$0xf]
      %v3653 = vld [vmem:[%s3646 + $0x18] sm:$0xf]
      %v3654 = vld [vmem:[%s3646 + $0x1c] sm:$0xf]
      %v3655 = vld [vmem:[%s3646 + $0x20] sm:$0xf]
      %v3656 = vld [vmem:[%s3646 + $0x24] sm:$0xf]
      %v3657 = vld [vmem:[%s3646 + $0x28] sm:$0xf]
      %v3658 = vld [vmem:[%s3646 + $0x2c] sm:$0xf]
      %v3659 = vld [vmem:[%s3646 + $0x30] sm:$0xf]
      %v3660 = vld [vmem:[%s3646 + $0x34] sm:$0xf]
      %v3661 = vld [vmem:[%s3646 + $0x38] sm:$0xf]
      %v3662 = vld [vmem:[%s3646 + $0x3c] sm:$0xf]
      %v3663 = vld [vmem:[%s3646 + $0x40] sm:$0xf]
      %v3664 = vld [vmem:[%s3646 + $0x44] sm:$0xf]
      %v3665 = vld [vmem:[%s3646 + $0x48] sm:$0x3]
      %s3666 = scalar_lea.vmem %s3, 6
      %v3667 = vld [vmem:[%s3666] sm:$0x1]
      %v3669 = vlaneseq
      %v3670 = vshrl.u32 %v3669, 7
      %v3671 = vsub.s32 0, %v3670
      %v3672 = vrot.slane %v3667, %v3671
      %v3693 = vunpack.c.l.b16 %v3647
      %v3694 = vunpack.c.l.b16 %v3648
      %v3695 = vunpack.c.l.b16 %v3649
      %v3696 = vunpack.c.l.b16 %v3650
      %v3697 = vunpack.c.l.b16 %v3651
      %v3698 = vunpack.c.l.b16 %v3652
      %v3699 = vunpack.c.l.b16 %v3653
      %v3700 = vunpack.c.l.b16 %v3654
      %v3701 = vunpack.c.l.b16 %v3655
      %v3702 = vunpack.c.l.b16 %v3656
      %v3703 = vunpack.c.l.b16 %v3657
      %v3704 = vunpack.c.l.b16 %v3658
      %v3705 = vunpack.c.l.b16 %v3659
      %v3706 = vunpack.c.l.b16 %v3660
      %v3707 = vunpack.c.l.b16 %v3661
      %v3708 = vunpack.c.l.b16 %v3662
      %v3709 = vunpack.c.l.b16 %v3663
      %v3710 = vunpack.c.l.b16 %v3664
      %v3711 = vunpack.c.l.b16 %v3665
      %v3712 = vpack.c.b16 %v3694, %v3693
      %v3713 = vpack.c.b16 %v3696, %v3695
      %v3714 = vpack.c.b16 %v3698, %v3697
      %v3715 = vpack.c.b16 %v3700, %v3699
      %v3716 = vpack.c.b16 %v3702, %v3701
      %v3717 = vpack.c.b16 %v3704, %v3703
      %v3718 = vpack.c.b16 %v3706, %v3705
      %v3719 = vpack.c.b16 %v3708, %v3707
      %v3720 = vpack.c.b16 %v3710, %v3709
      %v3721 = vpack.c.b16 %v3711, %v3711
      %v3732 = vand.u32 %v3721, %v615
      %3734 = vmatprep.subr.bf16.mxu0 0
      %3735 = vmatpush1.bf16.msra.mxu0 %v3712
      %3736 = vmatprep.subr.bf16.mxu0 0
      %3737 = vmatpush1.bf16.msra.mxu0 %v3713
      %3738 = vmatprep.subr.bf16.mxu0 0
      %3739 = vmatpush1.bf16.msra.mxu0 %v3714
      %3740 = vmatprep.subr.bf16.mxu0 0
      %3741 = vmatpush1.bf16.msra.mxu0 %v3715
      %3742 = vmatprep.subr.bf16.mxu0 0
      %3743 = vmatpush1.bf16.msra.mxu0 %v3716
      %3744 = vmatprep.subr.bf16.mxu0 0
      %3745 = vmatpush1.bf16.msra.mxu0 %v3717
      %3746 = vmatprep.subr.bf16.mxu0 0
      %3747 = vmatpush1.bf16.msra.mxu0 %v3718
      %3748 = vmatprep.subr.bf16.mxu0 0
      %3749 = vmatpush1.bf16.msra.mxu0 %v3719
      %3750 = vmatprep.subr.bf16.mxu0 0
      %3751 = vmatpush1.bf16.msra.mxu0 %v3720
      %3752 = vmatprep.subr.bf16.mxu0 0
      %3753 = vmatpush1.bf16.msra.mxu0 %v3732
      %3754 = vmatprep.subr.bf16.mxu0 0
      %3755 = vmatpush1.bf16.msra.mxu0 0
      %3756 = vmatprep.subr.bf16.mxu0 0
      %3757 = vmatpush1.bf16.msra.mxu0 0
      %3758 = vmatprep.subr.bf16.mxu0 0
      %3759 = vmatpush1.bf16.msra.mxu0 0
      %3760 = vmatprep.subr.bf16.mxu0 0
      %3761 = vmatpush1.bf16.msra.mxu0 0
      %3762 = vmatprep.subr.bf16.mxu0 0
      %3763 = vmatpush1.bf16.msra.mxu0 0
      %3764 = vmatprep.subr.bf16.mxu0 0
      %3765 = vmatpush1.bf16.msra.mxu0 0
      %3766 = vmatprep.mubr.bf16.mxu0 %v583
      %3767 = vmatmul.mubr.bf16.gmra.mrb[0].mxu0 %v494
      %v3768 = vpop.f32.mrb[0].mxu0
      %v3769 = vadd.f32 %v3672, %v3768
      %v3770 = vpop.f32.mrb[0].mxu0
      %v3771 = vpop.f32.mrb[0].mxu0
      %v3772 = vadd.f32 %v3672, %v3771
      %v3773 = vpop.f32.mrb[0].mxu0
      %3774 = vmatprep.mubr.bf16.mxu0 %v586
      %3775 = vmatmul.mubr.bf16.gmra.mrb[0].mxu0 %v496
      %v3776 = vpop.f32.mrb[0].mxu0
      %v3777 = vadd.f32 %v3672, %v3776
      %v3778 = vpop.f32.mrb[0].mxu0
      %v3779 = vpop.f32.mrb[0].mxu0
      %v3780 = vadd.f32 %v3672, %v3779
      %v3781 = vpop.f32.mrb[0].mxu0
      %3782 = vmatprep.mubr.bf16.mxu0 %v589
      %3783 = vmatmul.mubr.bf16.gmra.mrb[0].mxu0 %v498
      %v3784 = vpop.f32.mrb[0].mxu0
      %v3785 = vadd.f32 %v3672, %v3784
      %v3786 = vpop.f32.mrb[0].mxu0
      %v3787 = vpop.f32.mrb[0].mxu0
      %v3788 = vadd.f32 %v3672, %v3787
      %v3789 = vpop.f32.mrb[0].mxu0
      %3790 = vmatprep.mubr.bf16.mxu0 %v592
      %3791 = vmatmul.mubr.bf16.gmra.mrb[0].mxu0 %v500
      %v3792 = vpop.f32.mrb[0].mxu0
      %v3793 = vadd.f32 %v3672, %v3792
      %v3794 = vpop.f32.mrb[0].mxu0
      %v3795 = vpop.f32.mrb[0].mxu0
      %v3796 = vadd.f32 %v3672, %v3795
      %v3797 = vpop.f32.mrb[0].mxu0
      %3798 = vmatprep.mubr.bf16.mxu0 %v595
      %3799 = vmatmul.mubr.bf16.gmra.mrb[0].mxu0 %v502
      %v3800 = vpop.f32.mrb[0].mxu0
      %v3801 = vadd.f32 %v3672, %v3800
      %v3802 = vpop.f32.mrb[0].mxu0
      %v3803 = vpop.f32.mrb[0].mxu0
      %v3804 = vadd.f32 %v3672, %v3803
      %v3805 = vpop.f32.mrb[0].mxu0
      %3806 = vmatprep.mubr.bf16.mxu0 %v598
      %3807 = vmatmul.mubr.bf16.gmra.mrb[0].mxu0 %v504
      %v3808 = vpop.f32.mrb[0].mxu0
      %v3809 = vadd.f32 %v3672, %v3808
      %v3810 = vpop.f32.mrb[0].mxu0
      %v3811 = vpop.f32.mrb[0].mxu0
      %v3812 = vadd.f32 %v3672, %v3811
      %v3813 = vpop.f32.mrb[0].mxu0
      %3814 = vmatprep.mubr.bf16.mxu0 %v601
      %3815 = vmatmul.mubr.bf16.gmra.mrb[0].mxu0 %v506
      %v3816 = vpop.f32.mrb[0].mxu0
      %v3817 = vadd.f32 %v3672, %v3816
      %v3818 = vpop.f32.mrb[0].mxu0
      %v3819 = vpop.f32.mrb[0].mxu0
      %v3820 = vadd.f32 %v3672, %v3819
      %v3821 = vpop.f32.mrb[0].mxu0
      %3822 = vmatprep.mubr.bf16.mxu0 %v604
      %3823 = vmatmul.mubr.bf16.gmra.mrb[0].mxu0 %v508
      %v3824 = vpop.f32.mrb[0].mxu0
      %v3825 = vadd.f32 %v3672, %v3824
      %v3826 = vpop.f32.mrb[0].mxu0
      %v3827 = vpop.f32.mrb[0].mxu0
      %v3828 = vadd.f32 %v3672, %v3827
      %v3829 = vpop.f32.mrb[0].mxu0
      %3830 = vmatprep.mubr.bf16.mxu0 %v607
      %3831 = vmatmul.mubr.bf16.gmra.mrb[0].mxu0 %v510
      %v3832 = vpop.f32.mrb[0].mxu0
      %v3833 = vadd.f32 %v3672, %v3832
      %v3834 = vpop.f32.mrb[0].mxu0
      %v3835 = vpop.f32.mrb[0].mxu0
      %v3836 = vadd.f32 %v3672, %v3835
      %v3837 = vpop.f32.mrb[0].mxu0
      %3838 = vmatprep.mubr.bf16.mxu0 %v610
      %3839 = vmatmul.mubr.bf16.gmra.mrb[0].mxu0 %v512
      %v3840 = vpop.f32.mrb[0].mxu0
      %v3841 = vadd.f32 %v3672, %v3840
      %v3842 = vpop.f32.mrb[0].mxu0
      %v3843 = vpop.f32.mrb[0].mxu0
      %v3844 = vadd.f32 %v3672, %v3843
      %v3845 = vpop.f32.mrb[0].mxu0
      %3846 = vdwg.mxu0
      %v3847 = vsub.f32 0.0, %v3769
      %v3848 = vsub.f32 0.0, %v3772
      %v3849 = vsub.f32 0.0, %v3777
      %v3850 = vsub.f32 0.0, %v3780
      %v3851 = vsub.f32 0.0, %v3785
      %v3852 = vsub.f32 0.0, %v3788
      %v3853 = vsub.f32 0.0, %v3793
      %v3854 = vsub.f32 0.0, %v3796
      %v3855 = vsub.f32 0.0, %v3801
      %v3856 = vsub.f32 0.0, %v3804
      %v3857 = vsub.f32 0.0, %v3809
      %v3858 = vsub.f32 0.0, %v3812
      %v3859 = vsub.f32 0.0, %v3817
      %v3860 = vsub.f32 0.0, %v3820
      %v3861 = vsub.f32 0.0, %v3825
      %v3862 = vsub.f32 0.0, %v3828
      %v3863 = vsub.f32 0.0, %v3833
      %v3864 = vsub.f32 0.0, %v3836
      %v3865 = vsub.f32 0.0, %v3841
      %v3866 = vsub.f32 0.0, %v3844
      %v3867 = vmul.f32 %v3847, 1.442695
      %v3868 = vpow.pop %v3867
      %v3869 = vmul.f32 %v3848, 1.442695
      %v3870 = vpow.pop %v3869
      %v3871 = vmul.f32 %v3849, 1.442695
      %v3872 = vpow.pop %v3871
      %v3873 = vmul.f32 %v3850, 1.442695
      %v3874 = vpow.pop %v3873
      %v3875 = vmul.f32 %v3851, 1.442695
      %v3876 = vpow.pop %v3875
      %v3877 = vmul.f32 %v3852, 1.442695
      %v3878 = vpow.pop %v3877
      %v3879 = vmul.f32 %v3853, 1.442695
      %v3880 = vpow.pop %v3879
      %v3881 = vmul.f32 %v3854, 1.442695
      %v3882 = vpow.pop %v3881
      %v3883 = vmul.f32 %v3855, 1.442695
      %v3884 = vpow.pop %v3883
      %v3885 = vmul.f32 %v3856, 1.442695
      %v3886 = vpow.pop %v3885
      %v3887 = vmul.f32 %v3857, 1.442695
      %v3888 = vpow.pop %v3887
      %v3889 = vmul.f32 %v3858, 1.442695
      %v3890 = vpow.pop %v3889
      %v3891 = vmul.f32 %v3859, 1.442695
      %v3892 = vpow.pop %v3891
      %v3893 = vmul.f32 %v3860, 1.442695
      %v3894 = vpow.pop %v3893
      %v3895 = vmul.f32 %v3861, 1.442695
      %v3896 = vpow.pop %v3895
      %v3897 = vmul.f32 %v3862, 1.442695
      %v3898 = vpow.pop %v3897
      %v3899 = vmul.f32 %v3863, 1.442695
      %v3900 = vpow.pop %v3899
      %v3901 = vmul.f32 %v3864, 1.442695
      %v3902 = vpow.pop %v3901
      %v3903 = vmul.f32 %v3865, 1.442695
      %v3904 = vpow.pop %v3903
      %v3905 = vmul.f32 %v3866, 1.442695
      %v3906 = vpow.pop %v3905
      %v3907 = vadd.f32 %v3868, 1.0
      %v3908 = vadd.f32 %v3870, 1.0
      %v3909 = vadd.f32 %v3872, 1.0
      %v3910 = vadd.f32 %v3874, 1.0
      %v3911 = vadd.f32 %v3876, 1.0
      %v3912 = vadd.f32 %v3878, 1.0
      %v3913 = vadd.f32 %v3880, 1.0
      %v3914 = vadd.f32 %v3882, 1.0
      %v3915 = vadd.f32 %v3884, 1.0
      %v3916 = vadd.f32 %v3886, 1.0
      %v3917 = vadd.f32 %v3888, 1.0
      %v3918 = vadd.f32 %v3890, 1.0
      %v3919 = vadd.f32 %v3892, 1.0
      %v3920 = vadd.f32 %v3894, 1.0
      %v3921 = vadd.f32 %v3896, 1.0
      %v3922 = vadd.f32 %v3898, 1.0
      %v3923 = vadd.f32 %v3900, 1.0
      %v3924 = vadd.f32 %v3902, 1.0
      %v3925 = vadd.f32 %v3904, 1.0
      %v3926 = vadd.f32 %v3906, 1.0
      %v3927 = vrcp.pop %v3907
      %v3928 = vrcp.pop %v3908
      %v3929 = vrcp.pop %v3909
      %v3930 = vrcp.pop %v3910
      %v3931 = vrcp.pop %v3911
      %v3932 = vrcp.pop %v3912
      %v3933 = vrcp.pop %v3913
      %v3934 = vrcp.pop %v3914
      %v3935 = vrcp.pop %v3915
      %v3936 = vrcp.pop %v3916
      %v3937 = vrcp.pop %v3917
      %v3938 = vrcp.pop %v3918
      %v3939 = vrcp.pop %v3919
      %v3940 = vrcp.pop %v3920
      %v3941 = vrcp.pop %v3921
      %v3942 = vrcp.pop %v3922
      %v3943 = vrcp.pop %v3923
      %v3944 = vrcp.pop %v3924
      %v3945 = vrcp.pop %v3925
      %v3946 = vrcp.pop %v3926
      %s3947 = scalar_lea.vmem %s367, 48
      %v3948 = vld [vmem:[%s3947] sm:$0xff]
      %v3949 = vld [vmem:[%s3947 + $0x8] sm:$0xff]
      %v3950 = vld [vmem:[%s3947 + $0x18] sm:$0xff]
      %v3951 = vld [vmem:[%s3947 + $0x20] sm:$0xff]
      %v3952 = vld [vmem:[%s3947 + $0x30] sm:$0xff]
      %v3953 = vld [vmem:[%s3947 + $0x38] sm:$0xff]
      %v3954 = vld [vmem:[%s3947 + $0x48] sm:$0xff]
      %v3955 = vld [vmem:[%s3947 + $0x50] sm:$0xff]
      %v3956 = vld [vmem:[%s3947 + $0x60] sm:$0xff]
      %v3957 = vld [vmem:[%s3947 + $0x68] sm:$0xff]
      %v3958 = vld [vmem:[%s3947 + $0x78] sm:$0xff]
      %v3959 = vld [vmem:[%s3947 + $0x80] sm:$0xff]
      %v3960 = vld [vmem:[%s3947 + $0x90] sm:$0xff]
      %v3961 = vld [vmem:[%s3947 + $0x98] sm:$0xff]
      %v3962 = vld [vmem:[%s3947 + $0xa8] sm:$0xff]
      %v3963 = vld [vmem:[%s3947 + $0xb0] sm:$0xff]
      %v3964 = vld [vmem:[%s3947 + $0xc0] sm:$0xff]
      %v3965 = vld [vmem:[%s3947 + $0xc8] sm:$0xff]
      %v3966 = vld [vmem:[%s3947 + $0xd8] sm:$0xff]
      %v3967 = vld [vmem:[%s3947 + $0xe0] sm:$0xff]
      %v3968 = vmul.f32 %v3927, %v3948
      %v3969 = vmul.f32 %v3928, %v3949
      %v3970 = vmul.f32 %v3929, %v3950
      %v3971 = vmul.f32 %v3930, %v3951
      %v3972 = vmul.f32 %v3931, %v3952
      %v3973 = vmul.f32 %v3932, %v3953
      %v3974 = vmul.f32 %v3933, %v3954
      %v3975 = vmul.f32 %v3934, %v3955
      %v3976 = vmul.f32 %v3935, %v3956
      %v3977 = vmul.f32 %v3936, %v3957
      %v3978 = vmul.f32 %v3937, %v3958
      %v3979 = vmul.f32 %v3938, %v3959
      %v3980 = vmul.f32 %v3939, %v3960
      %v3981 = vmul.f32 %v3940, %v3961
      %v3982 = vmul.f32 %v3941, %v3962
      %v3983 = vmul.f32 %v3942, %v3963
      %v3984 = vmul.f32 %v3943, %v3964
      %v3985 = vmul.f32 %v3944, %v3965
      %v3986 = vmul.f32 %v3945, %v3966
      %v3987 = vmul.f32 %v3946, %v3967
      %v3988 = vpack.c.bf16 %v3969, %v3968
      %v3989 = vpack.c.bf16 %v3971, %v3970
      %v3990 = vpack.c.bf16 %v3973, %v3972
      %v3991 = vpack.c.bf16 %v3975, %v3974
      %v3992 = vpack.c.bf16 %v3977, %v3976
      %v3993 = vpack.c.bf16 %v3979, %v3978
      %v3994 = vpack.c.bf16 %v3981, %v3980
      %v3995 = vpack.c.bf16 %v3983, %v3982
      %v3996 = vpack.c.bf16 %v3985, %v3984
      %v3997 = vpack.c.bf16 %v3987, %v3986
      %s3998 = scalar_lea.vmem %s4, 12
      %v3999 = vld [vmem:[%s3998] sm:$0x3]
      %v4001 = vsel %vm883, %v3988, 0
      %v4004 = vsel %vm883, %v3989, 0
      %v4007 = vsel %vm883, %v3990, 0
      %v4010 = vsel %vm883, %v3991, 0
      %v4013 = vsel %vm883, %v3992, 0
      %v4016 = vsel %vm883, %v3993, 0
      %v4019 = vsel %vm883, %v3994, 0
      %v4022 = vsel %vm883, %v3995, 0
      %v4025 = vsel %vm883, %v3996, 0
      %v4028 = vsel %vm883, %v3997, 0
      %v4031 = vsel %vm613, %v3999, 0
      %4033 = vmatprep.subr.bf16.mxu0 0
      %4034 = vmatpush1.bf16.msra.mxu0 %v4031
      %4035 = vmatprep.subr.bf16.mxu0 0
      %4036 = vmatpush1.bf16.msra.mxu0 0
      %4037 = vmatprep.subr.bf16.mxu0 0
      %4038 = vmatpush1.bf16.msra.mxu0 0
      %4039 = vmatprep.subr.bf16.mxu0 0
      %4040 = vmatpush1.bf16.msra.mxu0 0
      %4041 = vmatprep.subr.bf16.mxu0 0
      %4042 = vmatpush1.bf16.msra.mxu0 0
      %4043 = vmatprep.subr.bf16.mxu0 0
      %4044 = vmatpush1.bf16.msra.mxu0 0
      %4045 = vmatprep.subr.bf16.mxu0 0
      %4046 = vmatpush1.bf16.msra.mxu0 0
      %4047 = vmatprep.subr.bf16.mxu0 0
      %4048 = vmatpush1.bf16.msra.mxu0 0
      %4049 = vmatprep.subr.bf16.mxu0 0
      %4050 = vmatpush1.bf16.msra.mxu0 0
      %4051 = vmatprep.subr.bf16.mxu0 0
      %4052 = vmatpush1.bf16.msra.mxu0 0
      %4053 = vmatprep.subr.bf16.mxu0 0
      %4054 = vmatpush1.bf16.msra.mxu0 0
      %4055 = vmatprep.subr.bf16.mxu0 0
      %4056 = vmatpush1.bf16.msra.mxu0 0
      %4057 = vmatprep.subr.bf16.mxu0 0
      %4058 = vmatpush1.bf16.msra.mxu0 0
      %4059 = vmatprep.subr.bf16.mxu0 0
      %4060 = vmatpush1.bf16.msra.mxu0 0
      %4061 = vmatprep.subr.bf16.mxu0 0
      %4062 = vmatpush1.bf16.msra.mxu0 0
      %4063 = vmatprep.subr.bf16.mxu0 0
      %4064 = vmatpush1.bf16.msra.mxu0 0
      %4065 = vmatprep.mubr.bf16.mxu0 0
      %4066 = vmatmul.mubr.bf16.gmra.mrb[0].mxu0 %v4001
      %v4067 = vpop.f32.mrb[0].mxu0
      %v4068 = vadd.f32 0.0, %v4067
      %v4069 = vpop.f32.mrb[0].mxu0
      %v4070 = vpop.f32.mrb[0].mxu0
      %v4071 = vadd.f32 0.0, %v4070
      %v4072 = vpop.f32.mrb[0].mxu0
      %4073 = vmatprep.mubr.bf16.mxu0 0
      %4074 = vmatmul.mubr.bf16.gmra.mrb[0].mxu0 %v4004
      %v4075 = vpop.f32.mrb[0].mxu0
      %v4076 = vadd.f32 0.0, %v4075
      %v4077 = vpop.f32.mrb[0].mxu0
      %v4078 = vpop.f32.mrb[0].mxu0
      %v4079 = vadd.f32 0.0, %v4078
      %v4080 = vpop.f32.mrb[0].mxu0
      %4081 = vmatprep.mubr.bf16.mxu0 0
      %4082 = vmatmul.mubr.bf16.gmra.mrb[0].mxu0 %v4007
      %v4083 = vpop.f32.mrb[0].mxu0
      %v4084 = vadd.f32 0.0, %v4083
      %v4085 = vpop.f32.mrb[0].mxu0
      %v4086 = vpop.f32.mrb[0].mxu0
      %v4087 = vadd.f32 0.0, %v4086
      %v4088 = vpop.f32.mrb[0].mxu0
      %4089 = vmatprep.mubr.bf16.mxu0 0
      %4090 = vmatmul.mubr.bf16.gmra.mrb[0].mxu0 %v4010
      %v4091 = vpop.f32.mrb[0].mxu0
      %v4092 = vadd.f32 0.0, %v4091
      %v4093 = vpop.f32.mrb[0].mxu0
      %v4094 = vpop.f32.mrb[0].mxu0
      %v4095 = vadd.f32 0.0, %v4094
      %v4096 = vpop.f32.mrb[0].mxu0
      %4097 = vmatprep.mubr.bf16.mxu0 0
      %4098 = vmatmul.mubr.bf16.gmra.mrb[0].mxu0 %v4013
      %v4099 = vpop.f32.mrb[0].mxu0
      %v4100 = vadd.f32 0.0, %v4099
      %v4101 = vpop.f32.mrb[0].mxu0
      %v4102 = vpop.f32.mrb[0].mxu0
      %v4103 = vadd.f32 0.0, %v4102
      %v4104 = vpop.f32.mrb[0].mxu0
      %4105 = vmatprep.mubr.bf16.mxu0 0
      %4106 = vmatmul.mubr.bf16.gmra.mrb[0].mxu0 %v4016
      %v4107 = vpop.f32.mrb[0].mxu0
      %v4108 = vadd.f32 0.0, %v4107
      %v4109 = vpop.f32.mrb[0].mxu0
      %v4110 = vpop.f32.mrb[0].mxu0
      %v4111 = vadd.f32 0.0, %v4110
      %v4112 = vpop.f32.mrb[0].mxu0
      %4113 = vmatprep.mubr.bf16.mxu0 0
      %4114 = vmatmul.mubr.bf16.gmra.mrb[0].mxu0 %v4019
      %v4115 = vpop.f32.mrb[0].mxu0
      %v4116 = vadd.f32 0.0, %v4115
      %v4117 = vpop.f32.mrb[0].mxu0
      %v4118 = vpop.f32.mrb[0].mxu0
      %v4119 = vadd.f32 0.0, %v4118
      %v4120 = vpop.f32.mrb[0].mxu0
      %4121 = vmatprep.mubr.bf16.mxu0 0
      %4122 = vmatmul.mubr.bf16.gmra.mrb[0].mxu0 %v4022
      %v4123 = vpop.f32.mrb[0].mxu0
      %v4124 = vadd.f32 0.0, %v4123
      %v4125 = vpop.f32.mrb[0].mxu0
      %v4126 = vpop.f32.mrb[0].mxu0
      %v4127 = vadd.f32 0.0, %v4126
      %v4128 = vpop.f32.mrb[0].mxu0
      %4129 = vmatprep.mubr.bf16.mxu0 0
      %4130 = vmatmul.mubr.bf16.gmra.mrb[0].mxu0 %v4025
      %v4131 = vpop.f32.mrb[0].mxu0
      %v4132 = vadd.f32 0.0, %v4131
      %v4133 = vpop.f32.mrb[0].mxu0
      %v4134 = vpop.f32.mrb[0].mxu0
      %v4135 = vadd.f32 0.0, %v4134
      %v4136 = vpop.f32.mrb[0].mxu0
      %4137 = vmatprep.mubr.bf16.mxu0 0
      %4138 = vmatmul.mubr.bf16.gmra.mrb[0].mxu0 %v4028
      %v4139 = vpop.f32.mrb[0].mxu0
      %v4140 = vadd.f32 0.0, %v4139
      %v4141 = vpop.f32.mrb[0].mxu0
      %v4142 = vpop.f32.mrb[0].mxu0
      %v4143 = vadd.f32 0.0, %v4142
      %v4144 = vpop.f32.mrb[0].mxu0
      %4145 = vdwg.mxu0
      %v4146 = vadd.f32 %v3626, %v4068
      %v4147 = vadd.f32 %v3627, %v4071
      %v4148 = vadd.f32 %v3628, %v4076
      %v4149 = vadd.f32 %v3629, %v4079
      %v4150 = vadd.f32 %v3630, %v4084
      %v4151 = vadd.f32 %v3631, %v4087
      %v4152 = vadd.f32 %v3632, %v4092
      %v4153 = vadd.f32 %v3633, %v4095
      %v4154 = vadd.f32 %v3634, %v4100
      %v4155 = vadd.f32 %v3635, %v4103
      %v4156 = vadd.f32 %v3636, %v4108
      %v4157 = vadd.f32 %v3637, %v4111
      %v4158 = vadd.f32 %v3638, %v4116
      %v4159 = vadd.f32 %v3639, %v4119
      %v4160 = vadd.f32 %v3640, %v4124
      %v4161 = vadd.f32 %v3641, %v4127
      %v4162 = vadd.f32 %v3642, %v4132
      %v4163 = vadd.f32 %v3643, %v4135
      %v4164 = vadd.f32 %v3644, %v4140
      %v4165 = vadd.f32 %v3645, %v4143
      %s4166 = scalar_lea.vmem %s2, 532
      %v4167 = vld [vmem:[%s4166] sm:$0xf]
      %v4168 = vld [vmem:[%s4166 + $0x4] sm:$0xf]
      %v4169 = vld [vmem:[%s4166 + $0x8] sm:$0xf]
      %v4170 = vld [vmem:[%s4166 + $0xc] sm:$0xf]
      %v4171 = vld [vmem:[%s4166 + $0x10] sm:$0xf]
      %v4172 = vld [vmem:[%s4166 + $0x14] sm:$0xf]
      %v4173 = vld [vmem:[%s4166 + $0x18] sm:$0xf]
      %v4174 = vld [vmem:[%s4166 + $0x1c] sm:$0xf]
      %v4175 = vld [vmem:[%s4166 + $0x20] sm:$0xf]
      %v4176 = vld [vmem:[%s4166 + $0x24] sm:$0xf]
      %v4177 = vld [vmem:[%s4166 + $0x28] sm:$0xf]
      %v4178 = vld [vmem:[%s4166 + $0x2c] sm:$0xf]
      %v4179 = vld [vmem:[%s4166 + $0x30] sm:$0xf]
      %v4180 = vld [vmem:[%s4166 + $0x34] sm:$0xf]
      %v4181 = vld [vmem:[%s4166 + $0x38] sm:$0xf]
      %v4182 = vld [vmem:[%s4166 + $0x3c] sm:$0xf]
      %v4183 = vld [vmem:[%s4166 + $0x40] sm:$0xf]
      %v4184 = vld [vmem:[%s4166 + $0x44] sm:$0xf]
      %v4185 = vld [vmem:[%s4166 + $0x48] sm:$0x3]
      %s4186 = scalar_lea.vmem %s3, 7
      %v4187 = vld [vmem:[%s4186] sm:$0x1]
      %v4189 = vlaneseq
      %v4190 = vshrl.u32 %v4189, 7
      %v4191 = vsub.s32 0, %v4190
      %v4192 = vrot.slane %v4187, %v4191
      %v4213 = vunpack.c.l.b16 %v4167
      %v4214 = vunpack.c.l.b16 %v4168
      %v4215 = vunpack.c.l.b16 %v4169
      %v4216 = vunpack.c.l.b16 %v4170
      %v4217 = vunpack.c.l.b16 %v4171
      %v4218 = vunpack.c.l.b16 %v4172
      %v4219 = vunpack.c.l.b16 %v4173
      %v4220 = vunpack.c.l.b16 %v4174
      %v4221 = vunpack.c.l.b16 %v4175
      %v4222 = vunpack.c.l.b16 %v4176
      %v4223 = vunpack.c.l.b16 %v4177
      %v4224 = vunpack.c.l.b16 %v4178
      %v4225 = vunpack.c.l.b16 %v4179
      %v4226 = vunpack.c.l.b16 %v4180
      %v4227 = vunpack.c.l.b16 %v4181
      %v4228 = vunpack.c.l.b16 %v4182
      %v4229 = vunpack.c.l.b16 %v4183
      %v4230 = vunpack.c.l.b16 %v4184
      %v4231 = vunpack.c.l.b16 %v4185
      %v4232 = vpack.c.b16 %v4214, %v4213
      %v4233 = vpack.c.b16 %v4216, %v4215
      %v4234 = vpack.c.b16 %v4218, %v4217
      %v4235 = vpack.c.b16 %v4220, %v4219
      %v4236 = vpack.c.b16 %v4222, %v4221
      %v4237 = vpack.c.b16 %v4224, %v4223
      %v4238 = vpack.c.b16 %v4226, %v4225
      %v4239 = vpack.c.b16 %v4228, %v4227
      %v4240 = vpack.c.b16 %v4230, %v4229
      %v4241 = vpack.c.b16 %v4231, %v4231
      %v4252 = vand.u32 %v4241, %v615
      %4254 = vmatprep.subr.bf16.mxu0 0
      %4255 = vmatpush1.bf16.msra.mxu0 %v4232
      %4256 = vmatprep.subr.bf16.mxu0 0
      %4257 = vmatpush1.bf16.msra.mxu0 %v4233
      %4258 = vmatprep.subr.bf16.mxu0 0
      %4259 = vmatpush1.bf16.msra.mxu0 %v4234
      %4260 = vmatprep.subr.bf16.mxu0 0
      %4261 = vmatpush1.bf16.msra.mxu0 %v4235
      %4262 = vmatprep.subr.bf16.mxu0 0
      %4263 = vmatpush1.bf16.msra.mxu0 %v4236
      %4264 = vmatprep.subr.bf16.mxu0 0
      %4265 = vmatpush1.bf16.msra.mxu0 %v4237
      %4266 = vmatprep.subr.bf16.mxu0 0
      %4267 = vmatpush1.bf16.msra.mxu0 %v4238
      %4268 = vmatprep.subr.bf16.mxu0 0
      %4269 = vmatpush1.bf16.msra.mxu0 %v4239
      %4270 = vmatprep.subr.bf16.mxu0 0
      %4271 = vmatpush1.bf16.msra.mxu0 %v4240
      %4272 = vmatprep.subr.bf16.mxu0 0
      %4273 = vmatpush1.bf16.msra.mxu0 %v4252
      %4274 = vmatprep.subr.bf16.mxu0 0
      %4275 = vmatpush1.bf16.msra.mxu0 0
      %4276 = vmatprep.subr.bf16.mxu0 0
      %4277 = vmatpush1.bf16.msra.mxu0 0
      %4278 = vmatprep.subr.bf16.mxu0 0
      %4279 = vmatpush1.bf16.msra.mxu0 0
      %4280 = vmatprep.subr.bf16.mxu0 0
      %4281 = vmatpush1.bf16.msra.mxu0 0
      %4282 = vmatprep.subr.bf16.mxu0 0
      %4283 = vmatpush1.bf16.msra.mxu0 0
      %4284 = vmatprep.subr.bf16.mxu0 0
      %4285 = vmatpush1.bf16.msra.mxu0 0
      %4286 = vmatprep.mubr.bf16.mxu0 %v583
      %4287 = vmatmul.mubr.bf16.gmra.mrb[0].mxu0 %v494
      %v4288 = vpop.f32.mrb[0].mxu0
      %v4289 = vadd.f32 %v4192, %v4288
      %v4290 = vpop.f32.mrb[0].mxu0
      %v4291 = vpop.f32.mrb[0].mxu0
      %v4292 = vadd.f32 %v4192, %v4291
      %v4293 = vpop.f32.mrb[0].mxu0
      %4294 = vmatprep.mubr.bf16.mxu0 %v586
      %4295 = vmatmul.mubr.bf16.gmra.mrb[0].mxu0 %v496
      %v4296 = vpop.f32.mrb[0].mxu0
      %v4297 = vadd.f32 %v4192, %v4296
      %v4298 = vpop.f32.mrb[0].mxu0
      %v4299 = vpop.f32.mrb[0].mxu0
      %v4300 = vadd.f32 %v4192, %v4299
      %v4301 = vpop.f32.mrb[0].mxu0
      %4302 = vmatprep.mubr.bf16.mxu0 %v589
      %4303 = vmatmul.mubr.bf16.gmra.mrb[0].mxu0 %v498
      %v4304 = vpop.f32.mrb[0].mxu0
      %v4305 = vadd.f32 %v4192, %v4304
      %v4306 = vpop.f32.mrb[0].mxu0
      %v4307 = vpop.f32.mrb[0].mxu0
      %v4308 = vadd.f32 %v4192, %v4307
      %v4309 = vpop.f32.mrb[0].mxu0
      %4310 = vmatprep.mubr.bf16.mxu0 %v592
      %4311 = vmatmul.mubr.bf16.gmra.mrb[0].mxu0 %v500
      %v4312 = vpop.f32.mrb[0].mxu0
      %v4313 = vadd.f32 %v4192, %v4312
      %v4314 = vpop.f32.mrb[0].mxu0
      %v4315 = vpop.f32.mrb[0].mxu0
      %v4316 = vadd.f32 %v4192, %v4315
      %v4317 = vpop.f32.mrb[0].mxu0
      %4318 = vmatprep.mubr.bf16.mxu0 %v595
      %4319 = vmatmul.mubr.bf16.gmra.mrb[0].mxu0 %v502
      %v4320 = vpop.f32.mrb[0].mxu0
      %v4321 = vadd.f32 %v4192, %v4320
      %v4322 = vpop.f32.mrb[0].mxu0
      %v4323 = vpop.f32.mrb[0].mxu0
      %v4324 = vadd.f32 %v4192, %v4323
      %v4325 = vpop.f32.mrb[0].mxu0
      %4326 = vmatprep.mubr.bf16.mxu0 %v598
      %4327 = vmatmul.mubr.bf16.gmra.mrb[0].mxu0 %v504
      %v4328 = vpop.f32.mrb[0].mxu0
      %v4329 = vadd.f32 %v4192, %v4328
      %v4330 = vpop.f32.mrb[0].mxu0
      %v4331 = vpop.f32.mrb[0].mxu0
      %v4332 = vadd.f32 %v4192, %v4331
      %v4333 = vpop.f32.mrb[0].mxu0
      %4334 = vmatprep.mubr.bf16.mxu0 %v601
      %4335 = vmatmul.mubr.bf16.gmra.mrb[0].mxu0 %v506
      %v4336 = vpop.f32.mrb[0].mxu0
      %v4337 = vadd.f32 %v4192, %v4336
      %v4338 = vpop.f32.mrb[0].mxu0
      %v4339 = vpop.f32.mrb[0].mxu0
      %v4340 = vadd.f32 %v4192, %v4339
      %v4341 = vpop.f32.mrb[0].mxu0
      %4342 = vmatprep.mubr.bf16.mxu0 %v604
      %4343 = vmatmul.mubr.bf16.gmra.mrb[0].mxu0 %v508
      %v4344 = vpop.f32.mrb[0].mxu0
      %v4345 = vadd.f32 %v4192, %v4344
      %v4346 = vpop.f32.mrb[0].mxu0
      %v4347 = vpop.f32.mrb[0].mxu0
      %v4348 = vadd.f32 %v4192, %v4347
      %v4349 = vpop.f32.mrb[0].mxu0
      %4350 = vmatprep.mubr.bf16.mxu0 %v607
      %4351 = vmatmul.mubr.bf16.gmra.mrb[0].mxu0 %v510
      %v4352 = vpop.f32.mrb[0].mxu0
      %v4353 = vadd.f32 %v4192, %v4352
      %v4354 = vpop.f32.mrb[0].mxu0
      %v4355 = vpop.f32.mrb[0].mxu0
      %v4356 = vadd.f32 %v4192, %v4355
      %v4357 = vpop.f32.mrb[0].mxu0
      %4358 = vmatprep.mubr.bf16.mxu0 %v610
      %4359 = vmatmul.mubr.bf16.gmra.mrb[0].mxu0 %v512
      %v4360 = vpop.f32.mrb[0].mxu0
      %v4361 = vadd.f32 %v4192, %v4360
      %v4362 = vpop.f32.mrb[0].mxu0
      %v4363 = vpop.f32.mrb[0].mxu0
      %v4364 = vadd.f32 %v4192, %v4363
      %v4365 = vpop.f32.mrb[0].mxu0
      %4366 = vdwg.mxu0
      %v4367 = vsub.f32 0.0, %v4289
      %v4368 = vsub.f32 0.0, %v4292
      %v4369 = vsub.f32 0.0, %v4297
      %v4370 = vsub.f32 0.0, %v4300
      %v4371 = vsub.f32 0.0, %v4305
      %v4372 = vsub.f32 0.0, %v4308
      %v4373 = vsub.f32 0.0, %v4313
      %v4374 = vsub.f32 0.0, %v4316
      %v4375 = vsub.f32 0.0, %v4321
      %v4376 = vsub.f32 0.0, %v4324
      %v4377 = vsub.f32 0.0, %v4329
      %v4378 = vsub.f32 0.0, %v4332
      %v4379 = vsub.f32 0.0, %v4337
      %v4380 = vsub.f32 0.0, %v4340
      %v4381 = vsub.f32 0.0, %v4345
      %v4382 = vsub.f32 0.0, %v4348
      %v4383 = vsub.f32 0.0, %v4353
      %v4384 = vsub.f32 0.0, %v4356
      %v4385 = vsub.f32 0.0, %v4361
      %v4386 = vsub.f32 0.0, %v4364
      %v4387 = vmul.f32 %v4367, 1.442695
      %v4388 = vpow.pop %v4387
      %v4389 = vmul.f32 %v4368, 1.442695
      %v4390 = vpow.pop %v4389
      %v4391 = vmul.f32 %v4369, 1.442695
      %v4392 = vpow.pop %v4391
      %v4393 = vmul.f32 %v4370, 1.442695
      %v4394 = vpow.pop %v4393
      %v4395 = vmul.f32 %v4371, 1.442695
      %v4396 = vpow.pop %v4395
      %v4397 = vmul.f32 %v4372, 1.442695
      %v4398 = vpow.pop %v4397
      %v4399 = vmul.f32 %v4373, 1.442695
      %v4400 = vpow.pop %v4399
      %v4401 = vmul.f32 %v4374, 1.442695
      %v4402 = vpow.pop %v4401
      %v4403 = vmul.f32 %v4375, 1.442695
      %v4404 = vpow.pop %v4403
      %v4405 = vmul.f32 %v4376, 1.442695
      %v4406 = vpow.pop %v4405
      %v4407 = vmul.f32 %v4377, 1.442695
      %v4408 = vpow.pop %v4407
      %v4409 = vmul.f32 %v4378, 1.442695
      %v4410 = vpow.pop %v4409
      %v4411 = vmul.f32 %v4379, 1.442695
      %v4412 = vpow.pop %v4411
      %v4413 = vmul.f32 %v4380, 1.442695
      %v4414 = vpow.pop %v4413
      %v4415 = vmul.f32 %v4381, 1.442695
      %v4416 = vpow.pop %v4415
      %v4417 = vmul.f32 %v4382, 1.442695
      %v4418 = vpow.pop %v4417
      %v4419 = vmul.f32 %v4383, 1.442695
      %v4420 = vpow.pop %v4419
      %v4421 = vmul.f32 %v4384, 1.442695
      %v4422 = vpow.pop %v4421
      %v4423 = vmul.f32 %v4385, 1.442695
      %v4424 = vpow.pop %v4423
      %v4425 = vmul.f32 %v4386, 1.442695
      %v4426 = vpow.pop %v4425
      %v4427 = vadd.f32 %v4388, 1.0
      %v4428 = vadd.f32 %v4390, 1.0
      %v4429 = vadd.f32 %v4392, 1.0
      %v4430 = vadd.f32 %v4394, 1.0
      %v4431 = vadd.f32 %v4396, 1.0
      %v4432 = vadd.f32 %v4398, 1.0
      %v4433 = vadd.f32 %v4400, 1.0
      %v4434 = vadd.f32 %v4402, 1.0
      %v4435 = vadd.f32 %v4404, 1.0
      %v4436 = vadd.f32 %v4406, 1.0
      %v4437 = vadd.f32 %v4408, 1.0
      %v4438 = vadd.f32 %v4410, 1.0
      %v4439 = vadd.f32 %v4412, 1.0
      %v4440 = vadd.f32 %v4414, 1.0
      %v4441 = vadd.f32 %v4416, 1.0
      %v4442 = vadd.f32 %v4418, 1.0
      %v4443 = vadd.f32 %v4420, 1.0
      %v4444 = vadd.f32 %v4422, 1.0
      %v4445 = vadd.f32 %v4424, 1.0
      %v4446 = vadd.f32 %v4426, 1.0
      %v4447 = vrcp.pop %v4427
      %v4448 = vrcp.pop %v4428
      %v4449 = vrcp.pop %v4429
      %v4450 = vrcp.pop %v4430
      %v4451 = vrcp.pop %v4431
      %v4452 = vrcp.pop %v4432
      %v4453 = vrcp.pop %v4433
      %v4454 = vrcp.pop %v4434
      %v4455 = vrcp.pop %v4435
      %v4456 = vrcp.pop %v4436
      %v4457 = vrcp.pop %v4437
      %v4458 = vrcp.pop %v4438
      %v4459 = vrcp.pop %v4439
      %v4460 = vrcp.pop %v4440
      %v4461 = vrcp.pop %v4441
      %v4462 = vrcp.pop %v4442
      %v4463 = vrcp.pop %v4443
      %v4464 = vrcp.pop %v4444
      %v4465 = vrcp.pop %v4445
      %v4466 = vrcp.pop %v4446
      %v4467 = vld [vmem:[%s3947 + $0x1] sm:$0xff]
      %v4468 = vld [vmem:[%s3947 + $0x9] sm:$0xff]
      %v4469 = vld [vmem:[%s3947 + $0x19] sm:$0xff]
      %v4470 = vld [vmem:[%s3947 + $0x21] sm:$0xff]
      %v4471 = vld [vmem:[%s3947 + $0x31] sm:$0xff]
      %v4472 = vld [vmem:[%s3947 + $0x39] sm:$0xff]
      %v4473 = vld [vmem:[%s3947 + $0x49] sm:$0xff]
      %v4474 = vld [vmem:[%s3947 + $0x51] sm:$0xff]
      %v4475 = vld [vmem:[%s3947 + $0x61] sm:$0xff]
      %v4476 = vld [vmem:[%s3947 + $0x69] sm:$0xff]
      %v4477 = vld [vmem:[%s3947 + $0x79] sm:$0xff]
      %v4478 = vld [vmem:[%s3947 + $0x81] sm:$0xff]
      %v4479 = vld [vmem:[%s3947 + $0x91] sm:$0xff]
      %v4480 = vld [vmem:[%s3947 + $0x99] sm:$0xff]
      %v4481 = vld [vmem:[%s3947 + $0xa9] sm:$0xff]
      %v4482 = vld [vmem:[%s3947 + $0xb1] sm:$0xff]
      %v4483 = vld [vmem:[%s3947 + $0xc1] sm:$0xff]
      %v4484 = vld [vmem:[%s3947 + $0xc9] sm:$0xff]
      %v4485 = vld [vmem:[%s3947 + $0xd9] sm:$0xff]
      %v4486 = vld [vmem:[%s3947 + $0xe1] sm:$0xff]
      %v4487 = vmul.f32 %v4447, %v4467
      %v4488 = vmul.f32 %v4448, %v4468
      %v4489 = vmul.f32 %v4449, %v4469
      %v4490 = vmul.f32 %v4450, %v4470
      %v4491 = vmul.f32 %v4451, %v4471
      %v4492 = vmul.f32 %v4452, %v4472
      %v4493 = vmul.f32 %v4453, %v4473
      %v4494 = vmul.f32 %v4454, %v4474
      %v4495 = vmul.f32 %v4455, %v4475
      %v4496 = vmul.f32 %v4456, %v4476
      %v4497 = vmul.f32 %v4457, %v4477
      %v4498 = vmul.f32 %v4458, %v4478
      %v4499 = vmul.f32 %v4459, %v4479
      %v4500 = vmul.f32 %v4460, %v4480
      %v4501 = vmul.f32 %v4461, %v4481
      %v4502 = vmul.f32 %v4462, %v4482
      %v4503 = vmul.f32 %v4463, %v4483
      %v4504 = vmul.f32 %v4464, %v4484
      %v4505 = vmul.f32 %v4465, %v4485
      %v4506 = vmul.f32 %v4466, %v4486
      %v4507 = vpack.c.bf16 %v4488, %v4487
      %v4508 = vpack.c.bf16 %v4490, %v4489
      %v4509 = vpack.c.bf16 %v4492, %v4491
      %v4510 = vpack.c.bf16 %v4494, %v4493
      %v4511 = vpack.c.bf16 %v4496, %v4495
      %v4512 = vpack.c.bf16 %v4498, %v4497
      %v4513 = vpack.c.bf16 %v4500, %v4499
      %v4514 = vpack.c.bf16 %v4502, %v4501
      %v4515 = vpack.c.bf16 %v4504, %v4503
      %v4516 = vpack.c.bf16 %v4506, %v4505
      %s4517 = scalar_lea.vmem %s4, 14
      %v4518 = vld [vmem:[%s4517] sm:$0x3]
      %v4520 = vsel %vm883, %v4507, 0
      %v4523 = vsel %vm883, %v4508, 0
      %v4526 = vsel %vm883, %v4509, 0
      %v4529 = vsel %vm883, %v4510, 0
      %v4532 = vsel %vm883, %v4511, 0
      %v4535 = vsel %vm883, %v4512, 0
      %v4538 = vsel %vm883, %v4513, 0
      %v4541 = vsel %vm883, %v4514, 0
      %v4544 = vsel %vm883, %v4515, 0
      %v4547 = vsel %vm883, %v4516, 0
      %v4550 = vsel %vm613, %v4518, 0
      %4552 = vmatprep.subr.bf16.mxu0 0
      %4553 = vmatpush1.bf16.msra.mxu0 %v4550
      %4554 = vmatprep.subr.bf16.mxu0 0
      %4555 = vmatpush1.bf16.msra.mxu0 0
      %4556 = vmatprep.subr.bf16.mxu0 0
      %4557 = vmatpush1.bf16.msra.mxu0 0
      %4558 = vmatprep.subr.bf16.mxu0 0
      %4559 = vmatpush1.bf16.msra.mxu0 0
      %4560 = vmatprep.subr.bf16.mxu0 0
      %4561 = vmatpush1.bf16.msra.mxu0 0
      %4562 = vmatprep.subr.bf16.mxu0 0
      %4563 = vmatpush1.bf16.msra.mxu0 0
      %4564 = vmatprep.subr.bf16.mxu0 0
      %4565 = vmatpush1.bf16.msra.mxu0 0
      %4566 = vmatprep.subr.bf16.mxu0 0
      %4567 = vmatpush1.bf16.msra.mxu0 0
      %4568 = vmatprep.subr.bf16.mxu0 0
      %4569 = vmatpush1.bf16.msra.mxu0 0
      %4570 = vmatprep.subr.bf16.mxu0 0
      %4571 = vmatpush1.bf16.msra.mxu0 0
      %4572 = vmatprep.subr.bf16.mxu0 0
      %4573 = vmatpush1.bf16.msra.mxu0 0
      %4574 = vmatprep.subr.bf16.mxu0 0
      %4575 = vmatpush1.bf16.msra.mxu0 0
      %4576 = vmatprep.subr.bf16.mxu0 0
      %4577 = vmatpush1.bf16.msra.mxu0 0
      %4578 = vmatprep.subr.bf16.mxu0 0
      %4579 = vmatpush1.bf16.msra.mxu0 0
      %4580 = vmatprep.subr.bf16.mxu0 0
      %4581 = vmatpush1.bf16.msra.mxu0 0
      %4582 = vmatprep.subr.bf16.mxu0 0
      %4583 = vmatpush1.bf16.msra.mxu0 0
      %4584 = vmatprep.mubr.bf16.mxu0 0
      %4585 = vmatmul.mubr.bf16.gmra.mrb[0].mxu0 %v4520
      %v4586 = vpop.f32.mrb[0].mxu0
      %v4587 = vadd.f32 0.0, %v4586
      %v4588 = vpop.f32.mrb[0].mxu0
      %v4589 = vpop.f32.mrb[0].mxu0
      %v4590 = vadd.f32 0.0, %v4589
      %v4591 = vpop.f32.mrb[0].mxu0
      %4592 = vmatprep.mubr.bf16.mxu0 0
      %4593 = vmatmul.mubr.bf16.gmra.mrb[0].mxu0 %v4523
      %v4594 = vpop.f32.mrb[0].mxu0
      %v4595 = vadd.f32 0.0, %v4594
      %v4596 = vpop.f32.mrb[0].mxu0
      %v4597 = vpop.f32.mrb[0].mxu0
      %v4598 = vadd.f32 0.0, %v4597
      %v4599 = vpop.f32.mrb[0].mxu0
      %4600 = vmatprep.mubr.bf16.mxu0 0
      %4601 = vmatmul.mubr.bf16.gmra.mrb[0].mxu0 %v4526
      %v4602 = vpop.f32.mrb[0].mxu0
      %v4603 = vadd.f32 0.0, %v4602
      %v4604 = vpop.f32.mrb[0].mxu0
      %v4605 = vpop.f32.mrb[0].mxu0
      %v4606 = vadd.f32 0.0, %v4605
      %v4607 = vpop.f32.mrb[0].mxu0
      %4608 = vmatprep.mubr.bf16.mxu0 0
      %4609 = vmatmul.mubr.bf16.gmra.mrb[0].mxu0 %v4529
      %v4610 = vpop.f32.mrb[0].mxu0
      %v4611 = vadd.f32 0.0, %v4610
      %v4612 = vpop.f32.mrb[0].mxu0
      %v4613 = vpop.f32.mrb[0].mxu0
      %v4614 = vadd.f32 0.0, %v4613
      %v4615 = vpop.f32.mrb[0].mxu0
      %4616 = vmatprep.mubr.bf16.mxu0 0
      %4617 = vmatmul.mubr.bf16.gmra.mrb[0].mxu0 %v4532
      %v4618 = vpop.f32.mrb[0].mxu0
      %v4619 = vadd.f32 0.0, %v4618
      %v4620 = vpop.f32.mrb[0].mxu0
      %v4621 = vpop.f32.mrb[0].mxu0
      %v4622 = vadd.f32 0.0, %v4621
      %v4623 = vpop.f32.mrb[0].mxu0
      %4624 = vmatprep.mubr.bf16.mxu0 0
      %4625 = vmatmul.mubr.bf16.gmra.mrb[0].mxu0 %v4535
      %v4626 = vpop.f32.mrb[0].mxu0
      %v4627 = vadd.f32 0.0, %v4626
      %v4628 = vpop.f32.mrb[0].mxu0
      %v4629 = vpop.f32.mrb[0].mxu0
      %v4630 = vadd.f32 0.0, %v4629
      %v4631 = vpop.f32.mrb[0].mxu0
      %4632 = vmatprep.mubr.bf16.mxu0 0
      %4633 = vmatmul.mubr.bf16.gmra.mrb[0].mxu0 %v4538
      %v4634 = vpop.f32.mrb[0].mxu0
      %v4635 = vadd.f32 0.0, %v4634
      %v4636 = vpop.f32.mrb[0].mxu0
      %v4637 = vpop.f32.mrb[0].mxu0
      %v4638 = vadd.f32 0.0, %v4637
      %v4639 = vpop.f32.mrb[0].mxu0
      %4640 = vmatprep.mubr.bf16.mxu0 0
      %4641 = vmatmul.mubr.bf16.gmra.mrb[0].mxu0 %v4541
      %v4642 = vpop.f32.mrb[0].mxu0
      %v4643 = vadd.f32 0.0, %v4642
      %v4644 = vpop.f32.mrb[0].mxu0
      %v4645 = vpop.f32.mrb[0].mxu0
      %v4646 = vadd.f32 0.0, %v4645
      %v4647 = vpop.f32.mrb[0].mxu0
      %4648 = vmatprep.mubr.bf16.mxu0 0
      %4649 = vmatmul.mubr.bf16.gmra.mrb[0].mxu0 %v4544
      %v4650 = vpop.f32.mrb[0].mxu0
      %v4651 = vadd.f32 0.0, %v4650
      %v4652 = vpop.f32.mrb[0].mxu0
      %v4653 = vpop.f32.mrb[0].mxu0
      %v4654 = vadd.f32 0.0, %v4653
      %v4655 = vpop.f32.mrb[0].mxu0
      %4656 = vmatprep.mubr.bf16.mxu0 0
      %4657 = vmatmul.mubr.bf16.gmra.mrb[0].mxu0 %v4547
      %v4658 = vpop.f32.mrb[0].mxu0
      %v4659 = vadd.f32 0.0, %v4658
      %v4660 = vpop.f32.mrb[0].mxu0
      %v4661 = vpop.f32.mrb[0].mxu0
      %v4662 = vadd.f32 0.0, %v4661
      %v4663 = vpop.f32.mrb[0].mxu0
      %4664 = vdwg.mxu0
      %v4665 = vadd.f32 %v4146, %v4587
      %v4666 = vadd.f32 %v4147, %v4590
      %v4667 = vadd.f32 %v4148, %v4595
      %v4668 = vadd.f32 %v4149, %v4598
      %v4669 = vadd.f32 %v4150, %v4603
      %v4670 = vadd.f32 %v4151, %v4606
      %v4671 = vadd.f32 %v4152, %v4611
      %v4672 = vadd.f32 %v4153, %v4614
      %v4673 = vadd.f32 %v4154, %v4619
      %v4674 = vadd.f32 %v4155, %v4622
      %v4675 = vadd.f32 %v4156, %v4627
      %v4676 = vadd.f32 %v4157, %v4630
      %v4677 = vadd.f32 %v4158, %v4635
      %v4678 = vadd.f32 %v4159, %v4638
      %v4679 = vadd.f32 %v4160, %v4643
      %v4680 = vadd.f32 %v4161, %v4646
      %v4681 = vadd.f32 %v4162, %v4651
      %v4682 = vadd.f32 %v4163, %v4654
      %v4683 = vadd.f32 %v4164, %v4659
      %v4684 = vadd.f32 %v4165, %v4662
      %s4685 = scalar_lea.vmem %s2, 608
      %v4686 = vld [vmem:[%s4685] sm:$0xf]
      %v4687 = vld [vmem:[%s4685 + $0x4] sm:$0xf]
      %v4688 = vld [vmem:[%s4685 + $0x8] sm:$0xf]
      %v4689 = vld [vmem:[%s4685 + $0xc] sm:$0xf]
      %v4690 = vld [vmem:[%s4685 + $0x10] sm:$0xf]
      %v4691 = vld [vmem:[%s4685 + $0x14] sm:$0xf]
      %v4692 = vld [vmem:[%s4685 + $0x18] sm:$0xf]
      %v4693 = vld [vmem:[%s4685 + $0x1c] sm:$0xf]
      %v4694 = vld [vmem:[%s4685 + $0x20] sm:$0xf]
      %v4695 = vld [vmem:[%s4685 + $0x24] sm:$0xf]
      %v4696 = vld [vmem:[%s4685 + $0x28] sm:$0xf]
      %v4697 = vld [vmem:[%s4685 + $0x2c] sm:$0xf]
      %v4698 = vld [vmem:[%s4685 + $0x30] sm:$0xf]
      %v4699 = vld [vmem:[%s4685 + $0x34] sm:$0xf]
      %v4700 = vld [vmem:[%s4685 + $0x38] sm:$0xf]
      %v4701 = vld [vmem:[%s4685 + $0x3c] sm:$0xf]
      %v4702 = vld [vmem:[%s4685 + $0x40] sm:$0xf]
      %v4703 = vld [vmem:[%s4685 + $0x44] sm:$0xf]
      %v4704 = vld [vmem:[%s4685 + $0x48] sm:$0x3]
      %s4705 = scalar_lea.vmem %s3, 8
      %v4706 = vld [vmem:[%s4705] sm:$0x1]
      %v4708 = vlaneseq
      %v4709 = vshrl.u32 %v4708, 7
      %v4710 = vsub.s32 0, %v4709
      %v4711 = vrot.slane %v4706, %v4710
      %v4732 = vunpack.c.l.b16 %v4686
      %v4733 = vunpack.c.l.b16 %v4687
      %v4734 = vunpack.c.l.b16 %v4688
      %v4735 = vunpack.c.l.b16 %v4689
      %v4736 = vunpack.c.l.b16 %v4690
      %v4737 = vunpack.c.l.b16 %v4691
      %v4738 = vunpack.c.l.b16 %v4692
      %v4739 = vunpack.c.l.b16 %v4693
      %v4740 = vunpack.c.l.b16 %v4694
      %v4741 = vunpack.c.l.b16 %v4695
      %v4742 = vunpack.c.l.b16 %v4696
      %v4743 = vunpack.c.l.b16 %v4697
      %v4744 = vunpack.c.l.b16 %v4698
      %v4745 = vunpack.c.l.b16 %v4699
      %v4746 = vunpack.c.l.b16 %v4700
      %v4747 = vunpack.c.l.b16 %v4701
      %v4748 = vunpack.c.l.b16 %v4702
      %v4749 = vunpack.c.l.b16 %v4703
      %v4750 = vunpack.c.l.b16 %v4704
      %v4751 = vpack.c.b16 %v4733, %v4732
      %v4752 = vpack.c.b16 %v4735, %v4734
      %v4753 = vpack.c.b16 %v4737, %v4736
      %v4754 = vpack.c.b16 %v4739, %v4738
      %v4755 = vpack.c.b16 %v4741, %v4740
      %v4756 = vpack.c.b16 %v4743, %v4742
      %v4757 = vpack.c.b16 %v4745, %v4744
      %v4758 = vpack.c.b16 %v4747, %v4746
      %v4759 = vpack.c.b16 %v4749, %v4748
      %v4760 = vpack.c.b16 %v4750, %v4750
      %v4771 = vand.u32 %v4760, %v615
      %4773 = vmatprep.subr.bf16.mxu0 0
      %4774 = vmatpush1.bf16.msra.mxu0 %v4751
      %4775 = vmatprep.subr.bf16.mxu0 0
      %4776 = vmatpush1.bf16.msra.mxu0 %v4752
      %4777 = vmatprep.subr.bf16.mxu0 0
      %4778 = vmatpush1.bf16.msra.mxu0 %v4753
      %4779 = vmatprep.subr.bf16.mxu0 0
      %4780 = vmatpush1.bf16.msra.mxu0 %v4754
      %4781 = vmatprep.subr.bf16.mxu0 0
      %4782 = vmatpush1.bf16.msra.mxu0 %v4755
      %4783 = vmatprep.subr.bf16.mxu0 0
      %4784 = vmatpush1.bf16.msra.mxu0 %v4756
      %4785 = vmatprep.subr.bf16.mxu0 0
      %4786 = vmatpush1.bf16.msra.mxu0 %v4757
      %4787 = vmatprep.subr.bf16.mxu0 0
      %4788 = vmatpush1.bf16.msra.mxu0 %v4758
      %4789 = vmatprep.subr.bf16.mxu0 0
      %4790 = vmatpush1.bf16.msra.mxu0 %v4759
      %4791 = vmatprep.subr.bf16.mxu0 0
      %4792 = vmatpush1.bf16.msra.mxu0 %v4771
      %4793 = vmatprep.subr.bf16.mxu0 0
      %4794 = vmatpush1.bf16.msra.mxu0 0
      %4795 = vmatprep.subr.bf16.mxu0 0
      %4796 = vmatpush1.bf16.msra.mxu0 0
      %4797 = vmatprep.subr.bf16.mxu0 0
      %4798 = vmatpush1.bf16.msra.mxu0 0
      %4799 = vmatprep.subr.bf16.mxu0 0
      %4800 = vmatpush1.bf16.msra.mxu0 0
      %4801 = vmatprep.subr.bf16.mxu0 0
      %4802 = vmatpush1.bf16.msra.mxu0 0
      %4803 = vmatprep.subr.bf16.mxu0 0
      %4804 = vmatpush1.bf16.msra.mxu0 0
      %4805 = vmatprep.mubr.bf16.mxu0 %v583
      %4806 = vmatmul.mubr.bf16.gmra.mrb[0].mxu0 %v494
      %v4807 = vpop.f32.mrb[0].mxu0
      %v4808 = vadd.f32 %v4711, %v4807
      %v4809 = vpop.f32.mrb[0].mxu0
      %v4810 = vpop.f32.mrb[0].mxu0
      %v4811 = vadd.f32 %v4711, %v4810
      %v4812 = vpop.f32.mrb[0].mxu0
      %4813 = vmatprep.mubr.bf16.mxu0 %v586
      %4814 = vmatmul.mubr.bf16.gmra.mrb[0].mxu0 %v496
      %v4815 = vpop.f32.mrb[0].mxu0
      %v4816 = vadd.f32 %v4711, %v4815
      %v4817 = vpop.f32.mrb[0].mxu0
      %v4818 = vpop.f32.mrb[0].mxu0
      %v4819 = vadd.f32 %v4711, %v4818
      %v4820 = vpop.f32.mrb[0].mxu0
      %4821 = vmatprep.mubr.bf16.mxu0 %v589
      %4822 = vmatmul.mubr.bf16.gmra.mrb[0].mxu0 %v498
      %v4823 = vpop.f32.mrb[0].mxu0
      %v4824 = vadd.f32 %v4711, %v4823
      %v4825 = vpop.f32.mrb[0].mxu0
      %v4826 = vpop.f32.mrb[0].mxu0
      %v4827 = vadd.f32 %v4711, %v4826
      %v4828 = vpop.f32.mrb[0].mxu0
      %4829 = vmatprep.mubr.bf16.mxu0 %v592
      %4830 = vmatmul.mubr.bf16.gmra.mrb[0].mxu0 %v500
      %v4831 = vpop.f32.mrb[0].mxu0
      %v4832 = vadd.f32 %v4711, %v4831
      %v4833 = vpop.f32.mrb[0].mxu0
      %v4834 = vpop.f32.mrb[0].mxu0
      %v4835 = vadd.f32 %v4711, %v4834
      %v4836 = vpop.f32.mrb[0].mxu0
      %4837 = vmatprep.mubr.bf16.mxu0 %v595
      %4838 = vmatmul.mubr.bf16.gmra.mrb[0].mxu0 %v502
      %v4839 = vpop.f32.mrb[0].mxu0
      %v4840 = vadd.f32 %v4711, %v4839
      %v4841 = vpop.f32.mrb[0].mxu0
      %v4842 = vpop.f32.mrb[0].mxu0
      %v4843 = vadd.f32 %v4711, %v4842
      %v4844 = vpop.f32.mrb[0].mxu0
      %4845 = vmatprep.mubr.bf16.mxu0 %v598
      %4846 = vmatmul.mubr.bf16.gmra.mrb[0].mxu0 %v504
      %v4847 = vpop.f32.mrb[0].mxu0
      %v4848 = vadd.f32 %v4711, %v4847
      %v4849 = vpop.f32.mrb[0].mxu0
      %v4850 = vpop.f32.mrb[0].mxu0
      %v4851 = vadd.f32 %v4711, %v4850
      %v4852 = vpop.f32.mrb[0].mxu0
      %4853 = vmatprep.mubr.bf16.mxu0 %v601
      %4854 = vmatmul.mubr.bf16.gmra.mrb[0].mxu0 %v506
      %v4855 = vpop.f32.mrb[0].mxu0
      %v4856 = vadd.f32 %v4711, %v4855
      %v4857 = vpop.f32.mrb[0].mxu0
      %v4858 = vpop.f32.mrb[0].mxu0
      %v4859 = vadd.f32 %v4711, %v4858
      %v4860 = vpop.f32.mrb[0].mxu0
      %4861 = vmatprep.mubr.bf16.mxu0 %v604
      %4862 = vmatmul.mubr.bf16.gmra.mrb[0].mxu0 %v508
      %v4863 = vpop.f32.mrb[0].mxu0
      %v4864 = vadd.f32 %v4711, %v4863
      %v4865 = vpop.f32.mrb[0].mxu0
      %v4866 = vpop.f32.mrb[0].mxu0
      %v4867 = vadd.f32 %v4711, %v4866
      %v4868 = vpop.f32.mrb[0].mxu0
      %4869 = vmatprep.mubr.bf16.mxu0 %v607
      %4870 = vmatmul.mubr.bf16.gmra.mrb[0].mxu0 %v510
      %v4871 = vpop.f32.mrb[0].mxu0
      %v4872 = vadd.f32 %v4711, %v4871
      %v4873 = vpop.f32.mrb[0].mxu0
      %v4874 = vpop.f32.mrb[0].mxu0
      %v4875 = vadd.f32 %v4711, %v4874
      %v4876 = vpop.f32.mrb[0].mxu0
      %4877 = vmatprep.mubr.bf16.mxu0 %v610
      %4878 = vmatmul.mubr.bf16.gmra.mrb[0].mxu0 %v512
      %v4879 = vpop.f32.mrb[0].mxu0
      %v4880 = vadd.f32 %v4711, %v4879
      %v4881 = vpop.f32.mrb[0].mxu0
      %v4882 = vpop.f32.mrb[0].mxu0
      %v4883 = vadd.f32 %v4711, %v4882
      %v4884 = vpop.f32.mrb[0].mxu0
      %4885 = vdwg.mxu0
      %v4886 = vsub.f32 0.0, %v4808
      %v4887 = vsub.f32 0.0, %v4811
      %v4888 = vsub.f32 0.0, %v4816
      %v4889 = vsub.f32 0.0, %v4819
      %v4890 = vsub.f32 0.0, %v4824
      %v4891 = vsub.f32 0.0, %v4827
      %v4892 = vsub.f32 0.0, %v4832
      %v4893 = vsub.f32 0.0, %v4835
      %v4894 = vsub.f32 0.0, %v4840
      %v4895 = vsub.f32 0.0, %v4843
      %v4896 = vsub.f32 0.0, %v4848
      %v4897 = vsub.f32 0.0, %v4851
      %v4898 = vsub.f32 0.0, %v4856
      %v4899 = vsub.f32 0.0, %v4859
      %v4900 = vsub.f32 0.0, %v4864
      %v4901 = vsub.f32 0.0, %v4867
      %v4902 = vsub.f32 0.0, %v4872
      %v4903 = vsub.f32 0.0, %v4875
      %v4904 = vsub.f32 0.0, %v4880
      %v4905 = vsub.f32 0.0, %v4883
      %v4906 = vmul.f32 %v4886, 1.442695
      %v4907 = vpow.pop %v4906
      %v4908 = vmul.f32 %v4887, 1.442695
      %v4909 = vpow.pop %v4908
      %v4910 = vmul.f32 %v4888, 1.442695
      %v4911 = vpow.pop %v4910
      %v4912 = vmul.f32 %v4889, 1.442695
      %v4913 = vpow.pop %v4912
      %v4914 = vmul.f32 %v4890, 1.442695
      %v4915 = vpow.pop %v4914
      %v4916 = vmul.f32 %v4891, 1.442695
      %v4917 = vpow.pop %v4916
      %v4918 = vmul.f32 %v4892, 1.442695
      %v4919 = vpow.pop %v4918
      %v4920 = vmul.f32 %v4893, 1.442695
      %v4921 = vpow.pop %v4920
      %v4922 = vmul.f32 %v4894, 1.442695
      %v4923 = vpow.pop %v4922
      %v4924 = vmul.f32 %v4895, 1.442695
      %v4925 = vpow.pop %v4924
      %v4926 = vmul.f32 %v4896, 1.442695
      %v4927 = vpow.pop %v4926
      %v4928 = vmul.f32 %v4897, 1.442695
      %v4929 = vpow.pop %v4928
      %v4930 = vmul.f32 %v4898, 1.442695
      %v4931 = vpow.pop %v4930
      %v4932 = vmul.f32 %v4899, 1.442695
      %v4933 = vpow.pop %v4932
      %v4934 = vmul.f32 %v4900, 1.442695
      %v4935 = vpow.pop %v4934
      %v4936 = vmul.f32 %v4901, 1.442695
      %v4937 = vpow.pop %v4936
      %v4938 = vmul.f32 %v4902, 1.442695
      %v4939 = vpow.pop %v4938
      %v4940 = vmul.f32 %v4903, 1.442695
      %v4941 = vpow.pop %v4940
      %v4942 = vmul.f32 %v4904, 1.442695
      %v4943 = vpow.pop %v4942
      %v4944 = vmul.f32 %v4905, 1.442695
      %v4945 = vpow.pop %v4944
      %v4946 = vadd.f32 %v4907, 1.0
      %v4947 = vadd.f32 %v4909, 1.0
      %v4948 = vadd.f32 %v4911, 1.0
      %v4949 = vadd.f32 %v4913, 1.0
      %v4950 = vadd.f32 %v4915, 1.0
      %v4951 = vadd.f32 %v4917, 1.0
      %v4952 = vadd.f32 %v4919, 1.0
      %v4953 = vadd.f32 %v4921, 1.0
      %v4954 = vadd.f32 %v4923, 1.0
      %v4955 = vadd.f32 %v4925, 1.0
      %v4956 = vadd.f32 %v4927, 1.0
      %v4957 = vadd.f32 %v4929, 1.0
      %v4958 = vadd.f32 %v4931, 1.0
      %v4959 = vadd.f32 %v4933, 1.0
      %v4960 = vadd.f32 %v4935, 1.0
      %v4961 = vadd.f32 %v4937, 1.0
      %v4962 = vadd.f32 %v4939, 1.0
      %v4963 = vadd.f32 %v4941, 1.0
      %v4964 = vadd.f32 %v4943, 1.0
      %v4965 = vadd.f32 %v4945, 1.0
      %v4966 = vrcp.pop %v4946
      %v4967 = vrcp.pop %v4947
      %v4968 = vrcp.pop %v4948
      %v4969 = vrcp.pop %v4949
      %v4970 = vrcp.pop %v4950
      %v4971 = vrcp.pop %v4951
      %v4972 = vrcp.pop %v4952
      %v4973 = vrcp.pop %v4953
      %v4974 = vrcp.pop %v4954
      %v4975 = vrcp.pop %v4955
      %v4976 = vrcp.pop %v4956
      %v4977 = vrcp.pop %v4957
      %v4978 = vrcp.pop %v4958
      %v4979 = vrcp.pop %v4959
      %v4980 = vrcp.pop %v4960
      %v4981 = vrcp.pop %v4961
      %v4982 = vrcp.pop %v4962
      %v4983 = vrcp.pop %v4963
      %v4984 = vrcp.pop %v4964
      %v4985 = vrcp.pop %v4965
      %v4986 = vld [vmem:[%s3947 + $0x2] sm:$0xff]
      %v4987 = vld [vmem:[%s3947 + $0xa] sm:$0xff]
      %v4988 = vld [vmem:[%s3947 + $0x1a] sm:$0xff]
      %v4989 = vld [vmem:[%s3947 + $0x22] sm:$0xff]
      %v4990 = vld [vmem:[%s3947 + $0x32] sm:$0xff]
      %v4991 = vld [vmem:[%s3947 + $0x3a] sm:$0xff]
      %v4992 = vld [vmem:[%s3947 + $0x4a] sm:$0xff]
      %v4993 = vld [vmem:[%s3947 + $0x52] sm:$0xff]
      %v4994 = vld [vmem:[%s3947 + $0x62] sm:$0xff]
      %v4995 = vld [vmem:[%s3947 + $0x6a] sm:$0xff]
      %v4996 = vld [vmem:[%s3947 + $0x7a] sm:$0xff]
      %v4997 = vld [vmem:[%s3947 + $0x82] sm:$0xff]
      %v4998 = vld [vmem:[%s3947 + $0x92] sm:$0xff]
      %v4999 = vld [vmem:[%s3947 + $0x9a] sm:$0xff]
      %v5000 = vld [vmem:[%s3947 + $0xaa] sm:$0xff]
      %v5001 = vld [vmem:[%s3947 + $0xb2] sm:$0xff]
      %v5002 = vld [vmem:[%s3947 + $0xc2] sm:$0xff]
      %v5003 = vld [vmem:[%s3947 + $0xca] sm:$0xff]
      %v5004 = vld [vmem:[%s3947 + $0xda] sm:$0xff]
      %v5005 = vld [vmem:[%s3947 + $0xe2] sm:$0xff]
      %v5006 = vmul.f32 %v4966, %v4986
      %v5007 = vmul.f32 %v4967, %v4987
      %v5008 = vmul.f32 %v4968, %v4988
      %v5009 = vmul.f32 %v4969, %v4989
      %v5010 = vmul.f32 %v4970, %v4990
      %v5011 = vmul.f32 %v4971, %v4991
      %v5012 = vmul.f32 %v4972, %v4992
      %v5013 = vmul.f32 %v4973, %v4993
      %v5014 = vmul.f32 %v4974, %v4994
      %v5015 = vmul.f32 %v4975, %v4995
      %v5016 = vmul.f32 %v4976, %v4996
      %v5017 = vmul.f32 %v4977, %v4997
      %v5018 = vmul.f32 %v4978, %v4998
      %v5019 = vmul.f32 %v4979, %v4999
      %v5020 = vmul.f32 %v4980, %v5000
      %v5021 = vmul.f32 %v4981, %v5001
      %v5022 = vmul.f32 %v4982, %v5002
      %v5023 = vmul.f32 %v4983, %v5003
      %v5024 = vmul.f32 %v4984, %v5004
      %v5025 = vmul.f32 %v4985, %v5005
      %v5026 = vpack.c.bf16 %v5007, %v5006
      %v5027 = vpack.c.bf16 %v5009, %v5008
      %v5028 = vpack.c.bf16 %v5011, %v5010
      %v5029 = vpack.c.bf16 %v5013, %v5012
      %v5030 = vpack.c.bf16 %v5015, %v5014
      %v5031 = vpack.c.bf16 %v5017, %v5016
      %v5032 = vpack.c.bf16 %v5019, %v5018
      %v5033 = vpack.c.bf16 %v5021, %v5020
      %v5034 = vpack.c.bf16 %v5023, %v5022
      %v5035 = vpack.c.bf16 %v5025, %v5024
      %s5036 = scalar_lea.vmem %s4, 16
      %v5037 = vld [vmem:[%s5036] sm:$0x3]
      %v5039 = vsel %vm883, %v5026, 0
      %v5042 = vsel %vm883, %v5027, 0
      %v5045 = vsel %vm883, %v5028, 0
      %v5048 = vsel %vm883, %v5029, 0
      %v5051 = vsel %vm883, %v5030, 0
      %v5054 = vsel %vm883, %v5031, 0
      %v5057 = vsel %vm883, %v5032, 0
      %v5060 = vsel %vm883, %v5033, 0
      %v5063 = vsel %vm883, %v5034, 0
      %v5066 = vsel %vm883, %v5035, 0
      %v5069 = vsel %vm613, %v5037, 0
      %5071 = vmatprep.subr.bf16.mxu0 0
      %5072 = vmatpush1.bf16.msra.mxu0 %v5069
      %5073 = vmatprep.subr.bf16.mxu0 0
      %5074 = vmatpush1.bf16.msra.mxu0 0
      %5075 = vmatprep.subr.bf16.mxu0 0
      %5076 = vmatpush1.bf16.msra.mxu0 0
      %5077 = vmatprep.subr.bf16.mxu0 0
      %5078 = vmatpush1.bf16.msra.mxu0 0
      %5079 = vmatprep.subr.bf16.mxu0 0
      %5080 = vmatpush1.bf16.msra.mxu0 0
      %5081 = vmatprep.subr.bf16.mxu0 0
      %5082 = vmatpush1.bf16.msra.mxu0 0
      %5083 = vmatprep.subr.bf16.mxu0 0
      %5084 = vmatpush1.bf16.msra.mxu0 0
      %5085 = vmatprep.subr.bf16.mxu0 0
      %5086 = vmatpush1.bf16.msra.mxu0 0
      %5087 = vmatprep.subr.bf16.mxu0 0
      %5088 = vmatpush1.bf16.msra.mxu0 0
      %5089 = vmatprep.subr.bf16.mxu0 0
      %5090 = vmatpush1.bf16.msra.mxu0 0
      %5091 = vmatprep.subr.bf16.mxu0 0
      %5092 = vmatpush1.bf16.msra.mxu0 0
      %5093 = vmatprep.subr.bf16.mxu0 0
      %5094 = vmatpush1.bf16.msra.mxu0 0
      %5095 = vmatprep.subr.bf16.mxu0 0
      %5096 = vmatpush1.bf16.msra.mxu0 0
      %5097 = vmatprep.subr.bf16.mxu0 0
      %5098 = vmatpush1.bf16.msra.mxu0 0
      %5099 = vmatprep.subr.bf16.mxu0 0
      %5100 = vmatpush1.bf16.msra.mxu0 0
      %5101 = vmatprep.subr.bf16.mxu0 0
      %5102 = vmatpush1.bf16.msra.mxu0 0
      %5103 = vmatprep.mubr.bf16.mxu0 0
      %5104 = vmatmul.mubr.bf16.gmra.mrb[0].mxu0 %v5039
      %v5105 = vpop.f32.mrb[0].mxu0
      %v5106 = vadd.f32 0.0, %v5105
      %v5107 = vpop.f32.mrb[0].mxu0
      %v5108 = vpop.f32.mrb[0].mxu0
      %v5109 = vadd.f32 0.0, %v5108
      %v5110 = vpop.f32.mrb[0].mxu0
      %5111 = vmatprep.mubr.bf16.mxu0 0
      %5112 = vmatmul.mubr.bf16.gmra.mrb[0].mxu0 %v5042
      %v5113 = vpop.f32.mrb[0].mxu0
      %v5114 = vadd.f32 0.0, %v5113
      %v5115 = vpop.f32.mrb[0].mxu0
      %v5116 = vpop.f32.mrb[0].mxu0
      %v5117 = vadd.f32 0.0, %v5116
      %v5118 = vpop.f32.mrb[0].mxu0
      %5119 = vmatprep.mubr.bf16.mxu0 0
      %5120 = vmatmul.mubr.bf16.gmra.mrb[0].mxu0 %v5045
      %v5121 = vpop.f32.mrb[0].mxu0
      %v5122 = vadd.f32 0.0, %v5121
      %v5123 = vpop.f32.mrb[0].mxu0
      %v5124 = vpop.f32.mrb[0].mxu0
      %v5125 = vadd.f32 0.0, %v5124
      %v5126 = vpop.f32.mrb[0].mxu0
      %5127 = vmatprep.mubr.bf16.mxu0 0
      %5128 = vmatmul.mubr.bf16.gmra.mrb[0].mxu0 %v5048
      %v5129 = vpop.f32.mrb[0].mxu0
      %v5130 = vadd.f32 0.0, %v5129
      %v5131 = vpop.f32.mrb[0].mxu0
      %v5132 = vpop.f32.mrb[0].mxu0
      %v5133 = vadd.f32 0.0, %v5132
      %v5134 = vpop.f32.mrb[0].mxu0
      %5135 = vmatprep.mubr.bf16.mxu0 0
      %5136 = vmatmul.mubr.bf16.gmra.mrb[0].mxu0 %v5051
      %v5137 = vpop.f32.mrb[0].mxu0
      %v5138 = vadd.f32 0.0, %v5137
      %v5139 = vpop.f32.mrb[0].mxu0
      %v5140 = vpop.f32.mrb[0].mxu0
      %v5141 = vadd.f32 0.0, %v5140
      %v5142 = vpop.f32.mrb[0].mxu0
      %5143 = vmatprep.mubr.bf16.mxu0 0
      %5144 = vmatmul.mubr.bf16.gmra.mrb[0].mxu0 %v5054
      %v5145 = vpop.f32.mrb[0].mxu0
      %v5146 = vadd.f32 0.0, %v5145
      %v5147 = vpop.f32.mrb[0].mxu0
      %v5148 = vpop.f32.mrb[0].mxu0
      %v5149 = vadd.f32 0.0, %v5148
      %v5150 = vpop.f32.mrb[0].mxu0
      %5151 = vmatprep.mubr.bf16.mxu0 0
      %5152 = vmatmul.mubr.bf16.gmra.mrb[0].mxu0 %v5057
      %v5153 = vpop.f32.mrb[0].mxu0
      %v5154 = vadd.f32 0.0, %v5153
      %v5155 = vpop.f32.mrb[0].mxu0
      %v5156 = vpop.f32.mrb[0].mxu0
      %v5157 = vadd.f32 0.0, %v5156
      %v5158 = vpop.f32.mrb[0].mxu0
      %5159 = vmatprep.mubr.bf16.mxu0 0
      %5160 = vmatmul.mubr.bf16.gmra.mrb[0].mxu0 %v5060
      %v5161 = vpop.f32.mrb[0].mxu0
      %v5162 = vadd.f32 0.0, %v5161
      %v5163 = vpop.f32.mrb[0].mxu0
      %v5164 = vpop.f32.mrb[0].mxu0
      %v5165 = vadd.f32 0.0, %v5164
      %v5166 = vpop.f32.mrb[0].mxu0
      %5167 = vmatprep.mubr.bf16.mxu0 0
      %5168 = vmatmul.mubr.bf16.gmra.mrb[0].mxu0 %v5063
      %v5169 = vpop.f32.mrb[0].mxu0
      %v5170 = vadd.f32 0.0, %v5169
      %v5171 = vpop.f32.mrb[0].mxu0
      %v5172 = vpop.f32.mrb[0].mxu0
      %v5173 = vadd.f32 0.0, %v5172
      %v5174 = vpop.f32.mrb[0].mxu0
      %5175 = vmatprep.mubr.bf16.mxu0 0
      %5176 = vmatmul.mubr.bf16.gmra.mrb[0].mxu0 %v5066
      %v5177 = vpop.f32.mrb[0].mxu0
      %v5178 = vadd.f32 0.0, %v5177
      %v5179 = vpop.f32.mrb[0].mxu0
      %v5180 = vpop.f32.mrb[0].mxu0
      %v5181 = vadd.f32 0.0, %v5180
      %v5182 = vpop.f32.mrb[0].mxu0
      %5183 = vdwg.mxu0
      %v5184 = vadd.f32 %v4665, %v5106
      %v5185 = vadd.f32 %v4666, %v5109
      %v5186 = vadd.f32 %v4667, %v5114
      %v5187 = vadd.f32 %v4668, %v5117
      %v5188 = vadd.f32 %v4669, %v5122
      %v5189 = vadd.f32 %v4670, %v5125
      %v5190 = vadd.f32 %v4671, %v5130
      %v5191 = vadd.f32 %v4672, %v5133
      %v5192 = vadd.f32 %v4673, %v5138
      %v5193 = vadd.f32 %v4674, %v5141
      %v5194 = vadd.f32 %v4675, %v5146
      %v5195 = vadd.f32 %v4676, %v5149
      %v5196 = vadd.f32 %v4677, %v5154
      %v5197 = vadd.f32 %v4678, %v5157
      %v5198 = vadd.f32 %v4679, %v5162
      %v5199 = vadd.f32 %v4680, %v5165
      %v5200 = vadd.f32 %v4681, %v5170
      %v5201 = vadd.f32 %v4682, %v5173
      %v5202 = vadd.f32 %v4683, %v5178
      %v5203 = vadd.f32 %v4684, %v5181
      %v5204 = vmax.f32 %v5184, 0.0
      %v5205 = vmax.f32 %v5185, 0.0
      %v5206 = vmax.f32 %v5186, 0.0
      %v5207 = vmax.f32 %v5187, 0.0
      %v5208 = vmax.f32 %v5188, 0.0
      %v5209 = vmax.f32 %v5189, 0.0
      %v5210 = vmax.f32 %v5190, 0.0
      %v5211 = vmax.f32 %v5191, 0.0
      %v5212 = vmax.f32 %v5192, 0.0
      %v5213 = vmax.f32 %v5193, 0.0
      %v5214 = vmax.f32 %v5194, 0.0
      %v5215 = vmax.f32 %v5195, 0.0
      %v5216 = vmax.f32 %v5196, 0.0
      %v5217 = vmax.f32 %v5197, 0.0
      %v5218 = vmax.f32 %v5198, 0.0
      %v5219 = vmax.f32 %v5199, 0.0
      %v5220 = vmax.f32 %v5200, 0.0
      %v5221 = vmax.f32 %v5201, 0.0
      %v5222 = vmax.f32 %v5202, 0.0
      %v5223 = vmax.f32 %v5203, 0.0
      %v5224 = vpack.c.bf16 %v5205, %v5204
      %v5225 = vpack.c.bf16 %v5207, %v5206
      %v5226 = vpack.c.bf16 %v5209, %v5208
      %v5227 = vpack.c.bf16 %v5211, %v5210
      %v5228 = vpack.c.bf16 %v5213, %v5212
      %v5229 = vpack.c.bf16 %v5215, %v5214
      %v5230 = vpack.c.bf16 %v5217, %v5216
      %v5231 = vpack.c.bf16 %v5219, %v5218
      %v5232 = vpack.c.bf16 %v5221, %v5220
      %v5233 = vpack.c.bf16 %v5223, %v5222
      %v5244 = vunpack.c.l.b16 %v5224
      %v5245 = vunpack.c.h.b16 %v5224
      %v5246 = vunpack.c.l.b16 %v5225
      %v5247 = vunpack.c.h.b16 %v5225
      %v5248 = vunpack.c.l.b16 %v5226
      %v5249 = vunpack.c.h.b16 %v5226
      %v5250 = vunpack.c.l.b16 %v5227
      %v5251 = vunpack.c.h.b16 %v5227
      %v5252 = vunpack.c.l.b16 %v5228
      %v5253 = vunpack.c.h.b16 %v5228
      %v5254 = vunpack.c.l.b16 %v5229
      %v5255 = vunpack.c.h.b16 %v5229
      %v5256 = vunpack.c.l.b16 %v5230
      %v5257 = vunpack.c.h.b16 %v5230
      %v5258 = vunpack.c.l.b16 %v5231
      %v5259 = vunpack.c.h.b16 %v5231
      %v5260 = vunpack.c.l.b16 %v5232
      %v5261 = vunpack.c.h.b16 %v5232
      %v5262 = vunpack.c.l.b16 %v5233
      %v5263 = vunpack.c.h.b16 %v5233
      %v5264 = vpack.c.b16 %v5244, %v5244
      %v5265 = vpack.c.b16 %v5245, %v5245
      %v5266 = vpack.c.b16 %v5246, %v5246
      %v5267 = vpack.c.b16 %v5247, %v5247
      %v5268 = vpack.c.b16 %v5248, %v5248
      %v5269 = vpack.c.b16 %v5249, %v5249
      %v5270 = vpack.c.b16 %v5250, %v5250
      %v5271 = vpack.c.b16 %v5251, %v5251
      %v5272 = vpack.c.b16 %v5252, %v5252
      %v5273 = vpack.c.b16 %v5253, %v5253
      %v5274 = vpack.c.b16 %v5254, %v5254
      %v5275 = vpack.c.b16 %v5255, %v5255
      %v5276 = vpack.c.b16 %v5256, %v5256
      %v5277 = vpack.c.b16 %v5257, %v5257
      %v5278 = vpack.c.b16 %v5258, %v5258
      %v5279 = vpack.c.b16 %v5259, %v5259
      %v5280 = vpack.c.b16 %v5260, %v5260
      %v5281 = vpack.c.b16 %v5261, %v5261
      %v5282 = vpack.c.b16 %v5262, %v5262
      %v5283 = vpack.c.b16 %v5263, %v5263
      %vm5284 = vsmask.f32 256
      %vm5285 = vsmask.f32 4368
      %vm5286 = vmor %vm5284, %vm5285
      %v5288 = vshrl.u32 %v5264, 16
      %v5290 = vrot.slane %v5288, 7
      %v5291 = vshll.u32 %v5264, 16
      %v5293 = vor.u32 %v5290, %v5291
      %v5294 = vrot.slane %v5290, 4
      %v5296 = vshrl.u32 %v5265, 16
      %v5298 = vrot.slane %v5296, 7
      %v5299 = vshll.u32 %v5265, 16
      %v5301 = vor.u32 %v5298, %v5299
      %v5302 = vsel %vm5286, %v5294, %v5301
      %v5303 = vrot.slane %v5298, 4
      %v5305 = vshrl.u32 %v5266, 16
      %v5307 = vrot.slane %v5305, 7
      %v5308 = vshll.u32 %v5266, 16
      %v5310 = vor.u32 %v5307, %v5308
      %v5311 = vrot.slane %v5307, 4
      %v5313 = vshrl.u32 %v5267, 16
      %v5315 = vrot.slane %v5313, 7
      %v5316 = vshll.u32 %v5267, 16
      %v5318 = vor.u32 %v5315, %v5316
      %v5319 = vsel %vm5286, %v5311, %v5318
      %v5320 = vrot.slane %v5315, 4
      %v5322 = vshrl.u32 %v5268, 16
      %v5324 = vrot.slane %v5322, 7
      %v5325 = vshll.u32 %v5268, 16
      %v5327 = vor.u32 %v5324, %v5325
      %v5328 = vrot.slane %v5324, 4
      %v5330 = vshrl.u32 %v5269, 16
      %v5332 = vrot.slane %v5330, 7
      %v5333 = vshll.u32 %v5269, 16
      %v5335 = vor.u32 %v5332, %v5333
      %v5336 = vsel %vm5286, %v5328, %v5335
      %v5337 = vrot.slane %v5332, 4
      %v5339 = vshrl.u32 %v5270, 16
      %v5341 = vrot.slane %v5339, 7
      %v5342 = vshll.u32 %v5270, 16
      %v5344 = vor.u32 %v5341, %v5342
      %v5345 = vrot.slane %v5341, 4
      %v5347 = vshrl.u32 %v5271, 16
      %v5349 = vrot.slane %v5347, 7
      %v5350 = vshll.u32 %v5271, 16
      %v5352 = vor.u32 %v5349, %v5350
      %v5353 = vsel %vm5286, %v5345, %v5352
      %v5354 = vrot.slane %v5349, 4
      %v5356 = vshrl.u32 %v5272, 16
      %v5358 = vrot.slane %v5356, 7
      %v5359 = vshll.u32 %v5272, 16
      %v5361 = vor.u32 %v5358, %v5359
      %v5362 = vrot.slane %v5358, 4
      %v5364 = vshrl.u32 %v5273, 16
      %v5366 = vrot.slane %v5364, 7
      %v5367 = vshll.u32 %v5273, 16
      %v5369 = vor.u32 %v5366, %v5367
      %v5370 = vsel %vm5286, %v5362, %v5369
      %v5371 = vrot.slane %v5366, 4
      %v5373 = vshrl.u32 %v5274, 16
      %v5375 = vrot.slane %v5373, 7
      %v5376 = vshll.u32 %v5274, 16
      %v5378 = vor.u32 %v5375, %v5376
      %v5379 = vrot.slane %v5375, 4
      %v5381 = vshrl.u32 %v5275, 16
      %v5383 = vrot.slane %v5381, 7
      %v5384 = vshll.u32 %v5275, 16
      %v5386 = vor.u32 %v5383, %v5384
      %v5387 = vsel %vm5286, %v5379, %v5386
      %v5388 = vrot.slane %v5383, 4
      %v5390 = vshrl.u32 %v5276, 16
      %v5392 = vrot.slane %v5390, 7
      %v5393 = vshll.u32 %v5276, 16
      %v5395 = vor.u32 %v5392, %v5393
      %v5396 = vrot.slane %v5392, 4
      %v5398 = vshrl.u32 %v5277, 16
      %v5400 = vrot.slane %v5398, 7
      %v5401 = vshll.u32 %v5277, 16
      %v5403 = vor.u32 %v5400, %v5401
      %v5404 = vsel %vm5286, %v5396, %v5403
      %v5405 = vrot.slane %v5400, 4
      %v5407 = vshrl.u32 %v5278, 16
      %v5409 = vrot.slane %v5407, 7
      %v5410 = vshll.u32 %v5278, 16
      %v5412 = vor.u32 %v5409, %v5410
      %v5413 = vrot.slane %v5409, 4
      %v5415 = vshrl.u32 %v5279, 16
      %v5417 = vrot.slane %v5415, 7
      %v5418 = vshll.u32 %v5279, 16
      %v5420 = vor.u32 %v5417, %v5418
      %v5421 = vsel %vm5286, %v5413, %v5420
      %v5422 = vrot.slane %v5417, 4
      %v5424 = vshrl.u32 %v5280, 16
      %v5426 = vrot.slane %v5424, 7
      %v5427 = vshll.u32 %v5280, 16
      %v5429 = vor.u32 %v5426, %v5427
      %v5430 = vrot.slane %v5426, 4
      %v5432 = vshrl.u32 %v5281, 16
      %v5434 = vrot.slane %v5432, 7
      %v5435 = vshll.u32 %v5281, 16
      %v5437 = vor.u32 %v5434, %v5435
      %v5438 = vsel %vm5286, %v5430, %v5437
      %v5439 = vrot.slane %v5434, 4
      %v5441 = vshrl.u32 %v5282, 16
      %v5443 = vrot.slane %v5441, 7
      %v5444 = vshll.u32 %v5282, 16
      %v5446 = vor.u32 %v5443, %v5444
      %v5447 = vrot.slane %v5443, 4
      %v5449 = vshrl.u32 %v5283, 16
      %v5451 = vrot.slane %v5449, 7
      %v5452 = vshll.u32 %v5283, 16
      %v5454 = vor.u32 %v5451, %v5452
      %v5455 = vsel %vm5286, %v5447, %v5454
      %v5456 = vrot.slane %v5451, 4
      %vm5487 = vcmask 27648
      %vm5488 = vsmask.f32 7938
      %vm5489 = vmand %vm5487, %vm5488
      %v5490 = vld [vmem:[#allocation2] sm:$0xf]
      %v5491 = vsel %vm5489, %v5293, %v5490
      %5492 = vst [vmem:[#allocation2] sm:$0xf] %v5491
      %vm5493 = vcmask 27648
      %5494 = vst.msk [vmem:[#allocation2 + $0x4] sm:$0xf] %vm5493, %v5302
      %vm5495 = vcmask 24576
      %vm5496 = vmand %vm5495, %vm5284
      %v5497 = vld [vmem:[#allocation2 + $0x8] sm:$0x1]
      %v5498 = vsel %vm5496, %v5303, %v5497
      %5499 = vst [vmem:[#allocation2 + $0x8] sm:$0x1] %v5498
      %v5500 = vld [vmem:[#allocation2 + $0xc] sm:$0xf]
      %v5501 = vsel %vm5489, %v5310, %v5500
      %5502 = vst [vmem:[#allocation2 + $0xc] sm:$0xf] %v5501
      %5503 = vst.msk [vmem:[#allocation2 + $0x10] sm:$0xf] %vm5493, %v5319
      %v5504 = vld [vmem:[#allocation2 + $0x14] sm:$0x1]
      %v5505 = vsel %vm5496, %v5320, %v5504
      %5506 = vst [vmem:[#allocation2 + $0x14] sm:$0x1] %v5505
      %v5507 = vld [vmem:[#allocation2 + $0x18] sm:$0xf]
      %v5508 = vsel %vm5489, %v5327, %v5507
      %5509 = vst [vmem:[#allocation2 + $0x18] sm:$0xf] %v5508
      %5510 = vst.msk [vmem:[#allocation2 + $0x1c] sm:$0xf] %vm5493, %v5336
      %v5511 = vld [vmem:[#allocation2 + $0x20] sm:$0x1]
      %v5512 = vsel %vm5496, %v5337, %v5511
      %5513 = vst [vmem:[#allocation2 + $0x20] sm:$0x1] %v5512
      %v5514 = vld [vmem:[#allocation2 + $0x24] sm:$0xf]
      %v5515 = vsel %vm5489, %v5344, %v5514
      %5516 = vst [vmem:[#allocation2 + $0x24] sm:$0xf] %v5515
      %5517 = vst.msk [vmem:[#allocation2 + $0x28] sm:$0xf] %vm5493, %v5353
      %v5518 = vld [vmem:[#allocation2 + $0x2c] sm:$0x1]
      %v5519 = vsel %vm5496, %v5354, %v5518
      %5520 = vst [vmem:[#allocation2 + $0x2c] sm:$0x1] %v5519
      %v5521 = vld [vmem:[#allocation2 + $0x30] sm:$0xf]
      %v5522 = vsel %vm5489, %v5361, %v5521
      %5523 = vst [vmem:[#allocation2 + $0x30] sm:$0xf] %v5522
      %5524 = vst.msk [vmem:[#allocation2 + $0x34] sm:$0xf] %vm5493, %v5370
      %v5525 = vld [vmem:[#allocation2 + $0x38] sm:$0x1]
      %v5526 = vsel %vm5496, %v5371, %v5525
      %5527 = vst [vmem:[#allocation2 + $0x38] sm:$0x1] %v5526
      %v5528 = vld [vmem:[#allocation2 + $0x3c] sm:$0xf]
      %v5529 = vsel %vm5489, %v5378, %v5528
      %5530 = vst [vmem:[#allocation2 + $0x3c] sm:$0xf] %v5529
      %5531 = vst.msk [vmem:[#allocation2 + $0x40] sm:$0xf] %vm5493, %v5387
      %v5532 = vld [vmem:[#allocation2 + $0x44] sm:$0x1]
      %v5533 = vsel %vm5496, %v5388, %v5532
      %5534 = vst [vmem:[#allocation2 + $0x44] sm:$0x1] %v5533
      %v5535 = vld [vmem:[#allocation2 + $0x48] sm:$0xf]
      %v5536 = vsel %vm5489, %v5395, %v5535
      %5537 = vst [vmem:[#allocation2 + $0x48] sm:$0xf] %v5536
      %5538 = vst.msk [vmem:[#allocation2 + $0x4c] sm:$0xf] %vm5493, %v5404
      %v5539 = vld [vmem:[#allocation2 + $0x50] sm:$0x1]
      %v5540 = vsel %vm5496, %v5405, %v5539
      %5541 = vst [vmem:[#allocation2 + $0x50] sm:$0x1] %v5540
      %v5542 = vld [vmem:[#allocation2 + $0x54] sm:$0xf]
      %v5543 = vsel %vm5489, %v5412, %v5542
      %5544 = vst [vmem:[#allocation2 + $0x54] sm:$0xf] %v5543
      %5545 = vst.msk [vmem:[#allocation2 + $0x58] sm:$0xf] %vm5493, %v5421
      %v5546 = vld [vmem:[#allocation2 + $0x5c] sm:$0x1]
      %v5547 = vsel %vm5496, %v5422, %v5546
      %5548 = vst [vmem:[#allocation2 + $0x5c] sm:$0x1] %v5547
      %v5549 = vld [vmem:[#allocation2 + $0x60] sm:$0xf]
      %v5550 = vsel %vm5489, %v5429, %v5549
      %5551 = vst [vmem:[#allocation2 + $0x60] sm:$0xf] %v5550
      %5552 = vst.msk [vmem:[#allocation2 + $0x64] sm:$0xf] %vm5493, %v5438
      %v5553 = vld [vmem:[#allocation2 + $0x68] sm:$0x1]
      %v5554 = vsel %vm5496, %v5439, %v5553
      %5555 = vst [vmem:[#allocation2 + $0x68] sm:$0x1] %v5554
      %v5556 = vld [vmem:[#allocation2 + $0x6c] sm:$0xf]
      %v5557 = vsel %vm5489, %v5446, %v5556
      %5558 = vst [vmem:[#allocation2 + $0x6c] sm:$0xf] %v5557
      %5559 = vst.msk [vmem:[#allocation2 + $0x70] sm:$0xf] %vm5493, %v5455
      %v5560 = vld [vmem:[#allocation2 + $0x74] sm:$0x1]
      %v5561 = vsel %vm5496, %v5456, %v5560
      %5562 = vst [vmem:[#allocation2 + $0x74] sm:$0x1] %v5561
      %v5563 = vld [vmem:[#allocation2] sm:$0x1]
      %v5564 = vsel %vm5496, 0, %v5563
      %5565 = vst [vmem:[#allocation2] sm:$0x1] %v5564
      %v5566 = vld [vmem:[#allocation2 + $0xc] sm:$0x1]
      %v5567 = vsel %vm5496, 0, %v5566
      %5568 = vst [vmem:[#allocation2 + $0xc] sm:$0x1] %v5567
      %v5569 = vld [vmem:[#allocation2 + $0x18] sm:$0x1]
      %v5570 = vsel %vm5496, 0, %v5569
      %5571 = vst [vmem:[#allocation2 + $0x18] sm:$0x1] %v5570
      %v5572 = vld [vmem:[#allocation2 + $0x24] sm:$0x1]
      %v5573 = vsel %vm5496, 0, %v5572
      %5574 = vst [vmem:[#allocation2 + $0x24] sm:$0x1] %v5573
      %v5575 = vld [vmem:[#allocation2 + $0x30] sm:$0x1]
      %v5576 = vsel %vm5496, 0, %v5575
      %5577 = vst [vmem:[#allocation2 + $0x30] sm:$0x1] %v5576
      %v5578 = vld [vmem:[#allocation2 + $0x3c] sm:$0x1]
      %v5579 = vsel %vm5496, 0, %v5578
      %5580 = vst [vmem:[#allocation2 + $0x3c] sm:$0x1] %v5579
      %v5581 = vld [vmem:[#allocation2 + $0x48] sm:$0x1]
      %v5582 = vsel %vm5496, 0, %v5581
      %5583 = vst [vmem:[#allocation2 + $0x48] sm:$0x1] %v5582
      %v5584 = vld [vmem:[#allocation2 + $0x54] sm:$0x1]
      %v5585 = vsel %vm5496, 0, %v5584
      %5586 = vst [vmem:[#allocation2 + $0x54] sm:$0x1] %v5585
      %v5587 = vld [vmem:[#allocation2 + $0x60] sm:$0x1]
      %v5588 = vsel %vm5496, 0, %v5587
      %5589 = vst [vmem:[#allocation2 + $0x60] sm:$0x1] %v5588
      %v5590 = vld [vmem:[#allocation2 + $0x6c] sm:$0x1]
      %v5591 = vsel %vm5496, 0, %v5590
      %5592 = vst [vmem:[#allocation2 + $0x6c] sm:$0x1] %v5591
      %vm5593 = vmand %vm5495, %vm5488
      %v5594 = vld [vmem:[#allocation2 + $0x8] sm:$0x1]
      %v5595 = vsel %vm5593, 0, %v5594
      %5596 = vst [vmem:[#allocation2 + $0x8] sm:$0x1] %v5595
      %v5597 = vld [vmem:[#allocation2 + $0x14] sm:$0x1]
      %v5598 = vsel %vm5593, 0, %v5597
      %5599 = vst [vmem:[#allocation2 + $0x14] sm:$0x1] %v5598
      %v5600 = vld [vmem:[#allocation2 + $0x20] sm:$0x1]
      %v5601 = vsel %vm5593, 0, %v5600
      %5602 = vst [vmem:[#allocation2 + $0x20] sm:$0x1] %v5601
      %v5603 = vld [vmem:[#allocation2 + $0x2c] sm:$0x1]
      %v5604 = vsel %vm5593, 0, %v5603
      %5605 = vst [vmem:[#allocation2 + $0x2c] sm:$0x1] %v5604
      %v5606 = vld [vmem:[#allocation2 + $0x38] sm:$0x1]
      %v5607 = vsel %vm5593, 0, %v5606
      %5608 = vst [vmem:[#allocation2 + $0x38] sm:$0x1] %v5607
      %v5609 = vld [vmem:[#allocation2 + $0x44] sm:$0x1]
      %v5610 = vsel %vm5593, 0, %v5609
      %5611 = vst [vmem:[#allocation2 + $0x44] sm:$0x1] %v5610
      %v5612 = vld [vmem:[#allocation2 + $0x50] sm:$0x1]
      %v5613 = vsel %vm5593, 0, %v5612
      %5614 = vst [vmem:[#allocation2 + $0x50] sm:$0x1] %v5613
      %v5615 = vld [vmem:[#allocation2 + $0x5c] sm:$0x1]
      %v5616 = vsel %vm5593, 0, %v5615
      %5617 = vst [vmem:[#allocation2 + $0x5c] sm:$0x1] %v5616
      %v5618 = vld [vmem:[#allocation2 + $0x68] sm:$0x1]
      %v5619 = vsel %vm5593, 0, %v5618
      %5620 = vst [vmem:[#allocation2 + $0x68] sm:$0x1] %v5619
      %v5621 = vld [vmem:[#allocation2 + $0x74] sm:$0x1]
      %v5622 = vsel %vm5593, 0, %v5621
      %5623 = vst [vmem:[#allocation2 + $0x74] sm:$0x1] %v5622
      %p5624 = scmp.eq.s32.totalorder %s24, 0
      // Predicated region
      $region53: #{tpu_custom_call.1} parent=51 // pred_check
        %p5625 = pneg %p5624
      $region54: #{tpu_custom_call.1} parent=51 // pred_check_branch
        %5627 = sbr.rel (%p5625) target = $region56
      $region55: #{tpu_custom_call.1} parent=51 // pred_region
        %5628 = vst.msk [vmem:[#allocation2] sm:$0xf] %vm5493, 0
        %5629 = vst.msk [vmem:[#allocation2 + $0x4] sm:$0xf] %vm5493, 0
        %vm5630 = vcmask 24576
        %5631 = vst.msk [vmem:[#allocation2 + $0x8] sm:$0x1] %vm5630, 0
      $region56: #{tpu_custom_call.1} parent=51 // pred_fallthru
        _
      %p5632 = scmp.eq.s32.totalorder %s24, 1
      // Predicated region
      $region57: #{tpu_custom_call.1} parent=51 // pred_check
        %p5633 = pneg %p5632
      $region58: #{tpu_custom_call.1} parent=51 // pred_check_branch
        %5635 = sbr.rel (%p5633) target = $region60
      $region59: #{tpu_custom_call.1} parent=51 // pred_region
        %s5636 = scalar_lea.vmem [#allocation2], 108
        %5637 = vst.msk [vmem:[%s5636] sm:$0xf] %vm5493, 0
        %5638 = vst.msk [vmem:[%s5636 + $0x4] sm:$0xf] %vm5493, 0
        %vm5639 = vcmask 24576
        %5640 = vst.msk [vmem:[%s5636 + $0x8] sm:$0x1] %vm5639, 0
      $region60: #{tpu_custom_call.1} parent=51 // pred_fallthru
        _
      %v5641 = vld [vmem:[%s7] sm:$0x1]
      %v5643 = vlaneseq
      %v5644 = vshrl.u32 %v5643, 7
      %v5645 = vsub.s32 0, %v5644
      %v5646 = vrot.slane %v5641, %v5645
      %v5648 = vadd.f32 %v5646, 0.0
      %v5649 = vld [vmem:[#allocation2] sm:$0xf]
      %v5650 = vld [vmem:[#allocation2 + $0x4] sm:$0xf]
      %v5651 = vld [vmem:[#allocation2 + $0xc] sm:$0xf]
      %v5652 = vld [vmem:[#allocation2 + $0x10] sm:$0xf]
      %v5653 = vld [vmem:[#allocation2 + $0x18] sm:$0xf]
      %v5654 = vld [vmem:[#allocation2 + $0x1c] sm:$0xf]
      %v5655 = vld [vmem:[#allocation2 + $0x24] sm:$0xf]
      %v5656 = vld [vmem:[#allocation2 + $0x28] sm:$0xf]
      %v5657 = vld [vmem:[#allocation2 + $0x30] sm:$0xf]
      %v5658 = vld [vmem:[#allocation2 + $0x34] sm:$0xf]
      %v5659 = vld [vmem:[#allocation2 + $0x3c] sm:$0xf]
      %v5660 = vld [vmem:[#allocation2 + $0x40] sm:$0xf]
      %v5661 = vld [vmem:[#allocation2 + $0x48] sm:$0xf]
      %v5662 = vld [vmem:[#allocation2 + $0x4c] sm:$0xf]
      %v5663 = vld [vmem:[#allocation2 + $0x54] sm:$0xf]
      %v5664 = vld [vmem:[#allocation2 + $0x58] sm:$0xf]
      %v5665 = vld [vmem:[%s6] sm:$0x3]
      %v5682 = vunpack.c.l.b16 %v5649
      %v5683 = vunpack.c.l.b16 %v5650
      %v5684 = vunpack.c.l.b16 %v5651
      %v5685 = vunpack.c.l.b16 %v5652
      %v5686 = vunpack.c.l.b16 %v5653
      %v5687 = vunpack.c.l.b16 %v5654
      %v5688 = vunpack.c.l.b16 %v5655
      %v5689 = vunpack.c.l.b16 %v5656
      %v5690 = vunpack.c.l.b16 %v5657
      %v5691 = vunpack.c.l.b16 %v5658
      %v5692 = vunpack.c.l.b16 %v5659
      %v5693 = vunpack.c.l.b16 %v5660
      %v5694 = vunpack.c.l.b16 %v5661
      %v5695 = vunpack.c.l.b16 %v5662
      %v5696 = vunpack.c.l.b16 %v5663
      %v5697 = vunpack.c.l.b16 %v5664
      %v5698 = vpack.c.b16 %v5683, %v5682
      %v5699 = vpack.c.b16 %v5685, %v5684
      %v5700 = vpack.c.b16 %v5687, %v5686
      %v5701 = vpack.c.b16 %v5689, %v5688
      %v5702 = vpack.c.b16 %v5691, %v5690
      %v5703 = vpack.c.b16 %v5693, %v5692
      %v5704 = vpack.c.b16 %v5695, %v5694
      %v5705 = vpack.c.b16 %v5697, %v5696
      %v5707 = vsel %vm883, %v5698, 0
      %v5710 = vsel %vm883, %v5699, 0
      %v5713 = vsel %vm883, %v5700, 0
      %v5716 = vsel %vm883, %v5701, 0
      %v5719 = vsel %vm883, %v5702, 0
      %v5722 = vsel %vm883, %v5703, 0
      %v5725 = vsel %vm883, %v5704, 0
      %v5728 = vsel %vm883, %v5705, 0
      %v5731 = vsel %vm613, %v5665, 0
      %5733 = vmatprep.subr.bf16.mxu0 0
      %5734 = vmatpush1.bf16.msra.mxu0 %v5731
      %5735 = vmatprep.subr.bf16.mxu0 0
      %5736 = vmatpush1.bf16.msra.mxu0 0
      %5737 = vmatprep.subr.bf16.mxu0 0
      %5738 = vmatpush1.bf16.msra.mxu0 0
      %5739 = vmatprep.subr.bf16.mxu0 0
      %5740 = vmatpush1.bf16.msra.mxu0 0
      %5741 = vmatprep.subr.bf16.mxu0 0
      %5742 = vmatpush1.bf16.msra.mxu0 0
      %5743 = vmatprep.subr.bf16.mxu0 0
      %5744 = vmatpush1.bf16.msra.mxu0 0
      %5745 = vmatprep.subr.bf16.mxu0 0
      %5746 = vmatpush1.bf16.msra.mxu0 0
      %5747 = vmatprep.subr.bf16.mxu0 0
      %5748 = vmatpush1.bf16.msra.mxu0 0
      %5749 = vmatprep.subr.bf16.mxu0 0
      %5750 = vmatpush1.bf16.msra.mxu0 0
      %5751 = vmatprep.subr.bf16.mxu0 0
      %5752 = vmatpush1.bf16.msra.mxu0 0
      %5753 = vmatprep.subr.bf16.mxu0 0
      %5754 = vmatpush1.bf16.msra.mxu0 0
      %5755 = vmatprep.subr.bf16.mxu0 0
      %5756 = vmatpush1.bf16.msra.mxu0 0
      %5757 = vmatprep.subr.bf16.mxu0 0
      %5758 = vmatpush1.bf16.msra.mxu0 0
      %5759 = vmatprep.subr.bf16.mxu0 0
      %5760 = vmatpush1.bf16.msra.mxu0 0
      %5761 = vmatprep.subr.bf16.mxu0 0
      %5762 = vmatpush1.bf16.msra.mxu0 0
      %5763 = vmatprep.subr.bf16.mxu0 0
      %5764 = vmatpush1.bf16.msra.mxu0 0
      %5765 = vmatprep.mubr.bf16.mxu0 0
      %5766 = vmatmul.mubr.bf16.gmra.mrb[0].mxu0 %v5707
      %v5767 = vpop.f32.mrb[0].mxu0
      %v5768 = vadd.f32 0.0, %v5767
      %v5769 = vpop.f32.mrb[0].mxu0
      %v5770 = vpop.f32.mrb[0].mxu0
      %v5771 = vadd.f32 0.0, %v5770
      %v5772 = vpop.f32.mrb[0].mxu0
      %5773 = vmatprep.mubr.bf16.mxu0 0
      %5774 = vmatmul.mubr.bf16.gmra.mrb[0].mxu0 %v5710
      %v5775 = vpop.f32.mrb[0].mxu0
      %v5776 = vadd.f32 0.0, %v5775
      %v5777 = vpop.f32.mrb[0].mxu0
      %v5778 = vpop.f32.mrb[0].mxu0
      %v5779 = vadd.f32 0.0, %v5778
      %v5780 = vpop.f32.mrb[0].mxu0
      %5781 = vmatprep.mubr.bf16.mxu0 0
      %5782 = vmatmul.mubr.bf16.gmra.mrb[0].mxu0 %v5713
      %v5783 = vpop.f32.mrb[0].mxu0
      %v5784 = vadd.f32 0.0, %v5783
      %v5785 = vpop.f32.mrb[0].mxu0
      %v5786 = vpop.f32.mrb[0].mxu0
      %v5787 = vadd.f32 0.0, %v5786
      %v5788 = vpop.f32.mrb[0].mxu0
      %5789 = vmatprep.mubr.bf16.mxu0 0
      %5790 = vmatmul.mubr.bf16.gmra.mrb[0].mxu0 %v5716
      %v5791 = vpop.f32.mrb[0].mxu0
      %v5792 = vadd.f32 0.0, %v5791
      %v5793 = vpop.f32.mrb[0].mxu0
      %v5794 = vpop.f32.mrb[0].mxu0
      %v5795 = vadd.f32 0.0, %v5794
      %v5796 = vpop.f32.mrb[0].mxu0
      %5797 = vmatprep.mubr.bf16.mxu0 0
      %5798 = vmatmul.mubr.bf16.gmra.mrb[0].mxu0 %v5719
      %v5799 = vpop.f32.mrb[0].mxu0
      %v5800 = vadd.f32 0.0, %v5799
      %v5801 = vpop.f32.mrb[0].mxu0
      %v5802 = vpop.f32.mrb[0].mxu0
      %v5803 = vadd.f32 0.0, %v5802
      %v5804 = vpop.f32.mrb[0].mxu0
      %5805 = vmatprep.mubr.bf16.mxu0 0
      %5806 = vmatmul.mubr.bf16.gmra.mrb[0].mxu0 %v5722
      %v5807 = vpop.f32.mrb[0].mxu0
      %v5808 = vadd.f32 0.0, %v5807
      %v5809 = vpop.f32.mrb[0].mxu0
      %v5810 = vpop.f32.mrb[0].mxu0
      %v5811 = vadd.f32 0.0, %v5810
      %v5812 = vpop.f32.mrb[0].mxu0
      %5813 = vmatprep.mubr.bf16.mxu0 0
      %5814 = vmatmul.mubr.bf16.gmra.mrb[0].mxu0 %v5725
      %v5815 = vpop.f32.mrb[0].mxu0
      %v5816 = vadd.f32 0.0, %v5815
      %v5817 = vpop.f32.mrb[0].mxu0
      %v5818 = vpop.f32.mrb[0].mxu0
      %v5819 = vadd.f32 0.0, %v5818
      %v5820 = vpop.f32.mrb[0].mxu0
      %5821 = vmatprep.mubr.bf16.mxu0 0
      %5822 = vmatmul.mubr.bf16.gmra.mrb[0].mxu0 %v5728
      %v5823 = vpop.f32.mrb[0].mxu0
      %v5824 = vadd.f32 0.0, %v5823
      %v5825 = vpop.f32.mrb[0].mxu0
      %v5826 = vpop.f32.mrb[0].mxu0
      %v5827 = vadd.f32 0.0, %v5826
      %v5828 = vpop.f32.mrb[0].mxu0
      %5829 = vdwg.mxu0
      %v5830 = vadd.f32 %v5648, %v5768
      %v5831 = vadd.f32 %v5648, %v5771
      %v5832 = vadd.f32 %v5648, %v5776
      %v5833 = vadd.f32 %v5648, %v5779
      %v5834 = vadd.f32 %v5648, %v5784
      %v5835 = vadd.f32 %v5648, %v5787
      %v5836 = vadd.f32 %v5648, %v5792
      %v5837 = vadd.f32 %v5648, %v5795
      %v5838 = vadd.f32 %v5648, %v5800
      %v5839 = vadd.f32 %v5648, %v5803
      %v5840 = vadd.f32 %v5648, %v5808
      %v5841 = vadd.f32 %v5648, %v5811
      %v5842 = vadd.f32 %v5648, %v5816
      %v5843 = vadd.f32 %v5648, %v5819
      %v5844 = vadd.f32 %v5648, %v5824
      %v5845 = vadd.f32 %v5648, %v5827
      %v5846 = vld [vmem:[#allocation2] sm:$0xf]
      %v5847 = vld [vmem:[#allocation2 + $0x4] sm:$0xf]
      %v5848 = vld [vmem:[#allocation2 + $0x8] sm:$0x1]
      %v5849 = vld [vmem:[#allocation2 + $0xc] sm:$0xf]
      %v5850 = vld [vmem:[#allocation2 + $0x10] sm:$0xf]
      %v5851 = vld [vmem:[#allocation2 + $0x14] sm:$0x1]
      %v5852 = vld [vmem:[#allocation2 + $0x18] sm:$0xf]
      %v5853 = vld [vmem:[#allocation2 + $0x1c] sm:$0xf]
      %v5854 = vld [vmem:[#allocation2 + $0x20] sm:$0x1]
      %v5855 = vld [vmem:[#allocation2 + $0x24] sm:$0xf]
      %v5856 = vld [vmem:[#allocation2 + $0x28] sm:$0xf]
      %v5857 = vld [vmem:[#allocation2 + $0x2c] sm:$0x1]
      %v5858 = vld [vmem:[#allocation2 + $0x30] sm:$0xf]
      %v5859 = vld [vmem:[#allocation2 + $0x34] sm:$0xf]
      %v5860 = vld [vmem:[#allocation2 + $0x38] sm:$0x1]
      %v5861 = vld [vmem:[#allocation2 + $0x3c] sm:$0xf]
      %v5862 = vld [vmem:[#allocation2 + $0x40] sm:$0xf]
      %v5863 = vld [vmem:[#allocation2 + $0x44] sm:$0x1]
      %v5864 = vld [vmem:[#allocation2 + $0x48] sm:$0xf]
      %v5865 = vld [vmem:[#allocation2 + $0x4c] sm:$0xf]
      %v5866 = vld [vmem:[#allocation2 + $0x50] sm:$0x1]
      %v5867 = vld [vmem:[#allocation2 + $0x54] sm:$0xf]
      %v5868 = vld [vmem:[#allocation2 + $0x58] sm:$0xf]
      %v5869 = vld [vmem:[#allocation2 + $0x5c] sm:$0x1]
      %vm5870 = vsmask.f32 3328
      %vm5871 = vsmask.f32 7440
      %vm5872 = vmor %vm5870, %vm5871
      %v5874 = vshrl.u32 %v5846, 16
      %v5876 = vrot.slane %v5874, 4
      %v5877 = vshll.u32 %v5846, 16
      %v5879 = vrot.slane %v5877, 5
      %v5880 = vor.u32 %v5876, %v5879
      %v5881 = vrot.slane %v5880, 4
      %v5883 = vshll.u32 %v5847, 16
      %v5885 = vrot.slane %v5883, 5
      %v5886 = vsel %vm5872, %v5881, %v5885
      %v5887 = vshrl.u32 %v5847, 16
      %v5889 = vrot.slane %v5887, 4
      %v5890 = vor.u32 %v5889, %v5885
      %v5891 = vrot.slane %v5890, 4
      %v5893 = vshll.u32 %v5848, 16
      %v5895 = vrot.slane %v5893, 5
      %v5896 = vsel %vm5872, %v5891, %v5895
      %v5898 = vshrl.u32 %v5849, 16
      %v5900 = vrot.slane %v5898, 4
      %v5901 = vshll.u32 %v5849, 16
      %v5903 = vrot.slane %v5901, 5
      %v5904 = vor.u32 %v5900, %v5903
      %v5905 = vrot.slane %v5904, 4
      %v5907 = vshll.u32 %v5850, 16
      %v5909 = vrot.slane %v5907, 5
      %v5910 = vsel %vm5872, %v5905, %v5909
      %v5911 = vshrl.u32 %v5850, 16
      %v5913 = vrot.slane %v5911, 4
      %v5914 = vor.u32 %v5913, %v5909
      %v5915 = vrot.slane %v5914, 4
      %v5917 = vshll.u32 %v5851, 16
      %v5919 = vrot.slane %v5917, 5
      %v5920 = vsel %vm5872, %v5915, %v5919
      %v5922 = vshrl.u32 %v5852, 16
      %v5924 = vrot.slane %v5922, 4
      %v5925 = vshll.u32 %v5852, 16
      %v5927 = vrot.slane %v5925, 5
      %v5928 = vor.u32 %v5924, %v5927
      %v5929 = vrot.slane %v5928, 4
      %v5931 = vshll.u32 %v5853, 16
      %v5933 = vrot.slane %v5931, 5
      %v5934 = vsel %vm5872, %v5929, %v5933
      %v5935 = vshrl.u32 %v5853, 16
      %v5937 = vrot.slane %v5935, 4
      %v5938 = vor.u32 %v5937, %v5933
      %v5939 = vrot.slane %v5938, 4
      %v5941 = vshll.u32 %v5854, 16
      %v5943 = vrot.slane %v5941, 5
      %v5944 = vsel %vm5872, %v5939, %v5943
      %v5946 = vshrl.u32 %v5855, 16
      %v5948 = vrot.slane %v5946, 4
      %v5949 = vshll.u32 %v5855, 16
      %v5951 = vrot.slane %v5949, 5
      %v5952 = vor.u32 %v5948, %v5951
      %v5953 = vrot.slane %v5952, 4
      %v5955 = vshll.u32 %v5856, 16
      %v5957 = vrot.slane %v5955, 5
      %v5958 = vsel %vm5872, %v5953, %v5957
      %v5959 = vshrl.u32 %v5856, 16
      %v5961 = vrot.slane %v5959, 4
      %v5962 = vor.u32 %v5961, %v5957
      %v5963 = vrot.slane %v5962, 4
      %v5965 = vshll.u32 %v5857, 16
      %v5967 = vrot.slane %v5965, 5
      %v5968 = vsel %vm5872, %v5963, %v5967
      %v5970 = vshrl.u32 %v5858, 16
      %v5972 = vrot.slane %v5970, 4
      %v5973 = vshll.u32 %v5858, 16
      %v5975 = vrot.slane %v5973, 5
      %v5976 = vor.u32 %v5972, %v5975
      %v5977 = vrot.slane %v5976, 4
      %v5979 = vshll.u32 %v5859, 16
      %v5981 = vrot.slane %v5979, 5
      %v5982 = vsel %vm5872, %v5977, %v5981
      %v5983 = vshrl.u32 %v5859, 16
      %v5985 = vrot.slane %v5983, 4
      %v5986 = vor.u32 %v5985, %v5981
      %v5987 = vrot.slane %v5986, 4
      %v5989 = vshll.u32 %v5860, 16
      %v5991 = vrot.slane %v5989, 5
      %v5992 = vsel %vm5872, %v5987, %v5991
      %v5994 = vshrl.u32 %v5861, 16
      %v5996 = vrot.slane %v5994, 4
      %v5997 = vshll.u32 %v5861, 16
      %v5999 = vrot.slane %v5997, 5
      %v6000 = vor.u32 %v5996, %v5999
      %v6001 = vrot.slane %v6000, 4
      %v6003 = vshll.u32 %v5862, 16
      %v6005 = vrot.slane %v6003, 5
      %v6006 = vsel %vm5872, %v6001, %v6005
      %v6007 = vshrl.u32 %v5862, 16
      %v6009 = vrot.slane %v6007, 4
      %v6010 = vor.u32 %v6009, %v6005
      %v6011 = vrot.slane %v6010, 4
      %v6013 = vshll.u32 %v5863, 16
      %v6015 = vrot.slane %v6013, 5
      %v6016 = vsel %vm5872, %v6011, %v6015
      %v6018 = vshrl.u32 %v5864, 16
      %v6020 = vrot.slane %v6018, 4
      %v6021 = vshll.u32 %v5864, 16
      %v6023 = vrot.slane %v6021, 5
      %v6024 = vor.u32 %v6020, %v6023
      %v6025 = vrot.slane %v6024, 4
      %v6027 = vshll.u32 %v5865, 16
      %v6029 = vrot.slane %v6027, 5
      %v6030 = vsel %vm5872, %v6025, %v6029
      %v6031 = vshrl.u32 %v5865, 16
      %v6033 = vrot.slane %v6031, 4
      %v6034 = vor.u32 %v6033, %v6029
      %v6035 = vrot.slane %v6034, 4
      %v6037 = vshll.u32 %v5866, 16
      %v6039 = vrot.slane %v6037, 5
      %v6040 = vsel %vm5872, %v6035, %v6039
      %v6042 = vshrl.u32 %v5867, 16
      %v6044 = vrot.slane %v6042, 4
      %v6045 = vshll.u32 %v5867, 16
      %v6047 = vrot.slane %v6045, 5
      %v6048 = vor.u32 %v6044, %v6047
      %v6049 = vrot.slane %v6048, 4
      %v6051 = vshll.u32 %v5868, 16
      %v6053 = vrot.slane %v6051, 5
      %v6054 = vsel %vm5872, %v6049, %v6053
      %v6055 = vshrl.u32 %v5868, 16
      %v6057 = vrot.slane %v6055, 4
      %v6058 = vor.u32 %v6057, %v6053
      %v6059 = vrot.slane %v6058, 4
      %v6061 = vshll.u32 %v5869, 16
      %v6063 = vrot.slane %v6061, 5
      %v6064 = vsel %vm5872, %v6059, %v6063
      %s6065 = scalar_lea.vmem %s6, 2
      %v6066 = vld [vmem:[%s6065] sm:$0x3]
      %v6067 = vunpack.c.l.b16 %v5886
      %v6068 = vunpack.c.l.b16 %v5896
      %v6069 = vunpack.c.l.b16 %v5910
      %v6070 = vunpack.c.l.b16 %v5920
      %v6071 = vunpack.c.l.b16 %v5934
      %v6072 = vunpack.c.l.b16 %v5944
      %v6073 = vunpack.c.l.b16 %v5958
      %v6074 = vunpack.c.l.b16 %v5968
      %v6075 = vunpack.c.l.b16 %v5982
      %v6076 = vunpack.c.l.b16 %v5992
      %v6077 = vunpack.c.l.b16 %v6006
      %v6078 = vunpack.c.l.b16 %v6016
      %v6079 = vunpack.c.l.b16 %v6030
      %v6080 = vunpack.c.l.b16 %v6040
      %v6081 = vunpack.c.l.b16 %v6054
      %v6082 = vunpack.c.l.b16 %v6064
      %v6083 = vpack.c.b16 %v6068, %v6067
      %v6084 = vpack.c.b16 %v6070, %v6069
      %v6085 = vpack.c.b16 %v6072, %v6071
      %v6086 = vpack.c.b16 %v6074, %v6073
      %v6087 = vpack.c.b16 %v6076, %v6075
      %v6088 = vpack.c.b16 %v6078, %v6077
      %v6089 = vpack.c.b16 %v6080, %v6079
      %v6090 = vpack.c.b16 %v6082, %v6081
      %v6092 = vsel %vm883, %v6083, 0
      %v6095 = vsel %vm883, %v6084, 0
      %v6098 = vsel %vm883, %v6085, 0
      %v6101 = vsel %vm883, %v6086, 0
      %v6104 = vsel %vm883, %v6087, 0
      %v6107 = vsel %vm883, %v6088, 0
      %v6110 = vsel %vm883, %v6089, 0
      %v6113 = vsel %vm883, %v6090, 0
      %v6116 = vsel %vm613, %v6066, 0
      %6118 = vmatprep.subr.bf16.mxu0 0
      %6119 = vmatpush1.bf16.msra.mxu0 %v6116
      %6120 = vmatprep.subr.bf16.mxu0 0
      %6121 = vmatpush1.bf16.msra.mxu0 0
      %6122 = vmatprep.subr.bf16.mxu0 0
      %6123 = vmatpush1.bf16.msra.mxu0 0
      %6124 = vmatprep.subr.bf16.mxu0 0
      %6125 = vmatpush1.bf16.msra.mxu0 0
      %6126 = vmatprep.subr.bf16.mxu0 0
      %6127 = vmatpush1.bf16.msra.mxu0 0
      %6128 = vmatprep.subr.bf16.mxu0 0
      %6129 = vmatpush1.bf16.msra.mxu0 0
      %6130 = vmatprep.subr.bf16.mxu0 0
      %6131 = vmatpush1.bf16.msra.mxu0 0
      %6132 = vmatprep.subr.bf16.mxu0 0
      %6133 = vmatpush1.bf16.msra.mxu0 0
      %6134 = vmatprep.subr.bf16.mxu0 0
      %6135 = vmatpush1.bf16.msra.mxu0 0
      %6136 = vmatprep.subr.bf16.mxu0 0
      %6137 = vmatpush1.bf16.msra.mxu0 0
      %6138 = vmatprep.subr.bf16.mxu0 0
      %6139 = vmatpush1.bf16.msra.mxu0 0
      %6140 = vmatprep.subr.bf16.mxu0 0
      %6141 = vmatpush1.bf16.msra.mxu0 0
      %6142 = vmatprep.subr.bf16.mxu0 0
      %6143 = vmatpush1.bf16.msra.mxu0 0
      %6144 = vmatprep.subr.bf16.mxu0 0
      %6145 = vmatpush1.bf16.msra.mxu0 0
      %6146 = vmatprep.subr.bf16.mxu0 0
      %6147 = vmatpush1.bf16.msra.mxu0 0
      %6148 = vmatprep.subr.bf16.mxu0 0
      %6149 = vmatpush1.bf16.msra.mxu0 0
      %6150 = vmatprep.mubr.bf16.mxu0 0
      %6151 = vmatmul.mubr.bf16.gmra.mrb[0].mxu0 %v6092
      %v6152 = vpop.f32.mrb[0].mxu0
      %v6153 = vadd.f32 0.0, %v6152
      %v6154 = vpop.f32.mrb[0].mxu0
      %v6155 = vpop.f32.mrb[0].mxu0
      %v6156 = vadd.f32 0.0, %v6155
      %v6157 = vpop.f32.mrb[0].mxu0
      %6158 = vmatprep.mubr.bf16.mxu0 0
      %6159 = vmatmul.mubr.bf16.gmra.mrb[0].mxu0 %v6095
      %v6160 = vpop.f32.mrb[0].mxu0
      %v6161 = vadd.f32 0.0, %v6160
      %v6162 = vpop.f32.mrb[0].mxu0
      %v6163 = vpop.f32.mrb[0].mxu0
      %v6164 = vadd.f32 0.0, %v6163
      %v6165 = vpop.f32.mrb[0].mxu0
      %6166 = vmatprep.mubr.bf16.mxu0 0
      %6167 = vmatmul.mubr.bf16.gmra.mrb[0].mxu0 %v6098
      %v6168 = vpop.f32.mrb[0].mxu0
      %v6169 = vadd.f32 0.0, %v6168
      %v6170 = vpop.f32.mrb[0].mxu0
      %v6171 = vpop.f32.mrb[0].mxu0
      %v6172 = vadd.f32 0.0, %v6171
      %v6173 = vpop.f32.mrb[0].mxu0
      %6174 = vmatprep.mubr.bf16.mxu0 0
      %6175 = vmatmul.mubr.bf16.gmra.mrb[0].mxu0 %v6101
      %v6176 = vpop.f32.mrb[0].mxu0
      %v6177 = vadd.f32 0.0, %v6176
      %v6178 = vpop.f32.mrb[0].mxu0
      %v6179 = vpop.f32.mrb[0].mxu0
      %v6180 = vadd.f32 0.0, %v6179
      %v6181 = vpop.f32.mrb[0].mxu0
      %6182 = vmatprep.mubr.bf16.mxu0 0
      %6183 = vmatmul.mubr.bf16.gmra.mrb[0].mxu0 %v6104
      %v6184 = vpop.f32.mrb[0].mxu0
      %v6185 = vadd.f32 0.0, %v6184
      %v6186 = vpop.f32.mrb[0].mxu0
      %v6187 = vpop.f32.mrb[0].mxu0
      %v6188 = vadd.f32 0.0, %v6187
      %v6189 = vpop.f32.mrb[0].mxu0
      %6190 = vmatprep.mubr.bf16.mxu0 0
      %6191 = vmatmul.mubr.bf16.gmra.mrb[0].mxu0 %v6107
      %v6192 = vpop.f32.mrb[0].mxu0
      %v6193 = vadd.f32 0.0, %v6192
      %v6194 = vpop.f32.mrb[0].mxu0
      %v6195 = vpop.f32.mrb[0].mxu0
      %v6196 = vadd.f32 0.0, %v6195
      %v6197 = vpop.f32.mrb[0].mxu0
      %6198 = vmatprep.mubr.bf16.mxu0 0
      %6199 = vmatmul.mubr.bf16.gmra.mrb[0].mxu0 %v6110
      %v6200 = vpop.f32.mrb[0].mxu0
      %v6201 = vadd.f32 0.0, %v6200
      %v6202 = vpop.f32.mrb[0].mxu0
      %v6203 = vpop.f32.mrb[0].mxu0
      %v6204 = vadd.f32 0.0, %v6203
      %v6205 = vpop.f32.mrb[0].mxu0
      %6206 = vmatprep.mubr.bf16.mxu0 0
      %6207 = vmatmul.mubr.bf16.gmra.mrb[0].mxu0 %v6113
      %v6208 = vpop.f32.mrb[0].mxu0
      %v6209 = vadd.f32 0.0, %v6208
      %v6210 = vpop.f32.mrb[0].mxu0
      %v6211 = vpop.f32.mrb[0].mxu0
      %v6212 = vadd.f32 0.0, %v6211
      %v6213 = vpop.f32.mrb[0].mxu0
      %6214 = vdwg.mxu0
      %v6215 = vadd.f32 %v5830, %v6153
      %v6216 = vadd.f32 %v5831, %v6156
      %v6217 = vadd.f32 %v5832, %v6161
      %v6218 = vadd.f32 %v5833, %v6164
      %v6219 = vadd.f32 %v5834, %v6169
      %v6220 = vadd.f32 %v5835, %v6172
      %v6221 = vadd.f32 %v5836, %v6177
      %v6222 = vadd.f32 %v5837, %v6180
      %v6223 = vadd.f32 %v5838, %v6185
      %v6224 = vadd.f32 %v5839, %v6188
      %v6225 = vadd.f32 %v5840, %v6193
      %v6226 = vadd.f32 %v5841, %v6196
      %v6227 = vadd.f32 %v5842, %v6201
      %v6228 = vadd.f32 %v5843, %v6204
      %v6229 = vadd.f32 %v5844, %v6209
      %v6230 = vadd.f32 %v5845, %v6212
      %v6231 = vld [vmem:[#allocation2] sm:$0xe]
      %v6232 = vld [vmem:[#allocation2 + $0xc] sm:$0xe]
      %v6233 = vld [vmem:[#allocation2 + $0x18] sm:$0xe]
      %v6234 = vld [vmem:[#allocation2 + $0x24] sm:$0xe]
      %v6235 = vld [vmem:[#allocation2 + $0x30] sm:$0xe]
      %v6236 = vld [vmem:[#allocation2 + $0x3c] sm:$0xe]
      %v6237 = vld [vmem:[#allocation2 + $0x48] sm:$0xe]
      %v6238 = vld [vmem:[#allocation2 + $0x54] sm:$0xe]
      %vm6263 = vcmask 1042432
      %vm6264 = vcmask 1046532
      %vm6265 = vmor %vm6263, %vm6264
      %v6266 = vrot.slane %v6231, 5
      %v6267 = vrot.slane %v6266, 4
      %v6268 = vrot.slane %v5847, 5
      %v6269 = vsel %vm6265, %v6267, %v6268
      %v6270 = vrot.slane %v6268, 4
      %v6271 = vrot.slane %v5848, 5
      %v6272 = vsel %vm6265, %v6270, %v6271
      %v6273 = vrot.slane %v6232, 5
      %v6274 = vrot.slane %v6273, 4
      %v6275 = vrot.slane %v5850, 5
      %v6276 = vsel %vm6265, %v6274, %v6275
      %v6277 = vrot.slane %v6275, 4
      %v6278 = vrot.slane %v5851, 5
      %v6279 = vsel %vm6265, %v6277, %v6278
      %v6280 = vrot.slane %v6233, 5
      %v6281 = vrot.slane %v6280, 4
      %v6282 = vrot.slane %v5853, 5
      %v6283 = vsel %vm6265, %v6281, %v6282
      %v6284 = vrot.slane %v6282, 4
      %v6285 = vrot.slane %v5854, 5
      %v6286 = vsel %vm6265, %v6284, %v6285
      %v6287 = vrot.slane %v6234, 5
      %v6288 = vrot.slane %v6287, 4
      %v6289 = vrot.slane %v5856, 5
      %v6290 = vsel %vm6265, %v6288, %v6289
      %v6291 = vrot.slane %v6289, 4
      %v6292 = vrot.slane %v5857, 5
      %v6293 = vsel %vm6265, %v6291, %v6292
      %v6294 = vrot.slane %v6235, 5
      %v6295 = vrot.slane %v6294, 4
      %v6296 = vrot.slane %v5859, 5
      %v6297 = vsel %vm6265, %v6295, %v6296
      %v6298 = vrot.slane %v6296, 4
      %v6299 = vrot.slane %v5860, 5
      %v6300 = vsel %vm6265, %v6298, %v6299
      %v6301 = vrot.slane %v6236, 5
      %v6302 = vrot.slane %v6301, 4
      %v6303 = vrot.slane %v5862, 5
      %v6304 = vsel %vm6265, %v6302, %v6303
      %v6305 = vrot.slane %v6303, 4
      %v6306 = vrot.slane %v5863, 5
      %v6307 = vsel %vm6265, %v6305, %v6306
      %v6308 = vrot.slane %v6237, 5
      %v6309 = vrot.slane %v6308, 4
      %v6310 = vrot.slane %v5865, 5
      %v6311 = vsel %vm6265, %v6309, %v6310
      %v6312 = vrot.slane %v6310, 4
      %v6313 = vrot.slane %v5866, 5
      %v6314 = vsel %vm6265, %v6312, %v6313
      %v6315 = vrot.slane %v6238, 5
      %v6316 = vrot.slane %v6315, 4
      %v6317 = vrot.slane %v5868, 5
      %v6318 = vsel %vm6265, %v6316, %v6317
      %v6319 = vrot.slane %v6317, 4
      %v6320 = vrot.slane %v5869, 5
      %v6321 = vsel %vm6265, %v6319, %v6320
      %s6322 = scalar_lea.vmem %s6, 4
      %v6323 = vld [vmem:[%s6322] sm:$0x3]
      %v6324 = vunpack.c.l.b16 %v6269
      %v6325 = vunpack.c.l.b16 %v6272
      %v6326 = vunpack.c.l.b16 %v6276
      %v6327 = vunpack.c.l.b16 %v6279
      %v6328 = vunpack.c.l.b16 %v6283
      %v6329 = vunpack.c.l.b16 %v6286
      %v6330 = vunpack.c.l.b16 %v6290
      %v6331 = vunpack.c.l.b16 %v6293
      %v6332 = vunpack.c.l.b16 %v6297
      %v6333 = vunpack.c.l.b16 %v6300
      %v6334 = vunpack.c.l.b16 %v6304
      %v6335 = vunpack.c.l.b16 %v6307
      %v6336 = vunpack.c.l.b16 %v6311
      %v6337 = vunpack.c.l.b16 %v6314
      %v6338 = vunpack.c.l.b16 %v6318
      %v6339 = vunpack.c.l.b16 %v6321
      %v6340 = vpack.c.b16 %v6325, %v6324
      %v6341 = vpack.c.b16 %v6327, %v6326
      %v6342 = vpack.c.b16 %v6329, %v6328
      %v6343 = vpack.c.b16 %v6331, %v6330
      %v6344 = vpack.c.b16 %v6333, %v6332
      %v6345 = vpack.c.b16 %v6335, %v6334
      %v6346 = vpack.c.b16 %v6337, %v6336
      %v6347 = vpack.c.b16 %v6339, %v6338
      %v6349 = vsel %vm883, %v6340, 0
      %v6352 = vsel %vm883, %v6341, 0
      %v6355 = vsel %vm883, %v6342, 0
      %v6358 = vsel %vm883, %v6343, 0
      %v6361 = vsel %vm883, %v6344, 0
      %v6364 = vsel %vm883, %v6345, 0
      %v6367 = vsel %vm883, %v6346, 0
      %v6370 = vsel %vm883, %v6347, 0
      %v6373 = vsel %vm613, %v6323, 0
      %6375 = vmatprep.subr.bf16.mxu0 0
      %6376 = vmatpush1.bf16.msra.mxu0 %v6373
      %6377 = vmatprep.subr.bf16.mxu0 0
      %6378 = vmatpush1.bf16.msra.mxu0 0
      %6379 = vmatprep.subr.bf16.mxu0 0
      %6380 = vmatpush1.bf16.msra.mxu0 0
      %6381 = vmatprep.subr.bf16.mxu0 0
      %6382 = vmatpush1.bf16.msra.mxu0 0
      %6383 = vmatprep.subr.bf16.mxu0 0
      %6384 = vmatpush1.bf16.msra.mxu0 0
      %6385 = vmatprep.subr.bf16.mxu0 0
      %6386 = vmatpush1.bf16.msra.mxu0 0
      %6387 = vmatprep.subr.bf16.mxu0 0
      %6388 = vmatpush1.bf16.msra.mxu0 0
      %6389 = vmatprep.subr.bf16.mxu0 0
      %6390 = vmatpush1.bf16.msra.mxu0 0
      %6391 = vmatprep.subr.bf16.mxu0 0
      %6392 = vmatpush1.bf16.msra.mxu0 0
      %6393 = vmatprep.subr.bf16.mxu0 0
      %6394 = vmatpush1.bf16.msra.mxu0 0
      %6395 = vmatprep.subr.bf16.mxu0 0
      %6396 = vmatpush1.bf16.msra.mxu0 0
      %6397 = vmatprep.subr.bf16.mxu0 0
      %6398 = vmatpush1.bf16.msra.mxu0 0
      %6399 = vmatprep.subr.bf16.mxu0 0
      %6400 = vmatpush1.bf16.msra.mxu0 0
      %6401 = vmatprep.subr.bf16.mxu0 0
      %6402 = vmatpush1.bf16.msra.mxu0 0
      %6403 = vmatprep.subr.bf16.mxu0 0
      %6404 = vmatpush1.bf16.msra.mxu0 0
      %6405 = vmatprep.subr.bf16.mxu0 0
      %6406 = vmatpush1.bf16.msra.mxu0 0
      %6407 = vmatprep.mubr.bf16.mxu0 0
      %6408 = vmatmul.mubr.bf16.gmra.mrb[0].mxu0 %v6349
      %v6409 = vpop.f32.mrb[0].mxu0
      %v6410 = vadd.f32 0.0, %v6409
      %v6411 = vpop.f32.mrb[0].mxu0
      %v6412 = vpop.f32.mrb[0].mxu0
      %v6413 = vadd.f32 0.0, %v6412
      %v6414 = vpop.f32.mrb[0].mxu0
      %6415 = vmatprep.mubr.bf16.mxu0 0
      %6416 = vmatmul.mubr.bf16.gmra.mrb[0].mxu0 %v6352
      %v6417 = vpop.f32.mrb[0].mxu0
      %v6418 = vadd.f32 0.0, %v6417
      %v6419 = vpop.f32.mrb[0].mxu0
      %v6420 = vpop.f32.mrb[0].mxu0
      %v6421 = vadd.f32 0.0, %v6420
      %v6422 = vpop.f32.mrb[0].mxu0
      %6423 = vmatprep.mubr.bf16.mxu0 0
      %6424 = vmatmul.mubr.bf16.gmra.mrb[0].mxu0 %v6355
      %v6425 = vpop.f32.mrb[0].mxu0
      %v6426 = vadd.f32 0.0, %v6425
      %v6427 = vpop.f32.mrb[0].mxu0
      %v6428 = vpop.f32.mrb[0].mxu0
      %v6429 = vadd.f32 0.0, %v6428
      %v6430 = vpop.f32.mrb[0].mxu0
      %6431 = vmatprep.mubr.bf16.mxu0 0
      %6432 = vmatmul.mubr.bf16.gmra.mrb[0].mxu0 %v6358
      %v6433 = vpop.f32.mrb[0].mxu0
      %v6434 = vadd.f32 0.0, %v6433
      %v6435 = vpop.f32.mrb[0].mxu0
      %v6436 = vpop.f32.mrb[0].mxu0
      %v6437 = vadd.f32 0.0, %v6436
      %v6438 = vpop.f32.mrb[0].mxu0
      %6439 = vmatprep.mubr.bf16.mxu0 0
      %6440 = vmatmul.mubr.bf16.gmra.mrb[0].mxu0 %v6361
      %v6441 = vpop.f32.mrb[0].mxu0
      %v6442 = vadd.f32 0.0, %v6441
      %v6443 = vpop.f32.mrb[0].mxu0
      %v6444 = vpop.f32.mrb[0].mxu0
      %v6445 = vadd.f32 0.0, %v6444
      %v6446 = vpop.f32.mrb[0].mxu0
      %6447 = vmatprep.mubr.bf16.mxu0 0
      %6448 = vmatmul.mubr.bf16.gmra.mrb[0].mxu0 %v6364
      %v6449 = vpop.f32.mrb[0].mxu0
      %v6450 = vadd.f32 0.0, %v6449
      %v6451 = vpop.f32.mrb[0].mxu0
      %v6452 = vpop.f32.mrb[0].mxu0
      %v6453 = vadd.f32 0.0, %v6452
      %v6454 = vpop.f32.mrb[0].mxu0
      %6455 = vmatprep.mubr.bf16.mxu0 0
      %6456 = vmatmul.mubr.bf16.gmra.mrb[0].mxu0 %v6367
      %v6457 = vpop.f32.mrb[0].mxu0
      %v6458 = vadd.f32 0.0, %v6457
      %v6459 = vpop.f32.mrb[0].mxu0
      %v6460 = vpop.f32.mrb[0].mxu0
      %v6461 = vadd.f32 0.0, %v6460
      %v6462 = vpop.f32.mrb[0].mxu0
      %6463 = vmatprep.mubr.bf16.mxu0 0
      %6464 = vmatmul.mubr.bf16.gmra.mrb[0].mxu0 %v6370
      %v6465 = vpop.f32.mrb[0].mxu0
      %v6466 = vadd.f32 0.0, %v6465
      %v6467 = vpop.f32.mrb[0].mxu0
      %v6468 = vpop.f32.mrb[0].mxu0
      %v6469 = vadd.f32 0.0, %v6468
      %v6470 = vpop.f32.mrb[0].mxu0
      %6471 = vdwg.mxu0
      %v6472 = vadd.f32 %v6215, %v6410
      %v6473 = vadd.f32 %v6216, %v6413
      %v6474 = vadd.f32 %v6217, %v6418
      %v6475 = vadd.f32 %v6218, %v6421
      %v6476 = vadd.f32 %v6219, %v6426
      %v6477 = vadd.f32 %v6220, %v6429
      %v6478 = vadd.f32 %v6221, %v6434
      %v6479 = vadd.f32 %v6222, %v6437
      %v6480 = vadd.f32 %v6223, %v6442
      %v6481 = vadd.f32 %v6224, %v6445
      %v6482 = vadd.f32 %v6225, %v6450
      %v6483 = vadd.f32 %v6226, %v6453
      %v6484 = vadd.f32 %v6227, %v6458
      %v6485 = vadd.f32 %v6228, %v6461
      %v6486 = vadd.f32 %v6229, %v6466
      %v6487 = vadd.f32 %v6230, %v6469
      %s6488 = scalar_lea.vmem [#allocation2], 12
      %v6489 = vld [vmem:[%s6488] sm:$0xf]
      %v6490 = vld [vmem:[%s6488 + $0x4] sm:$0xf]
      %v6491 = vld [vmem:[%s6488 + $0xc] sm:$0xf]
      %v6492 = vld [vmem:[%s6488 + $0x10] sm:$0xf]
      %v6493 = vld [vmem:[%s6488 + $0x18] sm:$0xf]
      %v6494 = vld [vmem:[%s6488 + $0x1c] sm:$0xf]
      %v6495 = vld [vmem:[%s6488 + $0x24] sm:$0xf]
      %v6496 = vld [vmem:[%s6488 + $0x28] sm:$0xf]
      %v6497 = vld [vmem:[%s6488 + $0x30] sm:$0xf]
      %v6498 = vld [vmem:[%s6488 + $0x34] sm:$0xf]
      %v6499 = vld [vmem:[%s6488 + $0x3c] sm:$0xf]
      %v6500 = vld [vmem:[%s6488 + $0x40] sm:$0xf]
      %v6501 = vld [vmem:[%s6488 + $0x48] sm:$0xf]
      %v6502 = vld [vmem:[%s6488 + $0x4c] sm:$0xf]
      %v6503 = vld [vmem:[%s6488 + $0x54] sm:$0xf]
      %v6504 = vld [vmem:[%s6488 + $0x58] sm:$0xf]
      %s6505 = scalar_lea.vmem %s6, 6
      %v6506 = vld [vmem:[%s6505] sm:$0x3]
      %v6523 = vunpack.c.l.b16 %v6489
      %v6524 = vunpack.c.l.b16 %v6490
      %v6525 = vunpack.c.l.b16 %v6491
      %v6526 = vunpack.c.l.b16 %v6492
      %v6527 = vunpack.c.l.b16 %v6493
      %v6528 = vunpack.c.l.b16 %v6494
      %v6529 = vunpack.c.l.b16 %v6495
      %v6530 = vunpack.c.l.b16 %v6496
      %v6531 = vunpack.c.l.b16 %v6497
      %v6532 = vunpack.c.l.b16 %v6498
      %v6533 = vunpack.c.l.b16 %v6499
      %v6534 = vunpack.c.l.b16 %v6500
      %v6535 = vunpack.c.l.b16 %v6501
      %v6536 = vunpack.c.l.b16 %v6502
      %v6537 = vunpack.c.l.b16 %v6503
      %v6538 = vunpack.c.l.b16 %v6504
      %v6539 = vpack.c.b16 %v6524, %v6523
      %v6540 = vpack.c.b16 %v6526, %v6525
      %v6541 = vpack.c.b16 %v6528, %v6527
      %v6542 = vpack.c.b16 %v6530, %v6529
      %v6543 = vpack.c.b16 %v6532, %v6531
      %v6544 = vpack.c.b16 %v6534, %v6533
      %v6545 = vpack.c.b16 %v6536, %v6535
      %v6546 = vpack.c.b16 %v6538, %v6537
      %v6548 = vsel %vm883, %v6539, 0
      %v6551 = vsel %vm883, %v6540, 0
      %v6554 = vsel %vm883, %v6541, 0
      %v6557 = vsel %vm883, %v6542, 0
      %v6560 = vsel %vm883, %v6543, 0
      %v6563 = vsel %vm883, %v6544, 0
      %v6566 = vsel %vm883, %v6545, 0
      %v6569 = vsel %vm883, %v6546, 0
      %v6572 = vsel %vm613, %v6506, 0
      %6574 = vmatprep.subr.bf16.mxu0 0
      %6575 = vmatpush1.bf16.msra.mxu0 %v6572
      %6576 = vmatprep.subr.bf16.mxu0 0
      %6577 = vmatpush1.bf16.msra.mxu0 0
      %6578 = vmatprep.subr.bf16.mxu0 0
      %6579 = vmatpush1.bf16.msra.mxu0 0
      %6580 = vmatprep.subr.bf16.mxu0 0
      %6581 = vmatpush1.bf16.msra.mxu0 0
      %6582 = vmatprep.subr.bf16.mxu0 0
      %6583 = vmatpush1.bf16.msra.mxu0 0
      %6584 = vmatprep.subr.bf16.mxu0 0
      %6585 = vmatpush1.bf16.msra.mxu0 0
      %6586 = vmatprep.subr.bf16.mxu0 0
      %6587 = vmatpush1.bf16.msra.mxu0 0
      %6588 = vmatprep.subr.bf16.mxu0 0
      %6589 = vmatpush1.bf16.msra.mxu0 0
      %6590 = vmatprep.subr.bf16.mxu0 0
      %6591 = vmatpush1.bf16.msra.mxu0 0
      %6592 = vmatprep.subr.bf16.mxu0 0
      %6593 = vmatpush1.bf16.msra.mxu0 0
      %6594 = vmatprep.subr.bf16.mxu0 0
      %6595 = vmatpush1.bf16.msra.mxu0 0
      %6596 = vmatprep.subr.bf16.mxu0 0
      %6597 = vmatpush1.bf16.msra.mxu0 0
      %6598 = vmatprep.subr.bf16.mxu0 0
      %6599 = vmatpush1.bf16.msra.mxu0 0
      %6600 = vmatprep.subr.bf16.mxu0 0
      %6601 = vmatpush1.bf16.msra.mxu0 0
      %6602 = vmatprep.subr.bf16.mxu0 0
      %6603 = vmatpush1.bf16.msra.mxu0 0
      %6604 = vmatprep.subr.bf16.mxu0 0
      %6605 = vmatpush1.bf16.msra.mxu0 0
      %6606 = vmatprep.mubr.bf16.mxu0 0
      %6607 = vmatmul.mubr.bf16.gmra.mrb[0].mxu0 %v6548
      %v6608 = vpop.f32.mrb[0].mxu0
      %v6609 = vadd.f32 0.0, %v6608
      %v6610 = vpop.f32.mrb[0].mxu0
      %v6611 = vpop.f32.mrb[0].mxu0
      %v6612 = vadd.f32 0.0, %v6611
      %v6613 = vpop.f32.mrb[0].mxu0
      %6614 = vmatprep.mubr.bf16.mxu0 0
      %6615 = vmatmul.mubr.bf16.gmra.mrb[0].mxu0 %v6551
      %v6616 = vpop.f32.mrb[0].mxu0
      %v6617 = vadd.f32 0.0, %v6616
      %v6618 = vpop.f32.mrb[0].mxu0
      %v6619 = vpop.f32.mrb[0].mxu0
      %v6620 = vadd.f32 0.0, %v6619
      %v6621 = vpop.f32.mrb[0].mxu0
      %6622 = vmatprep.mubr.bf16.mxu0 0
      %6623 = vmatmul.mubr.bf16.gmra.mrb[0].mxu0 %v6554
      %v6624 = vpop.f32.mrb[0].mxu0
      %v6625 = vadd.f32 0.0, %v6624
      %v6626 = vpop.f32.mrb[0].mxu0
      %v6627 = vpop.f32.mrb[0].mxu0
      %v6628 = vadd.f32 0.0, %v6627
      %v6629 = vpop.f32.mrb[0].mxu0
      %6630 = vmatprep.mubr.bf16.mxu0 0
      %6631 = vmatmul.mubr.bf16.gmra.mrb[0].mxu0 %v6557
      %v6632 = vpop.f32.mrb[0].mxu0
      %v6633 = vadd.f32 0.0, %v6632
      %v6634 = vpop.f32.mrb[0].mxu0
      %v6635 = vpop.f32.mrb[0].mxu0
      %v6636 = vadd.f32 0.0, %v6635
      %v6637 = vpop.f32.mrb[0].mxu0
      %6638 = vmatprep.mubr.bf16.mxu0 0
      %6639 = vmatmul.mubr.bf16.gmra.mrb[0].mxu0 %v6560
      %v6640 = vpop.f32.mrb[0].mxu0
      %v6641 = vadd.f32 0.0, %v6640
      %v6642 = vpop.f32.mrb[0].mxu0
      %v6643 = vpop.f32.mrb[0].mxu0
      %v6644 = vadd.f32 0.0, %v6643
      %v6645 = vpop.f32.mrb[0].mxu0
      %6646 = vmatprep.mubr.bf16.mxu0 0
      %6647 = vmatmul.mubr.bf16.gmra.mrb[0].mxu0 %v6563
      %v6648 = vpop.f32.mrb[0].mxu0
      %v6649 = vadd.f32 0.0, %v6648
      %v6650 = vpop.f32.mrb[0].mxu0
      %v6651 = vpop.f32.mrb[0].mxu0
      %v6652 = vadd.f32 0.0, %v6651
      %v6653 = vpop.f32.mrb[0].mxu0
      %6654 = vmatprep.mubr.bf16.mxu0 0
      %6655 = vmatmul.mubr.bf16.gmra.mrb[0].mxu0 %v6566
      %v6656 = vpop.f32.mrb[0].mxu0
      %v6657 = vadd.f32 0.0, %v6656
      %v6658 = vpop.f32.mrb[0].mxu0
      %v6659 = vpop.f32.mrb[0].mxu0
      %v6660 = vadd.f32 0.0, %v6659
      %v6661 = vpop.f32.mrb[0].mxu0
      %6662 = vmatprep.mubr.bf16.mxu0 0
      %6663 = vmatmul.mubr.bf16.gmra.mrb[0].mxu0 %v6569
      %v6664 = vpop.f32.mrb[0].mxu0
      %v6665 = vadd.f32 0.0, %v6664
      %v6666 = vpop.f32.mrb[0].mxu0
      %v6667 = vpop.f32.mrb[0].mxu0
      %v6668 = vadd.f32 0.0, %v6667
      %v6669 = vpop.f32.mrb[0].mxu0
      %6670 = vdwg.mxu0
      %v6671 = vadd.f32 %v6472, %v6609
      %v6672 = vadd.f32 %v6473, %v6612
      %v6673 = vadd.f32 %v6474, %v6617
      %v6674 = vadd.f32 %v6475, %v6620
      %v6675 = vadd.f32 %v6476, %v6625
      %v6676 = vadd.f32 %v6477, %v6628
      %v6677 = vadd.f32 %v6478, %v6633
      %v6678 = vadd.f32 %v6479, %v6636
      %v6679 = vadd.f32 %v6480, %v6641
      %v6680 = vadd.f32 %v6481, %v6644
      %v6681 = vadd.f32 %v6482, %v6649
      %v6682 = vadd.f32 %v6483, %v6652
      %v6683 = vadd.f32 %v6484, %v6657
      %v6684 = vadd.f32 %v6485, %v6660
      %v6685 = vadd.f32 %v6486, %v6665
      %v6686 = vadd.f32 %v6487, %v6668
      %v6687 = vld [vmem:[%s6488] sm:$0xf]
      %v6688 = vld [vmem:[%s6488 + $0x4] sm:$0xf]
      %v6689 = vld [vmem:[%s6488 + $0x8] sm:$0x1]
      %v6690 = vld [vmem:[%s6488 + $0xc] sm:$0xf]
      %v6691 = vld [vmem:[%s6488 + $0x10] sm:$0xf]
      %v6692 = vld [vmem:[%s6488 + $0x14] sm:$0x1]
      %v6693 = vld [vmem:[%s6488 + $0x18] sm:$0xf]
      %v6694 = vld [vmem:[%s6488 + $0x1c] sm:$0xf]
      %v6695 = vld [vmem:[%s6488 + $0x20] sm:$0x1]
      %v6696 = vld [vmem:[%s6488 + $0x24] sm:$0xf]
      %v6697 = vld [vmem:[%s6488 + $0x28] sm:$0xf]
      %v6698 = vld [vmem:[%s6488 + $0x2c] sm:$0x1]
      %v6699 = vld [vmem:[%s6488 + $0x30] sm:$0xf]
      %v6700 = vld [vmem:[%s6488 + $0x34] sm:$0xf]
      %v6701 = vld [vmem:[%s6488 + $0x38] sm:$0x1]
      %v6702 = vld [vmem:[%s6488 + $0x3c] sm:$0xf]
      %v6703 = vld [vmem:[%s6488 + $0x40] sm:$0xf]
      %v6704 = vld [vmem:[%s6488 + $0x44] sm:$0x1]
      %v6705 = vld [vmem:[%s6488 + $0x48] sm:$0xf]
      %v6706 = vld [vmem:[%s6488 + $0x4c] sm:$0xf]
      %v6707 = vld [vmem:[%s6488 + $0x50] sm:$0x1]
      %v6708 = vld [vmem:[%s6488 + $0x54] sm:$0xf]
      %v6709 = vld [vmem:[%s6488 + $0x58] sm:$0xf]
      %v6710 = vld [vmem:[%s6488 + $0x5c] sm:$0x1]
      %v6712 = vshrl.u32 %v6687, 16
      %v6714 = vrot.slane %v6712, 4
      %v6715 = vshll.u32 %v6687, 16
      %v6717 = vrot.slane %v6715, 5
      %v6718 = vor.u32 %v6714, %v6717
      %v6719 = vrot.slane %v6718, 4
      %v6721 = vshll.u32 %v6688, 16
      %v6723 = vrot.slane %v6721, 5
      %v6724 = vsel %vm5872, %v6719, %v6723
      %v6725 = vshrl.u32 %v6688, 16
      %v6727 = vrot.slane %v6725, 4
      %v6728 = vor.u32 %v6727, %v6723
      %v6729 = vrot.slane %v6728, 4
      %v6731 = vshll.u32 %v6689, 16
      %v6733 = vrot.slane %v6731, 5
      %v6734 = vsel %vm5872, %v6729, %v6733
      %v6736 = vshrl.u32 %v6690, 16
      %v6738 = vrot.slane %v6736, 4
      %v6739 = vshll.u32 %v6690, 16
      %v6741 = vrot.slane %v6739, 5
      %v6742 = vor.u32 %v6738, %v6741
      %v6743 = vrot.slane %v6742, 4
      %v6745 = vshll.u32 %v6691, 16
      %v6747 = vrot.slane %v6745, 5
      %v6748 = vsel %vm5872, %v6743, %v6747
      %v6749 = vshrl.u32 %v6691, 16
      %v6751 = vrot.slane %v6749, 4
      %v6752 = vor.u32 %v6751, %v6747
      %v6753 = vrot.slane %v6752, 4
      %v6755 = vshll.u32 %v6692, 16
      %v6757 = vrot.slane %v6755, 5
      %v6758 = vsel %vm5872, %v6753, %v6757
      %v6760 = vshrl.u32 %v6693, 16
      %v6762 = vrot.slane %v6760, 4
      %v6763 = vshll.u32 %v6693, 16
      %v6765 = vrot.slane %v6763, 5
      %v6766 = vor.u32 %v6762, %v6765
      %v6767 = vrot.slane %v6766, 4
      %v6769 = vshll.u32 %v6694, 16
      %v6771 = vrot.slane %v6769, 5
      %v6772 = vsel %vm5872, %v6767, %v6771
      %v6773 = vshrl.u32 %v6694, 16
      %v6775 = vrot.slane %v6773, 4
      %v6776 = vor.u32 %v6775, %v6771
      %v6777 = vrot.slane %v6776, 4
      %v6779 = vshll.u32 %v6695, 16
      %v6781 = vrot.slane %v6779, 5
      %v6782 = vsel %vm5872, %v6777, %v6781
      %v6784 = vshrl.u32 %v6696, 16
      %v6786 = vrot.slane %v6784, 4
      %v6787 = vshll.u32 %v6696, 16
      %v6789 = vrot.slane %v6787, 5
      %v6790 = vor.u32 %v6786, %v6789
      %v6791 = vrot.slane %v6790, 4
      %v6793 = vshll.u32 %v6697, 16
      %v6795 = vrot.slane %v6793, 5
      %v6796 = vsel %vm5872, %v6791, %v6795
      %v6797 = vshrl.u32 %v6697, 16
      %v6799 = vrot.slane %v6797, 4
      %v6800 = vor.u32 %v6799, %v6795
      %v6801 = vrot.slane %v6800, 4
      %v6803 = vshll.u32 %v6698, 16
      %v6805 = vrot.slane %v6803, 5
      %v6806 = vsel %vm5872, %v6801, %v6805
      %v6808 = vshrl.u32 %v6699, 16
      %v6810 = vrot.slane %v6808, 4
      %v6811 = vshll.u32 %v6699, 16
      %v6813 = vrot.slane %v6811, 5
      %v6814 = vor.u32 %v6810, %v6813
      %v6815 = vrot.slane %v6814, 4
      %v6817 = vshll.u32 %v6700, 16
      %v6819 = vrot.slane %v6817, 5
      %v6820 = vsel %vm5872, %v6815, %v6819
      %v6821 = vshrl.u32 %v6700, 16
      %v6823 = vrot.slane %v6821, 4
      %v6824 = vor.u32 %v6823, %v6819
      %v6825 = vrot.slane %v6824, 4
      %v6827 = vshll.u32 %v6701, 16
      %v6829 = vrot.slane %v6827, 5
      %v6830 = vsel %vm5872, %v6825, %v6829
      %v6832 = vshrl.u32 %v6702, 16
      %v6834 = vrot.slane %v6832, 4
      %v6835 = vshll.u32 %v6702, 16
      %v6837 = vrot.slane %v6835, 5
      %v6838 = vor.u32 %v6834, %v6837
      %v6839 = vrot.slane %v6838, 4
      %v6841 = vshll.u32 %v6703, 16
      %v6843 = vrot.slane %v6841, 5
      %v6844 = vsel %vm5872, %v6839, %v6843
      %v6845 = vshrl.u32 %v6703, 16
      %v6847 = vrot.slane %v6845, 4
      %v6848 = vor.u32 %v6847, %v6843
      %v6849 = vrot.slane %v6848, 4
      %v6851 = vshll.u32 %v6704, 16
      %v6853 = vrot.slane %v6851, 5
      %v6854 = vsel %vm5872, %v6849, %v6853
      %v6856 = vshrl.u32 %v6705, 16
      %v6858 = vrot.slane %v6856, 4
      %v6859 = vshll.u32 %v6705, 16
      %v6861 = vrot.slane %v6859, 5
      %v6862 = vor.u32 %v6858, %v6861
      %v6863 = vrot.slane %v6862, 4
      %v6865 = vshll.u32 %v6706, 16
      %v6867 = vrot.slane %v6865, 5
      %v6868 = vsel %vm5872, %v6863, %v6867
      %v6869 = vshrl.u32 %v6706, 16
      %v6871 = vrot.slane %v6869, 4
      %v6872 = vor.u32 %v6871, %v6867
      %v6873 = vrot.slane %v6872, 4
      %v6875 = vshll.u32 %v6707, 16
      %v6877 = vrot.slane %v6875, 5
      %v6878 = vsel %vm5872, %v6873, %v6877
      %v6880 = vshrl.u32 %v6708, 16
      %v6882 = vrot.slane %v6880, 4
      %v6883 = vshll.u32 %v6708, 16
      %v6885 = vrot.slane %v6883, 5
      %v6886 = vor.u32 %v6882, %v6885
      %v6887 = vrot.slane %v6886, 4
      %v6889 = vshll.u32 %v6709, 16
      %v6891 = vrot.slane %v6889, 5
      %v6892 = vsel %vm5872, %v6887, %v6891
      %v6893 = vshrl.u32 %v6709, 16
      %v6895 = vrot.slane %v6893, 4
      %v6896 = vor.u32 %v6895, %v6891
      %v6897 = vrot.slane %v6896, 4
      %v6899 = vshll.u32 %v6710, 16
      %v6901 = vrot.slane %v6899, 5
      %v6902 = vsel %vm5872, %v6897, %v6901
      %s6903 = scalar_lea.vmem %s6, 8
      %v6904 = vld [vmem:[%s6903] sm:$0x3]
      %v6905 = vunpack.c.l.b16 %v6724
      %v6906 = vunpack.c.l.b16 %v6734
      %v6907 = vunpack.c.l.b16 %v6748
      %v6908 = vunpack.c.l.b16 %v6758
      %v6909 = vunpack.c.l.b16 %v6772
      %v6910 = vunpack.c.l.b16 %v6782
      %v6911 = vunpack.c.l.b16 %v6796
      %v6912 = vunpack.c.l.b16 %v6806
      %v6913 = vunpack.c.l.b16 %v6820
      %v6914 = vunpack.c.l.b16 %v6830
      %v6915 = vunpack.c.l.b16 %v6844
      %v6916 = vunpack.c.l.b16 %v6854
      %v6917 = vunpack.c.l.b16 %v6868
      %v6918 = vunpack.c.l.b16 %v6878
      %v6919 = vunpack.c.l.b16 %v6892
      %v6920 = vunpack.c.l.b16 %v6902
      %v6921 = vpack.c.b16 %v6906, %v6905
      %v6922 = vpack.c.b16 %v6908, %v6907
      %v6923 = vpack.c.b16 %v6910, %v6909
      %v6924 = vpack.c.b16 %v6912, %v6911
      %v6925 = vpack.c.b16 %v6914, %v6913
      %v6926 = vpack.c.b16 %v6916, %v6915
      %v6927 = vpack.c.b16 %v6918, %v6917
      %v6928 = vpack.c.b16 %v6920, %v6919
      %v6930 = vsel %vm883, %v6921, 0
      %v6933 = vsel %vm883, %v6922, 0
      %v6936 = vsel %vm883, %v6923, 0
      %v6939 = vsel %vm883, %v6924, 0
      %v6942 = vsel %vm883, %v6925, 0
      %v6945 = vsel %vm883, %v6926, 0
      %v6948 = vsel %vm883, %v6927, 0
      %v6951 = vsel %vm883, %v6928, 0
      %v6954 = vsel %vm613, %v6904, 0
      %6956 = vmatprep.subr.bf16.mxu0 0
      %6957 = vmatpush1.bf16.msra.mxu0 %v6954
      %6958 = vmatprep.subr.bf16.mxu0 0
      %6959 = vmatpush1.bf16.msra.mxu0 0
      %6960 = vmatprep.subr.bf16.mxu0 0
      %6961 = vmatpush1.bf16.msra.mxu0 0
      %6962 = vmatprep.subr.bf16.mxu0 0
      %6963 = vmatpush1.bf16.msra.mxu0 0
      %6964 = vmatprep.subr.bf16.mxu0 0
      %6965 = vmatpush1.bf16.msra.mxu0 0
      %6966 = vmatprep.subr.bf16.mxu0 0
      %6967 = vmatpush1.bf16.msra.mxu0 0
      %6968 = vmatprep.subr.bf16.mxu0 0
      %6969 = vmatpush1.bf16.msra.mxu0 0
      %6970 = vmatprep.subr.bf16.mxu0 0
      %6971 = vmatpush1.bf16.msra.mxu0 0
      %6972 = vmatprep.subr.bf16.mxu0 0
      %6973 = vmatpush1.bf16.msra.mxu0 0
      %6974 = vmatprep.subr.bf16.mxu0 0
      %6975 = vmatpush1.bf16.msra.mxu0 0
      %6976 = vmatprep.subr.bf16.mxu0 0
      %6977 = vmatpush1.bf16.msra.mxu0 0
      %6978 = vmatprep.subr.bf16.mxu0 0
      %6979 = vmatpush1.bf16.msra.mxu0 0
      %6980 = vmatprep.subr.bf16.mxu0 0
      %6981 = vmatpush1.bf16.msra.mxu0 0
      %6982 = vmatprep.subr.bf16.mxu0 0
      %6983 = vmatpush1.bf16.msra.mxu0 0
      %6984 = vmatprep.subr.bf16.mxu0 0
      %6985 = vmatpush1.bf16.msra.mxu0 0
      %6986 = vmatprep.subr.bf16.mxu0 0
      %6987 = vmatpush1.bf16.msra.mxu0 0
      %6988 = vmatprep.mubr.bf16.mxu0 0
      %6989 = vmatmul.mubr.bf16.gmra.mrb[0].mxu0 %v6930
      %v6990 = vpop.f32.mrb[0].mxu0
      %v6991 = vadd.f32 0.0, %v6990
      %v6992 = vpop.f32.mrb[0].mxu0
      %v6993 = vpop.f32.mrb[0].mxu0
      %v6994 = vadd.f32 0.0, %v6993
      %v6995 = vpop.f32.mrb[0].mxu0
      %6996 = vmatprep.mubr.bf16.mxu0 0
      %6997 = vmatmul.mubr.bf16.gmra.mrb[0].mxu0 %v6933
      %v6998 = vpop.f32.mrb[0].mxu0
      %v6999 = vadd.f32 0.0, %v6998
      %v7000 = vpop.f32.mrb[0].mxu0
      %v7001 = vpop.f32.mrb[0].mxu0
      %v7002 = vadd.f32 0.0, %v7001
      %v7003 = vpop.f32.mrb[0].mxu0
      %7004 = vmatprep.mubr.bf16.mxu0 0
      %7005 = vmatmul.mubr.bf16.gmra.mrb[0].mxu0 %v6936
      %v7006 = vpop.f32.mrb[0].mxu0
      %v7007 = vadd.f32 0.0, %v7006
      %v7008 = vpop.f32.mrb[0].mxu0
      %v7009 = vpop.f32.mrb[0].mxu0
      %v7010 = vadd.f32 0.0, %v7009
      %v7011 = vpop.f32.mrb[0].mxu0
      %7012 = vmatprep.mubr.bf16.mxu0 0
      %7013 = vmatmul.mubr.bf16.gmra.mrb[0].mxu0 %v6939
      %v7014 = vpop.f32.mrb[0].mxu0
      %v7015 = vadd.f32 0.0, %v7014
      %v7016 = vpop.f32.mrb[0].mxu0
      %v7017 = vpop.f32.mrb[0].mxu0
      %v7018 = vadd.f32 0.0, %v7017
      %v7019 = vpop.f32.mrb[0].mxu0
      %7020 = vmatprep.mubr.bf16.mxu0 0
      %7021 = vmatmul.mubr.bf16.gmra.mrb[0].mxu0 %v6942
      %v7022 = vpop.f32.mrb[0].mxu0
      %v7023 = vadd.f32 0.0, %v7022
      %v7024 = vpop.f32.mrb[0].mxu0
      %v7025 = vpop.f32.mrb[0].mxu0
      %v7026 = vadd.f32 0.0, %v7025
      %v7027 = vpop.f32.mrb[0].mxu0
      %7028 = vmatprep.mubr.bf16.mxu0 0
      %7029 = vmatmul.mubr.bf16.gmra.mrb[0].mxu0 %v6945
      %v7030 = vpop.f32.mrb[0].mxu0
      %v7031 = vadd.f32 0.0, %v7030
      %v7032 = vpop.f32.mrb[0].mxu0
      %v7033 = vpop.f32.mrb[0].mxu0
      %v7034 = vadd.f32 0.0, %v7033
      %v7035 = vpop.f32.mrb[0].mxu0
      %7036 = vmatprep.mubr.bf16.mxu0 0
      %7037 = vmatmul.mubr.bf16.gmra.mrb[0].mxu0 %v6948
      %v7038 = vpop.f32.mrb[0].mxu0
      %v7039 = vadd.f32 0.0, %v7038
      %v7040 = vpop.f32.mrb[0].mxu0
      %v7041 = vpop.f32.mrb[0].mxu0
      %v7042 = vadd.f32 0.0, %v7041
      %v7043 = vpop.f32.mrb[0].mxu0
      %7044 = vmatprep.mubr.bf16.mxu0 0
      %7045 = vmatmul.mubr.bf16.gmra.mrb[0].mxu0 %v6951
      %v7046 = vpop.f32.mrb[0].mxu0
      %v7047 = vadd.f32 0.0, %v7046
      %v7048 = vpop.f32.mrb[0].mxu0
      %v7049 = vpop.f32.mrb[0].mxu0
      %v7050 = vadd.f32 0.0, %v7049
      %v7051 = vpop.f32.mrb[0].mxu0
      %7052 = vdwg.mxu0
      %v7053 = vadd.f32 %v6671, %v6991
      %v7054 = vadd.f32 %v6672, %v6994
      %v7055 = vadd.f32 %v6673, %v6999
      %v7056 = vadd.f32 %v6674, %v7002
      %v7057 = vadd.f32 %v6675, %v7007
      %v7058 = vadd.f32 %v6676, %v7010
      %v7059 = vadd.f32 %v6677, %v7015
      %v7060 = vadd.f32 %v6678, %v7018
      %v7061 = vadd.f32 %v6679, %v7023
      %v7062 = vadd.f32 %v6680, %v7026
      %v7063 = vadd.f32 %v6681, %v7031
      %v7064 = vadd.f32 %v6682, %v7034
      %v7065 = vadd.f32 %v6683, %v7039
      %v7066 = vadd.f32 %v6684, %v7042
      %v7067 = vadd.f32 %v6685, %v7047
      %v7068 = vadd.f32 %v6686, %v7050
      %v7069 = vld [vmem:[%s6488] sm:$0xe]
      %v7070 = vld [vmem:[%s6488 + $0xc] sm:$0xe]
      %v7071 = vld [vmem:[%s6488 + $0x18] sm:$0xe]
      %v7072 = vld [vmem:[%s6488 + $0x24] sm:$0xe]
      %v7073 = vld [vmem:[%s6488 + $0x30] sm:$0xe]
      %v7074 = vld [vmem:[%s6488 + $0x3c] sm:$0xe]
      %v7075 = vld [vmem:[%s6488 + $0x48] sm:$0xe]
      %v7076 = vld [vmem:[%s6488 + $0x54] sm:$0xe]
      %v7101 = vrot.slane %v7069, 5
      %v7102 = vrot.slane %v7101, 4
      %v7103 = vrot.slane %v6688, 5
      %v7104 = vsel %vm6265, %v7102, %v7103
      %v7105 = vrot.slane %v7103, 4
      %v7106 = vrot.slane %v6689, 5
      %v7107 = vsel %vm6265, %v7105, %v7106
      %v7108 = vrot.slane %v7070, 5
      %v7109 = vrot.slane %v7108, 4
      %v7110 = vrot.slane %v6691, 5
      %v7111 = vsel %vm6265, %v7109, %v7110
      %v7112 = vrot.slane %v7110, 4
      %v7113 = vrot.slane %v6692, 5
      %v7114 = vsel %vm6265, %v7112, %v7113
      %v7115 = vrot.slane %v7071, 5
      %v7116 = vrot.slane %v7115, 4
      %v7117 = vrot.slane %v6694, 5
      %v7118 = vsel %vm6265, %v7116, %v7117
      %v7119 = vrot.slane %v7117, 4
      %v7120 = vrot.slane %v6695, 5
      %v7121 = vsel %vm6265, %v7119, %v7120
      %v7122 = vrot.slane %v7072, 5
      %v7123 = vrot.slane %v7122, 4
      %v7124 = vrot.slane %v6697, 5
      %v7125 = vsel %vm6265, %v7123, %v7124
      %v7126 = vrot.slane %v7124, 4
      %v7127 = vrot.slane %v6698, 5
      %v7128 = vsel %vm6265, %v7126, %v7127
      %v7129 = vrot.slane %v7073, 5
      %v7130 = vrot.slane %v7129, 4
      %v7131 = vrot.slane %v6700, 5
      %v7132 = vsel %vm6265, %v7130, %v7131
      %v7133 = vrot.slane %v7131, 4
      %v7134 = vrot.slane %v6701, 5
      %v7135 = vsel %vm6265, %v7133, %v7134
      %v7136 = vrot.slane %v7074, 5
      %v7137 = vrot.slane %v7136, 4
      %v7138 = vrot.slane %v6703, 5
      %v7139 = vsel %vm6265, %v7137, %v7138
      %v7140 = vrot.slane %v7138, 4
      %v7141 = vrot.slane %v6704, 5
      %v7142 = vsel %vm6265, %v7140, %v7141
      %v7143 = vrot.slane %v7075, 5
      %v7144 = vrot.slane %v7143, 4
      %v7145 = vrot.slane %v6706, 5
      %v7146 = vsel %vm6265, %v7144, %v7145
      %v7147 = vrot.slane %v7145, 4
      %v7148 = vrot.slane %v6707, 5
      %v7149 = vsel %vm6265, %v7147, %v7148
      %v7150 = vrot.slane %v7076, 5
      %v7151 = vrot.slane %v7150, 4
      %v7152 = vrot.slane %v6709, 5
      %v7153 = vsel %vm6265, %v7151, %v7152
      %v7154 = vrot.slane %v7152, 4
      %v7155 = vrot.slane %v6710, 5
      %v7156 = vsel %vm6265, %v7154, %v7155
      %s7157 = scalar_lea.vmem %s6, 10
      %v7158 = vld [vmem:[%s7157] sm:$0x3]
      %v7159 = vunpack.c.l.b16 %v7104
      %v7160 = vunpack.c.l.b16 %v7107
      %v7161 = vunpack.c.l.b16 %v7111
      %v7162 = vunpack.c.l.b16 %v7114
      %v7163 = vunpack.c.l.b16 %v7118
      %v7164 = vunpack.c.l.b16 %v7121
      %v7165 = vunpack.c.l.b16 %v7125
      %v7166 = vunpack.c.l.b16 %v7128
      %v7167 = vunpack.c.l.b16 %v7132
      %v7168 = vunpack.c.l.b16 %v7135
      %v7169 = vunpack.c.l.b16 %v7139
      %v7170 = vunpack.c.l.b16 %v7142
      %v7171 = vunpack.c.l.b16 %v7146
      %v7172 = vunpack.c.l.b16 %v7149
      %v7173 = vunpack.c.l.b16 %v7153
      %v7174 = vunpack.c.l.b16 %v7156
      %v7175 = vpack.c.b16 %v7160, %v7159
      %v7176 = vpack.c.b16 %v7162, %v7161
      %v7177 = vpack.c.b16 %v7164, %v7163
      %v7178 = vpack.c.b16 %v7166, %v7165
      %v7179 = vpack.c.b16 %v7168, %v7167
      %v7180 = vpack.c.b16 %v7170, %v7169
      %v7181 = vpack.c.b16 %v7172, %v7171
      %v7182 = vpack.c.b16 %v7174, %v7173
      %v7184 = vsel %vm883, %v7175, 0
      %v7187 = vsel %vm883, %v7176, 0
      %v7190 = vsel %vm883, %v7177, 0
      %v7193 = vsel %vm883, %v7178, 0
      %v7196 = vsel %vm883, %v7179, 0
      %v7199 = vsel %vm883, %v7180, 0
      %v7202 = vsel %vm883, %v7181, 0
      %v7205 = vsel %vm883, %v7182, 0
      %v7208 = vsel %vm613, %v7158, 0
      %7210 = vmatprep.subr.bf16.mxu0 0
      %7211 = vmatpush1.bf16.msra.mxu0 %v7208
      %7212 = vmatprep.subr.bf16.mxu0 0
      %7213 = vmatpush1.bf16.msra.mxu0 0
      %7214 = vmatprep.subr.bf16.mxu0 0
      %7215 = vmatpush1.bf16.msra.mxu0 0
      %7216 = vmatprep.subr.bf16.mxu0 0
      %7217 = vmatpush1.bf16.msra.mxu0 0
      %7218 = vmatprep.subr.bf16.mxu0 0
      %7219 = vmatpush1.bf16.msra.mxu0 0
      %7220 = vmatprep.subr.bf16.mxu0 0
      %7221 = vmatpush1.bf16.msra.mxu0 0
      %7222 = vmatprep.subr.bf16.mxu0 0
      %7223 = vmatpush1.bf16.msra.mxu0 0
      %7224 = vmatprep.subr.bf16.mxu0 0
      %7225 = vmatpush1.bf16.msra.mxu0 0
      %7226 = vmatprep.subr.bf16.mxu0 0
      %7227 = vmatpush1.bf16.msra.mxu0 0
      %7228 = vmatprep.subr.bf16.mxu0 0
      %7229 = vmatpush1.bf16.msra.mxu0 0
      %7230 = vmatprep.subr.bf16.mxu0 0
      %7231 = vmatpush1.bf16.msra.mxu0 0
      %7232 = vmatprep.subr.bf16.mxu0 0
      %7233 = vmatpush1.bf16.msra.mxu0 0
      %7234 = vmatprep.subr.bf16.mxu0 0
      %7235 = vmatpush1.bf16.msra.mxu0 0
      %7236 = vmatprep.subr.bf16.mxu0 0
      %7237 = vmatpush1.bf16.msra.mxu0 0
      %7238 = vmatprep.subr.bf16.mxu0 0
      %7239 = vmatpush1.bf16.msra.mxu0 0
      %7240 = vmatprep.subr.bf16.mxu0 0
      %7241 = vmatpush1.bf16.msra.mxu0 0
      %7242 = vmatprep.mubr.bf16.mxu0 0
      %7243 = vmatmul.mubr.bf16.gmra.mrb[0].mxu0 %v7184
      %v7244 = vpop.f32.mrb[0].mxu0
      %v7245 = vadd.f32 0.0, %v7244
      %v7246 = vpop.f32.mrb[0].mxu0
      %v7247 = vpop.f32.mrb[0].mxu0
      %v7248 = vadd.f32 0.0, %v7247
      %v7249 = vpop.f32.mrb[0].mxu0
      %7250 = vmatprep.mubr.bf16.mxu0 0
      %7251 = vmatmul.mubr.bf16.gmra.mrb[0].mxu0 %v7187
      %v7252 = vpop.f32.mrb[0].mxu0
      %v7253 = vadd.f32 0.0, %v7252
      %v7254 = vpop.f32.mrb[0].mxu0
      %v7255 = vpop.f32.mrb[0].mxu0
      %v7256 = vadd.f32 0.0, %v7255
      %v7257 = vpop.f32.mrb[0].mxu0
      %7258 = vmatprep.mubr.bf16.mxu0 0
      %7259 = vmatmul.mubr.bf16.gmra.mrb[0].mxu0 %v7190
      %v7260 = vpop.f32.mrb[0].mxu0
      %v7261 = vadd.f32 0.0, %v7260
      %v7262 = vpop.f32.mrb[0].mxu0
      %v7263 = vpop.f32.mrb[0].mxu0
      %v7264 = vadd.f32 0.0, %v7263
      %v7265 = vpop.f32.mrb[0].mxu0
      %7266 = vmatprep.mubr.bf16.mxu0 0
      %7267 = vmatmul.mubr.bf16.gmra.mrb[0].mxu0 %v7193
      %v7268 = vpop.f32.mrb[0].mxu0
      %v7269 = vadd.f32 0.0, %v7268
      %v7270 = vpop.f32.mrb[0].mxu0
      %v7271 = vpop.f32.mrb[0].mxu0
      %v7272 = vadd.f32 0.0, %v7271
      %v7273 = vpop.f32.mrb[0].mxu0
      %7274 = vmatprep.mubr.bf16.mxu0 0
      %7275 = vmatmul.mubr.bf16.gmra.mrb[0].mxu0 %v7196
      %v7276 = vpop.f32.mrb[0].mxu0
      %v7277 = vadd.f32 0.0, %v7276
      %v7278 = vpop.f32.mrb[0].mxu0
      %v7279 = vpop.f32.mrb[0].mxu0
      %v7280 = vadd.f32 0.0, %v7279
      %v7281 = vpop.f32.mrb[0].mxu0
      %7282 = vmatprep.mubr.bf16.mxu0 0
      %7283 = vmatmul.mubr.bf16.gmra.mrb[0].mxu0 %v7199
      %v7284 = vpop.f32.mrb[0].mxu0
      %v7285 = vadd.f32 0.0, %v7284
      %v7286 = vpop.f32.mrb[0].mxu0
      %v7287 = vpop.f32.mrb[0].mxu0
      %v7288 = vadd.f32 0.0, %v7287
      %v7289 = vpop.f32.mrb[0].mxu0
      %7290 = vmatprep.mubr.bf16.mxu0 0
      %7291 = vmatmul.mubr.bf16.gmra.mrb[0].mxu0 %v7202
      %v7292 = vpop.f32.mrb[0].mxu0
      %v7293 = vadd.f32 0.0, %v7292
      %v7294 = vpop.f32.mrb[0].mxu0
      %v7295 = vpop.f32.mrb[0].mxu0
      %v7296 = vadd.f32 0.0, %v7295
      %v7297 = vpop.f32.mrb[0].mxu0
      %7298 = vmatprep.mubr.bf16.mxu0 0
      %7299 = vmatmul.mubr.bf16.gmra.mrb[0].mxu0 %v7205
      %v7300 = vpop.f32.mrb[0].mxu0
      %v7301 = vadd.f32 0.0, %v7300
      %v7302 = vpop.f32.mrb[0].mxu0
      %v7303 = vpop.f32.mrb[0].mxu0
      %v7304 = vadd.f32 0.0, %v7303
      %v7305 = vpop.f32.mrb[0].mxu0
      %7306 = vdwg.mxu0
      %v7307 = vadd.f32 %v7053, %v7245
      %v7308 = vadd.f32 %v7054, %v7248
      %v7309 = vadd.f32 %v7055, %v7253
      %v7310 = vadd.f32 %v7056, %v7256
      %v7311 = vadd.f32 %v7057, %v7261
      %v7312 = vadd.f32 %v7058, %v7264
      %v7313 = vadd.f32 %v7059, %v7269
      %v7314 = vadd.f32 %v7060, %v7272
      %v7315 = vadd.f32 %v7061, %v7277
      %v7316 = vadd.f32 %v7062, %v7280
      %v7317 = vadd.f32 %v7063, %v7285
      %v7318 = vadd.f32 %v7064, %v7288
      %v7319 = vadd.f32 %v7065, %v7293
      %v7320 = vadd.f32 %v7066, %v7296
      %v7321 = vadd.f32 %v7067, %v7301
      %v7322 = vadd.f32 %v7068, %v7304
      %s7323 = scalar_lea.vmem [#allocation2], 24
      %v7324 = vld [vmem:[%s7323] sm:$0xf]
      %v7325 = vld [vmem:[%s7323 + $0x4] sm:$0xf]
      %v7326 = vld [vmem:[%s7323 + $0xc] sm:$0xf]
      %v7327 = vld [vmem:[%s7323 + $0x10] sm:$0xf]
      %v7328 = vld [vmem:[%s7323 + $0x18] sm:$0xf]
      %v7329 = vld [vmem:[%s7323 + $0x1c] sm:$0xf]
      %v7330 = vld [vmem:[%s7323 + $0x24] sm:$0xf]
      %v7331 = vld [vmem:[%s7323 + $0x28] sm:$0xf]
      %v7332 = vld [vmem:[%s7323 + $0x30] sm:$0xf]
      %v7333 = vld [vmem:[%s7323 + $0x34] sm:$0xf]
      %v7334 = vld [vmem:[%s7323 + $0x3c] sm:$0xf]
      %v7335 = vld [vmem:[%s7323 + $0x40] sm:$0xf]
      %v7336 = vld [vmem:[%s7323 + $0x48] sm:$0xf]
      %v7337 = vld [vmem:[%s7323 + $0x4c] sm:$0xf]
      %v7338 = vld [vmem:[%s7323 + $0x54] sm:$0xf]
      %v7339 = vld [vmem:[%s7323 + $0x58] sm:$0xf]
      %s7340 = scalar_lea.vmem %s6, 12
      %v7341 = vld [vmem:[%s7340] sm:$0x3]
      %v7358 = vunpack.c.l.b16 %v7324
      %v7359 = vunpack.c.l.b16 %v7325
      %v7360 = vunpack.c.l.b16 %v7326
      %v7361 = vunpack.c.l.b16 %v7327
      %v7362 = vunpack.c.l.b16 %v7328
      %v7363 = vunpack.c.l.b16 %v7329
      %v7364 = vunpack.c.l.b16 %v7330
      %v7365 = vunpack.c.l.b16 %v7331
      %v7366 = vunpack.c.l.b16 %v7332
      %v7367 = vunpack.c.l.b16 %v7333
      %v7368 = vunpack.c.l.b16 %v7334
      %v7369 = vunpack.c.l.b16 %v7335
      %v7370 = vunpack.c.l.b16 %v7336
      %v7371 = vunpack.c.l.b16 %v7337
      %v7372 = vunpack.c.l.b16 %v7338
      %v7373 = vunpack.c.l.b16 %v7339
      %v7374 = vpack.c.b16 %v7359, %v7358
      %v7375 = vpack.c.b16 %v7361, %v7360
      %v7376 = vpack.c.b16 %v7363, %v7362
      %v7377 = vpack.c.b16 %v7365, %v7364
      %v7378 = vpack.c.b16 %v7367, %v7366
      %v7379 = vpack.c.b16 %v7369, %v7368
      %v7380 = vpack.c.b16 %v7371, %v7370
      %v7381 = vpack.c.b16 %v7373, %v7372
      %v7383 = vsel %vm883, %v7374, 0
      %v7386 = vsel %vm883, %v7375, 0
      %v7389 = vsel %vm883, %v7376, 0
      %v7392 = vsel %vm883, %v7377, 0
      %v7395 = vsel %vm883, %v7378, 0
      %v7398 = vsel %vm883, %v7379, 0
      %v7401 = vsel %vm883, %v7380, 0
      %v7404 = vsel %vm883, %v7381, 0
      %v7407 = vsel %vm613, %v7341, 0
      %7409 = vmatprep.subr.bf16.mxu0 0
      %7410 = vmatpush1.bf16.msra.mxu0 %v7407
      %7411 = vmatprep.subr.bf16.mxu0 0
      %7412 = vmatpush1.bf16.msra.mxu0 0
      %7413 = vmatprep.subr.bf16.mxu0 0
      %7414 = vmatpush1.bf16.msra.mxu0 0
      %7415 = vmatprep.subr.bf16.mxu0 0
      %7416 = vmatpush1.bf16.msra.mxu0 0
      %7417 = vmatprep.subr.bf16.mxu0 0
      %7418 = vmatpush1.bf16.msra.mxu0 0
      %7419 = vmatprep.subr.bf16.mxu0 0
      %7420 = vmatpush1.bf16.msra.mxu0 0
      %7421 = vmatprep.subr.bf16.mxu0 0
      %7422 = vmatpush1.bf16.msra.mxu0 0
      %7423 = vmatprep.subr.bf16.mxu0 0
      %7424 = vmatpush1.bf16.msra.mxu0 0
      %7425 = vmatprep.subr.bf16.mxu0 0
      %7426 = vmatpush1.bf16.msra.mxu0 0
      %7427 = vmatprep.subr.bf16.mxu0 0
      %7428 = vmatpush1.bf16.msra.mxu0 0
      %7429 = vmatprep.subr.bf16.mxu0 0
      %7430 = vmatpush1.bf16.msra.mxu0 0
      %7431 = vmatprep.subr.bf16.mxu0 0
      %7432 = vmatpush1.bf16.msra.mxu0 0
      %7433 = vmatprep.subr.bf16.mxu0 0
      %7434 = vmatpush1.bf16.msra.mxu0 0
      %7435 = vmatprep.subr.bf16.mxu0 0
      %7436 = vmatpush1.bf16.msra.mxu0 0
      %7437 = vmatprep.subr.bf16.mxu0 0
      %7438 = vmatpush1.bf16.msra.mxu0 0
      %7439 = vmatprep.subr.bf16.mxu0 0
      %7440 = vmatpush1.bf16.msra.mxu0 0
      %7441 = vmatprep.mubr.bf16.mxu0 0
      %7442 = vmatmul.mubr.bf16.gmra.mrb[0].mxu0 %v7383
      %v7443 = vpop.f32.mrb[0].mxu0
      %v7444 = vadd.f32 0.0, %v7443
      %v7445 = vpop.f32.mrb[0].mxu0
      %v7446 = vpop.f32.mrb[0].mxu0
      %v7447 = vadd.f32 0.0, %v7446
      %v7448 = vpop.f32.mrb[0].mxu0
      %7449 = vmatprep.mubr.bf16.mxu0 0
      %7450 = vmatmul.mubr.bf16.gmra.mrb[0].mxu0 %v7386
      %v7451 = vpop.f32.mrb[0].mxu0
      %v7452 = vadd.f32 0.0, %v7451
      %v7453 = vpop.f32.mrb[0].mxu0
      %v7454 = vpop.f32.mrb[0].mxu0
      %v7455 = vadd.f32 0.0, %v7454
      %v7456 = vpop.f32.mrb[0].mxu0
      %7457 = vmatprep.mubr.bf16.mxu0 0
      %7458 = vmatmul.mubr.bf16.gmra.mrb[0].mxu0 %v7389
      %v7459 = vpop.f32.mrb[0].mxu0
      %v7460 = vadd.f32 0.0, %v7459
      %v7461 = vpop.f32.mrb[0].mxu0
      %v7462 = vpop.f32.mrb[0].mxu0
      %v7463 = vadd.f32 0.0, %v7462
      %v7464 = vpop.f32.mrb[0].mxu0
      %7465 = vmatprep.mubr.bf16.mxu0 0
      %7466 = vmatmul.mubr.bf16.gmra.mrb[0].mxu0 %v7392
      %v7467 = vpop.f32.mrb[0].mxu0
      %v7468 = vadd.f32 0.0, %v7467
      %v7469 = vpop.f32.mrb[0].mxu0
      %v7470 = vpop.f32.mrb[0].mxu0
      %v7471 = vadd.f32 0.0, %v7470
      %v7472 = vpop.f32.mrb[0].mxu0
      %7473 = vmatprep.mubr.bf16.mxu0 0
      %7474 = vmatmul.mubr.bf16.gmra.mrb[0].mxu0 %v7395
      %v7475 = vpop.f32.mrb[0].mxu0
      %v7476 = vadd.f32 0.0, %v7475
      %v7477 = vpop.f32.mrb[0].mxu0
      %v7478 = vpop.f32.mrb[0].mxu0
      %v7479 = vadd.f32 0.0, %v7478
      %v7480 = vpop.f32.mrb[0].mxu0
      %7481 = vmatprep.mubr.bf16.mxu0 0
      %7482 = vmatmul.mubr.bf16.gmra.mrb[0].mxu0 %v7398
      %v7483 = vpop.f32.mrb[0].mxu0
      %v7484 = vadd.f32 0.0, %v7483
      %v7485 = vpop.f32.mrb[0].mxu0
      %v7486 = vpop.f32.mrb[0].mxu0
      %v7487 = vadd.f32 0.0, %v7486
      %v7488 = vpop.f32.mrb[0].mxu0
      %7489 = vmatprep.mubr.bf16.mxu0 0
      %7490 = vmatmul.mubr.bf16.gmra.mrb[0].mxu0 %v7401
      %v7491 = vpop.f32.mrb[0].mxu0
      %v7492 = vadd.f32 0.0, %v7491
      %v7493 = vpop.f32.mrb[0].mxu0
      %v7494 = vpop.f32.mrb[0].mxu0
      %v7495 = vadd.f32 0.0, %v7494
      %v7496 = vpop.f32.mrb[0].mxu0
      %7497 = vmatprep.mubr.bf16.mxu0 0
      %7498 = vmatmul.mubr.bf16.gmra.mrb[0].mxu0 %v7404
      %v7499 = vpop.f32.mrb[0].mxu0
      %v7500 = vadd.f32 0.0, %v7499
      %v7501 = vpop.f32.mrb[0].mxu0
      %v7502 = vpop.f32.mrb[0].mxu0
      %v7503 = vadd.f32 0.0, %v7502
      %v7504 = vpop.f32.mrb[0].mxu0
      %7505 = vdwg.mxu0
      %v7506 = vadd.f32 %v7307, %v7444
      %v7507 = vadd.f32 %v7308, %v7447
      %v7508 = vadd.f32 %v7309, %v7452
      %v7509 = vadd.f32 %v7310, %v7455
      %v7510 = vadd.f32 %v7311, %v7460
      %v7511 = vadd.f32 %v7312, %v7463
      %v7512 = vadd.f32 %v7313, %v7468
      %v7513 = vadd.f32 %v7314, %v7471
      %v7514 = vadd.f32 %v7315, %v7476
      %v7515 = vadd.f32 %v7316, %v7479
      %v7516 = vadd.f32 %v7317, %v7484
      %v7517 = vadd.f32 %v7318, %v7487
      %v7518 = vadd.f32 %v7319, %v7492
      %v7519 = vadd.f32 %v7320, %v7495
      %v7520 = vadd.f32 %v7321, %v7500
      %v7521 = vadd.f32 %v7322, %v7503
      %v7522 = vld [vmem:[%s7323] sm:$0xf]
      %v7523 = vld [vmem:[%s7323 + $0x4] sm:$0xf]
      %v7524 = vld [vmem:[%s7323 + $0x8] sm:$0x1]
      %v7525 = vld [vmem:[%s7323 + $0xc] sm:$0xf]
      %v7526 = vld [vmem:[%s7323 + $0x10] sm:$0xf]
      %v7527 = vld [vmem:[%s7323 + $0x14] sm:$0x1]
      %v7528 = vld [vmem:[%s7323 + $0x18] sm:$0xf]
      %v7529 = vld [vmem:[%s7323 + $0x1c] sm:$0xf]
      %v7530 = vld [vmem:[%s7323 + $0x20] sm:$0x1]
      %v7531 = vld [vmem:[%s7323 + $0x24] sm:$0xf]
      %v7532 = vld [vmem:[%s7323 + $0x28] sm:$0xf]
      %v7533 = vld [vmem:[%s7323 + $0x2c] sm:$0x1]
      %v7534 = vld [vmem:[%s7323 + $0x30] sm:$0xf]
      %v7535 = vld [vmem:[%s7323 + $0x34] sm:$0xf]
      %v7536 = vld [vmem:[%s7323 + $0x38] sm:$0x1]
      %v7537 = vld [vmem:[%s7323 + $0x3c] sm:$0xf]
      %v7538 = vld [vmem:[%s7323 + $0x40] sm:$0xf]
      %v7539 = vld [vmem:[%s7323 + $0x44] sm:$0x1]
      %v7540 = vld [vmem:[%s7323 + $0x48] sm:$0xf]
      %v7541 = vld [vmem:[%s7323 + $0x4c] sm:$0xf]
      %v7542 = vld [vmem:[%s7323 + $0x50] sm:$0x1]
      %v7543 = vld [vmem:[%s7323 + $0x54] sm:$0xf]
      %v7544 = vld [vmem:[%s7323 + $0x58] sm:$0xf]
      %v7545 = vld [vmem:[%s7323 + $0x5c] sm:$0x1]
      %v7547 = vshrl.u32 %v7522, 16
      %v7549 = vrot.slane %v7547, 4
      %v7550 = vshll.u32 %v7522, 16
      %v7552 = vrot.slane %v7550, 5
      %v7553 = vor.u32 %v7549, %v7552
      %v7554 = vrot.slane %v7553, 4
      %v7556 = vshll.u32 %v7523, 16
      %v7558 = vrot.slane %v7556, 5
      %v7559 = vsel %vm5872, %v7554, %v7558
      %v7560 = vshrl.u32 %v7523, 16
      %v7562 = vrot.slane %v7560, 4
      %v7563 = vor.u32 %v7562, %v7558
      %v7564 = vrot.slane %v7563, 4
      %v7566 = vshll.u32 %v7524, 16
      %v7568 = vrot.slane %v7566, 5
      %v7569 = vsel %vm5872, %v7564, %v7568
      %v7571 = vshrl.u32 %v7525, 16
      %v7573 = vrot.slane %v7571, 4
      %v7574 = vshll.u32 %v7525, 16
      %v7576 = vrot.slane %v7574, 5
      %v7577 = vor.u32 %v7573, %v7576
      %v7578 = vrot.slane %v7577, 4
      %v7580 = vshll.u32 %v7526, 16
      %v7582 = vrot.slane %v7580, 5
      %v7583 = vsel %vm5872, %v7578, %v7582
      %v7584 = vshrl.u32 %v7526, 16
      %v7586 = vrot.slane %v7584, 4
      %v7587 = vor.u32 %v7586, %v7582
      %v7588 = vrot.slane %v7587, 4
      %v7590 = vshll.u32 %v7527, 16
      %v7592 = vrot.slane %v7590, 5
      %v7593 = vsel %vm5872, %v7588, %v7592
      %v7595 = vshrl.u32 %v7528, 16
      %v7597 = vrot.slane %v7595, 4
      %v7598 = vshll.u32 %v7528, 16
      %v7600 = vrot.slane %v7598, 5
      %v7601 = vor.u32 %v7597, %v7600
      %v7602 = vrot.slane %v7601, 4
      %v7604 = vshll.u32 %v7529, 16
      %v7606 = vrot.slane %v7604, 5
      %v7607 = vsel %vm5872, %v7602, %v7606
      %v7608 = vshrl.u32 %v7529, 16
      %v7610 = vrot.slane %v7608, 4
      %v7611 = vor.u32 %v7610, %v7606
      %v7612 = vrot.slane %v7611, 4
      %v7614 = vshll.u32 %v7530, 16
      %v7616 = vrot.slane %v7614, 5
      %v7617 = vsel %vm5872, %v7612, %v7616
      %v7619 = vshrl.u32 %v7531, 16
      %v7621 = vrot.slane %v7619, 4
      %v7622 = vshll.u32 %v7531, 16
      %v7624 = vrot.slane %v7622, 5
      %v7625 = vor.u32 %v7621, %v7624
      %v7626 = vrot.slane %v7625, 4
      %v7628 = vshll.u32 %v7532, 16
      %v7630 = vrot.slane %v7628, 5
      %v7631 = vsel %vm5872, %v7626, %v7630
      %v7632 = vshrl.u32 %v7532, 16
      %v7634 = vrot.slane %v7632, 4
      %v7635 = vor.u32 %v7634, %v7630
      %v7636 = vrot.slane %v7635, 4
      %v7638 = vshll.u32 %v7533, 16
      %v7640 = vrot.slane %v7638, 5
      %v7641 = vsel %vm5872, %v7636, %v7640
      %v7643 = vshrl.u32 %v7534, 16
      %v7645 = vrot.slane %v7643, 4
      %v7646 = vshll.u32 %v7534, 16
      %v7648 = vrot.slane %v7646, 5
      %v7649 = vor.u32 %v7645, %v7648
      %v7650 = vrot.slane %v7649, 4
      %v7652 = vshll.u32 %v7535, 16
      %v7654 = vrot.slane %v7652, 5
      %v7655 = vsel %vm5872, %v7650, %v7654
      %v7656 = vshrl.u32 %v7535, 16
      %v7658 = vrot.slane %v7656, 4
      %v7659 = vor.u32 %v7658, %v7654
      %v7660 = vrot.slane %v7659, 4
      %v7662 = vshll.u32 %v7536, 16
      %v7664 = vrot.slane %v7662, 5
      %v7665 = vsel %vm5872, %v7660, %v7664
      %v7667 = vshrl.u32 %v7537, 16
      %v7669 = vrot.slane %v7667, 4
      %v7670 = vshll.u32 %v7537, 16
      %v7672 = vrot.slane %v7670, 5
      %v7673 = vor.u32 %v7669, %v7672
      %v7674 = vrot.slane %v7673, 4
      %v7676 = vshll.u32 %v7538, 16
      %v7678 = vrot.slane %v7676, 5
      %v7679 = vsel %vm5872, %v7674, %v7678
      %v7680 = vshrl.u32 %v7538, 16
      %v7682 = vrot.slane %v7680, 4
      %v7683 = vor.u32 %v7682, %v7678
      %v7684 = vrot.slane %v7683, 4
      %v7686 = vshll.u32 %v7539, 16
      %v7688 = vrot.slane %v7686, 5
      %v7689 = vsel %vm5872, %v7684, %v7688
      %v7691 = vshrl.u32 %v7540, 16
      %v7693 = vrot.slane %v7691, 4
      %v7694 = vshll.u32 %v7540, 16
      %v7696 = vrot.slane %v7694, 5
      %v7697 = vor.u32 %v7693, %v7696
      %v7698 = vrot.slane %v7697, 4
      %v7700 = vshll.u32 %v7541, 16
      %v7702 = vrot.slane %v7700, 5
      %v7703 = vsel %vm5872, %v7698, %v7702
      %v7704 = vshrl.u32 %v7541, 16
      %v7706 = vrot.slane %v7704, 4
      %v7707 = vor.u32 %v7706, %v7702
      %v7708 = vrot.slane %v7707, 4
      %v7710 = vshll.u32 %v7542, 16
      %v7712 = vrot.slane %v7710, 5
      %v7713 = vsel %vm5872, %v7708, %v7712
      %v7715 = vshrl.u32 %v7543, 16
      %v7717 = vrot.slane %v7715, 4
      %v7718 = vshll.u32 %v7543, 16
      %v7720 = vrot.slane %v7718, 5
      %v7721 = vor.u32 %v7717, %v7720
      %v7722 = vrot.slane %v7721, 4
      %v7724 = vshll.u32 %v7544, 16
      %v7726 = vrot.slane %v7724, 5
      %v7727 = vsel %vm5872, %v7722, %v7726
      %v7728 = vshrl.u32 %v7544, 16
      %v7730 = vrot.slane %v7728, 4
      %v7731 = vor.u32 %v7730, %v7726
      %v7732 = vrot.slane %v7731, 4
      %v7734 = vshll.u32 %v7545, 16
      %v7736 = vrot.slane %v7734, 5
      %v7737 = vsel %vm5872, %v7732, %v7736
      %s7738 = scalar_lea.vmem %s6, 14
      %v7739 = vld [vmem:[%s7738] sm:$0x3]
      %v7740 = vunpack.c.l.b16 %v7559
      %v7741 = vunpack.c.l.b16 %v7569
      %v7742 = vunpack.c.l.b16 %v7583
      %v7743 = vunpack.c.l.b16 %v7593
      %v7744 = vunpack.c.l.b16 %v7607
      %v7745 = vunpack.c.l.b16 %v7617
      %v7746 = vunpack.c.l.b16 %v7631
      %v7747 = vunpack.c.l.b16 %v7641
      %v7748 = vunpack.c.l.b16 %v7655
      %v7749 = vunpack.c.l.b16 %v7665
      %v7750 = vunpack.c.l.b16 %v7679
      %v7751 = vunpack.c.l.b16 %v7689
      %v7752 = vunpack.c.l.b16 %v7703
      %v7753 = vunpack.c.l.b16 %v7713
      %v7754 = vunpack.c.l.b16 %v7727
      %v7755 = vunpack.c.l.b16 %v7737
      %v7756 = vpack.c.b16 %v7741, %v7740
      %v7757 = vpack.c.b16 %v7743, %v7742
      %v7758 = vpack.c.b16 %v7745, %v7744
      %v7759 = vpack.c.b16 %v7747, %v7746
      %v7760 = vpack.c.b16 %v7749, %v7748
      %v7761 = vpack.c.b16 %v7751, %v7750
      %v7762 = vpack.c.b16 %v7753, %v7752
      %v7763 = vpack.c.b16 %v7755, %v7754
      %v7765 = vsel %vm883, %v7756, 0
      %v7768 = vsel %vm883, %v7757, 0
      %v7771 = vsel %vm883, %v7758, 0
      %v7774 = vsel %vm883, %v7759, 0
      %v7777 = vsel %vm883, %v7760, 0
      %v7780 = vsel %vm883, %v7761, 0
      %v7783 = vsel %vm883, %v7762, 0
      %v7786 = vsel %vm883, %v7763, 0
      %v7789 = vsel %vm613, %v7739, 0
      %7791 = vmatprep.subr.bf16.mxu0 0
      %7792 = vmatpush1.bf16.msra.mxu0 %v7789
      %7793 = vmatprep.subr.bf16.mxu0 0
      %7794 = vmatpush1.bf16.msra.mxu0 0
      %7795 = vmatprep.subr.bf16.mxu0 0
      %7796 = vmatpush1.bf16.msra.mxu0 0
      %7797 = vmatprep.subr.bf16.mxu0 0
      %7798 = vmatpush1.bf16.msra.mxu0 0
      %7799 = vmatprep.subr.bf16.mxu0 0
      %7800 = vmatpush1.bf16.msra.mxu0 0
      %7801 = vmatprep.subr.bf16.mxu0 0
      %7802 = vmatpush1.bf16.msra.mxu0 0
      %7803 = vmatprep.subr.bf16.mxu0 0
      %7804 = vmatpush1.bf16.msra.mxu0 0
      %7805 = vmatprep.subr.bf16.mxu0 0
      %7806 = vmatpush1.bf16.msra.mxu0 0
      %7807 = vmatprep.subr.bf16.mxu0 0
      %7808 = vmatpush1.bf16.msra.mxu0 0
      %7809 = vmatprep.subr.bf16.mxu0 0
      %7810 = vmatpush1.bf16.msra.mxu0 0
      %7811 = vmatprep.subr.bf16.mxu0 0
      %7812 = vmatpush1.bf16.msra.mxu0 0
      %7813 = vmatprep.subr.bf16.mxu0 0
      %7814 = vmatpush1.bf16.msra.mxu0 0
      %7815 = vmatprep.subr.bf16.mxu0 0
      %7816 = vmatpush1.bf16.msra.mxu0 0
      %7817 = vmatprep.subr.bf16.mxu0 0
      %7818 = vmatpush1.bf16.msra.mxu0 0
      %7819 = vmatprep.subr.bf16.mxu0 0
      %7820 = vmatpush1.bf16.msra.mxu0 0
      %7821 = vmatprep.subr.bf16.mxu0 0
      %7822 = vmatpush1.bf16.msra.mxu0 0
      %7823 = vmatprep.mubr.bf16.mxu0 0
      %7824 = vmatmul.mubr.bf16.gmra.mrb[0].mxu0 %v7765
      %v7825 = vpop.f32.mrb[0].mxu0
      %v7826 = vadd.f32 0.0, %v7825
      %v7827 = vpop.f32.mrb[0].mxu0
      %v7828 = vpop.f32.mrb[0].mxu0
      %v7829 = vadd.f32 0.0, %v7828
      %v7830 = vpop.f32.mrb[0].mxu0
      %7831 = vmatprep.mubr.bf16.mxu0 0
      %7832 = vmatmul.mubr.bf16.gmra.mrb[0].mxu0 %v7768
      %v7833 = vpop.f32.mrb[0].mxu0
      %v7834 = vadd.f32 0.0, %v7833
      %v7835 = vpop.f32.mrb[0].mxu0
      %v7836 = vpop.f32.mrb[0].mxu0
      %v7837 = vadd.f32 0.0, %v7836
      %v7838 = vpop.f32.mrb[0].mxu0
      %7839 = vmatprep.mubr.bf16.mxu0 0
      %7840 = vmatmul.mubr.bf16.gmra.mrb[0].mxu0 %v7771
      %v7841 = vpop.f32.mrb[0].mxu0
      %v7842 = vadd.f32 0.0, %v7841
      %v7843 = vpop.f32.mrb[0].mxu0
      %v7844 = vpop.f32.mrb[0].mxu0
      %v7845 = vadd.f32 0.0, %v7844
      %v7846 = vpop.f32.mrb[0].mxu0
      %7847 = vmatprep.mubr.bf16.mxu0 0
      %7848 = vmatmul.mubr.bf16.gmra.mrb[0].mxu0 %v7774
      %v7849 = vpop.f32.mrb[0].mxu0
      %v7850 = vadd.f32 0.0, %v7849
      %v7851 = vpop.f32.mrb[0].mxu0
      %v7852 = vpop.f32.mrb[0].mxu0
      %v7853 = vadd.f32 0.0, %v7852
      %v7854 = vpop.f32.mrb[0].mxu0
      %7855 = vmatprep.mubr.bf16.mxu0 0
      %7856 = vmatmul.mubr.bf16.gmra.mrb[0].mxu0 %v7777
      %v7857 = vpop.f32.mrb[0].mxu0
      %v7858 = vadd.f32 0.0, %v7857
      %v7859 = vpop.f32.mrb[0].mxu0
      %v7860 = vpop.f32.mrb[0].mxu0
      %v7861 = vadd.f32 0.0, %v7860
      %v7862 = vpop.f32.mrb[0].mxu0
      %7863 = vmatprep.mubr.bf16.mxu0 0
      %7864 = vmatmul.mubr.bf16.gmra.mrb[0].mxu0 %v7780
      %v7865 = vpop.f32.mrb[0].mxu0
      %v7866 = vadd.f32 0.0, %v7865
      %v7867 = vpop.f32.mrb[0].mxu0
      %v7868 = vpop.f32.mrb[0].mxu0
      %v7869 = vadd.f32 0.0, %v7868
      %v7870 = vpop.f32.mrb[0].mxu0
      %7871 = vmatprep.mubr.bf16.mxu0 0
      %7872 = vmatmul.mubr.bf16.gmra.mrb[0].mxu0 %v7783
      %v7873 = vpop.f32.mrb[0].mxu0
      %v7874 = vadd.f32 0.0, %v7873
      %v7875 = vpop.f32.mrb[0].mxu0
      %v7876 = vpop.f32.mrb[0].mxu0
      %v7877 = vadd.f32 0.0, %v7876
      %v7878 = vpop.f32.mrb[0].mxu0
      %7879 = vmatprep.mubr.bf16.mxu0 0
      %7880 = vmatmul.mubr.bf16.gmra.mrb[0].mxu0 %v7786
      %v7881 = vpop.f32.mrb[0].mxu0
      %v7882 = vadd.f32 0.0, %v7881
      %v7883 = vpop.f32.mrb[0].mxu0
      %v7884 = vpop.f32.mrb[0].mxu0
      %v7885 = vadd.f32 0.0, %v7884
      %v7886 = vpop.f32.mrb[0].mxu0
      %7887 = vdwg.mxu0
      %v7888 = vadd.f32 %v7506, %v7826
      %v7889 = vadd.f32 %v7507, %v7829
      %v7890 = vadd.f32 %v7508, %v7834
      %v7891 = vadd.f32 %v7509, %v7837
      %v7892 = vadd.f32 %v7510, %v7842
      %v7893 = vadd.f32 %v7511, %v7845
      %v7894 = vadd.f32 %v7512, %v7850
      %v7895 = vadd.f32 %v7513, %v7853
      %v7896 = vadd.f32 %v7514, %v7858
      %v7897 = vadd.f32 %v7515, %v7861
      %v7898 = vadd.f32 %v7516, %v7866
      %v7899 = vadd.f32 %v7517, %v7869
      %v7900 = vadd.f32 %v7518, %v7874
      %v7901 = vadd.f32 %v7519, %v7877
      %v7902 = vadd.f32 %v7520, %v7882
      %v7903 = vadd.f32 %v7521, %v7885
      %v7904 = vld [vmem:[%s7323] sm:$0xe]
      %v7905 = vld [vmem:[%s7323 + $0xc] sm:$0xe]
      %v7906 = vld [vmem:[%s7323 + $0x18] sm:$0xe]
      %v7907 = vld [vmem:[%s7323 + $0x24] sm:$0xe]
      %v7908 = vld [vmem:[%s7323 + $0x30] sm:$0xe]
      %v7909 = vld [vmem:[%s7323 + $0x3c] sm:$0xe]
      %v7910 = vld [vmem:[%s7323 + $0x48] sm:$0xe]
      %v7911 = vld [vmem:[%s7323 + $0x54] sm:$0xe]
      %v7936 = vrot.slane %v7904, 5
      %v7937 = vrot.slane %v7936, 4
      %v7938 = vrot.slane %v7523, 5
      %v7939 = vsel %vm6265, %v7937, %v7938
      %v7940 = vrot.slane %v7938, 4
      %v7941 = vrot.slane %v7524, 5
      %v7942 = vsel %vm6265, %v7940, %v7941
      %v7943 = vrot.slane %v7905, 5
      %v7944 = vrot.slane %v7943, 4
      %v7945 = vrot.slane %v7526, 5
      %v7946 = vsel %vm6265, %v7944, %v7945
      %v7947 = vrot.slane %v7945, 4
      %v7948 = vrot.slane %v7527, 5
      %v7949 = vsel %vm6265, %v7947, %v7948
      %v7950 = vrot.slane %v7906, 5
      %v7951 = vrot.slane %v7950, 4
      %v7952 = vrot.slane %v7529, 5
      %v7953 = vsel %vm6265, %v7951, %v7952
      %v7954 = vrot.slane %v7952, 4
      %v7955 = vrot.slane %v7530, 5
      %v7956 = vsel %vm6265, %v7954, %v7955
      %v7957 = vrot.slane %v7907, 5
      %v7958 = vrot.slane %v7957, 4
      %v7959 = vrot.slane %v7532, 5
      %v7960 = vsel %vm6265, %v7958, %v7959
      %v7961 = vrot.slane %v7959, 4
      %v7962 = vrot.slane %v7533, 5
      %v7963 = vsel %vm6265, %v7961, %v7962
      %v7964 = vrot.slane %v7908, 5
      %v7965 = vrot.slane %v7964, 4
      %v7966 = vrot.slane %v7535, 5
      %v7967 = vsel %vm6265, %v7965, %v7966
      %v7968 = vrot.slane %v7966, 4
      %v7969 = vrot.slane %v7536, 5
      %v7970 = vsel %vm6265, %v7968, %v7969
      %v7971 = vrot.slane %v7909, 5
      %v7972 = vrot.slane %v7971, 4
      %v7973 = vrot.slane %v7538, 5
      %v7974 = vsel %vm6265, %v7972, %v7973
      %v7975 = vrot.slane %v7973, 4
      %v7976 = vrot.slane %v7539, 5
      %v7977 = vsel %vm6265, %v7975, %v7976
      %v7978 = vrot.slane %v7910, 5
      %v7979 = vrot.slane %v7978, 4
      %v7980 = vrot.slane %v7541, 5
      %v7981 = vsel %vm6265, %v7979, %v7980
      %v7982 = vrot.slane %v7980, 4
      %v7983 = vrot.slane %v7542, 5
      %v7984 = vsel %vm6265, %v7982, %v7983
      %v7985 = vrot.slane %v7911, 5
      %v7986 = vrot.slane %v7985, 4
      %v7987 = vrot.slane %v7544, 5
      %v7988 = vsel %vm6265, %v7986, %v7987
      %v7989 = vrot.slane %v7987, 4
      %v7990 = vrot.slane %v7545, 5
      %v7991 = vsel %vm6265, %v7989, %v7990
      %s7992 = scalar_lea.vmem %s6, 16
      %v7993 = vld [vmem:[%s7992] sm:$0x3]
      %v7994 = vunpack.c.l.b16 %v7939
      %v7995 = vunpack.c.l.b16 %v7942
      %v7996 = vunpack.c.l.b16 %v7946
      %v7997 = vunpack.c.l.b16 %v7949
      %v7998 = vunpack.c.l.b16 %v7953
      %v7999 = vunpack.c.l.b16 %v7956
      %v8000 = vunpack.c.l.b16 %v7960
      %v8001 = vunpack.c.l.b16 %v7963
      %v8002 = vunpack.c.l.b16 %v7967
      %v8003 = vunpack.c.l.b16 %v7970
      %v8004 = vunpack.c.l.b16 %v7974
      %v8005 = vunpack.c.l.b16 %v7977
      %v8006 = vunpack.c.l.b16 %v7981
      %v8007 = vunpack.c.l.b16 %v7984
      %v8008 = vunpack.c.l.b16 %v7988
      %v8009 = vunpack.c.l.b16 %v7991
      %v8010 = vpack.c.b16 %v7995, %v7994
      %v8011 = vpack.c.b16 %v7997, %v7996
      %v8012 = vpack.c.b16 %v7999, %v7998
      %v8013 = vpack.c.b16 %v8001, %v8000
      %v8014 = vpack.c.b16 %v8003, %v8002
      %v8015 = vpack.c.b16 %v8005, %v8004
      %v8016 = vpack.c.b16 %v8007, %v8006
      %v8017 = vpack.c.b16 %v8009, %v8008
      %v8019 = vsel %vm883, %v8010, 0
      %v8022 = vsel %vm883, %v8011, 0
      %v8025 = vsel %vm883, %v8012, 0
      %v8028 = vsel %vm883, %v8013, 0
      %v8031 = vsel %vm883, %v8014, 0
      %v8034 = vsel %vm883, %v8015, 0
      %v8037 = vsel %vm883, %v8016, 0
      %v8040 = vsel %vm883, %v8017, 0
      %v8043 = vsel %vm613, %v7993, 0
      %8045 = vmatprep.subr.bf16.mxu0 0
      %8046 = vmatpush1.bf16.msra.mxu0 %v8043
      %8047 = vmatprep.subr.bf16.mxu0 0
      %8048 = vmatpush1.bf16.msra.mxu0 0
      %8049 = vmatprep.subr.bf16.mxu0 0
      %8050 = vmatpush1.bf16.msra.mxu0 0
      %8051 = vmatprep.subr.bf16.mxu0 0
      %8052 = vmatpush1.bf16.msra.mxu0 0
      %8053 = vmatprep.subr.bf16.mxu0 0
      %8054 = vmatpush1.bf16.msra.mxu0 0
      %8055 = vmatprep.subr.bf16.mxu0 0
      %8056 = vmatpush1.bf16.msra.mxu0 0
      %8057 = vmatprep.subr.bf16.mxu0 0
      %8058 = vmatpush1.bf16.msra.mxu0 0
      %8059 = vmatprep.subr.bf16.mxu0 0
      %8060 = vmatpush1.bf16.msra.mxu0 0
      %8061 = vmatprep.subr.bf16.mxu0 0
      %8062 = vmatpush1.bf16.msra.mxu0 0
      %8063 = vmatprep.subr.bf16.mxu0 0
      %8064 = vmatpush1.bf16.msra.mxu0 0
      %8065 = vmatprep.subr.bf16.mxu0 0
      %8066 = vmatpush1.bf16.msra.mxu0 0
      %8067 = vmatprep.subr.bf16.mxu0 0
      %8068 = vmatpush1.bf16.msra.mxu0 0
      %8069 = vmatprep.subr.bf16.mxu0 0
      %8070 = vmatpush1.bf16.msra.mxu0 0
      %8071 = vmatprep.subr.bf16.mxu0 0
      %8072 = vmatpush1.bf16.msra.mxu0 0
      %8073 = vmatprep.subr.bf16.mxu0 0
      %8074 = vmatpush1.bf16.msra.mxu0 0
      %8075 = vmatprep.subr.bf16.mxu0 0
      %8076 = vmatpush1.bf16.msra.mxu0 0
      %8077 = vmatprep.mubr.bf16.mxu0 0
      %8078 = vmatmul.mubr.bf16.gmra.mrb[0].mxu0 %v8019
      %v8079 = vpop.f32.mrb[0].mxu0
      %v8080 = vadd.f32 0.0, %v8079
      %v8081 = vpop.f32.mrb[0].mxu0
      %v8082 = vpop.f32.mrb[0].mxu0
      %v8083 = vadd.f32 0.0, %v8082
      %v8084 = vpop.f32.mrb[0].mxu0
      %8085 = vmatprep.mubr.bf16.mxu0 0
      %8086 = vmatmul.mubr.bf16.gmra.mrb[0].mxu0 %v8022
      %v8087 = vpop.f32.mrb[0].mxu0
      %v8088 = vadd.f32 0.0, %v8087
      %v8089 = vpop.f32.mrb[0].mxu0
      %v8090 = vpop.f32.mrb[0].mxu0
      %v8091 = vadd.f32 0.0, %v8090
      %v8092 = vpop.f32.mrb[0].mxu0
      %8093 = vmatprep.mubr.bf16.mxu0 0
      %8094 = vmatmul.mubr.bf16.gmra.mrb[0].mxu0 %v8025
      %v8095 = vpop.f32.mrb[0].mxu0
      %v8096 = vadd.f32 0.0, %v8095
      %v8097 = vpop.f32.mrb[0].mxu0
      %v8098 = vpop.f32.mrb[0].mxu0
      %v8099 = vadd.f32 0.0, %v8098
      %v8100 = vpop.f32.mrb[0].mxu0
      %8101 = vmatprep.mubr.bf16.mxu0 0
      %8102 = vmatmul.mubr.bf16.gmra.mrb[0].mxu0 %v8028
      %v8103 = vpop.f32.mrb[0].mxu0
      %v8104 = vadd.f32 0.0, %v8103
      %v8105 = vpop.f32.mrb[0].mxu0
      %v8106 = vpop.f32.mrb[0].mxu0
      %v8107 = vadd.f32 0.0, %v8106
      %v8108 = vpop.f32.mrb[0].mxu0
      %8109 = vmatprep.mubr.bf16.mxu0 0
      %8110 = vmatmul.mubr.bf16.gmra.mrb[0].mxu0 %v8031
      %v8111 = vpop.f32.mrb[0].mxu0
      %v8112 = vadd.f32 0.0, %v8111
      %v8113 = vpop.f32.mrb[0].mxu0
      %v8114 = vpop.f32.mrb[0].mxu0
      %v8115 = vadd.f32 0.0, %v8114
      %v8116 = vpop.f32.mrb[0].mxu0
      %8117 = vmatprep.mubr.bf16.mxu0 0
      %8118 = vmatmul.mubr.bf16.gmra.mrb[0].mxu0 %v8034
      %v8119 = vpop.f32.mrb[0].mxu0
      %v8120 = vadd.f32 0.0, %v8119
      %v8121 = vpop.f32.mrb[0].mxu0
      %v8122 = vpop.f32.mrb[0].mxu0
      %v8123 = vadd.f32 0.0, %v8122
      %v8124 = vpop.f32.mrb[0].mxu0
      %8125 = vmatprep.mubr.bf16.mxu0 0
      %8126 = vmatmul.mubr.bf16.gmra.mrb[0].mxu0 %v8037
      %v8127 = vpop.f32.mrb[0].mxu0
      %v8128 = vadd.f32 0.0, %v8127
      %v8129 = vpop.f32.mrb[0].mxu0
      %v8130 = vpop.f32.mrb[0].mxu0
      %v8131 = vadd.f32 0.0, %v8130
      %v8132 = vpop.f32.mrb[0].mxu0
      %8133 = vmatprep.mubr.bf16.mxu0 0
      %8134 = vmatmul.mubr.bf16.gmra.mrb[0].mxu0 %v8040
      %v8135 = vpop.f32.mrb[0].mxu0
      %v8136 = vadd.f32 0.0, %v8135
      %v8137 = vpop.f32.mrb[0].mxu0
      %v8138 = vpop.f32.mrb[0].mxu0
      %v8139 = vadd.f32 0.0, %v8138
      %v8140 = vpop.f32.mrb[0].mxu0
      %8141 = vdwg.mxu0
      %v8142 = vadd.f32 %v7888, %v8080
      %v8143 = vadd.f32 %v7889, %v8083
      %v8144 = vadd.f32 %v7890, %v8088
      %v8145 = vadd.f32 %v7891, %v8091
      %v8146 = vadd.f32 %v7892, %v8096
      %v8147 = vadd.f32 %v7893, %v8099
      %v8148 = vadd.f32 %v7894, %v8104
      %v8149 = vadd.f32 %v7895, %v8107
      %v8150 = vadd.f32 %v7896, %v8112
      %v8151 = vadd.f32 %v7897, %v8115
      %v8152 = vadd.f32 %v7898, %v8120
      %v8153 = vadd.f32 %v7899, %v8123
      %v8154 = vadd.f32 %v7900, %v8128
      %v8155 = vadd.f32 %v7901, %v8131
      %v8156 = vadd.f32 %v7902, %v8136
      %v8157 = vadd.f32 %v7903, %v8139
      %v8158 = vmax.f32 %v8142, 0.0
      %v8159 = vmax.f32 %v8143, 0.0
      %v8160 = vmax.f32 %v8144, 0.0
      %v8161 = vmax.f32 %v8145, 0.0
      %v8162 = vmax.f32 %v8146, 0.0
      %v8163 = vmax.f32 %v8147, 0.0
      %v8164 = vmax.f32 %v8148, 0.0
      %v8165 = vmax.f32 %v8149, 0.0
      %v8166 = vmax.f32 %v8150, 0.0
      %v8167 = vmax.f32 %v8151, 0.0
      %v8168 = vmax.f32 %v8152, 0.0
      %v8169 = vmax.f32 %v8153, 0.0
      %v8170 = vmax.f32 %v8154, 0.0
      %v8171 = vmax.f32 %v8155, 0.0
      %v8172 = vmax.f32 %v8156, 0.0
      %v8173 = vmax.f32 %v8157, 0.0
      %v8174 = vld [vmem:[%s3947 + $0x1] sm:$0xff]
      %v8175 = vld [vmem:[%s3947 + $0x9] sm:$0xff]
      %v8176 = vld [vmem:[%s3947 + $0x19] sm:$0xff]
      %v8177 = vld [vmem:[%s3947 + $0x21] sm:$0xff]
      %v8178 = vld [vmem:[%s3947 + $0x31] sm:$0xff]
      %v8179 = vld [vmem:[%s3947 + $0x39] sm:$0xff]
      %v8180 = vld [vmem:[%s3947 + $0x49] sm:$0xff]
      %v8181 = vld [vmem:[%s3947 + $0x51] sm:$0xff]
      %v8182 = vld [vmem:[%s3947 + $0x61] sm:$0xff]
      %v8183 = vld [vmem:[%s3947 + $0x69] sm:$0xff]
      %v8184 = vld [vmem:[%s3947 + $0x79] sm:$0xff]
      %v8185 = vld [vmem:[%s3947 + $0x81] sm:$0xff]
      %v8186 = vld [vmem:[%s3947 + $0x91] sm:$0xff]
      %v8187 = vld [vmem:[%s3947 + $0x99] sm:$0xff]
      %v8188 = vld [vmem:[%s3947 + $0xa9] sm:$0xff]
      %v8189 = vld [vmem:[%s3947 + $0xb1] sm:$0xff]
      %v8190 = vadd.f32 %v8158, %v8174
      %v8191 = vadd.f32 %v8159, %v8175
      %v8192 = vadd.f32 %v8160, %v8176
      %v8193 = vadd.f32 %v8161, %v8177
      %v8194 = vadd.f32 %v8162, %v8178
      %v8195 = vadd.f32 %v8163, %v8179
      %v8196 = vadd.f32 %v8164, %v8180
      %v8197 = vadd.f32 %v8165, %v8181
      %v8198 = vadd.f32 %v8166, %v8182
      %v8199 = vadd.f32 %v8167, %v8183
      %v8200 = vadd.f32 %v8168, %v8184
      %v8201 = vadd.f32 %v8169, %v8185
      %v8202 = vadd.f32 %v8170, %v8186
      %v8203 = vadd.f32 %v8171, %v8187
      %v8204 = vadd.f32 %v8172, %v8188
      %v8205 = vadd.f32 %v8173, %v8189
      %8206 = vst.msk [vmem:[%s377] sm:$0xff] %vm883, %v8190
      %8207 = vst.msk [vmem:[%s377 + $0x8] sm:$0xff] %vm883, %v8191
      %8208 = vst.msk [vmem:[%s377 + $0x10] sm:$0xff] %vm883, %v8192
      %8209 = vst.msk [vmem:[%s377 + $0x18] sm:$0xff] %vm883, %v8193
      %8210 = vst.msk [vmem:[%s377 + $0x20] sm:$0xff] %vm883, %v8194
      %8211 = vst.msk [vmem:[%s377 + $0x28] sm:$0xff] %vm883, %v8195
      %8212 = vst.msk [vmem:[%s377 + $0x30] sm:$0xff] %vm883, %v8196
      %8213 = vst.msk [vmem:[%s377 + $0x38] sm:$0xff] %vm883, %v8197
      %8214 = vst.msk [vmem:[%s377 + $0x40] sm:$0xff] %vm883, %v8198
      %8215 = vst.msk [vmem:[%s377 + $0x48] sm:$0xff] %vm883, %v8199
      %8216 = vst.msk [vmem:[%s377 + $0x50] sm:$0xff] %vm883, %v8200
      %8217 = vst.msk [vmem:[%s377 + $0x58] sm:$0xff] %vm883, %v8201
      %8218 = vst.msk [vmem:[%s377 + $0x60] sm:$0xff] %vm883, %v8202
      %8219 = vst.msk [vmem:[%s377 + $0x68] sm:$0xff] %vm883, %v8203
      %8220 = vst.msk [vmem:[%s377 + $0x70] sm:$0xff] %vm883, %v8204
      %8221 = vst.msk [vmem:[%s377 + $0x78] sm:$0xff] %vm883, %v8205
      %s8222 = smul.u32 8, %s24
      %p8223 = scmp.lt.s32.totalorder %s23, 1
      %s8224 = scalar_select %p8223, %s23, 1
      %p8225 = scmp.lt.s32.totalorder %s8222, 15
      %s8226 = scalar_select %p8225, %s8222, 15
      %s8227 = smul.addr %s8226, 2
      %s8228 = smul.addr %s8224, 32
      %s8229 = sadd.s32 %s8227, %s8228
      %s8230 = smul.addr %s8229, 8
      %s8231 = scalar_lea.vmem %s8, %s8230
      // Predicated region
      $region61: #{tpu_custom_call.1} parent=51 // pred_check
        %p8232 = pneg %p233
      $region62: #{tpu_custom_call.1} parent=51 // pred_check_branch
        %8234 = sbr.rel (%p8232) target = $region64
      $region63: #{tpu_custom_call.1} parent=51 // pred_region
        %s8235 = smul.u32 8, %s24
      $region64: #{tpu_custom_call.1} parent=51 // pred_fallthru
        _
    $region52: #{tpu_custom_call.1} parent=5 // pred_fallthru
      _
    %p8236 = scmp.le.s32.totalorder 2, %s14
    // Predicated region
    $region65: #{tpu_custom_call.1} parent=5 // pred_check
      %p8237 = pneg %p8236
    $region66: #{tpu_custom_call.1} parent=5 // pred_check_branch
      %8239 = sbr.rel (%p8237) target = $region68
    $region67: #{tpu_custom_call.1} parent=5 // pred_region
      %s8240 = ssub.s32 %s14, 2
      // Predicated region
      $region69: #{tpu_custom_call.1} parent=67 // pred_check
        %p8241 = pneg %p239
      $region70: #{tpu_custom_call.1} parent=67 // pred_check_branch
        %8243 = sbr.rel (%p8241) target = $region72
      $region71: #{tpu_custom_call.1} parent=67 // pred_region
        %s8244 = smul.u32 8, %s26
        %p8245 = scmp.lt.s32.totalorder %s25, 1
        %s8246 = scalar_select %p8245, %s25, 1
        %p8247 = scmp.lt.s32.totalorder %s8244, 15
        %s8248 = scalar_select %p8247, %s8244, 15
        %s8249 = smul.addr %s8248, 2
        %s8250 = smul.addr %s8246, 32
        %s8251 = sadd.s32 %s8249, %s8250
        %s8252 = smul.addr %s8251, 8
        %s8253 = scalar_lea.vmem %s8, %s8252
      $region72: #{tpu_custom_call.1} parent=67 // pred_fallthru
        _
    $region68: #{tpu_custom_call.1} parent=5 // pred_fallthru
      _
  $region6: #{tpu_custom_call.1} parent=0 // loop_footer
    %s18 = sadd.s32 1, %s14
  $region7: #{tpu_custom_call.1} parent=0 // loop_footer_branch
    %13 = sbr.rel target = $region3
  $region8: #{tpu_custom_call.1} parent=0 // loop_exit
    _

</llo_original>
